<compile_context>
chip_gen: v7x
topology: tpu7x:2x2x1
jax: 0.10.0
libtpu: 0.0.40
codegen_flags: <defaults>
</compile_context>

<pallas_src>
import functools

import jax
import jax.numpy as jnp
from jax.experimental import pallas as pl
from jax.experimental.pallas import tpu as pltpu


def _round_up(x, m):
    return (x + m - 1) // m * m


# ----------------------------------------------------------------------------
# Shared helpers
# ----------------------------------------------------------------------------
def _fold_bn(w, bn, cp, ocp):
    """Fold eval-mode BN into conv weight/bias; pad channels ic->cp, oc->ocp."""
    oc, ic, kh, kw = w.shape
    gamma, beta, mean, var = bn
    scale = gamma / jnp.sqrt(var + 1e-5)
    w_f = w * scale[:, None, None, None]
    b_f = beta - mean * scale
    wt = jnp.transpose(w_f, (2, 3, 1, 0)).reshape(kh * kw, ic, oc)
    wt = jnp.pad(wt, ((0, 0), (0, cp - ic), (0, ocp - oc))).astype(jnp.bfloat16)
    bias = jnp.pad(b_f, (0, ocp - oc)).reshape(1, ocp).astype(jnp.float32)
    return wt, bias


def _make_groups(kh, kw, stride):
    """Taps grouped by (stride-phase, phase-row offset); one slab load per group.

    Returns (groups, used_phases) where each group is
      (phase, row_off, col_off0, extra_cols, ((tap_index, col_off), ...)).
    """
    s = stride
    taps = [((ky % s) * s + (kx % s), ky // s, kx // s, ky * kw + kx)
            for ky in range(kh) for kx in range(kw)]
    used = sorted({p for (p, _, _, _) in taps})
    remap = {p: i for i, p in enumerate(used)}
    grouped = {}
    for (p, a, b, t) in taps:
        grouped.setdefault((remap[p], a), []).append((t, b))
    groups = []
    for (p, a), tb in sorted(grouped.items()):
        b0 = min(b for _, b in tb)
        extra = max(b for _, b in tb) - b0
        groups.append((p, a, b0, extra, tuple(tb)))
    return tuple(groups), used


def _pad_phases(x, pad, stride, used, pad_value=0.0):
    """Spatial pad, then stride-phase decompose (1x HBM cost, contiguous windows)."""
    xp = jnp.pad(x, ((0, 0), (pad, pad), (pad, pad), (0, 0)), constant_values=pad_value)
    s = stride
    all_ph = [xp[:, ry::s, rx::s, :] for ry in range(s) for rx in range(s)]
    phases = [all_ph[p] for p in used]
    n = x.shape[0]
    phase_h = tuple(ph.shape[1] for ph in phases)
    phases3d = [ph.reshape(n * ph.shape[1], ph.shape[2], ph.shape[3]) for ph in phases]
    return phases3d, phase_h


# ----------------------------------------------------------------------------
# Pallas kernel: direct conv ("tap GEMM"), M = rows*ow folded, fused BN/res/ReLU
# ----------------------------------------------------------------------------
def _conv_tap_kernel(*refs, groups, phase_h, rows, ow, relu, has_res, n_phases):
    phase_refs = refs[:n_phases]                 # (N*Hp, Wp, Cp) bf16, VMEM resident
    w_ref = refs[n_phases]                       # (kh*kw, Cp, tn) bf16
    b_ref = refs[n_phases + 1]                   # (1, tn) f32
    res_ref = refs[n_phases + 2] if has_res else None
    o_ref = refs[-1]                             # (1, rows, ow, tn)

    nn = pl.program_id(1)                        # batch index
    rr = pl.program_id(2)                        # output-row chunk
    tn = o_ref.shape[-1]
    m = rows * ow

    acc = jnp.zeros((m, tn), jnp.float32)
    for (p, a, b0, extra, taps) in groups:
        row0 = nn * phase_h[p] + rr * rows + a
        # One slab load per (phase, kernel-row) group; kw offsets sliced in-register.
        slab = phase_refs[p][pl.ds(row0, rows), pl.ds(b0, ow + extra), :]
        cp = slab.shape[-1]
        for (t, b) in taps:
            win = slab[:, b - b0:b - b0 + ow, :].reshape(m, cp)
            acc = acc + jnp.dot(win, w_ref[t], preferred_element_type=jnp.float32)
    acc = acc + b_ref[...]                       # folded BN bias
    out = acc.reshape(rows, ow, tn)
    if has_res:
        out = out + res_ref[0].astype(jnp.float32)
    if relu:
        out = jnp.maximum(out, 0.0)
    o_ref[0] = out.astype(o_ref.dtype)


def conv_bn_act_pallas(x, w, bn, *, stride, pad, relu, residual=None):
    n, h, wd, cp = x.shape
    oc, _, kh, kw = w.shape
    oh = (h + 2 * pad - kh) // stride + 1
    ow = (wd + 2 * pad - kw) // stride + 1
    ocp = _round_up(oc, 128)
    tn = 128

    wt, bias = _fold_bn(w, bn, cp, ocp)
    groups, used = _make_groups(kh, kw, stride)
    phases, phase_h = _pad_phases(x, pad, stride, used)

    # Row chunking: largest divisor of oh with rows*ow <= 128 (caps per-dot M / vregs).
    max_rows = max(1, 128 // ow)
    rows = 1
    for d in range(1, oh + 1):
        if oh % d == 0 and d <= max_rows:
            rows = d
    n_chunks = oh // rows

    has_res = residual is not None
    if has_res:
        assert residual.shape == (n, oh, ow, ocp), (residual.shape, (n, oh, ow, ocp))

    grid = (ocp // tn, n, n_chunks)              # oc tile slowest; weights stay resident
    in_specs = [pl.BlockSpec(ph.shape, lambda j, nn, r: (0, 0, 0)) for ph in phases]
    in_specs.append(pl.BlockSpec((kh * kw, cp, tn), lambda j, nn, r: (0, 0, j)))
    in_specs.append(pl.BlockSpec((1, tn), lambda j, nn, r: (0, j)))
    inputs = list(phases) + [wt, bias]
    if has_res:
        in_specs.append(pl.BlockSpec((1, rows, ow, tn), lambda j, nn, r: (nn, r, 0, j)))
        inputs.append(residual)

    return pl.pallas_call(
        functools.partial(_conv_tap_kernel, groups=groups, phase_h=phase_h,
                          rows=rows, ow=ow, relu=relu, has_res=has_res,
                          n_phases=len(phases)),
        out_shape=jax.ShapeDtypeStruct((n, oh, ow, ocp), jnp.bfloat16),
        grid=grid,
        in_specs=in_specs,
        out_specs=pl.BlockSpec((1, rows, ow, tn), lambda j, nn, r: (nn, r, 0, j)),
        compiler_params=pltpu.CompilerParams(
            dimension_semantics=("parallel", "parallel", "parallel")),
    )(*inputs)


# ----------------------------------------------------------------------------
# Flattened-GEMM conv path for tiny layers (1x1 downsamples, <=2x2 spatial, the stem)
# ----------------------------------------------------------------------------
def conv_bn_act_gemm(x, w, bn, *, stride, pad, relu, residual=None):
    n, h, wd, cp = x.shape
    oc, _, kh, kw = w.shape
    oh = (h + 2 * pad - kh) // stride + 1
    ow = (wd + 2 * pad - kw) // stride + 1
    ocp = _round_up(oc, 128)
    wt, bias = _fold_bn(w, bn, cp, ocp)
    xp = jnp.pad(x, ((0, 0), (pad, pad), (pad, pad), (0, 0)))
    cols = [xp[:, ky:ky + stride * (oh - 1) + 1:stride,
               kx:kx + stride * (ow - 1) + 1:stride, :]
            for ky in range(kh) for kx in range(kw)]
    patches = jnp.concatenate(cols, axis=-1).reshape(n * oh * ow, kh * kw * cp)
    y = jnp.dot(patches, wt.reshape(kh * kw * cp, ocp),
                preferred_element_type=jnp.float32) + bias
    y = y.reshape(n, oh, ow, ocp)
    if residual is not None:
        y = y + residual.astype(jnp.float32)
    if relu:
        y = jnp.maximum(y, 0.0)
    return y.astype(jnp.bfloat16)


def conv_bn_act(x, w, bn, *, stride, pad, relu, residual=None):
    _, h, wd, cp = x.shape
    _, _, kh, kw = w.shape
    oh = (h + 2 * pad - kh) // stride + 1
    ow = (wd + 2 * pad - kw) // stride + 1
    # 1x1 downsamples, <=2x2-spatial outputs (layer3/layer4) and sub-lane-K inputs (the
    # 7x7/C_in=3 stem) collapse to a single flattened GEMM per the performance review.
    if kh == 1 or oh * ow <= 4 or cp % 128 != 0:
        return conv_bn_act_gemm(x, w, bn, stride=stride, pad=pad, relu=relu,
                                residual=residual)
    return conv_bn_act_pallas(x, w, bn, stride=stride, pad=pad, relu=relu,
                              residual=residual)


# ----------------------------------------------------------------------------
# Pallas kernel: 3x3 stride-2 max pool (all output rows per image in one step)
# ----------------------------------------------------------------------------
def _maxpool_kernel(*refs, groups, phase_h, oh, ow, n_phases):
    phase_refs = refs[:n_phases]
    o_ref = refs[-1]                             # (1, oh, ow, C)
    nn = pl.program_id(0)
    m = None
    for (p, a, b0, extra, taps) in groups:
        slab = phase_refs[p][pl.ds(nn * phase_h[p] + a, oh), pl.ds(b0, ow + extra), :]
        for (_, b) in taps:
            win = slab[:, b - b0:b - b0 + ow, :]
            m = win if m is None else jnp.maximum(m, win)
    o_ref[0] = m


def maxpool3x3s2(x):
    n, h, w, c = x.shape
    k, s, pad = 3, 2, 1
    oh = (h + 2 * pad - k) // s + 1
    ow = (w + 2 * pad - k) // s + 1
    groups, used = _make_groups(k, k, s)
    phases, phase_h = _pad_phases(x, pad, s, used, pad_value=-jnp.inf)
    return pl.pallas_call(
        functools.partial(_maxpool_kernel, groups=groups, phase_h=phase_h,
                          oh=oh, ow=ow, n_phases=len(phases)),
        out_shape=jax.ShapeDtypeStruct((n, oh, ow, c), x.dtype),
        grid=(n,),
        in_specs=[pl.BlockSpec(ph.shape, lambda nn: (0, 0, 0)) for ph in phases],
        out_specs=pl.BlockSpec((1, oh, ow, c), lambda nn: (nn, 0, 0, 0)),
        compiler_params=pltpu.CompilerParams(dimension_semantics=("parallel",)),
    )(*phases)


# ----------------------------------------------------------------------------
# ResNet-18 forward
# ----------------------------------------------------------------------------
def basic_block(x, params, stride):
    identity = x
    out = conv_bn_act(x, params["conv1_w"], params["bn1"],
                      stride=stride, pad=1, relu=True)
    if "down_w" in params:
        identity = conv_bn_act(x, params["down_w"], params["down_bn"],
                               stride=stride, pad=0, relu=False)
    # Second conv fuses the residual add + ReLU into its epilogue.
    out = conv_bn_act(out, params["conv2_w"], params["bn2"],
                      stride=1, pad=1, relu=True, residual=identity)
    return out


def resnet18_forward(x, p):
    x = conv_bn_act(x, p["conv1_w"], p["bn1"], stride=2, pad=3, relu=True)   # stem (GEMM)
    x = maxpool3x3s2(x)
    for name, stride in (("layer1", 1), ("layer2", 2), ("layer3", 2), ("layer4", 2)):
        blocks = p[name]
        x = basic_block(x, blocks[0], stride)
        x = basic_block(x, blocks[1], 1)
    # Global average pool (spatial is 1x1 at this input size) — glue.
    x = jnp.mean(x.astype(jnp.float32), axis=(1, 2))          # (N, 512)
    # resnet18.fc (512 -> 1000): M=2 rows — plain matmul per perf review.
    x = x @ p["fc_w"].T + p["fc_b"]
    return x


def cnn_forward(x_nchw, p):
    """PyTorch CNN.forward: resnet18(x) then Linear(1000, 2)."""
    x = jnp.transpose(x_nchw, (0, 2, 3, 1)).astype(jnp.bfloat16)   # NCHW -> NHWC bf16
    x = resnet18_forward(x, p)
    # CNN.fc (1000 -> 2): M=2, N=2 — plain matmul per perf review.
    x = x @ p["head_w"].T + p["head_b"]
    return x


# ----------------------------------------------------------------------------
# Deterministic synthetic parameters (shapes of torchvision resnet18 + fc head)
# ----------------------------------------------------------------------------
def init_params(key):
    keys = iter(jax.random.split(key, 64))

    def conv(oc, ic, kh, kw):
        fan_in = ic * kh * kw
        return jax.random.normal(next(keys), (oc, ic, kh, kw), jnp.float32) / jnp.sqrt(fan_in)

    def bn(c):
        return (jnp.ones((c,), jnp.float32), jnp.zeros((c,), jnp.float32),
                jnp.zeros((c,), jnp.float32), jnp.ones((c,), jnp.float32))

    def block(in_c, out_c, downsample):
        d = {"conv1_w": conv(out_c, in_c, 3, 3), "bn1": bn(out_c),
             "conv2_w": conv(out_c, out_c, 3, 3), "bn2": bn(out_c)}
        if downsample:
            d["down_w"] = conv(out_c, in_c, 1, 1)
            d["down_bn"] = bn(out_c)
        return d

    def linear(out_f, in_f):
        w = jax.random.normal(next(keys), (out_f, in_f), jnp.float32) / jnp.sqrt(in_f)
        b = jnp.zeros((out_f,), jnp.float32)
        return w, b

    p = {"conv1_w": conv(64, 3, 7, 7), "bn1": bn(64)}
    p["layer1"] = [block(64, 64, False), block(64, 64, False)]
    p["layer2"] = [block(64, 128, True), block(128, 128, False)]
    p["layer3"] = [block(128, 256, True), block(256, 256, False)]
    p["layer4"] = [block(256, 512, True), block(512, 512, False)]
    p["fc_w"], p["fc_b"] = linear(1000, 512)     # resnet18.fc
    p["head_w"], p["head_b"] = linear(2, 1000)   # CNN.fc
    return p


if __name__ == "__main__":
    key = jax.random.PRNGKey(0)
    pkey, xkey = jax.random.split(key)
    params = init_params(pkey)
    # Small NCHW input (PyTorch convention): batch=2, 3 channels, 32x32 spatial.
    x = jax.random.normal(xkey, (2, 3, 32, 32), jnp.float32)
    fwd = jax.jit(cnn_forward)
    out = jax.block_until_ready(fwd(x, params))
    assert out.shape == (2, 2), out.shape
    assert bool(jnp.all(jnp.isfinite(out)))
    print("KERNEL_OK")
</pallas_src>

<mosaic_0001>
module attributes {stable_mosaic.version = 11 : i64} {
  func.func @_maxpool_kernel(%arg0: i32, %arg1: memref<18x9x128xbf16, #tpu.memory_space<vmem>>, %arg2: memref<18x9x128xbf16, #tpu.memory_space<vmem>>, %arg3: memref<18x9x128xbf16, #tpu.memory_space<vmem>>, %arg4: memref<18x9x128xbf16, #tpu.memory_space<vmem>>, %arg5: memref<1x8x8x128xbf16, #tpu.memory_space<vmem>>) attributes {dimension_semantics = [#tpu.dimension_semantics<parallel>], iteration_bounds = array<i64: 2>, scalar_prefetch = 0 : i64, scratch_operands = 0 : i64, tpu.core_type = #tpu.core_type<tc>, window_params = [{pipeline_mode = #tpu.pipeline_mode<synchronous>, transform_indices = @transform_0, window_bounds = array<i64: 18, 9, 128>}, {pipeline_mode = #tpu.pipeline_mode<synchronous>, transform_indices = @transform_1, window_bounds = array<i64: 18, 9, 128>}, {pipeline_mode = #tpu.pipeline_mode<synchronous>, transform_indices = @transform_2, window_bounds = array<i64: 18, 9, 128>}, {pipeline_mode = #tpu.pipeline_mode<synchronous>, transform_indices = @transform_3, window_bounds = array<i64: 18, 9, 128>}, {transform_indices = @transform_4, window_bounds = array<i64: 1, 8, 8, 128>}]} {
    %c9_i32 = arith.constant 9 : i32
    %0 = arith.muli %arg0, %c9_i32 : i32
    %c0_i32 = arith.constant 0 : i32
    %1 = arith.addi %0, %c0_i32 : i32
    %2 = arith.index_cast %1 : i32 to index
    %c0 = arith.constant 0 : index
    %c0_0 = arith.constant 0 : index
    %3 = vector.load %arg1[%2, %c0, %c0_0] : memref<18x9x128xbf16, #tpu.memory_space<vmem>>, vector<8x9x128xbf16>
    %4 = vector.extract_strided_slice %3 {offsets = [0, 0, 0], sizes = [8, 8, 128], strides = [1, 1, 1]} : vector<8x9x128xbf16> to vector<8x8x128xbf16>
    %5 = vector.extract_strided_slice %3 {offsets = [0, 1, 0], sizes = [8, 8, 128], strides = [1, 1, 1]} : vector<8x9x128xbf16> to vector<8x8x128xbf16>
    %6 = arith.maximumf %4, %5 : vector<8x8x128xbf16>
    %c9_i32_1 = arith.constant 9 : i32
    %7 = arith.muli %arg0, %c9_i32_1 : i32
    %c1_i32 = arith.constant 1 : i32
    %8 = arith.addi %7, %c1_i32 : i32
    %9 = arith.index_cast %8 : i32 to index
    %c0_2 = arith.constant 0 : index
    %c0_3 = arith.constant 0 : index
    %10 = vector.load %arg1[%9, %c0_2, %c0_3] : memref<18x9x128xbf16, #tpu.memory_space<vmem>>, vector<8x9x128xbf16>
    %11 = vector.extract_strided_slice %10 {offsets = [0, 0, 0], sizes = [8, 8, 128], strides = [1, 1, 1]} : vector<8x9x128xbf16> to vector<8x8x128xbf16>
    %12 = arith.maximumf %6, %11 : vector<8x8x128xbf16>
    %13 = vector.extract_strided_slice %10 {offsets = [0, 1, 0], sizes = [8, 8, 128], strides = [1, 1, 1]} : vector<8x9x128xbf16> to vector<8x8x128xbf16>
    %14 = arith.maximumf %12, %13 : vector<8x8x128xbf16>
    %c9_i32_4 = arith.constant 9 : i32
    %15 = arith.muli %arg0, %c9_i32_4 : i32
    %c0_i32_5 = arith.constant 0 : i32
    %16 = arith.addi %15, %c0_i32_5 : i32
    %17 = arith.index_cast %16 : i32 to index
    %c0_6 = arith.constant 0 : index
    %c0_7 = arith.constant 0 : index
    %18 = vector.load %arg2[%17, %c0_6, %c0_7] : memref<18x9x128xbf16, #tpu.memory_space<vmem>>, vector<8x8x128xbf16>
    %19 = arith.maximumf %14, %18 : vector<8x8x128xbf16>
    %c9_i32_8 = arith.constant 9 : i32
    %20 = arith.muli %arg0, %c9_i32_8 : i32
    %c1_i32_9 = arith.constant 1 : i32
    %21 = arith.addi %20, %c1_i32_9 : i32
    %22 = arith.index_cast %21 : i32 to index
    %c0_10 = arith.constant 0 : index
    %c0_11 = arith.constant 0 : index
    %23 = vector.load %arg2[%22, %c0_10, %c0_11] : memref<18x9x128xbf16, #tpu.memory_space<vmem>>, vector<8x8x128xbf16>
    %24 = arith.maximumf %19, %23 : vector<8x8x128xbf16>
    %c9_i32_12 = arith.constant 9 : i32
    %25 = arith.muli %arg0, %c9_i32_12 : i32
    %c0_i32_13 = arith.constant 0 : i32
    %26 = arith.addi %25, %c0_i32_13 : i32
    %27 = arith.index_cast %26 : i32 to index
    %c0_14 = arith.constant 0 : index
    %c0_15 = arith.constant 0 : index
    %28 = vector.load %arg3[%27, %c0_14, %c0_15] : memref<18x9x128xbf16, #tpu.memory_space<vmem>>, vector<8x9x128xbf16>
    %29 = vector.extract_strided_slice %28 {offsets = [0, 0, 0], sizes = [8, 8, 128], strides = [1, 1, 1]} : vector<8x9x128xbf16> to vector<8x8x128xbf16>
    %30 = arith.maximumf %24, %29 : vector<8x8x128xbf16>
    %31 = vector.extract_strided_slice %28 {offsets = [0, 1, 0], sizes = [8, 8, 128], strides = [1, 1, 1]} : vector<8x9x128xbf16> to vector<8x8x128xbf16>
    %32 = arith.maximumf %30, %31 : vector<8x8x128xbf16>
    %c9_i32_16 = arith.constant 9 : i32
    %33 = arith.muli %arg0, %c9_i32_16 : i32
    %c0_i32_17 = arith.constant 0 : i32
    %34 = arith.addi %33, %c0_i32_17 : i32
    %35 = arith.index_cast %34 : i32 to index
    %c0_18 = arith.constant 0 : index
    %c0_19 = arith.constant 0 : index
    %36 = vector.load %arg4[%35, %c0_18, %c0_19] : memref<18x9x128xbf16, #tpu.memory_space<vmem>>, vector<8x8x128xbf16>
    %37 = arith.maximumf %32, %36 : vector<8x8x128xbf16>
    %c0_20 = arith.constant 0 : index
    %c0_21 = arith.constant 0 : index
    %c0_22 = arith.constant 0 : index
    %c0_23 = arith.constant 0 : index
    %38 = vector.load %arg5[%c0_20, %c0_21, %c0_22, %c0_23] : memref<1x8x8x128xbf16, #tpu.memory_space<vmem>>, vector<1x8x8x128xbf16>
    %39 = vector.shape_cast %38 : vector<1x8x8x128xbf16> to vector<8x8x128xbf16>
    %40 = vector.shape_cast %37 : vector<8x8x128xbf16> to vector<1x8x8x128xbf16>
    tpu.vector_store %arg5[%c0_20, %c0_21, %c0_22, %c0_23], %40 {strides = array<i32>} : memref<1x8x8x128xbf16, #tpu.memory_space<vmem>>, vector<1x8x8x128xbf16>,
    return
  }
  func.func @transform_0(%arg0: i32) -> (i32, i32, i32) {
    %c0_i32 = arith.constant 0 : i32
    %c0_i32_0 = arith.constant 0 : i32
    %c0_i32_1 = arith.constant 0 : i32
    %c0_i32_2 = arith.constant 0 : i32
    return %c0_i32, %c0_i32_0, %c0_i32_1 : i32, i32, i32
  }
  func.func @transform_1(%arg0: i32) -> (i32, i32, i32) {
    %c0_i32 = arith.constant 0 : i32
    %c0_i32_0 = arith.constant 0 : i32
    %c0_i32_1 = arith.constant 0 : i32
    %c0_i32_2 = arith.constant 0 : i32
    return %c0_i32, %c0_i32_0, %c0_i32_1 : i32, i32, i32
  }
  func.func @transform_2(%arg0: i32) -> (i32, i32, i32) {
    %c0_i32 = arith.constant 0 : i32
    %c0_i32_0 = arith.constant 0 : i32
    %c0_i32_1 = arith.constant 0 : i32
    %c0_i32_2 = arith.constant 0 : i32
    return %c0_i32, %c0_i32_0, %c0_i32_1 : i32, i32, i32
  }
  func.func @transform_3(%arg0: i32) -> (i32, i32, i32) {
    %c0_i32 = arith.constant 0 : i32
    %c0_i32_0 = arith.constant 0 : i32
    %c0_i32_1 = arith.constant 0 : i32
    %c0_i32_2 = arith.constant 0 : i32
    return %c0_i32, %c0_i32_0, %c0_i32_1 : i32, i32, i32
  }
  func.func @transform_4(%arg0: i32) -> (i32, i32, i32, i32) {
    %c0_i32 = arith.constant 0 : i32
    %c0_i32_0 = arith.constant 0 : i32
    %c0_i32_1 = arith.constant 0 : i32
    %c0_i32_2 = arith.constant 0 : i32
    return %arg0, %c0_i32, %c0_i32_0, %c0_i32_1 : i32, i32, i32, i32
  }
}

module attributes {stable_mosaic.version = 11 : i64} {
  func.func @_conv_tap_kernel(%arg0: i32, %arg1: i32, %arg2: i32, %arg3: memref<20x10x128xbf16, #tpu.memory_space<vmem>>, %arg4: memref<9x128x128xbf16, #tpu.memory_space<vmem>>, %arg5: memref<1x128xf32, #tpu.memory_space<vmem>>, %arg6: memref<1x8x8x128xbf16, #tpu.memory_space<vmem>>) attributes {dimension_semantics = [#tpu.dimension_semantics<parallel>, #tpu.dimension_semantics<parallel>, #tpu.dimension_semantics<parallel>], iteration_bounds = array<i64: 1, 2, 1>, scalar_prefetch = 0 : i64, scratch_operands = 0 : i64, tpu.core_type = #tpu.core_type<tc>, window_params = [{pipeline_mode = #tpu.pipeline_mode<synchronous>, transform_indices = @transform_0, window_bounds = array<i64: 20, 10, 128>}, {transform_indices = @transform_1, window_bounds = array<i64: 9, 128, 128>}, {transform_indices = @transform_2, window_bounds = array<i64: 1, 128>}, {transform_indices = @transform_3, window_bounds = array<i64: 1, 8, 8, 128>}]} {
    %cst = arith.constant 0.000000e+00 : f32
    %0 = vector.broadcast %cst : f32 to vector<64x128xf32>
    %c10_i32 = arith.constant 10 : i32
    %1 = arith.muli %arg1, %c10_i32 : i32
    %c8_i32 = arith.constant 8 : i32
    %2 = arith.muli %arg2, %c8_i32 : i32
    %3 = arith.addi %1, %2 : i32
    %c0_i32 = arith.constant 0 : i32
    %4 = arith.addi %3, %c0_i32 : i32
    %5 = arith.index_cast %4 : i32 to index
    %c0 = arith.constant 0 : index
    %c0_0 = arith.constant 0 : index
    %6 = vector.load %arg3[%5, %c0, %c0_0] : memref<20x10x128xbf16, #tpu.memory_space<vmem>>, vector<8x10x128xbf16>
    %7 = vector.extract_strided_slice %6 {offsets = [0, 0, 0], sizes = [8, 8, 128], strides = [1, 1, 1]} : vector<8x10x128xbf16> to vector<8x8x128xbf16>
    %8 = vector.shape_cast %7 : vector<8x8x128xbf16> to vector<64x128xbf16>
    %c0_1 = arith.constant 0 : index
    %c0_2 = arith.constant 0 : index
    %c0_3 = arith.constant 0 : index
    %9 = vector.load %arg4[%c0_1, %c0_2, %c0_3] : memref<9x128x128xbf16, #tpu.memory_space<vmem>>, vector<1x128x128xbf16>
    %10 = vector.shape_cast %9 : vector<1x128x128xbf16> to vector<128x128xbf16>
    %cst_4 = arith.constant dense<0.000000e+00> : vector<64x128xf32>
    %11 = tpu.matmul %8, %10, %cst_4 {dimension_numbers = #tpu.dot_dimension_numbers<[1], [0], [0], [1], [0, 0, 1, 1], [], []>} : vector<64x128xbf16>, vector<128x128xbf16>, vector<64x128xf32> -> vector<64x128xf32>
    %12 = arith.addf %0, %11 : vector<64x128xf32>
    %13 = vector.extract_strided_slice %6 {offsets = [0, 1, 0], sizes = [8, 8, 128], strides = [1, 1, 1]} : vector<8x10x128xbf16> to vector<8x8x128xbf16>
    %14 = vector.shape_cast %13 : vector<8x8x128xbf16> to vector<64x128xbf16>
    %c1 = arith.constant 1 : index
    %c0_5 = arith.constant 0 : index
    %c0_6 = arith.constant 0 : index
    %15 = vector.load %arg4[%c1, %c0_5, %c0_6] : memref<9x128x128xbf16, #tpu.memory_space<vmem>>, vector<1x128x128xbf16>
    %16 = vector.shape_cast %15 : vector<1x128x128xbf16> to vector<128x128xbf16>
    %cst_7 = arith.constant dense<0.000000e+00> : vector<64x128xf32>
    %17 = tpu.matmul %14, %16, %cst_7 {dimension_numbers = #tpu.dot_dimension_numbers<[1], [0], [0], [1], [0, 0, 1, 1], [], []>} : vector<64x128xbf16>, vector<128x128xbf16>, vector<64x128xf32> -> vector<64x128xf32>
    %18 = arith.addf %12, %17 : vector<64x128xf32>
    %19 = vector.extract_strided_slice %6 {offsets = [0, 2, 0], sizes = [8, 8, 128], strides = [1, 1, 1]} : vector<8x10x128xbf16> to vector<8x8x128xbf16>
    %20 = vector.shape_cast %19 : vector<8x8x128xbf16> to vector<64x128xbf16>
    %c2 = arith.constant 2 : index
    %c0_8 = arith.constant 0 : index
    %c0_9 = arith.constant 0 : index
    %21 = vector.load %arg4[%c2, %c0_8, %c0_9] : memref<9x128x128xbf16, #tpu.memory_space<vmem>>, vector<1x128x128xbf16>
    %22 = vector.shape_cast %21 : vector<1x128x128xbf16> to vector<128x128xbf16>
    %cst_10 = arith.constant dense<0.000000e+00> : vector<64x128xf32>
    %23 = tpu.matmul %20, %22, %cst_10 {dimension_numbers = #tpu.dot_dimension_numbers<[1], [0], [0], [1], [0, 0, 1, 1], [], []>} : vector<64x128xbf16>, vector<128x128xbf16>, vector<64x128xf32> -> vector<64x128xf32>
    %24 = arith.addf %18, %23 : vector<64x128xf32>
    %c10_i32_11 = arith.constant 10 : i32
    %25 = arith.muli %arg1, %c10_i32_11 : i32
    %c8_i32_12 = arith.constant 8 : i32
    %26 = arith.muli %arg2, %c8_i32_12 : i32
    %27 = arith.addi %25, %26 : i32
    %c1_i32 = arith.constant 1 : i32
    %28 = arith.addi %27, %c1_i32 : i32
    %29 = arith.index_cast %28 : i32 to index
    %c0_13 = arith.constant 0 : index
    %c0_14 = arith.constant 0 : index
    %30 = vector.load %arg3[%29, %c0_13, %c0_14] : memref<20x10x128xbf16, #tpu.memory_space<vmem>>, vector<8x10x128xbf16>
    %31 = vector.extract_strided_slice %30 {offsets = [0, 0, 0], sizes = [8, 8, 128], strides = [1, 1, 1]} : vector<8x10x128xbf16> to vector<8x8x128xbf16>
    %32 = vector.shape_cast %31 : vector<8x8x128xbf16> to vector<64x128xbf16>
    %c3 = arith.constant 3 : index
    %c0_15 = arith.constant 0 : index
    %c0_16 = arith.constant 0 : index
    %33 = vector.load %arg4[%c3, %c0_15, %c0_16] : memref<9x128x128xbf16, #tpu.memory_space<vmem>>, vector<1x128x128xbf16>
    %34 = vector.shape_cast %33 : vector<1x128x128xbf16> to vector<128x128xbf16>
    %cst_17 = arith.constant dense<0.000000e+00> : vector<64x128xf32>
    %35 = tpu.matmul %32, %34, %cst_17 {dimension_numbers = #tpu.dot_dimension_numbers<[1], [0], [0], [1], [0, 0, 1, 1], [], []>} : vector<64x128xbf16>, vector<128x128xbf16>, vector<64x128xf32> -> vector<64x128xf32>
    %36 = arith.addf %24, %35 : vector<64x128xf32>
    %37 = vector.extract_strided_slice %30 {offsets = [0, 1, 0], sizes = [8, 8, 128], strides = [1, 1, 1]} : vector<8x10x128xbf16> to vector<8x8x128xbf16>
    %38 = vector.shape_cast %37 : vector<8x8x128xbf16> to vector<64x128xbf16>
    %c4 = arith.constant 4 : index
    %c0_18 = arith.constant 0 : index
    %c0_19 = arith.constant 0 : index
    %39 = vector.load %arg4[%c4, %c0_18, %c0_19] : memref<9x128x128xbf16, #tpu.memory_space<vmem>>, vector<1x128x128xbf16>
    %40 = vector.shape_cast %39 : vector<1x128x128xbf16> to vector<128x128xbf16>
    %cst_20 = arith.constant dense<0.000000e+00> : vector<64x128xf32>
    %41 = tpu.matmul %38, %40, %cst_20 {dimension_numbers = #tpu.dot_dimension_numbers<[1], [0], [0], [1], [0, 0, 1, 1], [], []>} : vector<64x128xbf16>, vector<128x128xbf16>, vector<64x128xf32> -> vector<64x128xf32>
    %42 = arith.addf %36, %41 : vector<64x128xf32>
    %43 = vector.extract_strided_slice %30 {offsets = [0, 2, 0], sizes = [8, 8, 128], strides = [1, 1, 1]} : vector<8x10x128xbf16> to vector<8x8x128xbf16>
    %44 = vector.shape_cast %43 : vector<8x8x128xbf16> to vector<64x128xbf16>
    %c5 = arith.constant 5 : index
    %c0_21 = arith.constant 0 : index
    %c0_22 = arith.constant 0 : index
    %45 = vector.load %arg4[%c5, %c0_21, %c0_22] : memref<9x128x128xbf16, #tpu.memory_space<vmem>>, vector<1x128x128xbf16>
    %46 = vector.shape_cast %45 : vector<1x128x128xbf16> to vector<128x128xbf16>
    %cst_23 = arith.constant dense<0.000000e+00> : vector<64x128xf32>
    %47 = tpu.matmul %44, %46, %cst_23 {dimension_numbers = #tpu.dot_dimension_numbers<[1], [0], [0], [1], [0, 0, 1, 1], [], []>} : vector<64x128xbf16>, vector<128x128xbf16>, vector<64x128xf32> -> vector<64x128xf32>
    %48 = arith.addf %42, %47 : vector<64x128xf32>
    %c10_i32_24 = arith.constant 10 : i32
    %49 = arith.muli %arg1, %c10_i32_24 : i32
    %c8_i32_25 = arith.constant 8 : i32
    %50 = arith.muli %arg2, %c8_i32_25 : i32
    %51 = arith.addi %49, %50 : i32
    %c2_i32 = arith.constant 2 : i32
    %52 = arith.addi %51, %c2_i32 : i32
    %53 = arith.index_cast %52 : i32 to index
    %c0_26 = arith.constant 0 : index
    %c0_27 = arith.constant 0 : index
    %54 = vector.load %arg3[%53, %c0_26, %c0_27] : memref<20x10x128xbf16, #tpu.memory_space<vmem>>, vector<8x10x128xbf16>
    %55 = vector.extract_strided_slice %54 {offsets = [0, 0, 0], sizes = [8, 8, 128], strides = [1, 1, 1]} : vector<8x10x128xbf16> to vector<8x8x128xbf16>
    %56 = vector.shape_cast %55 : vector<8x8x128xbf16> to vector<64x128xbf16>
    %c6 = arith.constant 6 : index
    %c0_28 = arith.constant 0 : index
    %c0_29 = arith.constant 0 : index
    %57 = vector.load %arg4[%c6, %c0_28, %c0_29] : memref<9x128x128xbf16, #tpu.memory_space<vmem>>, vector<1x128x128xbf16>
    %58 = vector.shape_cast %57 : vector<1x128x128xbf16> to vector<128x128xbf16>
    %cst_30 = arith.constant dense<0.000000e+00> : vector<64x128xf32>
    %59 = tpu.matmul %56, %58, %cst_30 {dimension_numbers = #tpu.dot_dimension_numbers<[1], [0], [0], [1], [0, 0, 1, 1], [], []>} : vector<64x128xbf16>, vector<128x128xbf16>, vector<64x128xf32> -> vector<64x128xf32>
    %60 = arith.addf %48, %59 : vector<64x128xf32>
    %61 = vector.extract_strided_slice %54 {offsets = [0, 1, 0], sizes = [8, 8, 128], strides = [1, 1, 1]} : vector<8x10x128xbf16> to vector<8x8x128xbf16>
    %62 = vector.shape_cast %61 : vector<8x8x128xbf16> to vector<64x128xbf16>
    %c7 = arith.constant 7 : index
    %c0_31 = arith.constant 0 : index
    %c0_32 = arith.constant 0 : index
    %63 = vector.load %arg4[%c7, %c0_31, %c0_32] : memref<9x128x128xbf16, #tpu.memory_space<vmem>>, vector<1x128x128xbf16>
    %64 = vector.shape_cast %63 : vector<1x128x128xbf16> to vector<128x128xbf16>
    %cst_33 = arith.constant dense<0.000000e+00> : vector<64x128xf32>
    %65 = tpu.matmul %62, %64, %cst_33 {dimension_numbers = #tpu.dot_dimension_numbers<[1], [0], [0], [1], [0, 0, 1, 1], [], []>} : vector<64x128xbf16>, vector<128x128xbf16>, vector<64x128xf32> -> vector<64x128xf32>
    %66 = arith.addf %60, %65 : vector<64x128xf32>
    %67 = vector.extract_strided_slice %54 {offsets = [0, 2, 0], sizes = [8, 8, 128], strides = [1, 1, 1]} : vector<8x10x128xbf16> to vector<8x8x128xbf16>
    %68 = vector.shape_cast %67 : vector<8x8x128xbf16> to vector<64x128xbf16>
    %c8 = arith.constant 8 : index
    %c0_34 = arith.constant 0 : index
    %c0_35 = arith.constant 0 : index
    %69 = vector.load %arg4[%c8, %c0_34, %c0_35] : memref<9x128x128xbf16, #tpu.memory_space<vmem>>, vector<1x128x128xbf16>
    %70 = vector.shape_cast %69 : vector<1x128x128xbf16> to vector<128x128xbf16>
    %cst_36 = arith.constant dense<0.000000e+00> : vector<64x128xf32>
    %71 = tpu.matmul %68, %70, %cst_36 {dimension_numbers = #tpu.dot_dimension_numbers<[1], [0], [0], [1], [0, 0, 1, 1], [], []>} : vector<64x128xbf16>, vector<128x128xbf16>, vector<64x128xf32> -> vector<64x128xf32>
    %72 = arith.addf %66, %71 : vector<64x128xf32>
    %c0_37 = arith.constant 0 : index
    %c0_38 = arith.constant 0 : index
    %73 = vector.load %arg5[%c0_37, %c0_38] : memref<1x128xf32, #tpu.memory_space<vmem>>, vector<1x128xf32>
    %74 = vector.broadcast %73 : vector<1x128xf32> to vector<64x128xf32>
    %75 = arith.addf %72, %74 : vector<64x128xf32>
    %76 = vector.shape_cast %75 : vector<64x128xf32> to vector<8x8x128xf32>
    %cst_39 = arith.constant 0.000000e+00 : f32
    %77 = vector.broadcast %cst_39 : f32 to vector<8x8x128xf32>
    %78 = arith.maximumf %76, %77 : vector<8x8x128xf32>
    %79 = arith.truncf %78 : vector<8x8x128xf32> to vector<8x8x128xbf16>
    %c0_40 = arith.constant 0 : index
    %c0_41 = arith.constant 0 : index
    %c0_42 = arith.constant 0 : index
    %c0_43 = arith.constant 0 : index
    %80 = vector.load %arg6[%c0_40, %c0_41, %c0_42, %c0_43] : memref<1x8x8x128xbf16, #tpu.memory_space<vmem>>, vector<1x8x8x128xbf16>
    %81 = vector.shape_cast %80 : vector<1x8x8x128xbf16> to vector<8x8x128xbf16>
    %82 = vector.shape_cast %79 : vector<8x8x128xbf16> to vector<1x8x8x128xbf16>
    tpu.vector_store %arg6[%c0_40, %c0_41, %c0_42, %c0_43], %82 {strides = array<i32>} : memref<1x8x8x128xbf16, #tpu.memory_space<vmem>>, vector<1x8x8x128xbf16>,
    return
  }
  func.func @transform_0(%arg0: i32, %arg1: i32, %arg2: i32) -> (i32, i32, i32) {
    %c0_i32 = arith.constant 0 : i32
    %c0_i32_0 = arith.constant 0 : i32
    %c0_i32_1 = arith.constant 0 : i32
    %c0_i32_2 = arith.constant 0 : i32
    return %c0_i32, %c0_i32_0, %c0_i32_1 : i32, i32, i32
  }
  func.func @transform_1(%arg0: i32, %arg1: i32, %arg2: i32) -> (i32, i32, i32) {
    %c0_i32 = arith.constant 0 : i32
    %c0_i32_0 = arith.constant 0 : i32
    %c0_i32_1 = arith.constant 0 : i32
    return %c0_i32, %c0_i32_0, %arg0 : i32, i32, i32
  }
  func.func @transform_2(%arg0: i32, %arg1: i32, %arg2: i32) -> (i32, i32) {
    %c0_i32 = arith.constant 0 : i32
    %c0_i32_0 = arith.constant 0 : i32
    return %c0_i32, %arg0 : i32, i32
  }
  func.func @transform_3(%arg0: i32, %arg1: i32, %arg2: i32) -> (i32, i32, i32, i32) {
    %c0_i32 = arith.constant 0 : i32
    %c0_i32_0 = arith.constant 0 : i32
    return %arg1, %arg2, %c0_i32, %arg0 : i32, i32, i32, i32
  }
}

module attributes {stable_mosaic.version = 11 : i64} {
  func.func @_conv_tap_kernel(%arg0: i32, %arg1: i32, %arg2: i32, %arg3: memref<20x10x128xbf16, #tpu.memory_space<vmem>>, %arg4: memref<9x128x128xbf16, #tpu.memory_space<vmem>>, %arg5: memref<1x128xf32, #tpu.memory_space<vmem>>, %arg6: memref<1x8x8x128xbf16, #tpu.memory_space<vmem>>, %arg7: memref<1x8x8x128xbf16, #tpu.memory_space<vmem>>) attributes {dimension_semantics = [#tpu.dimension_semantics<parallel>, #tpu.dimension_semantics<parallel>, #tpu.dimension_semantics<parallel>], iteration_bounds = array<i64: 1, 2, 1>, scalar_prefetch = 0 : i64, scratch_operands = 0 : i64, tpu.core_type = #tpu.core_type<tc>, window_params = [{pipeline_mode = #tpu.pipeline_mode<synchronous>, transform_indices = @transform_0, window_bounds = array<i64: 20, 10, 128>}, {transform_indices = @transform_1, window_bounds = array<i64: 9, 128, 128>}, {transform_indices = @transform_2, window_bounds = array<i64: 1, 128>}, {transform_indices = @transform_3, window_bounds = array<i64: 1, 8, 8, 128>}, {transform_indices = @transform_4, window_bounds = array<i64: 1, 8, 8, 128>}]} {
    %cst = arith.constant 0.000000e+00 : f32
    %0 = vector.broadcast %cst : f32 to vector<64x128xf32>
    %c10_i32 = arith.constant 10 : i32
    %1 = arith.muli %arg1, %c10_i32 : i32
    %c8_i32 = arith.constant 8 : i32
    %2 = arith.muli %arg2, %c8_i32 : i32
    %3 = arith.addi %1, %2 : i32
    %c0_i32 = arith.constant 0 : i32
    %4 = arith.addi %3, %c0_i32 : i32
    %5 = arith.index_cast %4 : i32 to index
    %c0 = arith.constant 0 : index
    %c0_0 = arith.constant 0 : index
    %6 = vector.load %arg3[%5, %c0, %c0_0] : memref<20x10x128xbf16, #tpu.memory_space<vmem>>, vector<8x10x128xbf16>
    %7 = vector.extract_strided_slice %6 {offsets = [0, 0, 0], sizes = [8, 8, 128], strides = [1, 1, 1]} : vector<8x10x128xbf16> to vector<8x8x128xbf16>
    %8 = vector.shape_cast %7 : vector<8x8x128xbf16> to vector<64x128xbf16>
    %c0_1 = arith.constant 0 : index
    %c0_2 = arith.constant 0 : index
    %c0_3 = arith.constant 0 : index
    %9 = vector.load %arg4[%c0_1, %c0_2, %c0_3] : memref<9x128x128xbf16, #tpu.memory_space<vmem>>, vector<1x128x128xbf16>
    %10 = vector.shape_cast %9 : vector<1x128x128xbf16> to vector<128x128xbf16>
    %cst_4 = arith.constant dense<0.000000e+00> : vector<64x128xf32>
    %11 = tpu.matmul %8, %10, %cst_4 {dimension_numbers = #tpu.dot_dimension_numbers<[1], [0], [0], [1], [0, 0, 1, 1], [], []>} : vector<64x128xbf16>, vector<128x128xbf16>, vector<64x128xf32> -> vector<64x128xf32>
    %12 = arith.addf %0, %11 : vector<64x128xf32>
    %13 = vector.extract_strided_slice %6 {offsets = [0, 1, 0], sizes = [8, 8, 128], strides = [1, 1, 1]} : vector<8x10x128xbf16> to vector<8x8x128xbf16>
    %14 = vector.shape_cast %13 : vector<8x8x128xbf16> to vector<64x128xbf16>
    %c1 = arith.constant 1 : index
    %c0_5 = arith.constant 0 : index
    %c0_6 = arith.constant 0 : index
    %15 = vector.load %arg4[%c1, %c0_5, %c0_6] : memref<9x128x128xbf16, #tpu.memory_space<vmem>>, vector<1x128x128xbf16>
    %16 = vector.shape_cast %15 : vector<1x128x128xbf16> to vector<128x128xbf16>
    %cst_7 = arith.constant dense<0.000000e+00> : vector<64x128xf32>
    %17 = tpu.matmul %14, %16, %cst_7 {dimension_numbers = #tpu.dot_dimension_numbers<[1], [0], [0], [1], [0, 0, 1, 1], [], []>} : vector<64x128xbf16>, vector<128x128xbf16>, vector<64x128xf32> -> vector<64x128xf32>
    %18 = arith.addf %12, %17 : vector<64x128xf32>
    %19 = vector.extract_strided_slice %6 {offsets = [0, 2, 0], sizes = [8, 8, 128], strides = [1, 1, 1]} : vector<8x10x128xbf16> to vector<8x8x128xbf16>
    %20 = vector.shape_cast %19 : vector<8x8x128xbf16> to vector<64x128xbf16>
    %c2 = arith.constant 2 : index
    %c0_8 = arith.constant 0 : index
    %c0_9 = arith.constant 0 : index
    %21 = vector.load %arg4[%c2, %c0_8, %c0_9] : memref<9x128x128xbf16, #tpu.memory_space<vmem>>, vector<1x128x128xbf16>
    %22 = vector.shape_cast %21 : vector<1x128x128xbf16> to vector<128x128xbf16>
    %cst_10 = arith.constant dense<0.000000e+00> : vector<64x128xf32>
    %23 = tpu.matmul %20, %22, %cst_10 {dimension_numbers = #tpu.dot_dimension_numbers<[1], [0], [0], [1], [0, 0, 1, 1], [], []>} : vector<64x128xbf16>, vector<128x128xbf16>, vector<64x128xf32> -> vector<64x128xf32>
    %24 = arith.addf %18, %23 : vector<64x128xf32>
    %c10_i32_11 = arith.constant 10 : i32
    %25 = arith.muli %arg1, %c10_i32_11 : i32
    %c8_i32_12 = arith.constant 8 : i32
    %26 = arith.muli %arg2, %c8_i32_12 : i32
    %27 = arith.addi %25, %26 : i32
    %c1_i32 = arith.constant 1 : i32
    %28 = arith.addi %27, %c1_i32 : i32
    %29 = arith.index_cast %28 : i32 to index
    %c0_13 = arith.constant 0 : index
    %c0_14 = arith.constant 0 : index
    %30 = vector.load %arg3[%29, %c0_13, %c0_14] : memref<20x10x128xbf16, #tpu.memory_space<vmem>>, vector<8x10x128xbf16>
    %31 = vector.extract_strided_slice %30 {offsets = [0, 0, 0], sizes = [8, 8, 128], strides = [1, 1, 1]} : vector<8x10x128xbf16> to vector<8x8x128xbf16>
    %32 = vector.shape_cast %31 : vector<8x8x128xbf16> to vector<64x128xbf16>
    %c3 = arith.constant 3 : index
    %c0_15 = arith.constant 0 : index
    %c0_16 = arith.constant 0 : index
    %33 = vector.load %arg4[%c3, %c0_15, %c0_16] : memref<9x128x128xbf16, #tpu.memory_space<vmem>>, vector<1x128x128xbf16>
    %34 = vector.shape_cast %33 : vector<1x128x128xbf16> to vector<128x128xbf16>
    %cst_17 = arith.constant dense<0.000000e+00> : vector<64x128xf32>
    %35 = tpu.matmul %32, %34, %cst_17 {dimension_numbers = #tpu.dot_dimension_numbers<[1], [0], [0], [1], [0, 0, 1, 1], [], []>} : vector<64x128xbf16>, vector<128x128xbf16>, vector<64x128xf32> -> vector<64x128xf32>
    %36 = arith.addf %24, %35 : vector<64x128xf32>
    %37 = vector.extract_strided_slice %30 {offsets = [0, 1, 0], sizes = [8, 8, 128], strides = [1, 1, 1]} : vector<8x10x128xbf16> to vector<8x8x128xbf16>
    %38 = vector.shape_cast %37 : vector<8x8x128xbf16> to vector<64x128xbf16>
    %c4 = arith.constant 4 : index
    %c0_18 = arith.constant 0 : index
    %c0_19 = arith.constant 0 : index
    %39 = vector.load %arg4[%c4, %c0_18, %c0_19] : memref<9x128x128xbf16, #tpu.memory_space<vmem>>, vector<1x128x128xbf16>
    %40 = vector.shape_cast %39 : vector<1x128x128xbf16> to vector<128x128xbf16>
    %cst_20 = arith.constant dense<0.000000e+00> : vector<64x128xf32>
    %41 = tpu.matmul %38, %40, %cst_20 {dimension_numbers = #tpu.dot_dimension_numbers<[1], [0], [0], [1], [0, 0, 1, 1], [], []>} : vector<64x128xbf16>, vector<128x128xbf16>, vector<64x128xf32> -> vector<64x128xf32>
    %42 = arith.addf %36, %41 : vector<64x128xf32>
    %43 = vector.extract_strided_slice %30 {offsets = [0, 2, 0], sizes = [8, 8, 128], strides = [1, 1, 1]} : vector<8x10x128xbf16> to vector<8x8x128xbf16>
    %44 = vector.shape_cast %43 : vector<8x8x128xbf16> to vector<64x128xbf16>
    %c5 = arith.constant 5 : index
    %c0_21 = arith.constant 0 : index
    %c0_22 = arith.constant 0 : index
    %45 = vector.load %arg4[%c5, %c0_21, %c0_22] : memref<9x128x128xbf16, #tpu.memory_space<vmem>>, vector<1x128x128xbf16>
    %46 = vector.shape_cast %45 : vector<1x128x128xbf16> to vector<128x128xbf16>
    %cst_23 = arith.constant dense<0.000000e+00> : vector<64x128xf32>
    %47 = tpu.matmul %44, %46, %cst_23 {dimension_numbers = #tpu.dot_dimension_numbers<[1], [0], [0], [1], [0, 0, 1, 1], [], []>} : vector<64x128xbf16>, vector<128x128xbf16>, vector<64x128xf32> -> vector<64x128xf32>
    %48 = arith.addf %42, %47 : vector<64x128xf32>
    %c10_i32_24 = arith.constant 10 : i32
    %49 = arith.muli %arg1, %c10_i32_24 : i32
    %c8_i32_25 = arith.constant 8 : i32
    %50 = arith.muli %arg2, %c8_i32_25 : i32
    %51 = arith.addi %49, %50 : i32
    %c2_i32 = arith.constant 2 : i32
    %52 = arith.addi %51, %c2_i32 : i32
    %53 = arith.index_cast %52 : i32 to index
    %c0_26 = arith.constant 0 : index
    %c0_27 = arith.constant 0 : index
    %54 = vector.load %arg3[%53, %c0_26, %c0_27] : memref<20x10x128xbf16, #tpu.memory_space<vmem>>, vector<8x10x128xbf16>
    %55 = vector.extract_strided_slice %54 {offsets = [0, 0, 0], sizes = [8, 8, 128], strides = [1, 1, 1]} : vector<8x10x128xbf16> to vector<8x8x128xbf16>
    %56 = vector.shape_cast %55 : vector<8x8x128xbf16> to vector<64x128xbf16>
    %c6 = arith.constant 6 : index
    %c0_28 = arith.constant 0 : index
    %c0_29 = arith.constant 0 : index
    %57 = vector.load %arg4[%c6, %c0_28, %c0_29] : memref<9x128x128xbf16, #tpu.memory_space<vmem>>, vector<1x128x128xbf16>
    %58 = vector.shape_cast %57 : vector<1x128x128xbf16> to vector<128x128xbf16>
    %cst_30 = arith.constant dense<0.000000e+00> : vector<64x128xf32>
    %59 = tpu.matmul %56, %58, %cst_30 {dimension_numbers = #tpu.dot_dimension_numbers<[1], [0], [0], [1], [0, 0, 1, 1], [], []>} : vector<64x128xbf16>, vector<128x128xbf16>, vector<64x128xf32> -> vector<64x128xf32>
    %60 = arith.addf %48, %59 : vector<64x128xf32>
    %61 = vector.extract_strided_slice %54 {offsets = [0, 1, 0], sizes = [8, 8, 128], strides = [1, 1, 1]} : vector<8x10x128xbf16> to vector<8x8x128xbf16>
    %62 = vector.shape_cast %61 : vector<8x8x128xbf16> to vector<64x128xbf16>
    %c7 = arith.constant 7 : index
    %c0_31 = arith.constant 0 : index
    %c0_32 = arith.constant 0 : index
    %63 = vector.load %arg4[%c7, %c0_31, %c0_32] : memref<9x128x128xbf16, #tpu.memory_space<vmem>>, vector<1x128x128xbf16>
    %64 = vector.shape_cast %63 : vector<1x128x128xbf16> to vector<128x128xbf16>
    %cst_33 = arith.constant dense<0.000000e+00> : vector<64x128xf32>
    %65 = tpu.matmul %62, %64, %cst_33 {dimension_numbers = #tpu.dot_dimension_numbers<[1], [0], [0], [1], [0, 0, 1, 1], [], []>} : vector<64x128xbf16>, vector<128x128xbf16>, vector<64x128xf32> -> vector<64x128xf32>
    %66 = arith.addf %60, %65 : vector<64x128xf32>
    %67 = vector.extract_strided_slice %54 {offsets = [0, 2, 0], sizes = [8, 8, 128], strides = [1, 1, 1]} : vector<8x10x128xbf16> to vector<8x8x128xbf16>
    %68 = vector.shape_cast %67 : vector<8x8x128xbf16> to vector<64x128xbf16>
    %c8 = arith.constant 8 : index
    %c0_34 = arith.constant 0 : index
    %c0_35 = arith.constant 0 : index
    %69 = vector.load %arg4[%c8, %c0_34, %c0_35] : memref<9x128x128xbf16, #tpu.memory_space<vmem>>, vector<1x128x128xbf16>
    %70 = vector.shape_cast %69 : vector<1x128x128xbf16> to vector<128x128xbf16>
    %cst_36 = arith.constant dense<0.000000e+00> : vector<64x128xf32>
    %71 = tpu.matmul %68, %70, %cst_36 {dimension_numbers = #tpu.dot_dimension_numbers<[1], [0], [0], [1], [0, 0, 1, 1], [], []>} : vector<64x128xbf16>, vector<128x128xbf16>, vector<64x128xf32> -> vector<64x128xf32>
    %72 = arith.addf %66, %71 : vector<64x128xf32>
    %c0_37 = arith.constant 0 : index
    %c0_38 = arith.constant 0 : index
    %73 = vector.load %arg5[%c0_37, %c0_38] : memref<1x128xf32, #tpu.memory_space<vmem>>, vector<1x128xf32>
    %74 = vector.broadcast %73 : vector<1x128xf32> to vector<64x128xf32>
    %75 = arith.addf %72, %74 : vector<64x128xf32>
    %76 = vector.shape_cast %75 : vector<64x128xf32> to vector<8x8x128xf32>
    %c0_39 = arith.constant 0 : index
    %c0_40 = arith.constant 0 : index
    %c0_41 = arith.constant 0 : index
    %c0_42 = arith.constant 0 : index
    %77 = vector.load %arg6[%c0_39, %c0_40, %c0_41, %c0_42] : memref<1x8x8x128xbf16, #tpu.memory_space<vmem>>, vector<1x8x8x128xbf16>
    %78 = vector.shape_cast %77 : vector<1x8x8x128xbf16> to vector<8x8x128xbf16>
    %79 = arith.extf %78 : vector<8x8x128xbf16> to vector<8x8x128xf32>
    %80 = arith.addf %76, %79 : vector<8x8x128xf32>
    %cst_43 = arith.constant 0.000000e+00 : f32
    %81 = vector.broadcast %cst_43 : f32 to vector<8x8x128xf32>
    %82 = arith.maximumf %80, %81 : vector<8x8x128xf32>
    %83 = arith.truncf %82 : vector<8x8x128xf32> to vector<8x8x128xbf16>
    %c0_44 = arith.constant 0 : index
    %c0_45 = arith.constant 0 : index
    %c0_46 = arith.constant 0 : index
    %c0_47 = arith.constant 0 : index
    %84 = vector.load %arg7[%c0_44, %c0_45, %c0_46, %c0_47] : memref<1x8x8x128xbf16, #tpu.memory_space<vmem>>, vector<1x8x8x128xbf16>
    %85 = vector.shape_cast %84 : vector<1x8x8x128xbf16> to vector<8x8x128xbf16>
    %86 = vector.shape_cast %83 : vector<8x8x128xbf16> to vector<1x8x8x128xbf16>
    tpu.vector_store %arg7[%c0_44, %c0_45, %c0_46, %c0_47], %86 {strides = array<i32>} : memref<1x8x8x128xbf16, #tpu.memory_space<vmem>>, vector<1x8x8x128xbf16>,
    return
  }
  func.func @transform_0(%arg0: i32, %arg1: i32, %arg2: i32) -> (i32, i32, i32) {
    %c0_i32 = arith.constant 0 : i32
    %c0_i32_0 = arith.constant 0 : i32
    %c0_i32_1 = arith.constant 0 : i32
    %c0_i32_2 = arith.constant 0 : i32
    return %c0_i32, %c0_i32_0, %c0_i32_1 : i32, i32, i32
  }
  func.func @transform_1(%arg0: i32, %arg1: i32, %arg2: i32) -> (i32, i32, i32) {
    %c0_i32 = arith.constant 0 : i32
    %c0_i32_0 = arith.constant 0 : i32
    %c0_i32_1 = arith.constant 0 : i32
    return %c0_i32, %c0_i32_0, %arg0 : i32, i32, i32
  }
  func.func @transform_2(%arg0: i32, %arg1: i32, %arg2: i32) -> (i32, i32) {
    %c0_i32 = arith.constant 0 : i32
    %c0_i32_0 = arith.constant 0 : i32
    return %c0_i32, %arg0 : i32, i32
  }
  func.func @transform_3(%arg0: i32, %arg1: i32, %arg2: i32) -> (i32, i32, i32, i32) {
    %c0_i32 = arith.constant 0 : i32
    %c0_i32_0 = arith.constant 0 : i32
    return %arg1, %arg2, %c0_i32, %arg0 : i32, i32, i32, i32
  }
  func.func @transform_4(%arg0: i32, %arg1: i32, %arg2: i32) -> (i32, i32, i32, i32) {
    %c0_i32 = arith.constant 0 : i32
    %c0_i32_0 = arith.constant 0 : i32
    return %arg1, %arg2, %c0_i32, %arg0 : i32, i32, i32, i32
  }
}

module attributes {stable_mosaic.version = 11 : i64} {
  func.func @_conv_tap_kernel(%arg0: i32, %arg1: i32, %arg2: i32, %arg3: memref<10x5x128xbf16, #tpu.memory_space<vmem>>, %arg4: memref<10x5x128xbf16, #tpu.memory_space<vmem>>, %arg5: memref<10x5x128xbf16, #tpu.memory_space<vmem>>, %arg6: memref<10x5x128xbf16, #tpu.memory_space<vmem>>, %arg7: memref<9x128x128xbf16, #tpu.memory_space<vmem>>, %arg8: memref<1x128xf32, #tpu.memory_space<vmem>>, %arg9: memref<1x4x4x128xbf16, #tpu.memory_space<vmem>>) attributes {dimension_semantics = [#tpu.dimension_semantics<parallel>, #tpu.dimension_semantics<parallel>, #tpu.dimension_semantics<parallel>], iteration_bounds = array<i64: 1, 2, 1>, scalar_prefetch = 0 : i64, scratch_operands = 0 : i64, tpu.core_type = #tpu.core_type<tc>, window_params = [{pipeline_mode = #tpu.pipeline_mode<synchronous>, transform_indices = @transform_0, window_bounds = array<i64: 10, 5, 128>}, {pipeline_mode = #tpu.pipeline_mode<synchronous>, transform_indices = @transform_1, window_bounds = array<i64: 10, 5, 128>}, {pipeline_mode = #tpu.pipeline_mode<synchronous>, transform_indices = @transform_2, window_bounds = array<i64: 10, 5, 128>}, {pipeline_mode = #tpu.pipeline_mode<synchronous>, transform_indices = @transform_3, window_bounds = array<i64: 10, 5, 128>}, {transform_indices = @transform_4, window_bounds = array<i64: 9, 128, 128>}, {transform_indices = @transform_5, window_bounds = array<i64: 1, 128>}, {transform_indices = @transform_6, window_bounds = array<i64: 1, 4, 4, 128>}]} {
    %cst = arith.constant 0.000000e+00 : f32
    %0 = vector.broadcast %cst : f32 to vector<16x128xf32>
    %c5_i32 = arith.constant 5 : i32
    %1 = arith.muli %arg1, %c5_i32 : i32
    %c4_i32 = arith.constant 4 : i32
    %2 = arith.muli %arg2, %c4_i32 : i32
    %3 = arith.addi %1, %2 : i32
    %c0_i32 = arith.constant 0 : i32
    %4 = arith.addi %3, %c0_i32 : i32
    %5 = arith.index_cast %4 : i32 to index
    %c0 = arith.constant 0 : index
    %c0_0 = arith.constant 0 : index
    %6 = vector.load %arg3[%5, %c0, %c0_0] : memref<10x5x128xbf16, #tpu.memory_space<vmem>>, vector<4x5x128xbf16>
    %7 = vector.extract_strided_slice %6 {offsets = [0, 0, 0], sizes = [4, 4, 128], strides = [1, 1, 1]} : vector<4x5x128xbf16> to vector<4x4x128xbf16>
    %8 = vector.shape_cast %7 : vector<4x4x128xbf16> to vector<16x128xbf16>
    %c0_1 = arith.constant 0 : index
    %c0_2 = arith.constant 0 : index
    %c0_3 = arith.constant 0 : index
    %9 = vector.load %arg7[%c0_1, %c0_2, %c0_3] : memref<9x128x128xbf16, #tpu.memory_space<vmem>>, vector<1x128x128xbf16>
    %10 = vector.shape_cast %9 : vector<1x128x128xbf16> to vector<128x128xbf16>
    %cst_4 = arith.constant dense<0.000000e+00> : vector<16x128xf32>
    %11 = tpu.matmul %8, %10, %cst_4 {dimension_numbers = #tpu.dot_dimension_numbers<[1], [0], [0], [1], [0, 0, 1, 1], [], []>} : vector<16x128xbf16>, vector<128x128xbf16>, vector<16x128xf32> -> vector<16x128xf32>
    %12 = arith.addf %0, %11 : vector<16x128xf32>
    %13 = vector.extract_strided_slice %6 {offsets = [0, 1, 0], sizes = [4, 4, 128], strides = [1, 1, 1]} : vector<4x5x128xbf16> to vector<4x4x128xbf16>
    %14 = vector.shape_cast %13 : vector<4x4x128xbf16> to vector<16x128xbf16>
    %c2 = arith.constant 2 : index
    %c0_5 = arith.constant 0 : index
    %c0_6 = arith.constant 0 : index
    %15 = vector.load %arg7[%c2, %c0_5, %c0_6] : memref<9x128x128xbf16, #tpu.memory_space<vmem>>, vector<1x128x128xbf16>
    %16 = vector.shape_cast %15 : vector<1x128x128xbf16> to vector<128x128xbf16>
    %cst_7 = arith.constant dense<0.000000e+00> : vector<16x128xf32>
    %17 = tpu.matmul %14, %16, %cst_7 {dimension_numbers = #tpu.dot_dimension_numbers<[1], [0], [0], [1], [0, 0, 1, 1], [], []>} : vector<16x128xbf16>, vector<128x128xbf16>, vector<16x128xf32> -> vector<16x128xf32>
    %18 = arith.addf %12, %17 : vector<16x128xf32>
    %c5_i32_8 = arith.constant 5 : i32
    %19 = arith.muli %arg1, %c5_i32_8 : i32
    %c4_i32_9 = arith.constant 4 : i32
    %20 = arith.muli %arg2, %c4_i32_9 : i32
    %21 = arith.addi %19, %20 : i32
    %c1_i32 = arith.constant 1 : i32
    %22 = arith.addi %21, %c1_i32 : i32
    %23 = arith.index_cast %22 : i32 to index
    %c0_10 = arith.constant 0 : index
    %c0_11 = arith.constant 0 : index
    %24 = vector.load %arg3[%23, %c0_10, %c0_11] : memref<10x5x128xbf16, #tpu.memory_space<vmem>>, vector<4x5x128xbf16>
    %25 = vector.extract_strided_slice %24 {offsets = [0, 0, 0], sizes = [4, 4, 128], strides = [1, 1, 1]} : vector<4x5x128xbf16> to vector<4x4x128xbf16>
    %26 = vector.shape_cast %25 : vector<4x4x128xbf16> to vector<16x128xbf16>
    %c6 = arith.constant 6 : index
    %c0_12 = arith.constant 0 : index
    %c0_13 = arith.constant 0 : index
    %27 = vector.load %arg7[%c6, %c0_12, %c0_13] : memref<9x128x128xbf16, #tpu.memory_space<vmem>>, vector<1x128x128xbf16>
    %28 = vector.shape_cast %27 : vector<1x128x128xbf16> to vector<128x128xbf16>
    %cst_14 = arith.constant dense<0.000000e+00> : vector<16x128xf32>
    %29 = tpu.matmul %26, %28, %cst_14 {dimension_numbers = #tpu.dot_dimension_numbers<[1], [0], [0], [1], [0, 0, 1, 1], [], []>} : vector<16x128xbf16>, vector<128x128xbf16>, vector<16x128xf32> -> vector<16x128xf32>
    %30 = arith.addf %18, %29 : vector<16x128xf32>
    %31 = vector.extract_strided_slice %24 {offsets = [0, 1, 0], sizes = [4, 4, 128], strides = [1, 1, 1]} : vector<4x5x128xbf16> to vector<4x4x128xbf16>
    %32 = vector.shape_cast %31 : vector<4x4x128xbf16> to vector<16x128xbf16>
    %c8 = arith.constant 8 : index
    %c0_15 = arith.constant 0 : index
    %c0_16 = arith.constant 0 : index
    %33 = vector.load %arg7[%c8, %c0_15, %c0_16] : memref<9x128x128xbf16, #tpu.memory_space<vmem>>, vector<1x128x128xbf16>
    %34 = vector.shape_cast %33 : vector<1x128x128xbf16> to vector<128x128xbf16>
    %cst_17 = arith.constant dense<0.000000e+00> : vector<16x128xf32>
    %35 = tpu.matmul %32, %34, %cst_17 {dimension_numbers = #tpu.dot_dimension_numbers<[1], [0], [0], [1], [0, 0, 1, 1], [], []>} : vector<16x128xbf16>, vector<128x128xbf16>, vector<16x128xf32> -> vector<16x128xf32>
    %36 = arith.addf %30, %35 : vector<16x128xf32>
    %c5_i32_18 = arith.constant 5 : i32
    %37 = arith.muli %arg1, %c5_i32_18 : i32
    %c4_i32_19 = arith.constant 4 : i32
    %38 = arith.muli %arg2, %c4_i32_19 : i32
    %39 = arith.addi %37, %38 : i32
    %c0_i32_20 = arith.constant 0 : i32
    %40 = arith.addi %39, %c0_i32_20 : i32
    %41 = arith.index_cast %40 : i32 to index
    %c0_21 = arith.constant 0 : index
    %c0_22 = arith.constant 0 : index
    %42 = vector.load %arg4[%41, %c0_21, %c0_22] : memref<10x5x128xbf16, #tpu.memory_space<vmem>>, vector<4x4x128xbf16>
    %43 = vector.shape_cast %42 : vector<4x4x128xbf16> to vector<16x128xbf16>
    %c1 = arith.constant 1 : index
    %c0_23 = arith.constant 0 : index
    %c0_24 = arith.constant 0 : index
    %44 = vector.load %arg7[%c1, %c0_23, %c0_24] : memref<9x128x128xbf16, #tpu.memory_space<vmem>>, vector<1x128x128xbf16>
    %45 = vector.shape_cast %44 : vector<1x128x128xbf16> to vector<128x128xbf16>
    %cst_25 = arith.constant dense<0.000000e+00> : vector<16x128xf32>
    %46 = tpu.matmul %43, %45, %cst_25 {dimension_numbers = #tpu.dot_dimension_numbers<[1], [0], [0], [1], [0, 0, 1, 1], [], []>} : vector<16x128xbf16>, vector<128x128xbf16>, vector<16x128xf32> -> vector<16x128xf32>
    %47 = arith.addf %36, %46 : vector<16x128xf32>
    %c5_i32_26 = arith.constant 5 : i32
    %48 = arith.muli %arg1, %c5_i32_26 : i32
    %c4_i32_27 = arith.constant 4 : i32
    %49 = arith.muli %arg2, %c4_i32_27 : i32
    %50 = arith.addi %48, %49 : i32
    %c1_i32_28 = arith.constant 1 : i32
    %51 = arith.addi %50, %c1_i32_28 : i32
    %52 = arith.index_cast %51 : i32 to index
    %c0_29 = arith.constant 0 : index
    %c0_30 = arith.constant 0 : index
    %53 = vector.load %arg4[%52, %c0_29, %c0_30] : memref<10x5x128xbf16, #tpu.memory_space<vmem>>, vector<4x4x128xbf16>
    %54 = vector.shape_cast %53 : vector<4x4x128xbf16> to vector<16x128xbf16>
    %c7 = arith.constant 7 : index
    %c0_31 = arith.constant 0 : index
    %c0_32 = arith.constant 0 : index
    %55 = vector.load %arg7[%c7, %c0_31, %c0_32] : memref<9x128x128xbf16, #tpu.memory_space<vmem>>, vector<1x128x128xbf16>
    %56 = vector.shape_cast %55 : vector<1x128x128xbf16> to vector<128x128xbf16>
    %cst_33 = arith.constant dense<0.000000e+00> : vector<16x128xf32>
    %57 = tpu.matmul %54, %56, %cst_33 {dimension_numbers = #tpu.dot_dimension_numbers<[1], [0], [0], [1], [0, 0, 1, 1], [], []>} : vector<16x128xbf16>, vector<128x128xbf16>, vector<16x128xf32> -> vector<16x128xf32>
    %58 = arith.addf %47, %57 : vector<16x128xf32>
    %c5_i32_34 = arith.constant 5 : i32
    %59 = arith.muli %arg1, %c5_i32_34 : i32
    %c4_i32_35 = arith.constant 4 : i32
    %60 = arith.muli %arg2, %c4_i32_35 : i32
    %61 = arith.addi %59, %60 : i32
    %c0_i32_36 = arith.constant 0 : i32
    %62 = arith.addi %61, %c0_i32_36 : i32
    %63 = arith.index_cast %62 : i32 to index
    %c0_37 = arith.constant 0 : index
    %c0_38 = arith.constant 0 : index
    %64 = vector.load %arg5[%63, %c0_37, %c0_38] : memref<10x5x128xbf16, #tpu.memory_space<vmem>>, vector<4x5x128xbf16>
    %65 = vector.extract_strided_slice %64 {offsets = [0, 0, 0], sizes = [4, 4, 128], strides = [1, 1, 1]} : vector<4x5x128xbf16> to vector<4x4x128xbf16>
    %66 = vector.shape_cast %65 : vector<4x4x128xbf16> to vector<16x128xbf16>
    %c3 = arith.constant 3 : index
    %c0_39 = arith.constant 0 : index
    %c0_40 = arith.constant 0 : index
    %67 = vector.load %arg7[%c3, %c0_39, %c0_40] : memref<9x128x128xbf16, #tpu.memory_space<vmem>>, vector<1x128x128xbf16>
    %68 = vector.shape_cast %67 : vector<1x128x128xbf16> to vector<128x128xbf16>
    %cst_41 = arith.constant dense<0.000000e+00> : vector<16x128xf32>
    %69 = tpu.matmul %66, %68, %cst_41 {dimension_numbers = #tpu.dot_dimension_numbers<[1], [0], [0], [1], [0, 0, 1, 1], [], []>} : vector<16x128xbf16>, vector<128x128xbf16>, vector<16x128xf32> -> vector<16x128xf32>
    %70 = arith.addf %58, %69 : vector<16x128xf32>
    %71 = vector.extract_strided_slice %64 {offsets = [0, 1, 0], sizes = [4, 4, 128], strides = [1, 1, 1]} : vector<4x5x128xbf16> to vector<4x4x128xbf16>
    %72 = vector.shape_cast %71 : vector<4x4x128xbf16> to vector<16x128xbf16>
    %c5 = arith.constant 5 : index
    %c0_42 = arith.constant 0 : index
    %c0_43 = arith.constant 0 : index
    %73 = vector.load %arg7[%c5, %c0_42, %c0_43] : memref<9x128x128xbf16, #tpu.memory_space<vmem>>, vector<1x128x128xbf16>
    %74 = vector.shape_cast %73 : vector<1x128x128xbf16> to vector<128x128xbf16>
    %cst_44 = arith.constant dense<0.000000e+00> : vector<16x128xf32>
    %75 = tpu.matmul %72, %74, %cst_44 {dimension_numbers = #tpu.dot_dimension_numbers<[1], [0], [0], [1], [0, 0, 1, 1], [], []>} : vector<16x128xbf16>, vector<128x128xbf16>, vector<16x128xf32> -> vector<16x128xf32>
    %76 = arith.addf %70, %75 : vector<16x128xf32>
    %c5_i32_45 = arith.constant 5 : i32
    %77 = arith.muli %arg1, %c5_i32_45 : i32
    %c4_i32_46 = arith.constant 4 : i32
    %78 = arith.muli %arg2, %c4_i32_46 : i32
    %79 = arith.addi %77, %78 : i32
    %c0_i32_47 = arith.constant 0 : i32
    %80 = arith.addi %79, %c0_i32_47 : i32
    %81 = arith.index_cast %80 : i32 to index
    %c0_48 = arith.constant 0 : index
    %c0_49 = arith.constant 0 : index
    %82 = vector.load %arg6[%81, %c0_48, %c0_49] : memref<10x5x128xbf16, #tpu.memory_space<vmem>>, vector<4x4x128xbf16>
    %83 = vector.shape_cast %82 : vector<4x4x128xbf16> to vector<16x128xbf16>
    %c4 = arith.constant 4 : index
    %c0_50 = arith.constant 0 : index
    %c0_51 = arith.constant 0 : index
    %84 = vector.load %arg7[%c4, %c0_50, %c0_51] : memref<9x128x128xbf16, #tpu.memory_space<vmem>>, vector<1x128x128xbf16>
    %85 = vector.shape_cast %84 : vector<1x128x128xbf16> to vector<128x128xbf16>
    %cst_52 = arith.constant dense<0.000000e+00> : vector<16x128xf32>
    %86 = tpu.matmul %83, %85, %cst_52 {dimension_numbers = #tpu.dot_dimension_numbers<[1], [0], [0], [1], [0, 0, 1, 1], [], []>} : vector<16x128xbf16>, vector<128x128xbf16>, vector<16x128xf32> -> vector<16x128xf32>
    %87 = arith.addf %76, %86 : vector<16x128xf32>
    %c0_53 = arith.constant 0 : index
    %c0_54 = arith.constant 0 : index
    %88 = vector.load %arg8[%c0_53, %c0_54] : memref<1x128xf32, #tpu.memory_space<vmem>>, vector<1x128xf32>
    %89 = vector.broadcast %88 : vector<1x128xf32> to vector<16x128xf32>
    %90 = arith.addf %87, %89 : vector<16x128xf32>
    %91 = vector.shape_cast %90 : vector<16x128xf32> to vector<4x4x128xf32>
    %cst_55 = arith.constant 0.000000e+00 : f32
    %92 = vector.broadcast %cst_55 : f32 to vector<4x4x128xf32>
    %93 = arith.maximumf %91, %92 : vector<4x4x128xf32>
    %94 = arith.truncf %93 : vector<4x4x128xf32> to vector<4x4x128xbf16>
    %c0_56 = arith.constant 0 : index
    %c0_57 = arith.constant 0 : index
    %c0_58 = arith.constant 0 : index
    %c0_59 = arith.constant 0 : index
    %95 = vector.load %arg9[%c0_56, %c0_57, %c0_58, %c0_59] : memref<1x4x4x128xbf16, #tpu.memory_space<vmem>>, vector<1x4x4x128xbf16>
    %96 = vector.shape_cast %95 : vector<1x4x4x128xbf16> to vector<4x4x128xbf16>
    %97 = vector.shape_cast %94 : vector<4x4x128xbf16> to vector<1x4x4x128xbf16>
    tpu.vector_store %arg9[%c0_56, %c0_57, %c0_58, %c0_59], %97 {strides = array<i32>} : memref<1x4x4x128xbf16, #tpu.memory_space<vmem>>, vector<1x4x4x128xbf16>,
    return
  }
  func.func @transform_0(%arg0: i32, %arg1: i32, %arg2: i32) -> (i32, i32, i32) {
    %c0_i32 = arith.constant 0 : i32
    %c0_i32_0 = arith.constant 0 : i32
    %c0_i32_1 = arith.constant 0 : i32
    %c0_i32_2 = arith.constant 0 : i32
    return %c0_i32, %c0_i32_0, %c0_i32_1 : i32, i32, i32
  }
  func.func @transform_1(%arg0: i32, %arg1: i32, %arg2: i32) -> (i32, i32, i32) {
    %c0_i32 = arith.constant 0 : i32
    %c0_i32_0 = arith.constant 0 : i32
    %c0_i32_1 = arith.constant 0 : i32
    %c0_i32_2 = arith.constant 0 : i32
    return %c0_i32, %c0_i32_0, %c0_i32_1 : i32, i32, i32
  }
  func.func @transform_2(%arg0: i32, %arg1: i32, %arg2: i32) -> (i32, i32, i32) {
    %c0_i32 = arith.constant 0 : i32
    %c0_i32_0 = arith.constant 0 : i32
    %c0_i32_1 = arith.constant 0 : i32
    %c0_i32_2 = arith.constant 0 : i32
    return %c0_i32, %c0_i32_0, %c0_i32_1 : i32, i32, i32
  }
  func.func @transform_3(%arg0: i32, %arg1: i32, %arg2: i32) -> (i32, i32, i32) {
    %c0_i32 = arith.constant 0 : i32
    %c0_i32_0 = arith.constant 0 : i32
    %c0_i32_1 = arith.constant 0 : i32
    %c0_i32_2 = arith.constant 0 : i32
    return %c0_i32, %c0_i32_0, %c0_i32_1 : i32, i32, i32
  }
  func.func @transform_4(%arg0: i32, %arg1: i32, %arg2: i32) -> (i32, i32, i32) {
    %c0_i32 = arith.constant 0 : i32
    %c0_i32_0 = arith.constant 0 : i32
    %c0_i32_1 = arith.constant 0 : i32
    return %c0_i32, %c0_i32_0, %arg0 : i32, i32, i32
  }
  func.func @transform_5(%arg0: i32, %arg1: i32, %arg2: i32) -> (i32, i32) {
    %c0_i32 = arith.constant 0 : i32
    %c0_i32_0 = arith.constant 0 : i32
    return %c0_i32, %arg0 : i32, i32
  }
  func.func @transform_6(%arg0: i32, %arg1: i32, %arg2: i32) -> (i32, i32, i32, i32) {
    %c0_i32 = arith.constant 0 : i32
    %c0_i32_0 = arith.constant 0 : i32
    return %arg1, %arg2, %c0_i32, %arg0 : i32, i32, i32, i32
  }
}

module attributes {stable_mosaic.version = 11 : i64} {
  func.func @_conv_tap_kernel(%arg0: i32, %arg1: i32, %arg2: i32, %arg3: memref<12x6x128xbf16, #tpu.memory_space<vmem>>, %arg4: memref<9x128x128xbf16, #tpu.memory_space<vmem>>, %arg5: memref<1x128xf32, #tpu.memory_space<vmem>>, %arg6: memref<1x4x4x128xbf16, #tpu.memory_space<vmem>>, %arg7: memref<1x4x4x128xbf16, #tpu.memory_space<vmem>>) attributes {dimension_semantics = [#tpu.dimension_semantics<parallel>, #tpu.dimension_semantics<parallel>, #tpu.dimension_semantics<parallel>], iteration_bounds = array<i64: 1, 2, 1>, scalar_prefetch = 0 : i64, scratch_operands = 0 : i64, tpu.core_type = #tpu.core_type<tc>, window_params = [{pipeline_mode = #tpu.pipeline_mode<synchronous>, transform_indices = @transform_0, window_bounds = array<i64: 12, 6, 128>}, {transform_indices = @transform_1, window_bounds = array<i64: 9, 128, 128>}, {transform_indices = @transform_2, window_bounds = array<i64: 1, 128>}, {transform_indices = @transform_3, window_bounds = array<i64: 1, 4, 4, 128>}, {transform_indices = @transform_4, window_bounds = array<i64: 1, 4, 4, 128>}]} {
    %cst = arith.constant 0.000000e+00 : f32
    %0 = vector.broadcast %cst : f32 to vector<16x128xf32>
    %c6_i32 = arith.constant 6 : i32
    %1 = arith.muli %arg1, %c6_i32 : i32
    %c4_i32 = arith.constant 4 : i32
    %2 = arith.muli %arg2, %c4_i32 : i32
    %3 = arith.addi %1, %2 : i32
    %c0_i32 = arith.constant 0 : i32
    %4 = arith.addi %3, %c0_i32 : i32
    %5 = arith.index_cast %4 : i32 to index
    %c0 = arith.constant 0 : index
    %c0_0 = arith.constant 0 : index
    %6 = vector.load %arg3[%5, %c0, %c0_0] : memref<12x6x128xbf16, #tpu.memory_space<vmem>>, vector<4x6x128xbf16>
    %7 = vector.extract_strided_slice %6 {offsets = [0, 0, 0], sizes = [4, 4, 128], strides = [1, 1, 1]} : vector<4x6x128xbf16> to vector<4x4x128xbf16>
    %8 = vector.shape_cast %7 : vector<4x4x128xbf16> to vector<16x128xbf16>
    %c0_1 = arith.constant 0 : index
    %c0_2 = arith.constant 0 : index
    %c0_3 = arith.constant 0 : index
    %9 = vector.load %arg4[%c0_1, %c0_2, %c0_3] : memref<9x128x128xbf16, #tpu.memory_space<vmem>>, vector<1x128x128xbf16>
    %10 = vector.shape_cast %9 : vector<1x128x128xbf16> to vector<128x128xbf16>
    %cst_4 = arith.constant dense<0.000000e+00> : vector<16x128xf32>
    %11 = tpu.matmul %8, %10, %cst_4 {dimension_numbers = #tpu.dot_dimension_numbers<[1], [0], [0], [1], [0, 0, 1, 1], [], []>} : vector<16x128xbf16>, vector<128x128xbf16>, vector<16x128xf32> -> vector<16x128xf32>
    %12 = arith.addf %0, %11 : vector<16x128xf32>
    %13 = vector.extract_strided_slice %6 {offsets = [0, 1, 0], sizes = [4, 4, 128], strides = [1, 1, 1]} : vector<4x6x128xbf16> to vector<4x4x128xbf16>
    %14 = vector.shape_cast %13 : vector<4x4x128xbf16> to vector<16x128xbf16>
    %c1 = arith.constant 1 : index
    %c0_5 = arith.constant 0 : index
    %c0_6 = arith.constant 0 : index
    %15 = vector.load %arg4[%c1, %c0_5, %c0_6] : memref<9x128x128xbf16, #tpu.memory_space<vmem>>, vector<1x128x128xbf16>
    %16 = vector.shape_cast %15 : vector<1x128x128xbf16> to vector<128x128xbf16>
    %cst_7 = arith.constant dense<0.000000e+00> : vector<16x128xf32>
    %17 = tpu.matmul %14, %16, %cst_7 {dimension_numbers = #tpu.dot_dimension_numbers<[1], [0], [0], [1], [0, 0, 1, 1], [], []>} : vector<16x128xbf16>, vector<128x128xbf16>, vector<16x128xf32> -> vector<16x128xf32>
    %18 = arith.addf %12, %17 : vector<16x128xf32>
    %19 = vector.extract_strided_slice %6 {offsets = [0, 2, 0], sizes = [4, 4, 128], strides = [1, 1, 1]} : vector<4x6x128xbf16> to vector<4x4x128xbf16>
    %20 = vector.shape_cast %19 : vector<4x4x128xbf16> to vector<16x128xbf16>
    %c2 = arith.constant 2 : index
    %c0_8 = arith.constant 0 : index
    %c0_9 = arith.constant 0 : index
    %21 = vector.load %arg4[%c2, %c0_8, %c0_9] : memref<9x128x128xbf16, #tpu.memory_space<vmem>>, vector<1x128x128xbf16>
    %22 = vector.shape_cast %21 : vector<1x128x128xbf16> to vector<128x128xbf16>
    %cst_10 = arith.constant dense<0.000000e+00> : vector<16x128xf32>
    %23 = tpu.matmul %20, %22, %cst_10 {dimension_numbers = #tpu.dot_dimension_numbers<[1], [0], [0], [1], [0, 0, 1, 1], [], []>} : vector<16x128xbf16>, vector<128x128xbf16>, vector<16x128xf32> -> vector<16x128xf32>
    %24 = arith.addf %18, %23 : vector<16x128xf32>
    %c6_i32_11 = arith.constant 6 : i32
    %25 = arith.muli %arg1, %c6_i32_11 : i32
    %c4_i32_12 = arith.constant 4 : i32
    %26 = arith.muli %arg2, %c4_i32_12 : i32
    %27 = arith.addi %25, %26 : i32
    %c1_i32 = arith.constant 1 : i32
    %28 = arith.addi %27, %c1_i32 : i32
    %29 = arith.index_cast %28 : i32 to index
    %c0_13 = arith.constant 0 : index
    %c0_14 = arith.constant 0 : index
    %30 = vector.load %arg3[%29, %c0_13, %c0_14] : memref<12x6x128xbf16, #tpu.memory_space<vmem>>, vector<4x6x128xbf16>
    %31 = vector.extract_strided_slice %30 {offsets = [0, 0, 0], sizes = [4, 4, 128], strides = [1, 1, 1]} : vector<4x6x128xbf16> to vector<4x4x128xbf16>
    %32 = vector.shape_cast %31 : vector<4x4x128xbf16> to vector<16x128xbf16>
    %c3 = arith.constant 3 : index
    %c0_15 = arith.constant 0 : index
    %c0_16 = arith.constant 0 : index
    %33 = vector.load %arg4[%c3, %c0_15, %c0_16] : memref<9x128x128xbf16, #tpu.memory_space<vmem>>, vector<1x128x128xbf16>
    %34 = vector.shape_cast %33 : vector<1x128x128xbf16> to vector<128x128xbf16>
    %cst_17 = arith.constant dense<0.000000e+00> : vector<16x128xf32>
    %35 = tpu.matmul %32, %34, %cst_17 {dimension_numbers = #tpu.dot_dimension_numbers<[1], [0], [0], [1], [0, 0, 1, 1], [], []>} : vector<16x128xbf16>, vector<128x128xbf16>, vector<16x128xf32> -> vector<16x128xf32>
    %36 = arith.addf %24, %35 : vector<16x128xf32>
    %37 = vector.extract_strided_slice %30 {offsets = [0, 1, 0], sizes = [4, 4, 128], strides = [1, 1, 1]} : vector<4x6x128xbf16> to vector<4x4x128xbf16>
    %38 = vector.shape_cast %37 : vector<4x4x128xbf16> to vector<16x128xbf16>
    %c4 = arith.constant 4 : index
    %c0_18 = arith.constant 0 : index
    %c0_19 = arith.constant 0 : index
    %39 = vector.load %arg4[%c4, %c0_18, %c0_19] : memref<9x128x128xbf16, #tpu.memory_space<vmem>>, vector<1x128x128xbf16>
    %40 = vector.shape_cast %39 : vector<1x128x128xbf16> to vector<128x128xbf16>
    %cst_20 = arith.constant dense<0.000000e+00> : vector<16x128xf32>
    %41 = tpu.matmul %38, %40, %cst_20 {dimension_numbers = #tpu.dot_dimension_numbers<[1], [0], [0], [1], [0, 0, 1, 1], [], []>} : vector<16x128xbf16>, vector<128x128xbf16>, vector<16x128xf32> -> vector<16x128xf32>
    %42 = arith.addf %36, %41 : vector<16x128xf32>
    %43 = vector.extract_strided_slice %30 {offsets = [0, 2, 0], sizes = [4, 4, 128], strides = [1, 1, 1]} : vector<4x6x128xbf16> to vector<4x4x128xbf16>
    %44 = vector.shape_cast %43 : vector<4x4x128xbf16> to vector<16x128xbf16>
    %c5 = arith.constant 5 : index
    %c0_21 = arith.constant 0 : index
    %c0_22 = arith.constant 0 : index
    %45 = vector.load %arg4[%c5, %c0_21, %c0_22] : memref<9x128x128xbf16, #tpu.memory_space<vmem>>, vector<1x128x128xbf16>
    %46 = vector.shape_cast %45 : vector<1x128x128xbf16> to vector<128x128xbf16>
    %cst_23 = arith.constant dense<0.000000e+00> : vector<16x128xf32>
    %47 = tpu.matmul %44, %46, %cst_23 {dimension_numbers = #tpu.dot_dimension_numbers<[1], [0], [0], [1], [0, 0, 1, 1], [], []>} : vector<16x128xbf16>, vector<128x128xbf16>, vector<16x128xf32> -> vector<16x128xf32>
    %48 = arith.addf %42, %47 : vector<16x128xf32>
    %c6_i32_24 = arith.constant 6 : i32
    %49 = arith.muli %arg1, %c6_i32_24 : i32
    %c4_i32_25 = arith.constant 4 : i32
    %50 = arith.muli %arg2, %c4_i32_25 : i32
    %51 = arith.addi %49, %50 : i32
    %c2_i32 = arith.constant 2 : i32
    %52 = arith.addi %51, %c2_i32 : i32
    %53 = arith.index_cast %52 : i32 to index
    %c0_26 = arith.constant 0 : index
    %c0_27 = arith.constant 0 : index
    %54 = vector.load %arg3[%53, %c0_26, %c0_27] : memref<12x6x128xbf16, #tpu.memory_space<vmem>>, vector<4x6x128xbf16>
    %55 = vector.extract_strided_slice %54 {offsets = [0, 0, 0], sizes = [4, 4, 128], strides = [1, 1, 1]} : vector<4x6x128xbf16> to vector<4x4x128xbf16>
    %56 = vector.shape_cast %55 : vector<4x4x128xbf16> to vector<16x128xbf16>
    %c6 = arith.constant 6 : index
    %c0_28 = arith.constant 0 : index
    %c0_29 = arith.constant 0 : index
    %57 = vector.load %arg4[%c6, %c0_28, %c0_29] : memref<9x128x128xbf16, #tpu.memory_space<vmem>>, vector<1x128x128xbf16>
    %58 = vector.shape_cast %57 : vector<1x128x128xbf16> to vector<128x128xbf16>
    %cst_30 = arith.constant dense<0.000000e+00> : vector<16x128xf32>
    %59 = tpu.matmul %56, %58, %cst_30 {dimension_numbers = #tpu.dot_dimension_numbers<[1], [0], [0], [1], [0, 0, 1, 1], [], []>} : vector<16x128xbf16>, vector<128x128xbf16>, vector<16x128xf32> -> vector<16x128xf32>
    %60 = arith.addf %48, %59 : vector<16x128xf32>
    %61 = vector.extract_strided_slice %54 {offsets = [0, 1, 0], sizes = [4, 4, 128], strides = [1, 1, 1]} : vector<4x6x128xbf16> to vector<4x4x128xbf16>
    %62 = vector.shape_cast %61 : vector<4x4x128xbf16> to vector<16x128xbf16>
    %c7 = arith.constant 7 : index
    %c0_31 = arith.constant 0 : index
    %c0_32 = arith.constant 0 : index
    %63 = vector.load %arg4[%c7, %c0_31, %c0_32] : memref<9x128x128xbf16, #tpu.memory_space<vmem>>, vector<1x128x128xbf16>
    %64 = vector.shape_cast %63 : vector<1x128x128xbf16> to vector<128x128xbf16>
    %cst_33 = arith.constant dense<0.000000e+00> : vector<16x128xf32>
    %65 = tpu.matmul %62, %64, %cst_33 {dimension_numbers = #tpu.dot_dimension_numbers<[1], [0], [0], [1], [0, 0, 1, 1], [], []>} : vector<16x128xbf16>, vector<128x128xbf16>, vector<16x128xf32> -> vector<16x128xf32>
    %66 = arith.addf %60, %65 : vector<16x128xf32>
    %67 = vector.extract_strided_slice %54 {offsets = [0, 2, 0], sizes = [4, 4, 128], strides = [1, 1, 1]} : vector<4x6x128xbf16> to vector<4x4x128xbf16>
    %68 = vector.shape_cast %67 : vector<4x4x128xbf16> to vector<16x128xbf16>
    %c8 = arith.constant 8 : index
    %c0_34 = arith.constant 0 : index
    %c0_35 = arith.constant 0 : index
    %69 = vector.load %arg4[%c8, %c0_34, %c0_35] : memref<9x128x128xbf16, #tpu.memory_space<vmem>>, vector<1x128x128xbf16>
    %70 = vector.shape_cast %69 : vector<1x128x128xbf16> to vector<128x128xbf16>
    %cst_36 = arith.constant dense<0.000000e+00> : vector<16x128xf32>
    %71 = tpu.matmul %68, %70, %cst_36 {dimension_numbers = #tpu.dot_dimension_numbers<[1], [0], [0], [1], [0, 0, 1, 1], [], []>} : vector<16x128xbf16>, vector<128x128xbf16>, vector<16x128xf32> -> vector<16x128xf32>
    %72 = arith.addf %66, %71 : vector<16x128xf32>
    %c0_37 = arith.constant 0 : index
    %c0_38 = arith.constant 0 : index
    %73 = vector.load %arg5[%c0_37, %c0_38] : memref<1x128xf32, #tpu.memory_space<vmem>>, vector<1x128xf32>
    %74 = vector.broadcast %73 : vector<1x128xf32> to vector<16x128xf32>
    %75 = arith.addf %72, %74 : vector<16x128xf32>
    %76 = vector.shape_cast %75 : vector<16x128xf32> to vector<4x4x128xf32>
    %c0_39 = arith.constant 0 : index
    %c0_40 = arith.constant 0 : index
    %c0_41 = arith.constant 0 : index
    %c0_42 = arith.constant 0 : index
    %77 = vector.load %arg6[%c0_39, %c0_40, %c0_41, %c0_42] : memref<1x4x4x128xbf16, #tpu.memory_space<vmem>>, vector<1x4x4x128xbf16>
    %78 = vector.shape_cast %77 : vector<1x4x4x128xbf16> to vector<4x4x128xbf16>
    %79 = arith.extf %78 : vector<4x4x128xbf16> to vector<4x4x128xf32>
    %80 = arith.addf %76, %79 : vector<4x4x128xf32>
    %cst_43 = arith.constant 0.000000e+00 : f32
    %81 = vector.broadcast %cst_43 : f32 to vector<4x4x128xf32>
    %82 = arith.maximumf %80, %81 : vector<4x4x128xf32>
    %83 = arith.truncf %82 : vector<4x4x128xf32> to vector<4x4x128xbf16>
    %c0_44 = arith.constant 0 : index
    %c0_45 = arith.constant 0 : index
    %c0_46 = arith.constant 0 : index
    %c0_47 = arith.constant 0 : index
    %84 = vector.load %arg7[%c0_44, %c0_45, %c0_46, %c0_47] : memref<1x4x4x128xbf16, #tpu.memory_space<vmem>>, vector<1x4x4x128xbf16>
    %85 = vector.shape_cast %84 : vector<1x4x4x128xbf16> to vector<4x4x128xbf16>
    %86 = vector.shape_cast %83 : vector<4x4x128xbf16> to vector<1x4x4x128xbf16>
    tpu.vector_store %arg7[%c0_44, %c0_45, %c0_46, %c0_47], %86 {strides = array<i32>} : memref<1x4x4x128xbf16, #tpu.memory_space<vmem>>, vector<1x4x4x128xbf16>,
    return
  }
  func.func @transform_0(%arg0: i32, %arg1: i32, %arg2: i32) -> (i32, i32, i32) {
    %c0_i32 = arith.constant 0 : i32
    %c0_i32_0 = arith.constant 0 : i32
    %c0_i32_1 = arith.constant 0 : i32
    %c0_i32_2 = arith.constant 0 : i32
    return %c0_i32, %c0_i32_0, %c0_i32_1 : i32, i32, i32
  }
  func.func @transform_1(%arg0: i32, %arg1: i32, %arg2: i32) -> (i32, i32, i32) {
    %c0_i32 = arith.constant 0 : i32
    %c0_i32_0 = arith.constant 0 : i32
    %c0_i32_1 = arith.constant 0 : i32
    return %c0_i32, %c0_i32_0, %arg0 : i32, i32, i32
  }
  func.func @transform_2(%arg0: i32, %arg1: i32, %arg2: i32) -> (i32, i32) {
    %c0_i32 = arith.constant 0 : i32
    %c0_i32_0 = arith.constant 0 : i32
    return %c0_i32, %arg0 : i32, i32
  }
  func.func @transform_3(%arg0: i32, %arg1: i32, %arg2: i32) -> (i32, i32, i32, i32) {
    %c0_i32 = arith.constant 0 : i32
    %c0_i32_0 = arith.constant 0 : i32
    return %arg1, %arg2, %c0_i32, %arg0 : i32, i32, i32, i32
  }
  func.func @transform_4(%arg0: i32, %arg1: i32, %arg2: i32) -> (i32, i32, i32, i32) {
    %c0_i32 = arith.constant 0 : i32
    %c0_i32_0 = arith.constant 0 : i32
    return %arg1, %arg2, %c0_i32, %arg0 : i32, i32, i32, i32
  }
}

module attributes {stable_mosaic.version = 11 : i64} {
  func.func @_conv_tap_kernel(%arg0: i32, %arg1: i32, %arg2: i32, %arg3: memref<12x6x128xbf16, #tpu.memory_space<vmem>>, %arg4: memref<9x128x128xbf16, #tpu.memory_space<vmem>>, %arg5: memref<1x128xf32, #tpu.memory_space<vmem>>, %arg6: memref<1x4x4x128xbf16, #tpu.memory_space<vmem>>) attributes {dimension_semantics = [#tpu.dimension_semantics<parallel>, #tpu.dimension_semantics<parallel>, #tpu.dimension_semantics<parallel>], iteration_bounds = array<i64: 1, 2, 1>, scalar_prefetch = 0 : i64, scratch_operands = 0 : i64, tpu.core_type = #tpu.core_type<tc>, window_params = [{pipeline_mode = #tpu.pipeline_mode<synchronous>, transform_indices = @transform_0, window_bounds = array<i64: 12, 6, 128>}, {transform_indices = @transform_1, window_bounds = array<i64: 9, 128, 128>}, {transform_indices = @transform_2, window_bounds = array<i64: 1, 128>}, {transform_indices = @transform_3, window_bounds = array<i64: 1, 4, 4, 128>}]} {
    %cst = arith.constant 0.000000e+00 : f32
    %0 = vector.broadcast %cst : f32 to vector<16x128xf32>
    %c6_i32 = arith.constant 6 : i32
    %1 = arith.muli %arg1, %c6_i32 : i32
    %c4_i32 = arith.constant 4 : i32
    %2 = arith.muli %arg2, %c4_i32 : i32
    %3 = arith.addi %1, %2 : i32
    %c0_i32 = arith.constant 0 : i32
    %4 = arith.addi %3, %c0_i32 : i32
    %5 = arith.index_cast %4 : i32 to index
    %c0 = arith.constant 0 : index
    %c0_0 = arith.constant 0 : index
    %6 = vector.load %arg3[%5, %c0, %c0_0] : memref<12x6x128xbf16, #tpu.memory_space<vmem>>, vector<4x6x128xbf16>
    %7 = vector.extract_strided_slice %6 {offsets = [0, 0, 0], sizes = [4, 4, 128], strides = [1, 1, 1]} : vector<4x6x128xbf16> to vector<4x4x128xbf16>
    %8 = vector.shape_cast %7 : vector<4x4x128xbf16> to vector<16x128xbf16>
    %c0_1 = arith.constant 0 : index
    %c0_2 = arith.constant 0 : index
    %c0_3 = arith.constant 0 : index
    %9 = vector.load %arg4[%c0_1, %c0_2, %c0_3] : memref<9x128x128xbf16, #tpu.memory_space<vmem>>, vector<1x128x128xbf16>
    %10 = vector.shape_cast %9 : vector<1x128x128xbf16> to vector<128x128xbf16>
    %cst_4 = arith.constant dense<0.000000e+00> : vector<16x128xf32>
    %11 = tpu.matmul %8, %10, %cst_4 {dimension_numbers = #tpu.dot_dimension_numbers<[1], [0], [0], [1], [0, 0, 1, 1], [], []>} : vector<16x128xbf16>, vector<128x128xbf16>, vector<16x128xf32> -> vector<16x128xf32>
    %12 = arith.addf %0, %11 : vector<16x128xf32>
    %13 = vector.extract_strided_slice %6 {offsets = [0, 1, 0], sizes = [4, 4, 128], strides = [1, 1, 1]} : vector<4x6x128xbf16> to vector<4x4x128xbf16>
    %14 = vector.shape_cast %13 : vector<4x4x128xbf16> to vector<16x128xbf16>
    %c1 = arith.constant 1 : index
    %c0_5 = arith.constant 0 : index
    %c0_6 = arith.constant 0 : index
    %15 = vector.load %arg4[%c1, %c0_5, %c0_6] : memref<9x128x128xbf16, #tpu.memory_space<vmem>>, vector<1x128x128xbf16>
    %16 = vector.shape_cast %15 : vector<1x128x128xbf16> to vector<128x128xbf16>
    %cst_7 = arith.constant dense<0.000000e+00> : vector<16x128xf32>
    %17 = tpu.matmul %14, %16, %cst_7 {dimension_numbers = #tpu.dot_dimension_numbers<[1], [0], [0], [1], [0, 0, 1, 1], [], []>} : vector<16x128xbf16>, vector<128x128xbf16>, vector<16x128xf32> -> vector<16x128xf32>
    %18 = arith.addf %12, %17 : vector<16x128xf32>
    %19 = vector.extract_strided_slice %6 {offsets = [0, 2, 0], sizes = [4, 4, 128], strides = [1, 1, 1]} : vector<4x6x128xbf16> to vector<4x4x128xbf16>
    %20 = vector.shape_cast %19 : vector<4x4x128xbf16> to vector<16x128xbf16>
    %c2 = arith.constant 2 : index
    %c0_8 = arith.constant 0 : index
    %c0_9 = arith.constant 0 : index
    %21 = vector.load %arg4[%c2, %c0_8, %c0_9] : memref<9x128x128xbf16, #tpu.memory_space<vmem>>, vector<1x128x128xbf16>
    %22 = vector.shape_cast %21 : vector<1x128x128xbf16> to vector<128x128xbf16>
    %cst_10 = arith.constant dense<0.000000e+00> : vector<16x128xf32>
    %23 = tpu.matmul %20, %22, %cst_10 {dimension_numbers = #tpu.dot_dimension_numbers<[1], [0], [0], [1], [0, 0, 1, 1], [], []>} : vector<16x128xbf16>, vector<128x128xbf16>, vector<16x128xf32> -> vector<16x128xf32>
    %24 = arith.addf %18, %23 : vector<16x128xf32>
    %c6_i32_11 = arith.constant 6 : i32
    %25 = arith.muli %arg1, %c6_i32_11 : i32
    %c4_i32_12 = arith.constant 4 : i32
    %26 = arith.muli %arg2, %c4_i32_12 : i32
    %27 = arith.addi %25, %26 : i32
    %c1_i32 = arith.constant 1 : i32
    %28 = arith.addi %27, %c1_i32 : i32
    %29 = arith.index_cast %28 : i32 to index
    %c0_13 = arith.constant 0 : index
    %c0_14 = arith.constant 0 : index
    %30 = vector.load %arg3[%29, %c0_13, %c0_14] : memref<12x6x128xbf16, #tpu.memory_space<vmem>>, vector<4x6x128xbf16>
    %31 = vector.extract_strided_slice %30 {offsets = [0, 0, 0], sizes = [4, 4, 128], strides = [1, 1, 1]} : vector<4x6x128xbf16> to vector<4x4x128xbf16>
    %32 = vector.shape_cast %31 : vector<4x4x128xbf16> to vector<16x128xbf16>
    %c3 = arith.constant 3 : index
    %c0_15 = arith.constant 0 : index
    %c0_16 = arith.constant 0 : index
    %33 = vector.load %arg4[%c3, %c0_15, %c0_16] : memref<9x128x128xbf16, #tpu.memory_space<vmem>>, vector<1x128x128xbf16>
    %34 = vector.shape_cast %33 : vector<1x128x128xbf16> to vector<128x128xbf16>
    %cst_17 = arith.constant dense<0.000000e+00> : vector<16x128xf32>
    %35 = tpu.matmul %32, %34, %cst_17 {dimension_numbers = #tpu.dot_dimension_numbers<[1], [0], [0], [1], [0, 0, 1, 1], [], []>} : vector<16x128xbf16>, vector<128x128xbf16>, vector<16x128xf32> -> vector<16x128xf32>
    %36 = arith.addf %24, %35 : vector<16x128xf32>
    %37 = vector.extract_strided_slice %30 {offsets = [0, 1, 0], sizes = [4, 4, 128], strides = [1, 1, 1]} : vector<4x6x128xbf16> to vector<4x4x128xbf16>
    %38 = vector.shape_cast %37 : vector<4x4x128xbf16> to vector<16x128xbf16>
    %c4 = arith.constant 4 : index
    %c0_18 = arith.constant 0 : index
    %c0_19 = arith.constant 0 : index
    %39 = vector.load %arg4[%c4, %c0_18, %c0_19] : memref<9x128x128xbf16, #tpu.memory_space<vmem>>, vector<1x128x128xbf16>
    %40 = vector.shape_cast %39 : vector<1x128x128xbf16> to vector<128x128xbf16>
    %cst_20 = arith.constant dense<0.000000e+00> : vector<16x128xf32>
    %41 = tpu.matmul %38, %40, %cst_20 {dimension_numbers = #tpu.dot_dimension_numbers<[1], [0], [0], [1], [0, 0, 1, 1], [], []>} : vector<16x128xbf16>, vector<128x128xbf16>, vector<16x128xf32> -> vector<16x128xf32>
    %42 = arith.addf %36, %41 : vector<16x128xf32>
    %43 = vector.extract_strided_slice %30 {offsets = [0, 2, 0], sizes = [4, 4, 128], strides = [1, 1, 1]} : vector<4x6x128xbf16> to vector<4x4x128xbf16>
    %44 = vector.shape_cast %43 : vector<4x4x128xbf16> to vector<16x128xbf16>
    %c5 = arith.constant 5 : index
    %c0_21 = arith.constant 0 : index
    %c0_22 = arith.constant 0 : index
    %45 = vector.load %arg4[%c5, %c0_21, %c0_22] : memref<9x128x128xbf16, #tpu.memory_space<vmem>>, vector<1x128x128xbf16>
    %46 = vector.shape_cast %45 : vector<1x128x128xbf16> to vector<128x128xbf16>
    %cst_23 = arith.constant dense<0.000000e+00> : vector<16x128xf32>
    %47 = tpu.matmul %44, %46, %cst_23 {dimension_numbers = #tpu.dot_dimension_numbers<[1], [0], [0], [1], [0, 0, 1, 1], [], []>} : vector<16x128xbf16>, vector<128x128xbf16>, vector<16x128xf32> -> vector<16x128xf32>
    %48 = arith.addf %42, %47 : vector<16x128xf32>
    %c6_i32_24 = arith.constant 6 : i32
    %49 = arith.muli %arg1, %c6_i32_24 : i32
    %c4_i32_25 = arith.constant 4 : i32
    %50 = arith.muli %arg2, %c4_i32_25 : i32
    %51 = arith.addi %49, %50 : i32
    %c2_i32 = arith.constant 2 : i32
    %52 = arith.addi %51, %c2_i32 : i32
    %53 = arith.index_cast %52 : i32 to index
    %c0_26 = arith.constant 0 : index
    %c0_27 = arith.constant 0 : index
    %54 = vector.load %arg3[%53, %c0_26, %c0_27] : memref<12x6x128xbf16, #tpu.memory_space<vmem>>, vector<4x6x128xbf16>
    %55 = vector.extract_strided_slice %54 {offsets = [0, 0, 0], sizes = [4, 4, 128], strides = [1, 1, 1]} : vector<4x6x128xbf16> to vector<4x4x128xbf16>
    %56 = vector.shape_cast %55 : vector<4x4x128xbf16> to vector<16x128xbf16>
    %c6 = arith.constant 6 : index
    %c0_28 = arith.constant 0 : index
    %c0_29 = arith.constant 0 : index
    %57 = vector.load %arg4[%c6, %c0_28, %c0_29] : memref<9x128x128xbf16, #tpu.memory_space<vmem>>, vector<1x128x128xbf16>
    %58 = vector.shape_cast %57 : vector<1x128x128xbf16> to vector<128x128xbf16>
    %cst_30 = arith.constant dense<0.000000e+00> : vector<16x128xf32>
    %59 = tpu.matmul %56, %58, %cst_30 {dimension_numbers = #tpu.dot_dimension_numbers<[1], [0], [0], [1], [0, 0, 1, 1], [], []>} : vector<16x128xbf16>, vector<128x128xbf16>, vector<16x128xf32> -> vector<16x128xf32>
    %60 = arith.addf %48, %59 : vector<16x128xf32>
    %61 = vector.extract_strided_slice %54 {offsets = [0, 1, 0], sizes = [4, 4, 128], strides = [1, 1, 1]} : vector<4x6x128xbf16> to vector<4x4x128xbf16>
    %62 = vector.shape_cast %61 : vector<4x4x128xbf16> to vector<16x128xbf16>
    %c7 = arith.constant 7 : index
    %c0_31 = arith.constant 0 : index
    %c0_32 = arith.constant 0 : index
    %63 = vector.load %arg4[%c7, %c0_31, %c0_32] : memref<9x128x128xbf16, #tpu.memory_space<vmem>>, vector<1x128x128xbf16>
    %64 = vector.shape_cast %63 : vector<1x128x128xbf16> to vector<128x128xbf16>
    %cst_33 = arith.constant dense<0.000000e+00> : vector<16x128xf32>
    %65 = tpu.matmul %62, %64, %cst_33 {dimension_numbers = #tpu.dot_dimension_numbers<[1], [0], [0], [1], [0, 0, 1, 1], [], []>} : vector<16x128xbf16>, vector<128x128xbf16>, vector<16x128xf32> -> vector<16x128xf32>
    %66 = arith.addf %60, %65 : vector<16x128xf32>
    %67 = vector.extract_strided_slice %54 {offsets = [0, 2, 0], sizes = [4, 4, 128], strides = [1, 1, 1]} : vector<4x6x128xbf16> to vector<4x4x128xbf16>
    %68 = vector.shape_cast %67 : vector<4x4x128xbf16> to vector<16x128xbf16>
    %c8 = arith.constant 8 : index
    %c0_34 = arith.constant 0 : index
    %c0_35 = arith.constant 0 : index
    %69 = vector.load %arg4[%c8, %c0_34, %c0_35] : memref<9x128x128xbf16, #tpu.memory_space<vmem>>, vector<1x128x128xbf16>
    %70 = vector.shape_cast %69 : vector<1x128x128xbf16> to vector<128x128xbf16>
    %cst_36 = arith.constant dense<0.000000e+00> : vector<16x128xf32>
    %71 = tpu.matmul %68, %70, %cst_36 {dimension_numbers = #tpu.dot_dimension_numbers<[1], [0], [0], [1], [0, 0, 1, 1], [], []>} : vector<16x128xbf16>, vector<128x128xbf16>, vector<16x128xf32> -> vector<16x128xf32>
    %72 = arith.addf %66, %71 : vector<16x128xf32>
    %c0_37 = arith.constant 0 : index
    %c0_38 = arith.constant 0 : index
    %73 = vector.load %arg5[%c0_37, %c0_38] : memref<1x128xf32, #tpu.memory_space<vmem>>, vector<1x128xf32>
    %74 = vector.broadcast %73 : vector<1x128xf32> to vector<16x128xf32>
    %75 = arith.addf %72, %74 : vector<16x128xf32>
    %76 = vector.shape_cast %75 : vector<16x128xf32> to vector<4x4x128xf32>
    %cst_39 = arith.constant 0.000000e+00 : f32
    %77 = vector.broadcast %cst_39 : f32 to vector<4x4x128xf32>
    %78 = arith.maximumf %76, %77 : vector<4x4x128xf32>
    %79 = arith.truncf %78 : vector<4x4x128xf32> to vector<4x4x128xbf16>
    %c0_40 = arith.constant 0 : index
    %c0_41 = arith.constant 0 : index
    %c0_42 = arith.constant 0 : index
    %c0_43 = arith.constant 0 : index
    %80 = vector.load %arg6[%c0_40, %c0_41, %c0_42, %c0_43] : memref<1x4x4x128xbf16, #tpu.memory_space<vmem>>, vector<1x4x4x128xbf16>
    %81 = vector.shape_cast %80 : vector<1x4x4x128xbf16> to vector<4x4x128xbf16>
    %82 = vector.shape_cast %79 : vector<4x4x128xbf16> to vector<1x4x4x128xbf16>
    tpu.vector_store %arg6[%c0_40, %c0_41, %c0_42, %c0_43], %82 {strides = array<i32>} : memref<1x4x4x128xbf16, #tpu.memory_space<vmem>>, vector<1x4x4x128xbf16>,
    return
  }
  func.func @transform_0(%arg0: i32, %arg1: i32, %arg2: i32) -> (i32, i32, i32) {
    %c0_i32 = arith.constant 0 : i32
    %c0_i32_0 = arith.constant 0 : i32
    %c0_i32_1 = arith.constant 0 : i32
    %c0_i32_2 = arith.constant 0 : i32
    return %c0_i32, %c0_i32_0, %c0_i32_1 : i32, i32, i32
  }
  func.func @transform_1(%arg0: i32, %arg1: i32, %arg2: i32) -> (i32, i32, i32) {
    %c0_i32 = arith.constant 0 : i32
    %c0_i32_0 = arith.constant 0 : i32
    %c0_i32_1 = arith.constant 0 : i32
    return %c0_i32, %c0_i32_0, %arg0 : i32, i32, i32
  }
  func.func @transform_2(%arg0: i32, %arg1: i32, %arg2: i32) -> (i32, i32) {
    %c0_i32 = arith.constant 0 : i32
    %c0_i32_0 = arith.constant 0 : i32
    return %c0_i32, %arg0 : i32, i32
  }
  func.func @transform_3(%arg0: i32, %arg1: i32, %arg2: i32) -> (i32, i32, i32, i32) {
    %c0_i32 = arith.constant 0 : i32
    %c0_i32_0 = arith.constant 0 : i32
    return %arg1, %arg2, %c0_i32, %arg0 : i32, i32, i32, i32
  }
}

</mosaic_0001>

<llo_original>
// kernel: cnn_forward.9
$region0: #{cnn_forward.9}
  #allocation0 [shape = 'u32[]', space=smem, size = 0x4, offset = 0x4, fixed_abs, tag = 'smem constant byte address 0x4 - core index']
  #allocation1 [shape = 'u32[144,128]{1,0:T(1,128)}', space=vmem, size = 0x12000, scoped, tag = 'internal scratch']
  %s0 = inlined_call_operand.vmem [shape: bf16[18,9,128], index: 0, kind: input, shape index: {}]
  %s1 = inlined_call_operand.vmem [shape: bf16[18,9,128], index: 1, kind: input, shape index: {}]
  %s2 = inlined_call_operand.vmem [shape: bf16[18,9,128], index: 2, kind: input, shape index: {}]
  %s3 = inlined_call_operand.vmem [shape: bf16[18,9,128], index: 3, kind: input, shape index: {}]
  %s4 = inlined_call_operand.vmem [shape: bf16[2,8,8,128], index: 4, kind: output, shape index: {}]
  %s5 = sld [smem:[#allocation0]]
  $region49: #{cnn_forward.9} parent=0
    _
  %s7 = ssub.s32 1, %s5
  %s8 = scalar_select 0, %s7, %s5
  loop: start=0, step=1, limit=4
  $region2: #{cnn_forward.9} parent=0 // loop_pre_header
    _
  $region3: #{cnn_forward.9} parent=0 // loop_header
    %s10 = sphi 0, %s14
    %p11 = scmp.ge.s32.totalorder %s10, 4
    %s18 = sphi 0, %s18
    %s20 = sphi 0, %s18
    %s21 = sphi 0, %s20
    %s35 = sphi 0, %s21
    %s39 = sphi 0, %s39
    %s41 = sphi 0, %s39
    %s42 = sphi 0, %s41
    %s56 = sphi 0, %s42
    %s60 = sphi 0, %s60
    %s62 = sphi 0, %s60
    %s63 = sphi 0, %s62
    %s77 = sphi 0, %s63
    %s81 = sphi 0, %s81
    %s83 = sphi 0, %s81
    %s84 = sphi 0, %s83
    %s98 = sphi 0, %s84
    %s104 = sphi 0, %s106
    %s107 = sphi 0, %s104
    %s108 = sphi 0, %s107
    %s124 = sphi 0, %s108
  $region4: #{cnn_forward.9} parent=0 // loop_header_branch
    %13 = sbr.rel (%p11) target = $region8
  $region5: #{cnn_forward.9} parent=0 // loop_body
    %s15 = ssub.s32 %s10, 1
    %s16 = ssub.s32 %s10, 2
    %s17 = sadd.s32 %s10, 1
    %s19 = sadd.s32 %s18, 1
    %p22 = scmp.eq.s32.totalorder %s10, 1
    %p23 = scmp.ne.s32.totalorder %s18, %s20
    %p24 = scmp.eq.s32.totalorder %s10, 0
    %p25 = por %p23, %p24
    %p26 = scmp.ne.s32.totalorder %s18, %s20
    %p27 = scmp.eq.s32.totalorder %s15, 1
    %p28 = por %p26, %p27
    %p29 = scmp.ne.s32.totalorder %s20, %s21
    %p30 = scmp.eq.s32.totalorder %s15, 0
    %p31 = por %p29, %p30
    %p32 = scmp.ne.s32.totalorder %s20, %s21
    %p33 = scmp.eq.s32.totalorder %s16, 1
    %p34 = por %p32, %p33
    %p36 = scmp.ne.s32.totalorder %s21, %s35
    %p37 = scmp.eq.s32.totalorder %s16, 0
    %p38 = por %p36, %p37
    %s40 = sadd.s32 %s39, 1
    %p43 = scmp.eq.s32.totalorder %s10, 1
    %p44 = scmp.ne.s32.totalorder %s39, %s41
    %p45 = scmp.eq.s32.totalorder %s10, 0
    %p46 = por %p44, %p45
    %p47 = scmp.ne.s32.totalorder %s39, %s41
    %p48 = scmp.eq.s32.totalorder %s15, 1
    %p49 = por %p47, %p48
    %p50 = scmp.ne.s32.totalorder %s41, %s42
    %p51 = scmp.eq.s32.totalorder %s15, 0
    %p52 = por %p50, %p51
    %p53 = scmp.ne.s32.totalorder %s41, %s42
    %p54 = scmp.eq.s32.totalorder %s16, 1
    %p55 = por %p53, %p54
    %p57 = scmp.ne.s32.totalorder %s42, %s56
    %p58 = scmp.eq.s32.totalorder %s16, 0
    %p59 = por %p57, %p58
    %s61 = sadd.s32 %s60, 1
    %p64 = scmp.eq.s32.totalorder %s10, 1
    %p65 = scmp.ne.s32.totalorder %s60, %s62
    %p66 = scmp.eq.s32.totalorder %s10, 0
    %p67 = por %p65, %p66
    %p68 = scmp.ne.s32.totalorder %s60, %s62
    %p69 = scmp.eq.s32.totalorder %s15, 1
    %p70 = por %p68, %p69
    %p71 = scmp.ne.s32.totalorder %s62, %s63
    %p72 = scmp.eq.s32.totalorder %s15, 0
    %p73 = por %p71, %p72
    %p74 = scmp.ne.s32.totalorder %s62, %s63
    %p75 = scmp.eq.s32.totalorder %s16, 1
    %p76 = por %p74, %p75
    %p78 = scmp.ne.s32.totalorder %s63, %s77
    %p79 = scmp.eq.s32.totalorder %s16, 0
    %p80 = por %p78, %p79
    %s82 = sadd.s32 %s81, 1
    %p85 = scmp.eq.s32.totalorder %s10, 1
    %p86 = scmp.ne.s32.totalorder %s81, %s83
    %p87 = scmp.eq.s32.totalorder %s10, 0
    %p88 = por %p86, %p87
    %p89 = scmp.ne.s32.totalorder %s81, %s83
    %p90 = scmp.eq.s32.totalorder %s15, 1
    %p91 = por %p89, %p90
    %p92 = scmp.ne.s32.totalorder %s83, %s84
    %p93 = scmp.eq.s32.totalorder %s15, 0
    %p94 = por %p92, %p93
    %p95 = scmp.ne.s32.totalorder %s83, %s84
    %p96 = scmp.eq.s32.totalorder %s16, 1
    %p97 = por %p95, %p96
    %p99 = scmp.ne.s32.totalorder %s84, %s98
    %p100 = scmp.eq.s32.totalorder %s16, 0
    %p101 = por %p99, %p100
    %s102 = ssub.s32 %s10, %s17
    %p103 = scmp.eq.s32.totalorder %s102, 0
    %s105 = sadd.s32 %s104, 1
    %s106 = scalar_select %p103, %s104, %s105
    %p109 = pneg %p103
    %p110 = scmp.eq.s32.totalorder %s10, 1
    %p111 = por %p109, %p110
    %p112 = scmp.ne.s32.totalorder %s104, %s107
    %p113 = scmp.eq.s32.totalorder %s10, 0
    %p114 = por %p112, %p113
    %p115 = scmp.ne.s32.totalorder %s104, %s107
    %p116 = scmp.eq.s32.totalorder %s15, 1
    %p117 = por %p115, %p116
    %p118 = scmp.ne.s32.totalorder %s107, %s108
    %p119 = scmp.eq.s32.totalorder %s15, 0
    %p120 = por %p118, %p119
    %p121 = scmp.ne.s32.totalorder %s107, %s108
    %p122 = scmp.eq.s32.totalorder %s16, 1
    %p123 = por %p121, %p122
    %p125 = scmp.ne.s32.totalorder %s108, %s124
    %p126 = scmp.eq.s32.totalorder %s16, 0
    %p127 = por %p125, %p126
    %p128 = scmp.le.s32.totalorder 1, %s10
    %p129 = scmp.lt.s32.totalorder %s10, 3
    %p130 = pnand %p128, %p129
    %p131 = pneg %p130
    // Predicated region
    $region9: #{cnn_forward.9} parent=5 // pred_check
      _
    $region10: #{cnn_forward.9} parent=5 // pred_check_branch
      %133 = sbr.rel (%p130) target = $region12
    $region11: #{cnn_forward.9} parent=5 // pred_region
      %s134 = ssub.s32 %s10, 1
      // Predicated region
      $region13: #{cnn_forward.9} parent=11 // pred_check
        %p135 = pneg %p31
      $region14: #{cnn_forward.9} parent=11 // pred_check_branch
        %137 = sbr.rel (%p135) target = $region16
      $region15: #{cnn_forward.9} parent=11 // pred_region
        _
      $region16: #{cnn_forward.9} parent=11 // pred_fallthru
        _
      // Predicated region
      $region17: #{cnn_forward.9} parent=11 // pred_check
        %p138 = pneg %p52
      $region18: #{cnn_forward.9} parent=11 // pred_check_branch
        %140 = sbr.rel (%p138) target = $region20
      $region19: #{cnn_forward.9} parent=11 // pred_region
        _
      $region20: #{cnn_forward.9} parent=11 // pred_fallthru
        _
      // Predicated region
      $region21: #{cnn_forward.9} parent=11 // pred_check
        %p141 = pneg %p73
      $region22: #{cnn_forward.9} parent=11 // pred_check_branch
        %143 = sbr.rel (%p141) target = $region24
      $region23: #{cnn_forward.9} parent=11 // pred_region
        _
      $region24: #{cnn_forward.9} parent=11 // pred_fallthru
        _
      // Predicated region
      $region25: #{cnn_forward.9} parent=11 // pred_check
        %p144 = pneg %p94
      $region26: #{cnn_forward.9} parent=11 // pred_check_branch
        %146 = sbr.rel (%p144) target = $region28
      $region27: #{cnn_forward.9} parent=11 // pred_region
        _
      $region28: #{cnn_forward.9} parent=11 // pred_fallthru
        _
    $region12: #{cnn_forward.9} parent=5 // pred_fallthru
      _
    %p147 = scmp.lt.s32.totalorder %s10, 2
    // Predicated region
    $region29: #{cnn_forward.9} parent=5 // pred_check
      %p148 = pneg %p147
    $region30: #{cnn_forward.9} parent=5 // pred_check_branch
      %150 = sbr.rel (%p148) target = $region32
    $region31: #{cnn_forward.9} parent=5 // pred_region
      _
    $region32: #{cnn_forward.9} parent=5 // pred_fallthru
      _
    %p151 = scmp.le.s32.totalorder 1, %s10
    %p152 = scmp.lt.s32.totalorder %s10, 3
    %p153 = pnand %p151, %p152
    %p154 = pneg %p153
    // Predicated region
    $region33: #{cnn_forward.9} parent=5 // pred_check
      _
    $region34: #{cnn_forward.9} parent=5 // pred_check_branch
      %156 = sbr.rel (%p153) target = $region36
    $region35: #{cnn_forward.9} parent=5 // pred_region
      %s157 = ssub.s32 %s10, 1
      %p158 = pneg %p31
      %p159 = pneg %p28
      %p160 = pneg %p52
      %p161 = pneg %p49
      %p162 = pneg %p73
      %p163 = pneg %p70
      %p164 = pneg %p94
      %p165 = pneg %p91
      %p166 = pneg %p120
      %p167 = pneg %p117
      %p168 = scmp.lt.s32.totalorder %s15, 1
      %s169 = scalar_select %p168, %s15, 1
      %s170 = smul.addr %s169, 8
      %s171 = smul.addr %s170, 4
      %s172 = scalar_lea.vmem %s4, %s171
      %p173 = scmp.lt.s32.totalorder %s15, 1
      %s174 = scalar_select %p173, %s15, 1
      %s175 = smul.addr %s174, 8
      %s176 = smul.addr %s175, 4
      %s177 = scalar_lea.vmem %s4, %s176
      %s178 = smul.u32 %s15, 9
      %s179 = smul.u32 %s178, 2
      %s180 = smul.addr %s179, 4
      %s181 = scalar_lea.vmem %s0, %s180
      %v182 = vld [vmem:[%s181] sm:$0xf]
      %v183 = vld [vmem:[%s181 + $0x4] sm:$0x1]
      %v184 = vld [vmem:[%s181 + $0x8] sm:$0xf]
      %v185 = vld [vmem:[%s181 + $0xc] sm:$0x1]
      %v186 = vld [vmem:[%s181 + $0x10] sm:$0xf]
      %v187 = vld [vmem:[%s181 + $0x14] sm:$0x1]
      %v188 = vld [vmem:[%s181 + $0x18] sm:$0xf]
      %v189 = vld [vmem:[%s181 + $0x1c] sm:$0x1]
      %v190 = vld [vmem:[%s181 + $0x20] sm:$0xf]
      %v191 = vld [vmem:[%s181 + $0x24] sm:$0x1]
      %v192 = vld [vmem:[%s181 + $0x28] sm:$0xf]
      %v193 = vld [vmem:[%s181 + $0x2c] sm:$0x1]
      %v194 = vld [vmem:[%s181 + $0x30] sm:$0xf]
      %v195 = vld [vmem:[%s181 + $0x34] sm:$0x1]
      %v196 = vld [vmem:[%s181 + $0x38] sm:$0xf]
      %v197 = vld [vmem:[%s181 + $0x3c] sm:$0x1]
      %vm198 = vsmask.f32 3328
      %vm199 = vsmask.f32 7440
      %vm200 = vmor %vm198, %vm199
      %v202 = vshrl.u32 %v182, 16
      %v204 = vrot.slane %v202, 4
      %v205 = vshll.u32 %v182, 16
      %v207 = vrot.slane %v205, 5
      %v208 = vor.u32 %v204, %v207
      %v209 = vrot.slane %v208, 4
      %v211 = vshll.u32 %v183, 16
      %v213 = vrot.slane %v211, 5
      %v214 = vsel %vm200, %v209, %v213
      %v216 = vshrl.u32 %v184, 16
      %v218 = vrot.slane %v216, 4
      %v219 = vshll.u32 %v184, 16
      %v221 = vrot.slane %v219, 5
      %v222 = vor.u32 %v218, %v221
      %v223 = vrot.slane %v222, 4
      %v225 = vshll.u32 %v185, 16
      %v227 = vrot.slane %v225, 5
      %v228 = vsel %vm200, %v223, %v227
      %v230 = vshrl.u32 %v186, 16
      %v232 = vrot.slane %v230, 4
      %v233 = vshll.u32 %v186, 16
      %v235 = vrot.slane %v233, 5
      %v236 = vor.u32 %v232, %v235
      %v237 = vrot.slane %v236, 4
      %v239 = vshll.u32 %v187, 16
      %v241 = vrot.slane %v239, 5
      %v242 = vsel %vm200, %v237, %v241
      %v244 = vshrl.u32 %v188, 16
      %v246 = vrot.slane %v244, 4
      %v247 = vshll.u32 %v188, 16
      %v249 = vrot.slane %v247, 5
      %v250 = vor.u32 %v246, %v249
      %v251 = vrot.slane %v250, 4
      %v253 = vshll.u32 %v189, 16
      %v255 = vrot.slane %v253, 5
      %v256 = vsel %vm200, %v251, %v255
      %v258 = vshrl.u32 %v190, 16
      %v260 = vrot.slane %v258, 4
      %v261 = vshll.u32 %v190, 16
      %v263 = vrot.slane %v261, 5
      %v264 = vor.u32 %v260, %v263
      %v265 = vrot.slane %v264, 4
      %v267 = vshll.u32 %v191, 16
      %v269 = vrot.slane %v267, 5
      %v270 = vsel %vm200, %v265, %v269
      %v272 = vshrl.u32 %v192, 16
      %v274 = vrot.slane %v272, 4
      %v275 = vshll.u32 %v192, 16
      %v277 = vrot.slane %v275, 5
      %v278 = vor.u32 %v274, %v277
      %v279 = vrot.slane %v278, 4
      %v281 = vshll.u32 %v193, 16
      %v283 = vrot.slane %v281, 5
      %v284 = vsel %vm200, %v279, %v283
      %v286 = vshrl.u32 %v194, 16
      %v288 = vrot.slane %v286, 4
      %v289 = vshll.u32 %v194, 16
      %v291 = vrot.slane %v289, 5
      %v292 = vor.u32 %v288, %v291
      %v293 = vrot.slane %v292, 4
      %v295 = vshll.u32 %v195, 16
      %v297 = vrot.slane %v295, 5
      %v298 = vsel %vm200, %v293, %v297
      %v300 = vshrl.u32 %v196, 16
      %v302 = vrot.slane %v300, 4
      %v303 = vshll.u32 %v196, 16
      %v305 = vrot.slane %v303, 5
      %v306 = vor.u32 %v302, %v305
      %v307 = vrot.slane %v306, 4
      %v309 = vshll.u32 %v197, 16
      %v311 = vrot.slane %v309, 5
      %v312 = vsel %vm200, %v307, %v311
      %v321 = vmax.bf16 %v182, %v214
      %v322 = vmax.bf16 %v184, %v228
      %v323 = vmax.bf16 %v186, %v242
      %v324 = vmax.bf16 %v188, %v256
      %v325 = vmax.bf16 %v190, %v270
      %v326 = vmax.bf16 %v192, %v284
      %v327 = vmax.bf16 %v194, %v298
      %v328 = vmax.bf16 %v196, %v312
      %s329 = sadd.s32 %s178, 1
      %s330 = smul.u32 %s329, 2
      %s331 = smul.addr %s330, 4
      %s332 = scalar_lea.vmem %s0, %s331
      %v333 = vld [vmem:[%s332] sm:$0xf]
      %v334 = vld [vmem:[%s332 + $0x4] sm:$0x1]
      %v335 = vld [vmem:[%s332 + $0x8] sm:$0xf]
      %v336 = vld [vmem:[%s332 + $0xc] sm:$0x1]
      %v337 = vld [vmem:[%s332 + $0x10] sm:$0xf]
      %v338 = vld [vmem:[%s332 + $0x14] sm:$0x1]
      %v339 = vld [vmem:[%s332 + $0x18] sm:$0xf]
      %v340 = vld [vmem:[%s332 + $0x1c] sm:$0x1]
      %v341 = vld [vmem:[%s332 + $0x20] sm:$0xf]
      %v342 = vld [vmem:[%s332 + $0x24] sm:$0x1]
      %v343 = vld [vmem:[%s332 + $0x28] sm:$0xf]
      %v344 = vld [vmem:[%s332 + $0x2c] sm:$0x1]
      %v345 = vld [vmem:[%s332 + $0x30] sm:$0xf]
      %v346 = vld [vmem:[%s332 + $0x34] sm:$0x1]
      %v347 = vld [vmem:[%s332 + $0x38] sm:$0xf]
      %v348 = vld [vmem:[%s332 + $0x3c] sm:$0x1]
      %v349 = vmax.bf16 %v321, %v333
      %v350 = vmax.bf16 %v322, %v335
      %v351 = vmax.bf16 %v323, %v337
      %v352 = vmax.bf16 %v324, %v339
      %v353 = vmax.bf16 %v325, %v341
      %v354 = vmax.bf16 %v326, %v343
      %v355 = vmax.bf16 %v327, %v345
      %v356 = vmax.bf16 %v328, %v347
      %v358 = vshrl.u32 %v333, 16
      %v360 = vrot.slane %v358, 4
      %v361 = vshll.u32 %v333, 16
      %v363 = vrot.slane %v361, 5
      %v364 = vor.u32 %v360, %v363
      %v365 = vrot.slane %v364, 4
      %v367 = vshll.u32 %v334, 16
      %v369 = vrot.slane %v367, 5
      %v370 = vsel %vm200, %v365, %v369
      %v372 = vshrl.u32 %v335, 16
      %v374 = vrot.slane %v372, 4
      %v375 = vshll.u32 %v335, 16
      %v377 = vrot.slane %v375, 5
      %v378 = vor.u32 %v374, %v377
      %v379 = vrot.slane %v378, 4
      %v381 = vshll.u32 %v336, 16
      %v383 = vrot.slane %v381, 5
      %v384 = vsel %vm200, %v379, %v383
      %v386 = vshrl.u32 %v337, 16
      %v388 = vrot.slane %v386, 4
      %v389 = vshll.u32 %v337, 16
      %v391 = vrot.slane %v389, 5
      %v392 = vor.u32 %v388, %v391
      %v393 = vrot.slane %v392, 4
      %v395 = vshll.u32 %v338, 16
      %v397 = vrot.slane %v395, 5
      %v398 = vsel %vm200, %v393, %v397
      %v400 = vshrl.u32 %v339, 16
      %v402 = vrot.slane %v400, 4
      %v403 = vshll.u32 %v339, 16
      %v405 = vrot.slane %v403, 5
      %v406 = vor.u32 %v402, %v405
      %v407 = vrot.slane %v406, 4
      %v409 = vshll.u32 %v340, 16
      %v411 = vrot.slane %v409, 5
      %v412 = vsel %vm200, %v407, %v411
      %v414 = vshrl.u32 %v341, 16
      %v416 = vrot.slane %v414, 4
      %v417 = vshll.u32 %v341, 16
      %v419 = vrot.slane %v417, 5
      %v420 = vor.u32 %v416, %v419
      %v421 = vrot.slane %v420, 4
      %v423 = vshll.u32 %v342, 16
      %v425 = vrot.slane %v423, 5
      %v426 = vsel %vm200, %v421, %v425
      %v428 = vshrl.u32 %v343, 16
      %v430 = vrot.slane %v428, 4
      %v431 = vshll.u32 %v343, 16
      %v433 = vrot.slane %v431, 5
      %v434 = vor.u32 %v430, %v433
      %v435 = vrot.slane %v434, 4
      %v437 = vshll.u32 %v344, 16
      %v439 = vrot.slane %v437, 5
      %v440 = vsel %vm200, %v435, %v439
      %v442 = vshrl.u32 %v345, 16
      %v444 = vrot.slane %v442, 4
      %v445 = vshll.u32 %v345, 16
      %v447 = vrot.slane %v445, 5
      %v448 = vor.u32 %v444, %v447
      %v449 = vrot.slane %v448, 4
      %v451 = vshll.u32 %v346, 16
      %v453 = vrot.slane %v451, 5
      %v454 = vsel %vm200, %v449, %v453
      %v456 = vshrl.u32 %v347, 16
      %v458 = vrot.slane %v456, 4
      %v459 = vshll.u32 %v347, 16
      %v461 = vrot.slane %v459, 5
      %v462 = vor.u32 %v458, %v461
      %v463 = vrot.slane %v462, 4
      %v465 = vshll.u32 %v348, 16
      %v467 = vrot.slane %v465, 5
      %v468 = vsel %vm200, %v463, %v467
      %v477 = vmax.bf16 %v349, %v370
      %v478 = vmax.bf16 %v350, %v384
      %v479 = vmax.bf16 %v351, %v398
      %v480 = vmax.bf16 %v352, %v412
      %v481 = vmax.bf16 %v353, %v426
      %v482 = vmax.bf16 %v354, %v440
      %v483 = vmax.bf16 %v355, %v454
      %v484 = vmax.bf16 %v356, %v468
      %s485 = smul.addr %s179, 4
      %s486 = scalar_lea.vmem %s1, %s485
      %v487 = vld [vmem:[%s486] sm:$0xf]
      %v488 = vld [vmem:[%s486 + $0x8] sm:$0xf]
      %v489 = vld [vmem:[%s486 + $0x10] sm:$0xf]
      %v490 = vld [vmem:[%s486 + $0x18] sm:$0xf]
      %v491 = vld [vmem:[%s486 + $0x20] sm:$0xf]
      %v492 = vld [vmem:[%s486 + $0x28] sm:$0xf]
      %v493 = vld [vmem:[%s486 + $0x30] sm:$0xf]
      %v494 = vld [vmem:[%s486 + $0x38] sm:$0xf]
      %v495 = vmax.bf16 %v477, %v487
      %v496 = vmax.bf16 %v478, %v488
      %v497 = vmax.bf16 %v479, %v489
      %v498 = vmax.bf16 %v480, %v490
      %v499 = vmax.bf16 %v481, %v491
      %v500 = vmax.bf16 %v482, %v492
      %v501 = vmax.bf16 %v483, %v493
      %v502 = vmax.bf16 %v484, %v494
      %s503 = smul.addr %s330, 4
      %s504 = scalar_lea.vmem %s1, %s503
      %v505 = vld [vmem:[%s504] sm:$0xf]
      %v506 = vld [vmem:[%s504 + $0x8] sm:$0xf]
      %v507 = vld [vmem:[%s504 + $0x10] sm:$0xf]
      %v508 = vld [vmem:[%s504 + $0x18] sm:$0xf]
      %v509 = vld [vmem:[%s504 + $0x20] sm:$0xf]
      %v510 = vld [vmem:[%s504 + $0x28] sm:$0xf]
      %v511 = vld [vmem:[%s504 + $0x30] sm:$0xf]
      %v512 = vld [vmem:[%s504 + $0x38] sm:$0xf]
      %v513 = vmax.bf16 %v495, %v505
      %v514 = vmax.bf16 %v496, %v506
      %v515 = vmax.bf16 %v497, %v507
      %v516 = vmax.bf16 %v498, %v508
      %v517 = vmax.bf16 %v499, %v509
      %v518 = vmax.bf16 %v500, %v510
      %v519 = vmax.bf16 %v501, %v511
      %v520 = vmax.bf16 %v502, %v512
      %s521 = smul.addr %s179, 4
      %s522 = scalar_lea.vmem %s2, %s521
      %v523 = vld [vmem:[%s522] sm:$0xf]
      %v524 = vld [vmem:[%s522 + $0x4] sm:$0x1]
      %v525 = vld [vmem:[%s522 + $0x8] sm:$0xf]
      %v526 = vld [vmem:[%s522 + $0xc] sm:$0x1]
      %v527 = vld [vmem:[%s522 + $0x10] sm:$0xf]
      %v528 = vld [vmem:[%s522 + $0x14] sm:$0x1]
      %v529 = vld [vmem:[%s522 + $0x18] sm:$0xf]
      %v530 = vld [vmem:[%s522 + $0x1c] sm:$0x1]
      %v531 = vld [vmem:[%s522 + $0x20] sm:$0xf]
      %v532 = vld [vmem:[%s522 + $0x24] sm:$0x1]
      %v533 = vld [vmem:[%s522 + $0x28] sm:$0xf]
      %v534 = vld [vmem:[%s522 + $0x2c] sm:$0x1]
      %v535 = vld [vmem:[%s522 + $0x30] sm:$0xf]
      %v536 = vld [vmem:[%s522 + $0x34] sm:$0x1]
      %v537 = vld [vmem:[%s522 + $0x38] sm:$0xf]
      %v538 = vld [vmem:[%s522 + $0x3c] sm:$0x1]
      %v539 = vmax.bf16 %v513, %v523
      %v540 = vmax.bf16 %v514, %v525
      %v541 = vmax.bf16 %v515, %v527
      %v542 = vmax.bf16 %v516, %v529
      %v543 = vmax.bf16 %v517, %v531
      %v544 = vmax.bf16 %v518, %v533
      %v545 = vmax.bf16 %v519, %v535
      %v546 = vmax.bf16 %v520, %v537
      %v548 = vshrl.u32 %v523, 16
      %v550 = vrot.slane %v548, 4
      %v551 = vshll.u32 %v523, 16
      %v553 = vrot.slane %v551, 5
      %v554 = vor.u32 %v550, %v553
      %v555 = vrot.slane %v554, 4
      %v557 = vshll.u32 %v524, 16
      %v559 = vrot.slane %v557, 5
      %v560 = vsel %vm200, %v555, %v559
      %v562 = vshrl.u32 %v525, 16
      %v564 = vrot.slane %v562, 4
      %v565 = vshll.u32 %v525, 16
      %v567 = vrot.slane %v565, 5
      %v568 = vor.u32 %v564, %v567
      %v569 = vrot.slane %v568, 4
      %v571 = vshll.u32 %v526, 16
      %v573 = vrot.slane %v571, 5
      %v574 = vsel %vm200, %v569, %v573
      %v576 = vshrl.u32 %v527, 16
      %v578 = vrot.slane %v576, 4
      %v579 = vshll.u32 %v527, 16
      %v581 = vrot.slane %v579, 5
      %v582 = vor.u32 %v578, %v581
      %v583 = vrot.slane %v582, 4
      %v585 = vshll.u32 %v528, 16
      %v587 = vrot.slane %v585, 5
      %v588 = vsel %vm200, %v583, %v587
      %v590 = vshrl.u32 %v529, 16
      %v592 = vrot.slane %v590, 4
      %v593 = vshll.u32 %v529, 16
      %v595 = vrot.slane %v593, 5
      %v596 = vor.u32 %v592, %v595
      %v597 = vrot.slane %v596, 4
      %v599 = vshll.u32 %v530, 16
      %v601 = vrot.slane %v599, 5
      %v602 = vsel %vm200, %v597, %v601
      %v604 = vshrl.u32 %v531, 16
      %v606 = vrot.slane %v604, 4
      %v607 = vshll.u32 %v531, 16
      %v609 = vrot.slane %v607, 5
      %v610 = vor.u32 %v606, %v609
      %v611 = vrot.slane %v610, 4
      %v613 = vshll.u32 %v532, 16
      %v615 = vrot.slane %v613, 5
      %v616 = vsel %vm200, %v611, %v615
      %v618 = vshrl.u32 %v533, 16
      %v620 = vrot.slane %v618, 4
      %v621 = vshll.u32 %v533, 16
      %v623 = vrot.slane %v621, 5
      %v624 = vor.u32 %v620, %v623
      %v625 = vrot.slane %v624, 4
      %v627 = vshll.u32 %v534, 16
      %v629 = vrot.slane %v627, 5
      %v630 = vsel %vm200, %v625, %v629
      %v632 = vshrl.u32 %v535, 16
      %v634 = vrot.slane %v632, 4
      %v635 = vshll.u32 %v535, 16
      %v637 = vrot.slane %v635, 5
      %v638 = vor.u32 %v634, %v637
      %v639 = vrot.slane %v638, 4
      %v641 = vshll.u32 %v536, 16
      %v643 = vrot.slane %v641, 5
      %v644 = vsel %vm200, %v639, %v643
      %v646 = vshrl.u32 %v537, 16
      %v648 = vrot.slane %v646, 4
      %v649 = vshll.u32 %v537, 16
      %v651 = vrot.slane %v649, 5
      %v652 = vor.u32 %v648, %v651
      %v653 = vrot.slane %v652, 4
      %v655 = vshll.u32 %v538, 16
      %v657 = vrot.slane %v655, 5
      %v658 = vsel %vm200, %v653, %v657
      %v667 = vmax.bf16 %v539, %v560
      %v668 = vmax.bf16 %v540, %v574
      %v669 = vmax.bf16 %v541, %v588
      %v670 = vmax.bf16 %v542, %v602
      %v671 = vmax.bf16 %v543, %v616
      %v672 = vmax.bf16 %v544, %v630
      %v673 = vmax.bf16 %v545, %v644
      %v674 = vmax.bf16 %v546, %v658
      %s675 = smul.addr %s179, 4
      %s676 = scalar_lea.vmem %s3, %s675
      %v677 = vld [vmem:[%s676] sm:$0xf]
      %v678 = vld [vmem:[%s676 + $0x8] sm:$0xf]
      %v679 = vld [vmem:[%s676 + $0x10] sm:$0xf]
      %v680 = vld [vmem:[%s676 + $0x18] sm:$0xf]
      %v681 = vld [vmem:[%s676 + $0x20] sm:$0xf]
      %v682 = vld [vmem:[%s676 + $0x28] sm:$0xf]
      %v683 = vld [vmem:[%s676 + $0x30] sm:$0xf]
      %v684 = vld [vmem:[%s676 + $0x38] sm:$0xf]
      %v685 = vmax.bf16 %v667, %v677
      %v686 = vmax.bf16 %v668, %v678
      %v687 = vmax.bf16 %v669, %v679
      %v688 = vmax.bf16 %v670, %v680
      %v689 = vmax.bf16 %v671, %v681
      %v690 = vmax.bf16 %v672, %v682
      %v691 = vmax.bf16 %v673, %v683
      %v692 = vmax.bf16 %v674, %v684
      %693 = vst [vmem:[%s177] sm:$0xf] %v685
      %694 = vst [vmem:[%s177 + $0x4] sm:$0xf] %v686
      %695 = vst [vmem:[%s177 + $0x8] sm:$0xf] %v687
      %696 = vst [vmem:[%s177 + $0xc] sm:$0xf] %v688
      %697 = vst [vmem:[%s177 + $0x10] sm:$0xf] %v689
      %698 = vst [vmem:[%s177 + $0x14] sm:$0xf] %v690
      %699 = vst [vmem:[%s177 + $0x18] sm:$0xf] %v691
      %700 = vst [vmem:[%s177 + $0x1c] sm:$0xf] %v692
      %p701 = scmp.lt.s32.totalorder %s15, 1
      %s702 = scalar_select %p701, %s15, 1
      %s703 = smul.addr %s702, 8
      %s704 = smul.addr %s703, 4
      %s705 = scalar_lea.vmem %s4, %s704
      // Predicated region
      $region37: #{cnn_forward.9} parent=35 // pred_check
        %p706 = pneg %p117
      $region38: #{cnn_forward.9} parent=35 // pred_check_branch
        %708 = sbr.rel (%p706) target = $region40
      $region39: #{cnn_forward.9} parent=35 // pred_region
        _
      $region40: #{cnn_forward.9} parent=35 // pred_fallthru
        _
    $region36: #{cnn_forward.9} parent=5 // pred_fallthru
      _
    %p709 = scmp.le.s32.totalorder 2, %s10
    // Predicated region
    $region41: #{cnn_forward.9} parent=5 // pred_check
      %p710 = pneg %p709
    $region42: #{cnn_forward.9} parent=5 // pred_check_branch
      %712 = sbr.rel (%p710) target = $region44
    $region43: #{cnn_forward.9} parent=5 // pred_region
      %s713 = ssub.s32 %s10, 2
      // Predicated region
      $region45: #{cnn_forward.9} parent=43 // pred_check
        %p714 = pneg %p123
      $region46: #{cnn_forward.9} parent=43 // pred_check_branch
        %716 = sbr.rel (%p714) target = $region48
      $region47: #{cnn_forward.9} parent=43 // pred_region
        %p717 = scmp.lt.s32.totalorder %s16, 1
        %s718 = scalar_select %p717, %s16, 1
        %s719 = smul.addr %s718, 8
        %s720 = smul.addr %s719, 4
        %s721 = scalar_lea.vmem %s4, %s720
      $region48: #{cnn_forward.9} parent=43 // pred_fallthru
        _
    $region44: #{cnn_forward.9} parent=5 // pred_fallthru
      _
  $region6: #{cnn_forward.9} parent=0 // loop_footer
    %s14 = sadd.s32 1, %s10
  $region7: #{cnn_forward.9} parent=0 // loop_footer_branch
    %9 = sbr.rel target = $region3
  $region8: #{cnn_forward.9} parent=0 // loop_exit
    _

// kernel: cnn_forward.11
$region0: #{cnn_forward.11}
  #allocation0 [shape = 'u32[]', space=smem, size = 0x4, offset = 0x4, fixed_abs, tag = 'smem constant byte address 0x4 - core index']
  #allocation1 [shape = 'u32[144,128]{1,0:T(1,128)}', space=vmem, size = 0x12000, scoped, tag = 'internal scratch']
  %s0 = inlined_call_operand.vmem [shape: bf16[20,10,128], index: 0, kind: input, shape index: {}]
  %s1 = inlined_call_operand.vmem [shape: bf16[9,128,128], index: 1, kind: input, shape index: {}]
  %s2 = inlined_call_operand.vmem [shape: f32[1,128], index: 2, kind: input, shape index: {}]
  %s3 = inlined_call_operand.vmem [shape: bf16[2,8,8,128], index: 3, kind: input, shape index: {}]
  %s4 = inlined_call_operand.vmem [shape: bf16[2,8,8,128], index: 4, kind: output, shape index: {}]
  %s5 = sld [smem:[#allocation0]]
  $region49: #{cnn_forward.11} parent=0
    _
  %s7 = ssub.s32 1, %s5
  %s8 = scalar_select 0, %s7, %s5
  loop: start=0, step=1, limit=4
  $region2: #{cnn_forward.11} parent=0 // loop_pre_header
    _
  $region3: #{cnn_forward.11} parent=0 // loop_header
    %s10 = sphi 0, %s14
    %p11 = scmp.ge.s32.totalorder %s10, 4
    %s17 = sphi 0, %s36
    %s18 = sphi 0, %s32
    %s19 = sphi 0, %s28
    %s20 = sphi 0, %s17
    %s21 = sphi 0, %s18
    %s22 = sphi 0, %s19
    %s23 = sphi 0, %s20
    %s24 = sphi 0, %s21
    %s25 = sphi 0, %s22
    %s37 = sphi 0, %s37
    %s39 = sphi 0, %s37
    %s40 = sphi 0, %s39
    %s54 = sphi 0, %s40
    %s60 = sphi 0, %s62
    %s63 = sphi 0, %s60
    %s64 = sphi 0, %s63
    %s80 = sphi 0, %s64
    %s86 = sphi 0, %s88
    %s89 = sphi 0, %s86
    %s90 = sphi 0, %s89
    %s106 = sphi 0, %s90
    %s116 = sphi 0, %s118
    %s119 = sphi 0, %s116
    %s120 = sphi 0, %s119
    %s136 = sphi 0, %s120
    %s146 = sphi 0, %s148
    %s149 = sphi 0, %s146
    %s150 = sphi 0, %s149
    %s166 = sphi 0, %s150
  $region4: #{cnn_forward.11} parent=0 // loop_header_branch
    %13 = sbr.rel (%p11) target = $region8
  $region5: #{cnn_forward.11} parent=0 // loop_body
    %s15 = ssub.s32 %s10, 1
    %s16 = ssub.s32 %s10, 2
    %s26 = sadd.s32 1, %s19
    %p27 = scmp.ge.s32.totalorder %s26, 1
    %s28 = scalar_select %p27, 0, %s26
    %s29 = sadd.s32 1, %s18
    %s30 = scalar_select %p27, %s29, %s18
    %p31 = scmp.ge.s32.totalorder %s30, 2
    %s32 = scalar_select %p31, 0, %s30
    %s33 = sadd.s32 1, %s17
    %s34 = scalar_select %p31, %s33, %s17
    %p35 = scmp.ge.s32.totalorder %s34, 1
    %s36 = scalar_select %p35, 0, %s34
    %s38 = sadd.s32 %s37, 1
    %p41 = scmp.eq.s32.totalorder %s10, 1
    %p42 = scmp.ne.s32.totalorder %s37, %s39
    %p43 = scmp.eq.s32.totalorder %s10, 0
    %p44 = por %p42, %p43
    %p45 = scmp.ne.s32.totalorder %s37, %s39
    %p46 = scmp.eq.s32.totalorder %s15, 1
    %p47 = por %p45, %p46
    %p48 = scmp.ne.s32.totalorder %s39, %s40
    %p49 = scmp.eq.s32.totalorder %s15, 0
    %p50 = por %p48, %p49
    %p51 = scmp.ne.s32.totalorder %s39, %s40
    %p52 = scmp.eq.s32.totalorder %s16, 1
    %p53 = por %p51, %p52
    %p55 = scmp.ne.s32.totalorder %s40, %s54
    %p56 = scmp.eq.s32.totalorder %s16, 0
    %p57 = por %p55, %p56
    %s58 = ssub.s32 %s17, %s36
    %p59 = scmp.eq.s32.totalorder %s58, 0
    %s61 = sadd.s32 %s60, 1
    %s62 = scalar_select %p59, %s60, %s61
    %p65 = pneg %p59
    %p66 = scmp.eq.s32.totalorder %s10, 1
    %p67 = por %p65, %p66
    %p68 = scmp.ne.s32.totalorder %s60, %s63
    %p69 = scmp.eq.s32.totalorder %s10, 0
    %p70 = por %p68, %p69
    %p71 = scmp.ne.s32.totalorder %s60, %s63
    %p72 = scmp.eq.s32.totalorder %s15, 1
    %p73 = por %p71, %p72
    %p74 = scmp.ne.s32.totalorder %s63, %s64
    %p75 = scmp.eq.s32.totalorder %s15, 0
    %p76 = por %p74, %p75
    %p77 = scmp.ne.s32.totalorder %s63, %s64
    %p78 = scmp.eq.s32.totalorder %s16, 1
    %p79 = por %p77, %p78
    %p81 = scmp.ne.s32.totalorder %s64, %s80
    %p82 = scmp.eq.s32.totalorder %s16, 0
    %p83 = por %p81, %p82
    %s84 = ssub.s32 %s17, %s36
    %p85 = scmp.eq.s32.totalorder %s84, 0
    %s87 = sadd.s32 %s86, 1
    %s88 = scalar_select %p85, %s86, %s87
    %p91 = pneg %p85
    %p92 = scmp.eq.s32.totalorder %s10, 1
    %p93 = por %p91, %p92
    %p94 = scmp.ne.s32.totalorder %s86, %s89
    %p95 = scmp.eq.s32.totalorder %s10, 0
    %p96 = por %p94, %p95
    %p97 = scmp.ne.s32.totalorder %s86, %s89
    %p98 = scmp.eq.s32.totalorder %s15, 1
    %p99 = por %p97, %p98
    %p100 = scmp.ne.s32.totalorder %s89, %s90
    %p101 = scmp.eq.s32.totalorder %s15, 0
    %p102 = por %p100, %p101
    %p103 = scmp.ne.s32.totalorder %s89, %s90
    %p104 = scmp.eq.s32.totalorder %s16, 1
    %p105 = por %p103, %p104
    %p107 = scmp.ne.s32.totalorder %s90, %s106
    %p108 = scmp.eq.s32.totalorder %s16, 0
    %p109 = por %p107, %p108
    %s110 = ssub.s32 %s18, %s32
    %s111 = ssub.s32 %s19, %s28
    %s112 = sor.u32 %s110, %s111
    %s113 = ssub.s32 %s17, %s36
    %s114 = sor.u32 %s112, %s113
    %p115 = scmp.eq.s32.totalorder %s114, 0
    %s117 = sadd.s32 %s116, 1
    %s118 = scalar_select %p115, %s116, %s117
    %p121 = pneg %p115
    %p122 = scmp.eq.s32.totalorder %s10, 1
    %p123 = por %p121, %p122
    %p124 = scmp.ne.s32.totalorder %s116, %s119
    %p125 = scmp.eq.s32.totalorder %s10, 0
    %p126 = por %p124, %p125
    %p127 = scmp.ne.s32.totalorder %s116, %s119
    %p128 = scmp.eq.s32.totalorder %s15, 1
    %p129 = por %p127, %p128
    %p130 = scmp.ne.s32.totalorder %s119, %s120
    %p131 = scmp.eq.s32.totalorder %s15, 0
    %p132 = por %p130, %p131
    %p133 = scmp.ne.s32.totalorder %s119, %s120
    %p134 = scmp.eq.s32.totalorder %s16, 1
    %p135 = por %p133, %p134
    %p137 = scmp.ne.s32.totalorder %s120, %s136
    %p138 = scmp.eq.s32.totalorder %s16, 0
    %p139 = por %p137, %p138
    %s140 = ssub.s32 %s18, %s32
    %s141 = ssub.s32 %s19, %s28
    %s142 = sor.u32 %s140, %s141
    %s143 = ssub.s32 %s17, %s36
    %s144 = sor.u32 %s142, %s143
    %p145 = scmp.eq.s32.totalorder %s144, 0
    %s147 = sadd.s32 %s146, 1
    %s148 = scalar_select %p145, %s146, %s147
    %p151 = pneg %p145
    %p152 = scmp.eq.s32.totalorder %s10, 1
    %p153 = por %p151, %p152
    %p154 = scmp.ne.s32.totalorder %s146, %s149
    %p155 = scmp.eq.s32.totalorder %s10, 0
    %p156 = por %p154, %p155
    %p157 = scmp.ne.s32.totalorder %s146, %s149
    %p158 = scmp.eq.s32.totalorder %s15, 1
    %p159 = por %p157, %p158
    %p160 = scmp.ne.s32.totalorder %s149, %s150
    %p161 = scmp.eq.s32.totalorder %s15, 0
    %p162 = por %p160, %p161
    %p163 = scmp.ne.s32.totalorder %s149, %s150
    %p164 = scmp.eq.s32.totalorder %s16, 1
    %p165 = por %p163, %p164
    %p167 = scmp.ne.s32.totalorder %s150, %s166
    %p168 = scmp.eq.s32.totalorder %s16, 0
    %p169 = por %p167, %p168
    %p170 = scmp.le.s32.totalorder 1, %s10
    %p171 = scmp.lt.s32.totalorder %s10, 3
    %p172 = pnand %p170, %p171
    %p173 = pneg %p172
    // Predicated region
    $region9: #{cnn_forward.11} parent=5 // pred_check
      _
    $region10: #{cnn_forward.11} parent=5 // pred_check_branch
      %175 = sbr.rel (%p172) target = $region12
    $region11: #{cnn_forward.11} parent=5 // pred_region
      %s176 = ssub.s32 %s10, 1
      // Predicated region
      $region13: #{cnn_forward.11} parent=11 // pred_check
        %p177 = pneg %p50
      $region14: #{cnn_forward.11} parent=11 // pred_check_branch
        %179 = sbr.rel (%p177) target = $region16
      $region15: #{cnn_forward.11} parent=11 // pred_region
        _
      $region16: #{cnn_forward.11} parent=11 // pred_fallthru
        _
      // Predicated region
      $region17: #{cnn_forward.11} parent=11 // pred_check
        %p180 = pneg %p76
      $region18: #{cnn_forward.11} parent=11 // pred_check_branch
        %182 = sbr.rel (%p180) target = $region20
      $region19: #{cnn_forward.11} parent=11 // pred_region
        %p183 = scmp.lt.s32.totalorder %s20, 0
        %s184 = scalar_select %p183, %s20, 0
        %s185 = smul.addr %s184, 4
        %s186 = scalar_lea.vmem %s1, %s185
      $region20: #{cnn_forward.11} parent=11 // pred_fallthru
        _
      // Predicated region
      $region21: #{cnn_forward.11} parent=11 // pred_check
        %p187 = pneg %p102
      $region22: #{cnn_forward.11} parent=11 // pred_check_branch
        %189 = sbr.rel (%p187) target = $region24
      $region23: #{cnn_forward.11} parent=11 // pred_region
        %p190 = scmp.lt.s32.totalorder %s20, 0
        %s191 = scalar_select %p190, %s20, 0
        %s192 = scalar_lea.vmem %s2, %s191
      $region24: #{cnn_forward.11} parent=11 // pred_fallthru
        _
    $region12: #{cnn_forward.11} parent=5 // pred_fallthru
      _
    %p193 = scmp.lt.s32.totalorder %s10, 2
    // Predicated region
    $region25: #{cnn_forward.11} parent=5 // pred_check
      %p194 = pneg %p193
    $region26: #{cnn_forward.11} parent=5 // pred_check_branch
      %196 = sbr.rel (%p194) target = $region28
    $region27: #{cnn_forward.11} parent=5 // pred_region
      // Predicated region
      $region29: #{cnn_forward.11} parent=27 // pred_check
        %p197 = pneg %p126
      $region30: #{cnn_forward.11} parent=27 // pred_check_branch
        %199 = sbr.rel (%p197) target = $region32
      $region31: #{cnn_forward.11} parent=27 // pred_region
        %s200 = smul.u32 8, %s19
        %p201 = scmp.lt.s32.totalorder %s18, 1
        %s202 = scalar_select %p201, %s18, 1
        %p203 = scmp.lt.s32.totalorder %s200, 7
        %s204 = scalar_select %p203, %s200, 7
        %p205 = scmp.lt.s32.totalorder %s17, 0
        %s206 = scalar_select %p205, %s17, 0
        %s207 = sadd.s32 %s206, %s204
        %s208 = smul.addr %s202, 8
        %s209 = sadd.s32 %s207, %s208
        %s210 = smul.addr %s209, 4
        %s211 = scalar_lea.vmem %s3, %s210
        %s212 = smul.u32 8, %s19
      $region32: #{cnn_forward.11} parent=27 // pred_fallthru
        _
    $region28: #{cnn_forward.11} parent=5 // pred_fallthru
      _
    %p213 = scmp.le.s32.totalorder 1, %s10
    %p214 = scmp.lt.s32.totalorder %s10, 3
    %p215 = pnand %p213, %p214
    %p216 = pneg %p215
    // Predicated region
    $region33: #{cnn_forward.11} parent=5 // pred_check
      _
    $region34: #{cnn_forward.11} parent=5 // pred_check_branch
      %218 = sbr.rel (%p215) target = $region36
    $region35: #{cnn_forward.11} parent=5 // pred_region
      %s219 = ssub.s32 %s10, 1
      %p220 = pneg %p50
      %p221 = pneg %p47
      %p222 = scmp.lt.s32.totalorder %s20, 0
      %s223 = scalar_select %p222, %s20, 0
      %s224 = smul.addr %s223, 4
      %s225 = scalar_lea.vmem %s1, %s224
      %p226 = pneg %p76
      %p227 = pneg %p73
      %p228 = scmp.lt.s32.totalorder %s20, 0
      %s229 = scalar_select %p228, %s20, 0
      %s230 = scalar_lea.vmem %s2, %s229
      %p231 = pneg %p102
      %p232 = pneg %p99
      %s233 = smul.u32 8, %s22
      %p234 = scmp.lt.s32.totalorder %s21, 1
      %s235 = scalar_select %p234, %s21, 1
      %p236 = scmp.lt.s32.totalorder %s233, 7
      %s237 = scalar_select %p236, %s233, 7
      %p238 = scmp.lt.s32.totalorder %s20, 0
      %s239 = scalar_select %p238, %s20, 0
      %s240 = sadd.s32 %s239, %s237
      %s241 = smul.addr %s235, 8
      %s242 = sadd.s32 %s240, %s241
      %s243 = smul.addr %s242, 4
      %s244 = scalar_lea.vmem %s3, %s243
      %p245 = pneg %p132
      %p246 = pneg %p129
      %p247 = pneg %p162
      %p248 = pneg %p159
      %s249 = smul.u32 8, %s22
      %p250 = scmp.lt.s32.totalorder %s21, 1
      %s251 = scalar_select %p250, %s21, 1
      %p252 = scmp.lt.s32.totalorder %s249, 7
      %s253 = scalar_select %p252, %s249, 7
      %p254 = scmp.lt.s32.totalorder %s20, 0
      %s255 = scalar_select %p254, %s20, 0
      %s256 = sadd.s32 %s255, %s253
      %s257 = smul.addr %s251, 8
      %s258 = sadd.s32 %s256, %s257
      %s259 = smul.addr %s258, 4
      %s260 = scalar_lea.vmem %s4, %s259
      %p261 = scmp.lt.s32.totalorder %s20, 0
      %s262 = scalar_select %p261, %s20, 0
      %s263 = smul.addr %s262, 4
      %s264 = scalar_lea.vmem %s1, %s263
      %p265 = scmp.lt.s32.totalorder %s20, 0
      %s266 = scalar_select %p265, %s20, 0
      %s267 = scalar_lea.vmem %s2, %s266
      %s268 = smul.u32 8, %s22
      %p269 = scmp.lt.s32.totalorder %s21, 1
      %s270 = scalar_select %p269, %s21, 1
      %p271 = scmp.lt.s32.totalorder %s268, 7
      %s272 = scalar_select %p271, %s268, 7
      %p273 = scmp.lt.s32.totalorder %s20, 0
      %s274 = scalar_select %p273, %s20, 0
      %s275 = sadd.s32 %s274, %s272
      %s276 = smul.addr %s270, 8
      %s277 = sadd.s32 %s275, %s276
      %s278 = smul.addr %s277, 4
      %s279 = scalar_lea.vmem %s3, %s278
      %s280 = smul.u32 8, %s22
      %s281 = smul.u32 8, %s22
      %p282 = scmp.lt.s32.totalorder %s21, 1
      %s283 = scalar_select %p282, %s21, 1
      %p284 = scmp.lt.s32.totalorder %s281, 7
      %s285 = scalar_select %p284, %s281, 7
      %p286 = scmp.lt.s32.totalorder %s20, 0
      %s287 = scalar_select %p286, %s20, 0
      %s288 = sadd.s32 %s287, %s285
      %s289 = smul.addr %s283, 8
      %s290 = sadd.s32 %s288, %s289
      %s291 = smul.addr %s290, 4
      %s292 = scalar_lea.vmem %s4, %s291
      %s293 = smul.u32 8, %s22
      %s295 = smul.u32 %s21, 10
      %s296 = smul.u32 %s22, 8
      %s297 = sadd.s32 %s295, %s296
      %s298 = smul.u32 %s297, 2
      %s299 = smul.addr %s298, 4
      %s300 = scalar_lea.vmem %s0, %s299
      %v301 = vld [vmem:[%s300] sm:$0xf]
      %v302 = vld [vmem:[%s300 + $0x4] sm:$0x1]
      %v303 = vld [vmem:[%s300 + $0x8] sm:$0xf]
      %v304 = vld [vmem:[%s300 + $0xc] sm:$0x1]
      %v305 = vld [vmem:[%s300 + $0x10] sm:$0xf]
      %v306 = vld [vmem:[%s300 + $0x14] sm:$0x1]
      %v307 = vld [vmem:[%s300 + $0x18] sm:$0xf]
      %v308 = vld [vmem:[%s300 + $0x1c] sm:$0x1]
      %v309 = vld [vmem:[%s300 + $0x20] sm:$0xf]
      %v310 = vld [vmem:[%s300 + $0x24] sm:$0x1]
      %v311 = vld [vmem:[%s300 + $0x28] sm:$0xf]
      %v312 = vld [vmem:[%s300 + $0x2c] sm:$0x1]
      %v313 = vld [vmem:[%s300 + $0x30] sm:$0xf]
      %v314 = vld [vmem:[%s300 + $0x34] sm:$0x1]
      %v315 = vld [vmem:[%s300 + $0x38] sm:$0xf]
      %v316 = vld [vmem:[%s300 + $0x3c] sm:$0x1]
      %v317 = vld [vmem:[%s264] sm:$0xf]
      %v318 = vld [vmem:[%s264 + $0x4] sm:$0xf]
      %v319 = vld [vmem:[%s264 + $0x8] sm:$0xf]
      %v320 = vld [vmem:[%s264 + $0xc] sm:$0xf]
      %v321 = vld [vmem:[%s264 + $0x10] sm:$0xf]
      %v322 = vld [vmem:[%s264 + $0x14] sm:$0xf]
      %v323 = vld [vmem:[%s264 + $0x18] sm:$0xf]
      %v324 = vld [vmem:[%s264 + $0x1c] sm:$0xf]
      %v325 = vld [vmem:[%s264 + $0x20] sm:$0xf]
      %v326 = vld [vmem:[%s264 + $0x24] sm:$0xf]
      %v327 = vld [vmem:[%s264 + $0x28] sm:$0xf]
      %v328 = vld [vmem:[%s264 + $0x2c] sm:$0xf]
      %v329 = vld [vmem:[%s264 + $0x30] sm:$0xf]
      %v330 = vld [vmem:[%s264 + $0x34] sm:$0xf]
      %v331 = vld [vmem:[%s264 + $0x38] sm:$0xf]
      %v332 = vld [vmem:[%s264 + $0x3c] sm:$0xf]
      %vm333 = vsmask.f32 3328
      %vm334 = vsmask.f32 7440
      %vm335 = vmor %vm333, %vm334
      %v337 = vshrl.u32 %v301, 16
      %v339 = vrot.slane %v337, 4
      %v340 = vshll.u32 %v301, 16
      %v342 = vrot.slane %v340, 5
      %v343 = vor.u32 %v339, %v342
      %v344 = vrot.slane %v343, 4
      %v346 = vshll.u32 %v302, 16
      %v348 = vrot.slane %v346, 5
      %v349 = vsel %vm335, %v344, %v348
      %v351 = vshrl.u32 %v303, 16
      %v353 = vrot.slane %v351, 4
      %v354 = vshll.u32 %v303, 16
      %v356 = vrot.slane %v354, 5
      %v357 = vor.u32 %v353, %v356
      %v358 = vrot.slane %v357, 4
      %v360 = vshll.u32 %v304, 16
      %v362 = vrot.slane %v360, 5
      %v363 = vsel %vm335, %v358, %v362
      %v365 = vshrl.u32 %v305, 16
      %v367 = vrot.slane %v365, 4
      %v368 = vshll.u32 %v305, 16
      %v370 = vrot.slane %v368, 5
      %v371 = vor.u32 %v367, %v370
      %v372 = vrot.slane %v371, 4
      %v374 = vshll.u32 %v306, 16
      %v376 = vrot.slane %v374, 5
      %v377 = vsel %vm335, %v372, %v376
      %v379 = vshrl.u32 %v307, 16
      %v381 = vrot.slane %v379, 4
      %v382 = vshll.u32 %v307, 16
      %v384 = vrot.slane %v382, 5
      %v385 = vor.u32 %v381, %v384
      %v386 = vrot.slane %v385, 4
      %v388 = vshll.u32 %v308, 16
      %v390 = vrot.slane %v388, 5
      %v391 = vsel %vm335, %v386, %v390
      %v393 = vshrl.u32 %v309, 16
      %v395 = vrot.slane %v393, 4
      %v396 = vshll.u32 %v309, 16
      %v398 = vrot.slane %v396, 5
      %v399 = vor.u32 %v395, %v398
      %v400 = vrot.slane %v399, 4
      %v402 = vshll.u32 %v310, 16
      %v404 = vrot.slane %v402, 5
      %v405 = vsel %vm335, %v400, %v404
      %v407 = vshrl.u32 %v311, 16
      %v409 = vrot.slane %v407, 4
      %v410 = vshll.u32 %v311, 16
      %v412 = vrot.slane %v410, 5
      %v413 = vor.u32 %v409, %v412
      %v414 = vrot.slane %v413, 4
      %v416 = vshll.u32 %v312, 16
      %v418 = vrot.slane %v416, 5
      %v419 = vsel %vm335, %v414, %v418
      %v421 = vshrl.u32 %v313, 16
      %v423 = vrot.slane %v421, 4
      %v424 = vshll.u32 %v313, 16
      %v426 = vrot.slane %v424, 5
      %v427 = vor.u32 %v423, %v426
      %v428 = vrot.slane %v427, 4
      %v430 = vshll.u32 %v314, 16
      %v432 = vrot.slane %v430, 5
      %v433 = vsel %vm335, %v428, %v432
      %v435 = vshrl.u32 %v315, 16
      %v437 = vrot.slane %v435, 4
      %v438 = vshll.u32 %v315, 16
      %v440 = vrot.slane %v438, 5
      %v441 = vor.u32 %v437, %v440
      %v442 = vrot.slane %v441, 4
      %v444 = vshll.u32 %v316, 16
      %v446 = vrot.slane %v444, 5
      %v447 = vsel %vm335, %v442, %v446
      %s448 = scalar_lea.vmem %s264, 64
      %v449 = vld [vmem:[%s448] sm:$0xf]
      %v450 = vld [vmem:[%s448 + $0x4] sm:$0xf]
      %v451 = vld [vmem:[%s448 + $0x8] sm:$0xf]
      %v452 = vld [vmem:[%s448 + $0xc] sm:$0xf]
      %v453 = vld [vmem:[%s448 + $0x10] sm:$0xf]
      %v454 = vld [vmem:[%s448 + $0x14] sm:$0xf]
      %v455 = vld [vmem:[%s448 + $0x18] sm:$0xf]
      %v456 = vld [vmem:[%s448 + $0x1c] sm:$0xf]
      %v457 = vld [vmem:[%s448 + $0x20] sm:$0xf]
      %v458 = vld [vmem:[%s448 + $0x24] sm:$0xf]
      %v459 = vld [vmem:[%s448 + $0x28] sm:$0xf]
      %v460 = vld [vmem:[%s448 + $0x2c] sm:$0xf]
      %v461 = vld [vmem:[%s448 + $0x30] sm:$0xf]
      %v462 = vld [vmem:[%s448 + $0x34] sm:$0xf]
      %v463 = vld [vmem:[%s448 + $0x38] sm:$0xf]
      %v464 = vld [vmem:[%s448 + $0x3c] sm:$0xf]
      %v465 = vunpack.c.l.b16 %v349
      %v466 = vunpack.c.l.b16 %v363
      %v467 = vunpack.c.l.b16 %v377
      %v468 = vunpack.c.l.b16 %v391
      %v469 = vunpack.c.l.b16 %v405
      %v470 = vunpack.c.l.b16 %v419
      %v471 = vunpack.c.l.b16 %v433
      %v472 = vunpack.c.l.b16 %v447
      %v473 = vpack.c.b16 %v466, %v465
      %v474 = vpack.c.b16 %v468, %v467
      %v475 = vpack.c.b16 %v470, %v469
      %v476 = vpack.c.b16 %v472, %v471
      %v497 = vunpack.c.l.b16 %v449
      %v498 = vunpack.c.l.b16 %v450
      %v499 = vunpack.c.l.b16 %v451
      %v500 = vunpack.c.l.b16 %v452
      %v501 = vunpack.c.l.b16 %v453
      %v502 = vunpack.c.l.b16 %v454
      %v503 = vunpack.c.l.b16 %v455
      %v504 = vunpack.c.l.b16 %v456
      %v505 = vunpack.c.l.b16 %v457
      %v506 = vunpack.c.l.b16 %v458
      %v507 = vunpack.c.l.b16 %v459
      %v508 = vunpack.c.l.b16 %v460
      %v509 = vunpack.c.l.b16 %v461
      %v510 = vunpack.c.l.b16 %v462
      %v511 = vunpack.c.l.b16 %v463
      %v512 = vunpack.c.l.b16 %v464
      %v513 = vpack.c.b16 %v498, %v497
      %v514 = vpack.c.b16 %v500, %v499
      %v515 = vpack.c.b16 %v502, %v501
      %v516 = vpack.c.b16 %v504, %v503
      %v517 = vpack.c.b16 %v506, %v505
      %v518 = vpack.c.b16 %v508, %v507
      %v519 = vpack.c.b16 %v510, %v509
      %v520 = vpack.c.b16 %v512, %v511
      %529 = vmatprep.subr.bf16.mxu0 0
      %530 = vmatpush1.bf16.msra.mxu0 %v513
      %531 = vmatprep.subr.bf16.mxu0 0
      %532 = vmatpush1.bf16.msra.mxu0 %v514
      %533 = vmatprep.subr.bf16.mxu0 0
      %534 = vmatpush1.bf16.msra.mxu0 %v515
      %535 = vmatprep.subr.bf16.mxu0 0
      %536 = vmatpush1.bf16.msra.mxu0 %v516
      %537 = vmatprep.subr.bf16.mxu0 0
      %538 = vmatpush1.bf16.msra.mxu0 %v517
      %539 = vmatprep.subr.bf16.mxu0 0
      %540 = vmatpush1.bf16.msra.mxu0 %v518
      %541 = vmatprep.subr.bf16.mxu0 0
      %542 = vmatpush1.bf16.msra.mxu0 %v519
      %543 = vmatprep.subr.bf16.mxu0 0
      %544 = vmatpush1.bf16.msra.mxu0 %v520
      %545 = vmatprep.subr.bf16.mxu0 0
      %546 = vmatpush1.bf16.msra.mxu0 0
      %547 = vmatprep.subr.bf16.mxu0 0
      %548 = vmatpush1.bf16.msra.mxu0 0
      %549 = vmatprep.subr.bf16.mxu0 0
      %550 = vmatpush1.bf16.msra.mxu0 0
      %551 = vmatprep.subr.bf16.mxu0 0
      %552 = vmatpush1.bf16.msra.mxu0 0
      %553 = vmatprep.subr.bf16.mxu0 0
      %554 = vmatpush1.bf16.msra.mxu0 0
      %555 = vmatprep.subr.bf16.mxu0 0
      %556 = vmatpush1.bf16.msra.mxu0 0
      %557 = vmatprep.subr.bf16.mxu0 0
      %558 = vmatpush1.bf16.msra.mxu0 0
      %559 = vmatprep.subr.bf16.mxu0 0
      %560 = vmatpush1.bf16.msra.mxu0 0
      %561 = vmatprep.mubr.bf16.mxu0 0
      %562 = vmatmul.mubr.bf16.gmra.mrb[0].mxu0 %v473
      %v563 = vpop.f32.mrb[0].mxu0
      %v564 = vadd.f32 0.0, %v563
      %v565 = vpop.f32.mrb[0].mxu0
      %v566 = vpop.f32.mrb[0].mxu0
      %v567 = vadd.f32 0.0, %v566
      %v568 = vpop.f32.mrb[0].mxu0
      %569 = vmatprep.mubr.bf16.mxu0 0
      %570 = vmatmul.mubr.bf16.gmra.mrb[0].mxu0 %v474
      %v571 = vpop.f32.mrb[0].mxu0
      %v572 = vadd.f32 0.0, %v571
      %v573 = vpop.f32.mrb[0].mxu0
      %v574 = vpop.f32.mrb[0].mxu0
      %v575 = vadd.f32 0.0, %v574
      %v576 = vpop.f32.mrb[0].mxu0
      %577 = vmatprep.mubr.bf16.mxu0 0
      %578 = vmatmul.mubr.bf16.gmra.mrb[0].mxu0 %v475
      %v579 = vpop.f32.mrb[0].mxu0
      %v580 = vadd.f32 0.0, %v579
      %v581 = vpop.f32.mrb[0].mxu0
      %v582 = vpop.f32.mrb[0].mxu0
      %v583 = vadd.f32 0.0, %v582
      %v584 = vpop.f32.mrb[0].mxu0
      %585 = vmatprep.mubr.bf16.mxu0 0
      %586 = vmatmul.mubr.bf16.gmra.mrb[0].mxu0 %v476
      %v587 = vpop.f32.mrb[0].mxu0
      %v588 = vadd.f32 0.0, %v587
      %v589 = vpop.f32.mrb[0].mxu0
      %v590 = vpop.f32.mrb[0].mxu0
      %v591 = vadd.f32 0.0, %v590
      %v592 = vpop.f32.mrb[0].mxu0
      %593 = vdwg.mxu0
      %v602 = vunpack.c.l.b16 %v301
      %v603 = vunpack.c.l.b16 %v303
      %v604 = vunpack.c.l.b16 %v305
      %v605 = vunpack.c.l.b16 %v307
      %v606 = vunpack.c.l.b16 %v309
      %v607 = vunpack.c.l.b16 %v311
      %v608 = vunpack.c.l.b16 %v313
      %v609 = vunpack.c.l.b16 %v315
      %v610 = vpack.c.b16 %v603, %v602
      %v611 = vpack.c.b16 %v605, %v604
      %v612 = vpack.c.b16 %v607, %v606
      %v613 = vpack.c.b16 %v609, %v608
      %v634 = vunpack.c.l.b16 %v317
      %v635 = vunpack.c.l.b16 %v318
      %v636 = vunpack.c.l.b16 %v319
      %v637 = vunpack.c.l.b16 %v320
      %v638 = vunpack.c.l.b16 %v321
      %v639 = vunpack.c.l.b16 %v322
      %v640 = vunpack.c.l.b16 %v323
      %v641 = vunpack.c.l.b16 %v324
      %v642 = vunpack.c.l.b16 %v325
      %v643 = vunpack.c.l.b16 %v326
      %v644 = vunpack.c.l.b16 %v327
      %v645 = vunpack.c.l.b16 %v328
      %v646 = vunpack.c.l.b16 %v329
      %v647 = vunpack.c.l.b16 %v330
      %v648 = vunpack.c.l.b16 %v331
      %v649 = vunpack.c.l.b16 %v332
      %v650 = vpack.c.b16 %v635, %v634
      %v651 = vpack.c.b16 %v637, %v636
      %v652 = vpack.c.b16 %v639, %v638
      %v653 = vpack.c.b16 %v641, %v640
      %v654 = vpack.c.b16 %v643, %v642
      %v655 = vpack.c.b16 %v645, %v644
      %v656 = vpack.c.b16 %v647, %v646
      %v657 = vpack.c.b16 %v649, %v648
      %666 = vmatprep.subr.bf16.mxu0 0
      %667 = vmatpush1.bf16.msra.mxu0 %v650
      %668 = vmatprep.subr.bf16.mxu0 0
      %669 = vmatpush1.bf16.msra.mxu0 %v651
      %670 = vmatprep.subr.bf16.mxu0 0
      %671 = vmatpush1.bf16.msra.mxu0 %v652
      %672 = vmatprep.subr.bf16.mxu0 0
      %673 = vmatpush1.bf16.msra.mxu0 %v653
      %674 = vmatprep.subr.bf16.mxu0 0
      %675 = vmatpush1.bf16.msra.mxu0 %v654
      %676 = vmatprep.subr.bf16.mxu0 0
      %677 = vmatpush1.bf16.msra.mxu0 %v655
      %678 = vmatprep.subr.bf16.mxu0 0
      %679 = vmatpush1.bf16.msra.mxu0 %v656
      %680 = vmatprep.subr.bf16.mxu0 0
      %681 = vmatpush1.bf16.msra.mxu0 %v657
      %682 = vmatprep.subr.bf16.mxu0 0
      %683 = vmatpush1.bf16.msra.mxu0 0
      %684 = vmatprep.subr.bf16.mxu0 0
      %685 = vmatpush1.bf16.msra.mxu0 0
      %686 = vmatprep.subr.bf16.mxu0 0
      %687 = vmatpush1.bf16.msra.mxu0 0
      %688 = vmatprep.subr.bf16.mxu0 0
      %689 = vmatpush1.bf16.msra.mxu0 0
      %690 = vmatprep.subr.bf16.mxu0 0
      %691 = vmatpush1.bf16.msra.mxu0 0
      %692 = vmatprep.subr.bf16.mxu0 0
      %693 = vmatpush1.bf16.msra.mxu0 0
      %694 = vmatprep.subr.bf16.mxu0 0
      %695 = vmatpush1.bf16.msra.mxu0 0
      %696 = vmatprep.subr.bf16.mxu0 0
      %697 = vmatpush1.bf16.msra.mxu0 0
      %698 = vmatprep.mubr.bf16.mxu0 0
      %699 = vmatmul.mubr.bf16.gmra.mrb[0].mxu0 %v610
      %v700 = vpop.f32.mrb[0].mxu0
      %v701 = vadd.f32 %v564, %v700
      %v702 = vpop.f32.mrb[0].mxu0
      %v703 = vpop.f32.mrb[0].mxu0
      %v704 = vadd.f32 %v567, %v703
      %v705 = vpop.f32.mrb[0].mxu0
      %706 = vmatprep.mubr.bf16.mxu0 0
      %707 = vmatmul.mubr.bf16.gmra.mrb[0].mxu0 %v611
      %v708 = vpop.f32.mrb[0].mxu0
      %v709 = vadd.f32 %v572, %v708
      %v710 = vpop.f32.mrb[0].mxu0
      %v711 = vpop.f32.mrb[0].mxu0
      %v712 = vadd.f32 %v575, %v711
      %v713 = vpop.f32.mrb[0].mxu0
      %714 = vmatprep.mubr.bf16.mxu0 0
      %715 = vmatmul.mubr.bf16.gmra.mrb[0].mxu0 %v612
      %v716 = vpop.f32.mrb[0].mxu0
      %v717 = vadd.f32 %v580, %v716
      %v718 = vpop.f32.mrb[0].mxu0
      %v719 = vpop.f32.mrb[0].mxu0
      %v720 = vadd.f32 %v583, %v719
      %v721 = vpop.f32.mrb[0].mxu0
      %722 = vmatprep.mubr.bf16.mxu0 0
      %723 = vmatmul.mubr.bf16.gmra.mrb[0].mxu0 %v613
      %v724 = vpop.f32.mrb[0].mxu0
      %v725 = vadd.f32 %v588, %v724
      %v726 = vpop.f32.mrb[0].mxu0
      %v727 = vpop.f32.mrb[0].mxu0
      %v728 = vadd.f32 %v591, %v727
      %v729 = vpop.f32.mrb[0].mxu0
      %730 = vdwg.mxu0
      %vm739 = vcmask 1042432
      %vm740 = vcmask 1046532
      %vm741 = vmor %vm739, %vm740
      %v742 = vrot.slane %v301, 5
      %v743 = vrot.slane %v742, 4
      %v744 = vrot.slane %v302, 5
      %v745 = vsel %vm741, %v743, %v744
      %v746 = vrot.slane %v303, 5
      %v747 = vrot.slane %v746, 4
      %v748 = vrot.slane %v304, 5
      %v749 = vsel %vm741, %v747, %v748
      %v750 = vrot.slane %v305, 5
      %v751 = vrot.slane %v750, 4
      %v752 = vrot.slane %v306, 5
      %v753 = vsel %vm741, %v751, %v752
      %v754 = vrot.slane %v307, 5
      %v755 = vrot.slane %v754, 4
      %v756 = vrot.slane %v308, 5
      %v757 = vsel %vm741, %v755, %v756
      %v758 = vrot.slane %v309, 5
      %v759 = vrot.slane %v758, 4
      %v760 = vrot.slane %v310, 5
      %v761 = vsel %vm741, %v759, %v760
      %v762 = vrot.slane %v311, 5
      %v763 = vrot.slane %v762, 4
      %v764 = vrot.slane %v312, 5
      %v765 = vsel %vm741, %v763, %v764
      %v766 = vrot.slane %v313, 5
      %v767 = vrot.slane %v766, 4
      %v768 = vrot.slane %v314, 5
      %v769 = vsel %vm741, %v767, %v768
      %v770 = vrot.slane %v315, 5
      %v771 = vrot.slane %v770, 4
      %v772 = vrot.slane %v316, 5
      %v773 = vsel %vm741, %v771, %v772
      %s774 = scalar_lea.vmem %s264, 128
      %v775 = vld [vmem:[%s774] sm:$0xf]
      %v776 = vld [vmem:[%s774 + $0x4] sm:$0xf]
      %v777 = vld [vmem:[%s774 + $0x8] sm:$0xf]
      %v778 = vld [vmem:[%s774 + $0xc] sm:$0xf]
      %v779 = vld [vmem:[%s774 + $0x10] sm:$0xf]
      %v780 = vld [vmem:[%s774 + $0x14] sm:$0xf]
      %v781 = vld [vmem:[%s774 + $0x18] sm:$0xf]
      %v782 = vld [vmem:[%s774 + $0x1c] sm:$0xf]
      %v783 = vld [vmem:[%s774 + $0x20] sm:$0xf]
      %v784 = vld [vmem:[%s774 + $0x24] sm:$0xf]
      %v785 = vld [vmem:[%s774 + $0x28] sm:$0xf]
      %v786 = vld [vmem:[%s774 + $0x2c] sm:$0xf]
      %v787 = vld [vmem:[%s774 + $0x30] sm:$0xf]
      %v788 = vld [vmem:[%s774 + $0x34] sm:$0xf]
      %v789 = vld [vmem:[%s774 + $0x38] sm:$0xf]
      %v790 = vld [vmem:[%s774 + $0x3c] sm:$0xf]
      %v791 = vunpack.c.l.b16 %v745
      %v792 = vunpack.c.l.b16 %v749
      %v793 = vunpack.c.l.b16 %v753
      %v794 = vunpack.c.l.b16 %v757
      %v795 = vunpack.c.l.b16 %v761
      %v796 = vunpack.c.l.b16 %v765
      %v797 = vunpack.c.l.b16 %v769
      %v798 = vunpack.c.l.b16 %v773
      %v799 = vpack.c.b16 %v792, %v791
      %v800 = vpack.c.b16 %v794, %v793
      %v801 = vpack.c.b16 %v796, %v795
      %v802 = vpack.c.b16 %v798, %v797
      %v823 = vunpack.c.l.b16 %v775
      %v824 = vunpack.c.l.b16 %v776
      %v825 = vunpack.c.l.b16 %v777
      %v826 = vunpack.c.l.b16 %v778
      %v827 = vunpack.c.l.b16 %v779
      %v828 = vunpack.c.l.b16 %v780
      %v829 = vunpack.c.l.b16 %v781
      %v830 = vunpack.c.l.b16 %v782
      %v831 = vunpack.c.l.b16 %v783
      %v832 = vunpack.c.l.b16 %v784
      %v833 = vunpack.c.l.b16 %v785
      %v834 = vunpack.c.l.b16 %v786
      %v835 = vunpack.c.l.b16 %v787
      %v836 = vunpack.c.l.b16 %v788
      %v837 = vunpack.c.l.b16 %v789
      %v838 = vunpack.c.l.b16 %v790
      %v839 = vpack.c.b16 %v824, %v823
      %v840 = vpack.c.b16 %v826, %v825
      %v841 = vpack.c.b16 %v828, %v827
      %v842 = vpack.c.b16 %v830, %v829
      %v843 = vpack.c.b16 %v832, %v831
      %v844 = vpack.c.b16 %v834, %v833
      %v845 = vpack.c.b16 %v836, %v835
      %v846 = vpack.c.b16 %v838, %v837
      %855 = vmatprep.subr.bf16.mxu0 0
      %856 = vmatpush1.bf16.msra.mxu0 %v839
      %857 = vmatprep.subr.bf16.mxu0 0
      %858 = vmatpush1.bf16.msra.mxu0 %v840
      %859 = vmatprep.subr.bf16.mxu0 0
      %860 = vmatpush1.bf16.msra.mxu0 %v841
      %861 = vmatprep.subr.bf16.mxu0 0
      %862 = vmatpush1.bf16.msra.mxu0 %v842
      %863 = vmatprep.subr.bf16.mxu0 0
      %864 = vmatpush1.bf16.msra.mxu0 %v843
      %865 = vmatprep.subr.bf16.mxu0 0
      %866 = vmatpush1.bf16.msra.mxu0 %v844
      %867 = vmatprep.subr.bf16.mxu0 0
      %868 = vmatpush1.bf16.msra.mxu0 %v845
      %869 = vmatprep.subr.bf16.mxu0 0
      %870 = vmatpush1.bf16.msra.mxu0 %v846
      %871 = vmatprep.subr.bf16.mxu0 0
      %872 = vmatpush1.bf16.msra.mxu0 0
      %873 = vmatprep.subr.bf16.mxu0 0
      %874 = vmatpush1.bf16.msra.mxu0 0
      %875 = vmatprep.subr.bf16.mxu0 0
      %876 = vmatpush1.bf16.msra.mxu0 0
      %877 = vmatprep.subr.bf16.mxu0 0
      %878 = vmatpush1.bf16.msra.mxu0 0
      %879 = vmatprep.subr.bf16.mxu0 0
      %880 = vmatpush1.bf16.msra.mxu0 0
      %881 = vmatprep.subr.bf16.mxu0 0
      %882 = vmatpush1.bf16.msra.mxu0 0
      %883 = vmatprep.subr.bf16.mxu0 0
      %884 = vmatpush1.bf16.msra.mxu0 0
      %885 = vmatprep.subr.bf16.mxu0 0
      %886 = vmatpush1.bf16.msra.mxu0 0
      %887 = vmatprep.mubr.bf16.mxu0 0
      %888 = vmatmul.mubr.bf16.gmra.mrb[0].mxu0 %v799
      %v889 = vpop.f32.mrb[0].mxu0
      %v890 = vadd.f32 0.0, %v889
      %v891 = vpop.f32.mrb[0].mxu0
      %v892 = vpop.f32.mrb[0].mxu0
      %v893 = vadd.f32 0.0, %v892
      %v894 = vpop.f32.mrb[0].mxu0
      %895 = vmatprep.mubr.bf16.mxu0 0
      %896 = vmatmul.mubr.bf16.gmra.mrb[0].mxu0 %v800
      %v897 = vpop.f32.mrb[0].mxu0
      %v898 = vadd.f32 0.0, %v897
      %v899 = vpop.f32.mrb[0].mxu0
      %v900 = vpop.f32.mrb[0].mxu0
      %v901 = vadd.f32 0.0, %v900
      %v902 = vpop.f32.mrb[0].mxu0
      %903 = vmatprep.mubr.bf16.mxu0 0
      %904 = vmatmul.mubr.bf16.gmra.mrb[0].mxu0 %v801
      %v905 = vpop.f32.mrb[0].mxu0
      %v906 = vadd.f32 0.0, %v905
      %v907 = vpop.f32.mrb[0].mxu0
      %v908 = vpop.f32.mrb[0].mxu0
      %v909 = vadd.f32 0.0, %v908
      %v910 = vpop.f32.mrb[0].mxu0
      %911 = vmatprep.mubr.bf16.mxu0 0
      %912 = vmatmul.mubr.bf16.gmra.mrb[0].mxu0 %v802
      %v913 = vpop.f32.mrb[0].mxu0
      %v914 = vadd.f32 0.0, %v913
      %v915 = vpop.f32.mrb[0].mxu0
      %v916 = vpop.f32.mrb[0].mxu0
      %v917 = vadd.f32 0.0, %v916
      %v918 = vpop.f32.mrb[0].mxu0
      %919 = vdwg.mxu0
      %v920 = vadd.f32 %v701, %v890
      %v921 = vadd.f32 %v704, %v893
      %v922 = vadd.f32 %v709, %v898
      %v923 = vadd.f32 %v712, %v901
      %v924 = vadd.f32 %v717, %v906
      %v925 = vadd.f32 %v720, %v909
      %v926 = vadd.f32 %v725, %v914
      %v927 = vadd.f32 %v728, %v917
      %s928 = sadd.s32 %s297, 1
      %s929 = smul.u32 %s928, 2
      %s930 = smul.addr %s929, 4
      %s931 = scalar_lea.vmem %s0, %s930
      %v932 = vld [vmem:[%s931] sm:$0xf]
      %v933 = vld [vmem:[%s931 + $0x4] sm:$0x1]
      %v934 = vld [vmem:[%s931 + $0x8] sm:$0xf]
      %v935 = vld [vmem:[%s931 + $0xc] sm:$0x1]
      %v936 = vld [vmem:[%s931 + $0x10] sm:$0xf]
      %v937 = vld [vmem:[%s931 + $0x14] sm:$0x1]
      %v938 = vld [vmem:[%s931 + $0x18] sm:$0xf]
      %v939 = vld [vmem:[%s931 + $0x1c] sm:$0x1]
      %v940 = vld [vmem:[%s931 + $0x20] sm:$0xf]
      %v941 = vld [vmem:[%s931 + $0x24] sm:$0x1]
      %v942 = vld [vmem:[%s931 + $0x28] sm:$0xf]
      %v943 = vld [vmem:[%s931 + $0x2c] sm:$0x1]
      %v944 = vld [vmem:[%s931 + $0x30] sm:$0xf]
      %v945 = vld [vmem:[%s931 + $0x34] sm:$0x1]
      %v946 = vld [vmem:[%s931 + $0x38] sm:$0xf]
      %v947 = vld [vmem:[%s931 + $0x3c] sm:$0x1]
      %s948 = scalar_lea.vmem %s264, 192
      %v949 = vld [vmem:[%s948] sm:$0xf]
      %v950 = vld [vmem:[%s948 + $0x4] sm:$0xf]
      %v951 = vld [vmem:[%s948 + $0x8] sm:$0xf]
      %v952 = vld [vmem:[%s948 + $0xc] sm:$0xf]
      %v953 = vld [vmem:[%s948 + $0x10] sm:$0xf]
      %v954 = vld [vmem:[%s948 + $0x14] sm:$0xf]
      %v955 = vld [vmem:[%s948 + $0x18] sm:$0xf]
      %v956 = vld [vmem:[%s948 + $0x1c] sm:$0xf]
      %v957 = vld [vmem:[%s948 + $0x20] sm:$0xf]
      %v958 = vld [vmem:[%s948 + $0x24] sm:$0xf]
      %v959 = vld [vmem:[%s948 + $0x28] sm:$0xf]
      %v960 = vld [vmem:[%s948 + $0x2c] sm:$0xf]
      %v961 = vld [vmem:[%s948 + $0x30] sm:$0xf]
      %v962 = vld [vmem:[%s948 + $0x34] sm:$0xf]
      %v963 = vld [vmem:[%s948 + $0x38] sm:$0xf]
      %v964 = vld [vmem:[%s948 + $0x3c] sm:$0xf]
      %v973 = vunpack.c.l.b16 %v932
      %v974 = vunpack.c.l.b16 %v934
      %v975 = vunpack.c.l.b16 %v936
      %v976 = vunpack.c.l.b16 %v938
      %v977 = vunpack.c.l.b16 %v940
      %v978 = vunpack.c.l.b16 %v942
      %v979 = vunpack.c.l.b16 %v944
      %v980 = vunpack.c.l.b16 %v946
      %v981 = vpack.c.b16 %v974, %v973
      %v982 = vpack.c.b16 %v976, %v975
      %v983 = vpack.c.b16 %v978, %v977
      %v984 = vpack.c.b16 %v980, %v979
      %v1005 = vunpack.c.l.b16 %v949
      %v1006 = vunpack.c.l.b16 %v950
      %v1007 = vunpack.c.l.b16 %v951
      %v1008 = vunpack.c.l.b16 %v952
      %v1009 = vunpack.c.l.b16 %v953
      %v1010 = vunpack.c.l.b16 %v954
      %v1011 = vunpack.c.l.b16 %v955
      %v1012 = vunpack.c.l.b16 %v956
      %v1013 = vunpack.c.l.b16 %v957
      %v1014 = vunpack.c.l.b16 %v958
      %v1015 = vunpack.c.l.b16 %v959
      %v1016 = vunpack.c.l.b16 %v960
      %v1017 = vunpack.c.l.b16 %v961
      %v1018 = vunpack.c.l.b16 %v962
      %v1019 = vunpack.c.l.b16 %v963
      %v1020 = vunpack.c.l.b16 %v964
      %v1021 = vpack.c.b16 %v1006, %v1005
      %v1022 = vpack.c.b16 %v1008, %v1007
      %v1023 = vpack.c.b16 %v1010, %v1009
      %v1024 = vpack.c.b16 %v1012, %v1011
      %v1025 = vpack.c.b16 %v1014, %v1013
      %v1026 = vpack.c.b16 %v1016, %v1015
      %v1027 = vpack.c.b16 %v1018, %v1017
      %v1028 = vpack.c.b16 %v1020, %v1019
      %1037 = vmatprep.subr.bf16.mxu0 0
      %1038 = vmatpush1.bf16.msra.mxu0 %v1021
      %1039 = vmatprep.subr.bf16.mxu0 0
      %1040 = vmatpush1.bf16.msra.mxu0 %v1022
      %1041 = vmatprep.subr.bf16.mxu0 0
      %1042 = vmatpush1.bf16.msra.mxu0 %v1023
      %1043 = vmatprep.subr.bf16.mxu0 0
      %1044 = vmatpush1.bf16.msra.mxu0 %v1024
      %1045 = vmatprep.subr.bf16.mxu0 0
      %1046 = vmatpush1.bf16.msra.mxu0 %v1025
      %1047 = vmatprep.subr.bf16.mxu0 0
      %1048 = vmatpush1.bf16.msra.mxu0 %v1026
      %1049 = vmatprep.subr.bf16.mxu0 0
      %1050 = vmatpush1.bf16.msra.mxu0 %v1027
      %1051 = vmatprep.subr.bf16.mxu0 0
      %1052 = vmatpush1.bf16.msra.mxu0 %v1028
      %1053 = vmatprep.subr.bf16.mxu0 0
      %1054 = vmatpush1.bf16.msra.mxu0 0
      %1055 = vmatprep.subr.bf16.mxu0 0
      %1056 = vmatpush1.bf16.msra.mxu0 0
      %1057 = vmatprep.subr.bf16.mxu0 0
      %1058 = vmatpush1.bf16.msra.mxu0 0
      %1059 = vmatprep.subr.bf16.mxu0 0
      %1060 = vmatpush1.bf16.msra.mxu0 0
      %1061 = vmatprep.subr.bf16.mxu0 0
      %1062 = vmatpush1.bf16.msra.mxu0 0
      %1063 = vmatprep.subr.bf16.mxu0 0
      %1064 = vmatpush1.bf16.msra.mxu0 0
      %1065 = vmatprep.subr.bf16.mxu0 0
      %1066 = vmatpush1.bf16.msra.mxu0 0
      %1067 = vmatprep.subr.bf16.mxu0 0
      %1068 = vmatpush1.bf16.msra.mxu0 0
      %1069 = vmatprep.mubr.bf16.mxu0 0
      %1070 = vmatmul.mubr.bf16.gmra.mrb[0].mxu0 %v981
      %v1071 = vpop.f32.mrb[0].mxu0
      %v1072 = vadd.f32 0.0, %v1071
      %v1073 = vpop.f32.mrb[0].mxu0
      %v1074 = vpop.f32.mrb[0].mxu0
      %v1075 = vadd.f32 0.0, %v1074
      %v1076 = vpop.f32.mrb[0].mxu0
      %1077 = vmatprep.mubr.bf16.mxu0 0
      %1078 = vmatmul.mubr.bf16.gmra.mrb[0].mxu0 %v982
      %v1079 = vpop.f32.mrb[0].mxu0
      %v1080 = vadd.f32 0.0, %v1079
      %v1081 = vpop.f32.mrb[0].mxu0
      %v1082 = vpop.f32.mrb[0].mxu0
      %v1083 = vadd.f32 0.0, %v1082
      %v1084 = vpop.f32.mrb[0].mxu0
      %1085 = vmatprep.mubr.bf16.mxu0 0
      %1086 = vmatmul.mubr.bf16.gmra.mrb[0].mxu0 %v983
      %v1087 = vpop.f32.mrb[0].mxu0
      %v1088 = vadd.f32 0.0, %v1087
      %v1089 = vpop.f32.mrb[0].mxu0
      %v1090 = vpop.f32.mrb[0].mxu0
      %v1091 = vadd.f32 0.0, %v1090
      %v1092 = vpop.f32.mrb[0].mxu0
      %1093 = vmatprep.mubr.bf16.mxu0 0
      %1094 = vmatmul.mubr.bf16.gmra.mrb[0].mxu0 %v984
      %v1095 = vpop.f32.mrb[0].mxu0
      %v1096 = vadd.f32 0.0, %v1095
      %v1097 = vpop.f32.mrb[0].mxu0
      %v1098 = vpop.f32.mrb[0].mxu0
      %v1099 = vadd.f32 0.0, %v1098
      %v1100 = vpop.f32.mrb[0].mxu0
      %1101 = vdwg.mxu0
      %v1102 = vadd.f32 %v920, %v1072
      %v1103 = vadd.f32 %v921, %v1075
      %v1104 = vadd.f32 %v922, %v1080
      %v1105 = vadd.f32 %v923, %v1083
      %v1106 = vadd.f32 %v924, %v1088
      %v1107 = vadd.f32 %v925, %v1091
      %v1108 = vadd.f32 %v926, %v1096
      %v1109 = vadd.f32 %v927, %v1099
      %v1111 = vshrl.u32 %v932, 16
      %v1113 = vrot.slane %v1111, 4
      %v1114 = vshll.u32 %v932, 16
      %v1116 = vrot.slane %v1114, 5
      %v1117 = vor.u32 %v1113, %v1116
      %v1118 = vrot.slane %v1117, 4
      %v1120 = vshll.u32 %v933, 16
      %v1122 = vrot.slane %v1120, 5
      %v1123 = vsel %vm335, %v1118, %v1122
      %v1125 = vshrl.u32 %v934, 16
      %v1127 = vrot.slane %v1125, 4
      %v1128 = vshll.u32 %v934, 16
      %v1130 = vrot.slane %v1128, 5
      %v1131 = vor.u32 %v1127, %v1130
      %v1132 = vrot.slane %v1131, 4
      %v1134 = vshll.u32 %v935, 16
      %v1136 = vrot.slane %v1134, 5
      %v1137 = vsel %vm335, %v1132, %v1136
      %v1139 = vshrl.u32 %v936, 16
      %v1141 = vrot.slane %v1139, 4
      %v1142 = vshll.u32 %v936, 16
      %v1144 = vrot.slane %v1142, 5
      %v1145 = vor.u32 %v1141, %v1144
      %v1146 = vrot.slane %v1145, 4
      %v1148 = vshll.u32 %v937, 16
      %v1150 = vrot.slane %v1148, 5
      %v1151 = vsel %vm335, %v1146, %v1150
      %v1153 = vshrl.u32 %v938, 16
      %v1155 = vrot.slane %v1153, 4
      %v1156 = vshll.u32 %v938, 16
      %v1158 = vrot.slane %v1156, 5
      %v1159 = vor.u32 %v1155, %v1158
      %v1160 = vrot.slane %v1159, 4
      %v1162 = vshll.u32 %v939, 16
      %v1164 = vrot.slane %v1162, 5
      %v1165 = vsel %vm335, %v1160, %v1164
      %v1167 = vshrl.u32 %v940, 16
      %v1169 = vrot.slane %v1167, 4
      %v1170 = vshll.u32 %v940, 16
      %v1172 = vrot.slane %v1170, 5
      %v1173 = vor.u32 %v1169, %v1172
      %v1174 = vrot.slane %v1173, 4
      %v1176 = vshll.u32 %v941, 16
      %v1178 = vrot.slane %v1176, 5
      %v1179 = vsel %vm335, %v1174, %v1178
      %v1181 = vshrl.u32 %v942, 16
      %v1183 = vrot.slane %v1181, 4
      %v1184 = vshll.u32 %v942, 16
      %v1186 = vrot.slane %v1184, 5
      %v1187 = vor.u32 %v1183, %v1186
      %v1188 = vrot.slane %v1187, 4
      %v1190 = vshll.u32 %v943, 16
      %v1192 = vrot.slane %v1190, 5
      %v1193 = vsel %vm335, %v1188, %v1192
      %v1195 = vshrl.u32 %v944, 16
      %v1197 = vrot.slane %v1195, 4
      %v1198 = vshll.u32 %v944, 16
      %v1200 = vrot.slane %v1198, 5
      %v1201 = vor.u32 %v1197, %v1200
      %v1202 = vrot.slane %v1201, 4
      %v1204 = vshll.u32 %v945, 16
      %v1206 = vrot.slane %v1204, 5
      %v1207 = vsel %vm335, %v1202, %v1206
      %v1209 = vshrl.u32 %v946, 16
      %v1211 = vrot.slane %v1209, 4
      %v1212 = vshll.u32 %v946, 16
      %v1214 = vrot.slane %v1212, 5
      %v1215 = vor.u32 %v1211, %v1214
      %v1216 = vrot.slane %v1215, 4
      %v1218 = vshll.u32 %v947, 16
      %v1220 = vrot.slane %v1218, 5
      %v1221 = vsel %vm335, %v1216, %v1220
      %s1222 = scalar_lea.vmem %s264, 256
      %v1223 = vld [vmem:[%s1222] sm:$0xf]
      %v1224 = vld [vmem:[%s1222 + $0x4] sm:$0xf]
      %v1225 = vld [vmem:[%s1222 + $0x8] sm:$0xf]
      %v1226 = vld [vmem:[%s1222 + $0xc] sm:$0xf]
      %v1227 = vld [vmem:[%s1222 + $0x10] sm:$0xf]
      %v1228 = vld [vmem:[%s1222 + $0x14] sm:$0xf]
      %v1229 = vld [vmem:[%s1222 + $0x18] sm:$0xf]
      %v1230 = vld [vmem:[%s1222 + $0x1c] sm:$0xf]
      %v1231 = vld [vmem:[%s1222 + $0x20] sm:$0xf]
      %v1232 = vld [vmem:[%s1222 + $0x24] sm:$0xf]
      %v1233 = vld [vmem:[%s1222 + $0x28] sm:$0xf]
      %v1234 = vld [vmem:[%s1222 + $0x2c] sm:$0xf]
      %v1235 = vld [vmem:[%s1222 + $0x30] sm:$0xf]
      %v1236 = vld [vmem:[%s1222 + $0x34] sm:$0xf]
      %v1237 = vld [vmem:[%s1222 + $0x38] sm:$0xf]
      %v1238 = vld [vmem:[%s1222 + $0x3c] sm:$0xf]
      %v1239 = vunpack.c.l.b16 %v1123
      %v1240 = vunpack.c.l.b16 %v1137
      %v1241 = vunpack.c.l.b16 %v1151
      %v1242 = vunpack.c.l.b16 %v1165
      %v1243 = vunpack.c.l.b16 %v1179
      %v1244 = vunpack.c.l.b16 %v1193
      %v1245 = vunpack.c.l.b16 %v1207
      %v1246 = vunpack.c.l.b16 %v1221
      %v1247 = vpack.c.b16 %v1240, %v1239
      %v1248 = vpack.c.b16 %v1242, %v1241
      %v1249 = vpack.c.b16 %v1244, %v1243
      %v1250 = vpack.c.b16 %v1246, %v1245
      %v1271 = vunpack.c.l.b16 %v1223
      %v1272 = vunpack.c.l.b16 %v1224
      %v1273 = vunpack.c.l.b16 %v1225
      %v1274 = vunpack.c.l.b16 %v1226
      %v1275 = vunpack.c.l.b16 %v1227
      %v1276 = vunpack.c.l.b16 %v1228
      %v1277 = vunpack.c.l.b16 %v1229
      %v1278 = vunpack.c.l.b16 %v1230
      %v1279 = vunpack.c.l.b16 %v1231
      %v1280 = vunpack.c.l.b16 %v1232
      %v1281 = vunpack.c.l.b16 %v1233
      %v1282 = vunpack.c.l.b16 %v1234
      %v1283 = vunpack.c.l.b16 %v1235
      %v1284 = vunpack.c.l.b16 %v1236
      %v1285 = vunpack.c.l.b16 %v1237
      %v1286 = vunpack.c.l.b16 %v1238
      %v1287 = vpack.c.b16 %v1272, %v1271
      %v1288 = vpack.c.b16 %v1274, %v1273
      %v1289 = vpack.c.b16 %v1276, %v1275
      %v1290 = vpack.c.b16 %v1278, %v1277
      %v1291 = vpack.c.b16 %v1280, %v1279
      %v1292 = vpack.c.b16 %v1282, %v1281
      %v1293 = vpack.c.b16 %v1284, %v1283
      %v1294 = vpack.c.b16 %v1286, %v1285
      %1303 = vmatprep.subr.bf16.mxu0 0
      %1304 = vmatpush1.bf16.msra.mxu0 %v1287
      %1305 = vmatprep.subr.bf16.mxu0 0
      %1306 = vmatpush1.bf16.msra.mxu0 %v1288
      %1307 = vmatprep.subr.bf16.mxu0 0
      %1308 = vmatpush1.bf16.msra.mxu0 %v1289
      %1309 = vmatprep.subr.bf16.mxu0 0
      %1310 = vmatpush1.bf16.msra.mxu0 %v1290
      %1311 = vmatprep.subr.bf16.mxu0 0
      %1312 = vmatpush1.bf16.msra.mxu0 %v1291
      %1313 = vmatprep.subr.bf16.mxu0 0
      %1314 = vmatpush1.bf16.msra.mxu0 %v1292
      %1315 = vmatprep.subr.bf16.mxu0 0
      %1316 = vmatpush1.bf16.msra.mxu0 %v1293
      %1317 = vmatprep.subr.bf16.mxu0 0
      %1318 = vmatpush1.bf16.msra.mxu0 %v1294
      %1319 = vmatprep.subr.bf16.mxu0 0
      %1320 = vmatpush1.bf16.msra.mxu0 0
      %1321 = vmatprep.subr.bf16.mxu0 0
      %1322 = vmatpush1.bf16.msra.mxu0 0
      %1323 = vmatprep.subr.bf16.mxu0 0
      %1324 = vmatpush1.bf16.msra.mxu0 0
      %1325 = vmatprep.subr.bf16.mxu0 0
      %1326 = vmatpush1.bf16.msra.mxu0 0
      %1327 = vmatprep.subr.bf16.mxu0 0
      %1328 = vmatpush1.bf16.msra.mxu0 0
      %1329 = vmatprep.subr.bf16.mxu0 0
      %1330 = vmatpush1.bf16.msra.mxu0 0
      %1331 = vmatprep.subr.bf16.mxu0 0
      %1332 = vmatpush1.bf16.msra.mxu0 0
      %1333 = vmatprep.subr.bf16.mxu0 0
      %1334 = vmatpush1.bf16.msra.mxu0 0
      %1335 = vmatprep.mubr.bf16.mxu0 0
      %1336 = vmatmul.mubr.bf16.gmra.mrb[0].mxu0 %v1247
      %v1337 = vpop.f32.mrb[0].mxu0
      %v1338 = vadd.f32 0.0, %v1337
      %v1339 = vpop.f32.mrb[0].mxu0
      %v1340 = vpop.f32.mrb[0].mxu0
      %v1341 = vadd.f32 0.0, %v1340
      %v1342 = vpop.f32.mrb[0].mxu0
      %1343 = vmatprep.mubr.bf16.mxu0 0
      %1344 = vmatmul.mubr.bf16.gmra.mrb[0].mxu0 %v1248
      %v1345 = vpop.f32.mrb[0].mxu0
      %v1346 = vadd.f32 0.0, %v1345
      %v1347 = vpop.f32.mrb[0].mxu0
      %v1348 = vpop.f32.mrb[0].mxu0
      %v1349 = vadd.f32 0.0, %v1348
      %v1350 = vpop.f32.mrb[0].mxu0
      %1351 = vmatprep.mubr.bf16.mxu0 0
      %1352 = vmatmul.mubr.bf16.gmra.mrb[0].mxu0 %v1249
      %v1353 = vpop.f32.mrb[0].mxu0
      %v1354 = vadd.f32 0.0, %v1353
      %v1355 = vpop.f32.mrb[0].mxu0
      %v1356 = vpop.f32.mrb[0].mxu0
      %v1357 = vadd.f32 0.0, %v1356
      %v1358 = vpop.f32.mrb[0].mxu0
      %1359 = vmatprep.mubr.bf16.mxu0 0
      %1360 = vmatmul.mubr.bf16.gmra.mrb[0].mxu0 %v1250
      %v1361 = vpop.f32.mrb[0].mxu0
      %v1362 = vadd.f32 0.0, %v1361
      %v1363 = vpop.f32.mrb[0].mxu0
      %v1364 = vpop.f32.mrb[0].mxu0
      %v1365 = vadd.f32 0.0, %v1364
      %v1366 = vpop.f32.mrb[0].mxu0
      %1367 = vdwg.mxu0
      %v1368 = vadd.f32 %v1102, %v1338
      %v1369 = vadd.f32 %v1103, %v1341
      %v1370 = vadd.f32 %v1104, %v1346
      %v1371 = vadd.f32 %v1105, %v1349
      %v1372 = vadd.f32 %v1106, %v1354
      %v1373 = vadd.f32 %v1107, %v1357
      %v1374 = vadd.f32 %v1108, %v1362
      %v1375 = vadd.f32 %v1109, %v1365
      %v1384 = vrot.slane %v932, 5
      %v1385 = vrot.slane %v1384, 4
      %v1386 = vrot.slane %v933, 5
      %v1387 = vsel %vm741, %v1385, %v1386
      %v1388 = vrot.slane %v934, 5
      %v1389 = vrot.slane %v1388, 4
      %v1390 = vrot.slane %v935, 5
      %v1391 = vsel %vm741, %v1389, %v1390
      %v1392 = vrot.slane %v936, 5
      %v1393 = vrot.slane %v1392, 4
      %v1394 = vrot.slane %v937, 5
      %v1395 = vsel %vm741, %v1393, %v1394
      %v1396 = vrot.slane %v938, 5
      %v1397 = vrot.slane %v1396, 4
      %v1398 = vrot.slane %v939, 5
      %v1399 = vsel %vm741, %v1397, %v1398
      %v1400 = vrot.slane %v940, 5
      %v1401 = vrot.slane %v1400, 4
      %v1402 = vrot.slane %v941, 5
      %v1403 = vsel %vm741, %v1401, %v1402
      %v1404 = vrot.slane %v942, 5
      %v1405 = vrot.slane %v1404, 4
      %v1406 = vrot.slane %v943, 5
      %v1407 = vsel %vm741, %v1405, %v1406
      %v1408 = vrot.slane %v944, 5
      %v1409 = vrot.slane %v1408, 4
      %v1410 = vrot.slane %v945, 5
      %v1411 = vsel %vm741, %v1409, %v1410
      %v1412 = vrot.slane %v946, 5
      %v1413 = vrot.slane %v1412, 4
      %v1414 = vrot.slane %v947, 5
      %v1415 = vsel %vm741, %v1413, %v1414
      %s1416 = scalar_lea.vmem %s264, 320
      %v1417 = vld [vmem:[%s1416] sm:$0xf]
      %v1418 = vld [vmem:[%s1416 + $0x4] sm:$0xf]
      %v1419 = vld [vmem:[%s1416 + $0x8] sm:$0xf]
      %v1420 = vld [vmem:[%s1416 + $0xc] sm:$0xf]
      %v1421 = vld [vmem:[%s1416 + $0x10] sm:$0xf]
      %v1422 = vld [vmem:[%s1416 + $0x14] sm:$0xf]
      %v1423 = vld [vmem:[%s1416 + $0x18] sm:$0xf]
      %v1424 = vld [vmem:[%s1416 + $0x1c] sm:$0xf]
      %v1425 = vld [vmem:[%s1416 + $0x20] sm:$0xf]
      %v1426 = vld [vmem:[%s1416 + $0x24] sm:$0xf]
      %v1427 = vld [vmem:[%s1416 + $0x28] sm:$0xf]
      %v1428 = vld [vmem:[%s1416 + $0x2c] sm:$0xf]
      %v1429 = vld [vmem:[%s1416 + $0x30] sm:$0xf]
      %v1430 = vld [vmem:[%s1416 + $0x34] sm:$0xf]
      %v1431 = vld [vmem:[%s1416 + $0x38] sm:$0xf]
      %v1432 = vld [vmem:[%s1416 + $0x3c] sm:$0xf]
      %v1433 = vunpack.c.l.b16 %v1387
      %v1434 = vunpack.c.l.b16 %v1391
      %v1435 = vunpack.c.l.b16 %v1395
      %v1436 = vunpack.c.l.b16 %v1399
      %v1437 = vunpack.c.l.b16 %v1403
      %v1438 = vunpack.c.l.b16 %v1407
      %v1439 = vunpack.c.l.b16 %v1411
      %v1440 = vunpack.c.l.b16 %v1415
      %v1441 = vpack.c.b16 %v1434, %v1433
      %v1442 = vpack.c.b16 %v1436, %v1435
      %v1443 = vpack.c.b16 %v1438, %v1437
      %v1444 = vpack.c.b16 %v1440, %v1439
      %v1465 = vunpack.c.l.b16 %v1417
      %v1466 = vunpack.c.l.b16 %v1418
      %v1467 = vunpack.c.l.b16 %v1419
      %v1468 = vunpack.c.l.b16 %v1420
      %v1469 = vunpack.c.l.b16 %v1421
      %v1470 = vunpack.c.l.b16 %v1422
      %v1471 = vunpack.c.l.b16 %v1423
      %v1472 = vunpack.c.l.b16 %v1424
      %v1473 = vunpack.c.l.b16 %v1425
      %v1474 = vunpack.c.l.b16 %v1426
      %v1475 = vunpack.c.l.b16 %v1427
      %v1476 = vunpack.c.l.b16 %v1428
      %v1477 = vunpack.c.l.b16 %v1429
      %v1478 = vunpack.c.l.b16 %v1430
      %v1479 = vunpack.c.l.b16 %v1431
      %v1480 = vunpack.c.l.b16 %v1432
      %v1481 = vpack.c.b16 %v1466, %v1465
      %v1482 = vpack.c.b16 %v1468, %v1467
      %v1483 = vpack.c.b16 %v1470, %v1469
      %v1484 = vpack.c.b16 %v1472, %v1471
      %v1485 = vpack.c.b16 %v1474, %v1473
      %v1486 = vpack.c.b16 %v1476, %v1475
      %v1487 = vpack.c.b16 %v1478, %v1477
      %v1488 = vpack.c.b16 %v1480, %v1479
      %1497 = vmatprep.subr.bf16.mxu0 0
      %1498 = vmatpush1.bf16.msra.mxu0 %v1481
      %1499 = vmatprep.subr.bf16.mxu0 0
      %1500 = vmatpush1.bf16.msra.mxu0 %v1482
      %1501 = vmatprep.subr.bf16.mxu0 0
      %1502 = vmatpush1.bf16.msra.mxu0 %v1483
      %1503 = vmatprep.subr.bf16.mxu0 0
      %1504 = vmatpush1.bf16.msra.mxu0 %v1484
      %1505 = vmatprep.subr.bf16.mxu0 0
      %1506 = vmatpush1.bf16.msra.mxu0 %v1485
      %1507 = vmatprep.subr.bf16.mxu0 0
      %1508 = vmatpush1.bf16.msra.mxu0 %v1486
      %1509 = vmatprep.subr.bf16.mxu0 0
      %1510 = vmatpush1.bf16.msra.mxu0 %v1487
      %1511 = vmatprep.subr.bf16.mxu0 0
      %1512 = vmatpush1.bf16.msra.mxu0 %v1488
      %1513 = vmatprep.subr.bf16.mxu0 0
      %1514 = vmatpush1.bf16.msra.mxu0 0
      %1515 = vmatprep.subr.bf16.mxu0 0
      %1516 = vmatpush1.bf16.msra.mxu0 0
      %1517 = vmatprep.subr.bf16.mxu0 0
      %1518 = vmatpush1.bf16.msra.mxu0 0
      %1519 = vmatprep.subr.bf16.mxu0 0
      %1520 = vmatpush1.bf16.msra.mxu0 0
      %1521 = vmatprep.subr.bf16.mxu0 0
      %1522 = vmatpush1.bf16.msra.mxu0 0
      %1523 = vmatprep.subr.bf16.mxu0 0
      %1524 = vmatpush1.bf16.msra.mxu0 0
      %1525 = vmatprep.subr.bf16.mxu0 0
      %1526 = vmatpush1.bf16.msra.mxu0 0
      %1527 = vmatprep.subr.bf16.mxu0 0
      %1528 = vmatpush1.bf16.msra.mxu0 0
      %1529 = vmatprep.mubr.bf16.mxu0 0
      %1530 = vmatmul.mubr.bf16.gmra.mrb[0].mxu0 %v1441
      %v1531 = vpop.f32.mrb[0].mxu0
      %v1532 = vadd.f32 0.0, %v1531
      %v1533 = vpop.f32.mrb[0].mxu0
      %v1534 = vpop.f32.mrb[0].mxu0
      %v1535 = vadd.f32 0.0, %v1534
      %v1536 = vpop.f32.mrb[0].mxu0
      %1537 = vmatprep.mubr.bf16.mxu0 0
      %1538 = vmatmul.mubr.bf16.gmra.mrb[0].mxu0 %v1442
      %v1539 = vpop.f32.mrb[0].mxu0
      %v1540 = vadd.f32 0.0, %v1539
      %v1541 = vpop.f32.mrb[0].mxu0
      %v1542 = vpop.f32.mrb[0].mxu0
      %v1543 = vadd.f32 0.0, %v1542
      %v1544 = vpop.f32.mrb[0].mxu0
      %1545 = vmatprep.mubr.bf16.mxu0 0
      %1546 = vmatmul.mubr.bf16.gmra.mrb[0].mxu0 %v1443
      %v1547 = vpop.f32.mrb[0].mxu0
      %v1548 = vadd.f32 0.0, %v1547
      %v1549 = vpop.f32.mrb[0].mxu0
      %v1550 = vpop.f32.mrb[0].mxu0
      %v1551 = vadd.f32 0.0, %v1550
      %v1552 = vpop.f32.mrb[0].mxu0
      %1553 = vmatprep.mubr.bf16.mxu0 0
      %1554 = vmatmul.mubr.bf16.gmra.mrb[0].mxu0 %v1444
      %v1555 = vpop.f32.mrb[0].mxu0
      %v1556 = vadd.f32 0.0, %v1555
      %v1557 = vpop.f32.mrb[0].mxu0
      %v1558 = vpop.f32.mrb[0].mxu0
      %v1559 = vadd.f32 0.0, %v1558
      %v1560 = vpop.f32.mrb[0].mxu0
      %1561 = vdwg.mxu0
      %v1562 = vadd.f32 %v1368, %v1532
      %v1563 = vadd.f32 %v1369, %v1535
      %v1564 = vadd.f32 %v1370, %v1540
      %v1565 = vadd.f32 %v1371, %v1543
      %v1566 = vadd.f32 %v1372, %v1548
      %v1567 = vadd.f32 %v1373, %v1551
      %v1568 = vadd.f32 %v1374, %v1556
      %v1569 = vadd.f32 %v1375, %v1559
      %s1570 = sadd.s32 %s297, 2
      %s1571 = smul.u32 %s1570, 2
      %s1572 = smul.addr %s1571, 4
      %s1573 = scalar_lea.vmem %s0, %s1572
      %v1574 = vld [vmem:[%s1573] sm:$0xf]
      %v1575 = vld [vmem:[%s1573 + $0x4] sm:$0x1]
      %v1576 = vld [vmem:[%s1573 + $0x8] sm:$0xf]
      %v1577 = vld [vmem:[%s1573 + $0xc] sm:$0x1]
      %v1578 = vld [vmem:[%s1573 + $0x10] sm:$0xf]
      %v1579 = vld [vmem:[%s1573 + $0x14] sm:$0x1]
      %v1580 = vld [vmem:[%s1573 + $0x18] sm:$0xf]
      %v1581 = vld [vmem:[%s1573 + $0x1c] sm:$0x1]
      %v1582 = vld [vmem:[%s1573 + $0x20] sm:$0xf]
      %v1583 = vld [vmem:[%s1573 + $0x24] sm:$0x1]
      %v1584 = vld [vmem:[%s1573 + $0x28] sm:$0xf]
      %v1585 = vld [vmem:[%s1573 + $0x2c] sm:$0x1]
      %v1586 = vld [vmem:[%s1573 + $0x30] sm:$0xf]
      %v1587 = vld [vmem:[%s1573 + $0x34] sm:$0x1]
      %v1588 = vld [vmem:[%s1573 + $0x38] sm:$0xf]
      %v1589 = vld [vmem:[%s1573 + $0x3c] sm:$0x1]
      %s1590 = scalar_lea.vmem %s264, 384
      %v1591 = vld [vmem:[%s1590] sm:$0xf]
      %v1592 = vld [vmem:[%s1590 + $0x4] sm:$0xf]
      %v1593 = vld [vmem:[%s1590 + $0x8] sm:$0xf]
      %v1594 = vld [vmem:[%s1590 + $0xc] sm:$0xf]
      %v1595 = vld [vmem:[%s1590 + $0x10] sm:$0xf]
      %v1596 = vld [vmem:[%s1590 + $0x14] sm:$0xf]
      %v1597 = vld [vmem:[%s1590 + $0x18] sm:$0xf]
      %v1598 = vld [vmem:[%s1590 + $0x1c] sm:$0xf]
      %v1599 = vld [vmem:[%s1590 + $0x20] sm:$0xf]
      %v1600 = vld [vmem:[%s1590 + $0x24] sm:$0xf]
      %v1601 = vld [vmem:[%s1590 + $0x28] sm:$0xf]
      %v1602 = vld [vmem:[%s1590 + $0x2c] sm:$0xf]
      %v1603 = vld [vmem:[%s1590 + $0x30] sm:$0xf]
      %v1604 = vld [vmem:[%s1590 + $0x34] sm:$0xf]
      %v1605 = vld [vmem:[%s1590 + $0x38] sm:$0xf]
      %v1606 = vld [vmem:[%s1590 + $0x3c] sm:$0xf]
      %v1615 = vunpack.c.l.b16 %v1574
      %v1616 = vunpack.c.l.b16 %v1576
      %v1617 = vunpack.c.l.b16 %v1578
      %v1618 = vunpack.c.l.b16 %v1580
      %v1619 = vunpack.c.l.b16 %v1582
      %v1620 = vunpack.c.l.b16 %v1584
      %v1621 = vunpack.c.l.b16 %v1586
      %v1622 = vunpack.c.l.b16 %v1588
      %v1623 = vpack.c.b16 %v1616, %v1615
      %v1624 = vpack.c.b16 %v1618, %v1617
      %v1625 = vpack.c.b16 %v1620, %v1619
      %v1626 = vpack.c.b16 %v1622, %v1621
      %v1647 = vunpack.c.l.b16 %v1591
      %v1648 = vunpack.c.l.b16 %v1592
      %v1649 = vunpack.c.l.b16 %v1593
      %v1650 = vunpack.c.l.b16 %v1594
      %v1651 = vunpack.c.l.b16 %v1595
      %v1652 = vunpack.c.l.b16 %v1596
      %v1653 = vunpack.c.l.b16 %v1597
      %v1654 = vunpack.c.l.b16 %v1598
      %v1655 = vunpack.c.l.b16 %v1599
      %v1656 = vunpack.c.l.b16 %v1600
      %v1657 = vunpack.c.l.b16 %v1601
      %v1658 = vunpack.c.l.b16 %v1602
      %v1659 = vunpack.c.l.b16 %v1603
      %v1660 = vunpack.c.l.b16 %v1604
      %v1661 = vunpack.c.l.b16 %v1605
      %v1662 = vunpack.c.l.b16 %v1606
      %v1663 = vpack.c.b16 %v1648, %v1647
      %v1664 = vpack.c.b16 %v1650, %v1649
      %v1665 = vpack.c.b16 %v1652, %v1651
      %v1666 = vpack.c.b16 %v1654, %v1653
      %v1667 = vpack.c.b16 %v1656, %v1655
      %v1668 = vpack.c.b16 %v1658, %v1657
      %v1669 = vpack.c.b16 %v1660, %v1659
      %v1670 = vpack.c.b16 %v1662, %v1661
      %1679 = vmatprep.subr.bf16.mxu0 0
      %1680 = vmatpush1.bf16.msra.mxu0 %v1663
      %1681 = vmatprep.subr.bf16.mxu0 0
      %1682 = vmatpush1.bf16.msra.mxu0 %v1664
      %1683 = vmatprep.subr.bf16.mxu0 0
      %1684 = vmatpush1.bf16.msra.mxu0 %v1665
      %1685 = vmatprep.subr.bf16.mxu0 0
      %1686 = vmatpush1.bf16.msra.mxu0 %v1666
      %1687 = vmatprep.subr.bf16.mxu0 0
      %1688 = vmatpush1.bf16.msra.mxu0 %v1667
      %1689 = vmatprep.subr.bf16.mxu0 0
      %1690 = vmatpush1.bf16.msra.mxu0 %v1668
      %1691 = vmatprep.subr.bf16.mxu0 0
      %1692 = vmatpush1.bf16.msra.mxu0 %v1669
      %1693 = vmatprep.subr.bf16.mxu0 0
      %1694 = vmatpush1.bf16.msra.mxu0 %v1670
      %1695 = vmatprep.subr.bf16.mxu0 0
      %1696 = vmatpush1.bf16.msra.mxu0 0
      %1697 = vmatprep.subr.bf16.mxu0 0
      %1698 = vmatpush1.bf16.msra.mxu0 0
      %1699 = vmatprep.subr.bf16.mxu0 0
      %1700 = vmatpush1.bf16.msra.mxu0 0
      %1701 = vmatprep.subr.bf16.mxu0 0
      %1702 = vmatpush1.bf16.msra.mxu0 0
      %1703 = vmatprep.subr.bf16.mxu0 0
      %1704 = vmatpush1.bf16.msra.mxu0 0
      %1705 = vmatprep.subr.bf16.mxu0 0
      %1706 = vmatpush1.bf16.msra.mxu0 0
      %1707 = vmatprep.subr.bf16.mxu0 0
      %1708 = vmatpush1.bf16.msra.mxu0 0
      %1709 = vmatprep.subr.bf16.mxu0 0
      %1710 = vmatpush1.bf16.msra.mxu0 0
      %1711 = vmatprep.mubr.bf16.mxu0 0
      %1712 = vmatmul.mubr.bf16.gmra.mrb[0].mxu0 %v1623
      %v1713 = vpop.f32.mrb[0].mxu0
      %v1714 = vadd.f32 0.0, %v1713
      %v1715 = vpop.f32.mrb[0].mxu0
      %v1716 = vpop.f32.mrb[0].mxu0
      %v1717 = vadd.f32 0.0, %v1716
      %v1718 = vpop.f32.mrb[0].mxu0
      %1719 = vmatprep.mubr.bf16.mxu0 0
      %1720 = vmatmul.mubr.bf16.gmra.mrb[0].mxu0 %v1624
      %v1721 = vpop.f32.mrb[0].mxu0
      %v1722 = vadd.f32 0.0, %v1721
      %v1723 = vpop.f32.mrb[0].mxu0
      %v1724 = vpop.f32.mrb[0].mxu0
      %v1725 = vadd.f32 0.0, %v1724
      %v1726 = vpop.f32.mrb[0].mxu0
      %1727 = vmatprep.mubr.bf16.mxu0 0
      %1728 = vmatmul.mubr.bf16.gmra.mrb[0].mxu0 %v1625
      %v1729 = vpop.f32.mrb[0].mxu0
      %v1730 = vadd.f32 0.0, %v1729
      %v1731 = vpop.f32.mrb[0].mxu0
      %v1732 = vpop.f32.mrb[0].mxu0
      %v1733 = vadd.f32 0.0, %v1732
      %v1734 = vpop.f32.mrb[0].mxu0
      %1735 = vmatprep.mubr.bf16.mxu0 0
      %1736 = vmatmul.mubr.bf16.gmra.mrb[0].mxu0 %v1626
      %v1737 = vpop.f32.mrb[0].mxu0
      %v1738 = vadd.f32 0.0, %v1737
      %v1739 = vpop.f32.mrb[0].mxu0
      %v1740 = vpop.f32.mrb[0].mxu0
      %v1741 = vadd.f32 0.0, %v1740
      %v1742 = vpop.f32.mrb[0].mxu0
      %1743 = vdwg.mxu0
      %v1744 = vadd.f32 %v1562, %v1714
      %v1745 = vadd.f32 %v1563, %v1717
      %v1746 = vadd.f32 %v1564, %v1722
      %v1747 = vadd.f32 %v1565, %v1725
      %v1748 = vadd.f32 %v1566, %v1730
      %v1749 = vadd.f32 %v1567, %v1733
      %v1750 = vadd.f32 %v1568, %v1738
      %v1751 = vadd.f32 %v1569, %v1741
      %v1753 = vshrl.u32 %v1574, 16
      %v1755 = vrot.slane %v1753, 4
      %v1756 = vshll.u32 %v1574, 16
      %v1758 = vrot.slane %v1756, 5
      %v1759 = vor.u32 %v1755, %v1758
      %v1760 = vrot.slane %v1759, 4
      %v1762 = vshll.u32 %v1575, 16
      %v1764 = vrot.slane %v1762, 5
      %v1765 = vsel %vm335, %v1760, %v1764
      %v1767 = vshrl.u32 %v1576, 16
      %v1769 = vrot.slane %v1767, 4
      %v1770 = vshll.u32 %v1576, 16
      %v1772 = vrot.slane %v1770, 5
      %v1773 = vor.u32 %v1769, %v1772
      %v1774 = vrot.slane %v1773, 4
      %v1776 = vshll.u32 %v1577, 16
      %v1778 = vrot.slane %v1776, 5
      %v1779 = vsel %vm335, %v1774, %v1778
      %v1781 = vshrl.u32 %v1578, 16
      %v1783 = vrot.slane %v1781, 4
      %v1784 = vshll.u32 %v1578, 16
      %v1786 = vrot.slane %v1784, 5
      %v1787 = vor.u32 %v1783, %v1786
      %v1788 = vrot.slane %v1787, 4
      %v1790 = vshll.u32 %v1579, 16
      %v1792 = vrot.slane %v1790, 5
      %v1793 = vsel %vm335, %v1788, %v1792
      %v1795 = vshrl.u32 %v1580, 16
      %v1797 = vrot.slane %v1795, 4
      %v1798 = vshll.u32 %v1580, 16
      %v1800 = vrot.slane %v1798, 5
      %v1801 = vor.u32 %v1797, %v1800
      %v1802 = vrot.slane %v1801, 4
      %v1804 = vshll.u32 %v1581, 16
      %v1806 = vrot.slane %v1804, 5
      %v1807 = vsel %vm335, %v1802, %v1806
      %v1809 = vshrl.u32 %v1582, 16
      %v1811 = vrot.slane %v1809, 4
      %v1812 = vshll.u32 %v1582, 16
      %v1814 = vrot.slane %v1812, 5
      %v1815 = vor.u32 %v1811, %v1814
      %v1816 = vrot.slane %v1815, 4
      %v1818 = vshll.u32 %v1583, 16
      %v1820 = vrot.slane %v1818, 5
      %v1821 = vsel %vm335, %v1816, %v1820
      %v1823 = vshrl.u32 %v1584, 16
      %v1825 = vrot.slane %v1823, 4
      %v1826 = vshll.u32 %v1584, 16
      %v1828 = vrot.slane %v1826, 5
      %v1829 = vor.u32 %v1825, %v1828
      %v1830 = vrot.slane %v1829, 4
      %v1832 = vshll.u32 %v1585, 16
      %v1834 = vrot.slane %v1832, 5
      %v1835 = vsel %vm335, %v1830, %v1834
      %v1837 = vshrl.u32 %v1586, 16
      %v1839 = vrot.slane %v1837, 4
      %v1840 = vshll.u32 %v1586, 16
      %v1842 = vrot.slane %v1840, 5
      %v1843 = vor.u32 %v1839, %v1842
      %v1844 = vrot.slane %v1843, 4
      %v1846 = vshll.u32 %v1587, 16
      %v1848 = vrot.slane %v1846, 5
      %v1849 = vsel %vm335, %v1844, %v1848
      %v1851 = vshrl.u32 %v1588, 16
      %v1853 = vrot.slane %v1851, 4
      %v1854 = vshll.u32 %v1588, 16
      %v1856 = vrot.slane %v1854, 5
      %v1857 = vor.u32 %v1853, %v1856
      %v1858 = vrot.slane %v1857, 4
      %v1860 = vshll.u32 %v1589, 16
      %v1862 = vrot.slane %v1860, 5
      %v1863 = vsel %vm335, %v1858, %v1862
      %s1864 = scalar_lea.vmem %s264, 448
      %v1865 = vld [vmem:[%s1864] sm:$0xf]
      %v1866 = vld [vmem:[%s1864 + $0x4] sm:$0xf]
      %v1867 = vld [vmem:[%s1864 + $0x8] sm:$0xf]
      %v1868 = vld [vmem:[%s1864 + $0xc] sm:$0xf]
      %v1869 = vld [vmem:[%s1864 + $0x10] sm:$0xf]
      %v1870 = vld [vmem:[%s1864 + $0x14] sm:$0xf]
      %v1871 = vld [vmem:[%s1864 + $0x18] sm:$0xf]
      %v1872 = vld [vmem:[%s1864 + $0x1c] sm:$0xf]
      %v1873 = vld [vmem:[%s1864 + $0x20] sm:$0xf]
      %v1874 = vld [vmem:[%s1864 + $0x24] sm:$0xf]
      %v1875 = vld [vmem:[%s1864 + $0x28] sm:$0xf]
      %v1876 = vld [vmem:[%s1864 + $0x2c] sm:$0xf]
      %v1877 = vld [vmem:[%s1864 + $0x30] sm:$0xf]
      %v1878 = vld [vmem:[%s1864 + $0x34] sm:$0xf]
      %v1879 = vld [vmem:[%s1864 + $0x38] sm:$0xf]
      %v1880 = vld [vmem:[%s1864 + $0x3c] sm:$0xf]
      %v1881 = vunpack.c.l.b16 %v1765
      %v1882 = vunpack.c.l.b16 %v1779
      %v1883 = vunpack.c.l.b16 %v1793
      %v1884 = vunpack.c.l.b16 %v1807
      %v1885 = vunpack.c.l.b16 %v1821
      %v1886 = vunpack.c.l.b16 %v1835
      %v1887 = vunpack.c.l.b16 %v1849
      %v1888 = vunpack.c.l.b16 %v1863
      %v1889 = vpack.c.b16 %v1882, %v1881
      %v1890 = vpack.c.b16 %v1884, %v1883
      %v1891 = vpack.c.b16 %v1886, %v1885
      %v1892 = vpack.c.b16 %v1888, %v1887
      %v1913 = vunpack.c.l.b16 %v1865
      %v1914 = vunpack.c.l.b16 %v1866
      %v1915 = vunpack.c.l.b16 %v1867
      %v1916 = vunpack.c.l.b16 %v1868
      %v1917 = vunpack.c.l.b16 %v1869
      %v1918 = vunpack.c.l.b16 %v1870
      %v1919 = vunpack.c.l.b16 %v1871
      %v1920 = vunpack.c.l.b16 %v1872
      %v1921 = vunpack.c.l.b16 %v1873
      %v1922 = vunpack.c.l.b16 %v1874
      %v1923 = vunpack.c.l.b16 %v1875
      %v1924 = vunpack.c.l.b16 %v1876
      %v1925 = vunpack.c.l.b16 %v1877
      %v1926 = vunpack.c.l.b16 %v1878
      %v1927 = vunpack.c.l.b16 %v1879
      %v1928 = vunpack.c.l.b16 %v1880
      %v1929 = vpack.c.b16 %v1914, %v1913
      %v1930 = vpack.c.b16 %v1916, %v1915
      %v1931 = vpack.c.b16 %v1918, %v1917
      %v1932 = vpack.c.b16 %v1920, %v1919
      %v1933 = vpack.c.b16 %v1922, %v1921
      %v1934 = vpack.c.b16 %v1924, %v1923
      %v1935 = vpack.c.b16 %v1926, %v1925
      %v1936 = vpack.c.b16 %v1928, %v1927
      %1945 = vmatprep.subr.bf16.mxu0 0
      %1946 = vmatpush1.bf16.msra.mxu0 %v1929
      %1947 = vmatprep.subr.bf16.mxu0 0
      %1948 = vmatpush1.bf16.msra.mxu0 %v1930
      %1949 = vmatprep.subr.bf16.mxu0 0
      %1950 = vmatpush1.bf16.msra.mxu0 %v1931
      %1951 = vmatprep.subr.bf16.mxu0 0
      %1952 = vmatpush1.bf16.msra.mxu0 %v1932
      %1953 = vmatprep.subr.bf16.mxu0 0
      %1954 = vmatpush1.bf16.msra.mxu0 %v1933
      %1955 = vmatprep.subr.bf16.mxu0 0
      %1956 = vmatpush1.bf16.msra.mxu0 %v1934
      %1957 = vmatprep.subr.bf16.mxu0 0
      %1958 = vmatpush1.bf16.msra.mxu0 %v1935
      %1959 = vmatprep.subr.bf16.mxu0 0
      %1960 = vmatpush1.bf16.msra.mxu0 %v1936
      %1961 = vmatprep.subr.bf16.mxu0 0
      %1962 = vmatpush1.bf16.msra.mxu0 0
      %1963 = vmatprep.subr.bf16.mxu0 0
      %1964 = vmatpush1.bf16.msra.mxu0 0
      %1965 = vmatprep.subr.bf16.mxu0 0
      %1966 = vmatpush1.bf16.msra.mxu0 0
      %1967 = vmatprep.subr.bf16.mxu0 0
      %1968 = vmatpush1.bf16.msra.mxu0 0
      %1969 = vmatprep.subr.bf16.mxu0 0
      %1970 = vmatpush1.bf16.msra.mxu0 0
      %1971 = vmatprep.subr.bf16.mxu0 0
      %1972 = vmatpush1.bf16.msra.mxu0 0
      %1973 = vmatprep.subr.bf16.mxu0 0
      %1974 = vmatpush1.bf16.msra.mxu0 0
      %1975 = vmatprep.subr.bf16.mxu0 0
      %1976 = vmatpush1.bf16.msra.mxu0 0
      %1977 = vmatprep.mubr.bf16.mxu0 0
      %1978 = vmatmul.mubr.bf16.gmra.mrb[0].mxu0 %v1889
      %v1979 = vpop.f32.mrb[0].mxu0
      %v1980 = vadd.f32 0.0, %v1979
      %v1981 = vpop.f32.mrb[0].mxu0
      %v1982 = vpop.f32.mrb[0].mxu0
      %v1983 = vadd.f32 0.0, %v1982
      %v1984 = vpop.f32.mrb[0].mxu0
      %1985 = vmatprep.mubr.bf16.mxu0 0
      %1986 = vmatmul.mubr.bf16.gmra.mrb[0].mxu0 %v1890
      %v1987 = vpop.f32.mrb[0].mxu0
      %v1988 = vadd.f32 0.0, %v1987
      %v1989 = vpop.f32.mrb[0].mxu0
      %v1990 = vpop.f32.mrb[0].mxu0
      %v1991 = vadd.f32 0.0, %v1990
      %v1992 = vpop.f32.mrb[0].mxu0
      %1993 = vmatprep.mubr.bf16.mxu0 0
      %1994 = vmatmul.mubr.bf16.gmra.mrb[0].mxu0 %v1891
      %v1995 = vpop.f32.mrb[0].mxu0
      %v1996 = vadd.f32 0.0, %v1995
      %v1997 = vpop.f32.mrb[0].mxu0
      %v1998 = vpop.f32.mrb[0].mxu0
      %v1999 = vadd.f32 0.0, %v1998
      %v2000 = vpop.f32.mrb[0].mxu0
      %2001 = vmatprep.mubr.bf16.mxu0 0
      %2002 = vmatmul.mubr.bf16.gmra.mrb[0].mxu0 %v1892
      %v2003 = vpop.f32.mrb[0].mxu0
      %v2004 = vadd.f32 0.0, %v2003
      %v2005 = vpop.f32.mrb[0].mxu0
      %v2006 = vpop.f32.mrb[0].mxu0
      %v2007 = vadd.f32 0.0, %v2006
      %v2008 = vpop.f32.mrb[0].mxu0
      %2009 = vdwg.mxu0
      %v2010 = vadd.f32 %v1744, %v1980
      %v2011 = vadd.f32 %v1745, %v1983
      %v2012 = vadd.f32 %v1746, %v1988
      %v2013 = vadd.f32 %v1747, %v1991
      %v2014 = vadd.f32 %v1748, %v1996
      %v2015 = vadd.f32 %v1749, %v1999
      %v2016 = vadd.f32 %v1750, %v2004
      %v2017 = vadd.f32 %v1751, %v2007
      %v2026 = vrot.slane %v1574, 5
      %v2027 = vrot.slane %v2026, 4
      %v2028 = vrot.slane %v1575, 5
      %v2029 = vsel %vm741, %v2027, %v2028
      %v2030 = vrot.slane %v1576, 5
      %v2031 = vrot.slane %v2030, 4
      %v2032 = vrot.slane %v1577, 5
      %v2033 = vsel %vm741, %v2031, %v2032
      %v2034 = vrot.slane %v1578, 5
      %v2035 = vrot.slane %v2034, 4
      %v2036 = vrot.slane %v1579, 5
      %v2037 = vsel %vm741, %v2035, %v2036
      %v2038 = vrot.slane %v1580, 5
      %v2039 = vrot.slane %v2038, 4
      %v2040 = vrot.slane %v1581, 5
      %v2041 = vsel %vm741, %v2039, %v2040
      %v2042 = vrot.slane %v1582, 5
      %v2043 = vrot.slane %v2042, 4
      %v2044 = vrot.slane %v1583, 5
      %v2045 = vsel %vm741, %v2043, %v2044
      %v2046 = vrot.slane %v1584, 5
      %v2047 = vrot.slane %v2046, 4
      %v2048 = vrot.slane %v1585, 5
      %v2049 = vsel %vm741, %v2047, %v2048
      %v2050 = vrot.slane %v1586, 5
      %v2051 = vrot.slane %v2050, 4
      %v2052 = vrot.slane %v1587, 5
      %v2053 = vsel %vm741, %v2051, %v2052
      %v2054 = vrot.slane %v1588, 5
      %v2055 = vrot.slane %v2054, 4
      %v2056 = vrot.slane %v1589, 5
      %v2057 = vsel %vm741, %v2055, %v2056
      %s2058 = scalar_lea.vmem %s264, 512
      %v2059 = vld [vmem:[%s2058] sm:$0xf]
      %v2060 = vld [vmem:[%s2058 + $0x4] sm:$0xf]
      %v2061 = vld [vmem:[%s2058 + $0x8] sm:$0xf]
      %v2062 = vld [vmem:[%s2058 + $0xc] sm:$0xf]
      %v2063 = vld [vmem:[%s2058 + $0x10] sm:$0xf]
      %v2064 = vld [vmem:[%s2058 + $0x14] sm:$0xf]
      %v2065 = vld [vmem:[%s2058 + $0x18] sm:$0xf]
      %v2066 = vld [vmem:[%s2058 + $0x1c] sm:$0xf]
      %v2067 = vld [vmem:[%s2058 + $0x20] sm:$0xf]
      %v2068 = vld [vmem:[%s2058 + $0x24] sm:$0xf]
      %v2069 = vld [vmem:[%s2058 + $0x28] sm:$0xf]
      %v2070 = vld [vmem:[%s2058 + $0x2c] sm:$0xf]
      %v2071 = vld [vmem:[%s2058 + $0x30] sm:$0xf]
      %v2072 = vld [vmem:[%s2058 + $0x34] sm:$0xf]
      %v2073 = vld [vmem:[%s2058 + $0x38] sm:$0xf]
      %v2074 = vld [vmem:[%s2058 + $0x3c] sm:$0xf]
      %v2075 = vunpack.c.l.b16 %v2029
      %v2076 = vunpack.c.l.b16 %v2033
      %v2077 = vunpack.c.l.b16 %v2037
      %v2078 = vunpack.c.l.b16 %v2041
      %v2079 = vunpack.c.l.b16 %v2045
      %v2080 = vunpack.c.l.b16 %v2049
      %v2081 = vunpack.c.l.b16 %v2053
      %v2082 = vunpack.c.l.b16 %v2057
      %v2083 = vpack.c.b16 %v2076, %v2075
      %v2084 = vpack.c.b16 %v2078, %v2077
      %v2085 = vpack.c.b16 %v2080, %v2079
      %v2086 = vpack.c.b16 %v2082, %v2081
      %v2107 = vunpack.c.l.b16 %v2059
      %v2108 = vunpack.c.l.b16 %v2060
      %v2109 = vunpack.c.l.b16 %v2061
      %v2110 = vunpack.c.l.b16 %v2062
      %v2111 = vunpack.c.l.b16 %v2063
      %v2112 = vunpack.c.l.b16 %v2064
      %v2113 = vunpack.c.l.b16 %v2065
      %v2114 = vunpack.c.l.b16 %v2066
      %v2115 = vunpack.c.l.b16 %v2067
      %v2116 = vunpack.c.l.b16 %v2068
      %v2117 = vunpack.c.l.b16 %v2069
      %v2118 = vunpack.c.l.b16 %v2070
      %v2119 = vunpack.c.l.b16 %v2071
      %v2120 = vunpack.c.l.b16 %v2072
      %v2121 = vunpack.c.l.b16 %v2073
      %v2122 = vunpack.c.l.b16 %v2074
      %v2123 = vpack.c.b16 %v2108, %v2107
      %v2124 = vpack.c.b16 %v2110, %v2109
      %v2125 = vpack.c.b16 %v2112, %v2111
      %v2126 = vpack.c.b16 %v2114, %v2113
      %v2127 = vpack.c.b16 %v2116, %v2115
      %v2128 = vpack.c.b16 %v2118, %v2117
      %v2129 = vpack.c.b16 %v2120, %v2119
      %v2130 = vpack.c.b16 %v2122, %v2121
      %2139 = vmatprep.subr.bf16.mxu0 0
      %2140 = vmatpush1.bf16.msra.mxu0 %v2123
      %2141 = vmatprep.subr.bf16.mxu0 0
      %2142 = vmatpush1.bf16.msra.mxu0 %v2124
      %2143 = vmatprep.subr.bf16.mxu0 0
      %2144 = vmatpush1.bf16.msra.mxu0 %v2125
      %2145 = vmatprep.subr.bf16.mxu0 0
      %2146 = vmatpush1.bf16.msra.mxu0 %v2126
      %2147 = vmatprep.subr.bf16.mxu0 0
      %2148 = vmatpush1.bf16.msra.mxu0 %v2127
      %2149 = vmatprep.subr.bf16.mxu0 0
      %2150 = vmatpush1.bf16.msra.mxu0 %v2128
      %2151 = vmatprep.subr.bf16.mxu0 0
      %2152 = vmatpush1.bf16.msra.mxu0 %v2129
      %2153 = vmatprep.subr.bf16.mxu0 0
      %2154 = vmatpush1.bf16.msra.mxu0 %v2130
      %2155 = vmatprep.subr.bf16.mxu0 0
      %2156 = vmatpush1.bf16.msra.mxu0 0
      %2157 = vmatprep.subr.bf16.mxu0 0
      %2158 = vmatpush1.bf16.msra.mxu0 0
      %2159 = vmatprep.subr.bf16.mxu0 0
      %2160 = vmatpush1.bf16.msra.mxu0 0
      %2161 = vmatprep.subr.bf16.mxu0 0
      %2162 = vmatpush1.bf16.msra.mxu0 0
      %2163 = vmatprep.subr.bf16.mxu0 0
      %2164 = vmatpush1.bf16.msra.mxu0 0
      %2165 = vmatprep.subr.bf16.mxu0 0
      %2166 = vmatpush1.bf16.msra.mxu0 0
      %2167 = vmatprep.subr.bf16.mxu0 0
      %2168 = vmatpush1.bf16.msra.mxu0 0
      %2169 = vmatprep.subr.bf16.mxu0 0
      %2170 = vmatpush1.bf16.msra.mxu0 0
      %2171 = vmatprep.mubr.bf16.mxu0 0
      %2172 = vmatmul.mubr.bf16.gmra.mrb[0].mxu0 %v2083
      %v2173 = vpop.f32.mrb[0].mxu0
      %v2174 = vadd.f32 0.0, %v2173
      %v2175 = vpop.f32.mrb[0].mxu0
      %v2176 = vpop.f32.mrb[0].mxu0
      %v2177 = vadd.f32 0.0, %v2176
      %v2178 = vpop.f32.mrb[0].mxu0
      %2179 = vmatprep.mubr.bf16.mxu0 0
      %2180 = vmatmul.mubr.bf16.gmra.mrb[0].mxu0 %v2084
      %v2181 = vpop.f32.mrb[0].mxu0
      %v2182 = vadd.f32 0.0, %v2181
      %v2183 = vpop.f32.mrb[0].mxu0
      %v2184 = vpop.f32.mrb[0].mxu0
      %v2185 = vadd.f32 0.0, %v2184
      %v2186 = vpop.f32.mrb[0].mxu0
      %2187 = vmatprep.mubr.bf16.mxu0 0
      %2188 = vmatmul.mubr.bf16.gmra.mrb[0].mxu0 %v2085
      %v2189 = vpop.f32.mrb[0].mxu0
      %v2190 = vadd.f32 0.0, %v2189
      %v2191 = vpop.f32.mrb[0].mxu0
      %v2192 = vpop.f32.mrb[0].mxu0
      %v2193 = vadd.f32 0.0, %v2192
      %v2194 = vpop.f32.mrb[0].mxu0
      %2195 = vmatprep.mubr.bf16.mxu0 0
      %2196 = vmatmul.mubr.bf16.gmra.mrb[0].mxu0 %v2086
      %v2197 = vpop.f32.mrb[0].mxu0
      %v2198 = vadd.f32 0.0, %v2197
      %v2199 = vpop.f32.mrb[0].mxu0
      %v2200 = vpop.f32.mrb[0].mxu0
      %v2201 = vadd.f32 0.0, %v2200
      %v2202 = vpop.f32.mrb[0].mxu0
      %2203 = vdwg.mxu0
      %v2204 = vadd.f32 %v2010, %v2174
      %v2205 = vadd.f32 %v2011, %v2177
      %v2206 = vadd.f32 %v2012, %v2182
      %v2207 = vadd.f32 %v2013, %v2185
      %v2208 = vadd.f32 %v2014, %v2190
      %v2209 = vadd.f32 %v2015, %v2193
      %v2210 = vadd.f32 %v2016, %v2198
      %v2211 = vadd.f32 %v2017, %v2201
      %v2212 = vld [vmem:[%s267] sm:$0x1]
      %v2214 = vlaneseq
      %v2215 = vshrl.u32 %v2214, 7
      %v2216 = vsub.s32 0, %v2215
      %v2217 = vrot.slane %v2212, %v2216
      %v2219 = vadd.f32 %v2204, %v2217
      %v2220 = vadd.f32 %v2205, %v2217
      %v2221 = vadd.f32 %v2206, %v2217
      %v2222 = vadd.f32 %v2207, %v2217
      %v2223 = vadd.f32 %v2208, %v2217
      %v2224 = vadd.f32 %v2209, %v2217
      %v2225 = vadd.f32 %v2210, %v2217
      %v2226 = vadd.f32 %v2211, %v2217
      %v2227 = vld [vmem:[%s279] sm:$0xf]
      %v2228 = vld [vmem:[%s279 + $0x4] sm:$0xf]
      %v2229 = vld [vmem:[%s279 + $0x8] sm:$0xf]
      %v2230 = vld [vmem:[%s279 + $0xc] sm:$0xf]
      %v2231 = vld [vmem:[%s279 + $0x10] sm:$0xf]
      %v2232 = vld [vmem:[%s279 + $0x14] sm:$0xf]
      %v2233 = vld [vmem:[%s279 + $0x18] sm:$0xf]
      %v2234 = vld [vmem:[%s279 + $0x1c] sm:$0xf]
      %v2235 = vunpack.c.l.bf16 %v2227
      %v2236 = vunpack.c.l.bf16 %v2228
      %v2237 = vunpack.c.l.bf16 %v2229
      %v2238 = vunpack.c.l.bf16 %v2230
      %v2239 = vunpack.c.l.bf16 %v2231
      %v2240 = vunpack.c.l.bf16 %v2232
      %v2241 = vunpack.c.l.bf16 %v2233
      %v2242 = vunpack.c.l.bf16 %v2234
      %v2243 = vadd.f32 %v2219, %v2235
      %v2244 = vadd.f32 %v2220, %v2236
      %v2245 = vadd.f32 %v2221, %v2237
      %v2246 = vadd.f32 %v2222, %v2238
      %v2247 = vadd.f32 %v2223, %v2239
      %v2248 = vadd.f32 %v2224, %v2240
      %v2249 = vadd.f32 %v2225, %v2241
      %v2250 = vadd.f32 %v2226, %v2242
      %v2251 = vmax.f32 %v2243, 0.0
      %v2252 = vmax.f32 %v2244, 0.0
      %v2253 = vmax.f32 %v2245, 0.0
      %v2254 = vmax.f32 %v2246, 0.0
      %v2255 = vmax.f32 %v2247, 0.0
      %v2256 = vmax.f32 %v2248, 0.0
      %v2257 = vmax.f32 %v2249, 0.0
      %v2258 = vmax.f32 %v2250, 0.0
      %v2259 = vpack.c.bf16 %v2251, %v2251
      %v2260 = vpack.c.bf16 %v2252, %v2252
      %v2261 = vpack.c.bf16 %v2253, %v2253
      %v2262 = vpack.c.bf16 %v2254, %v2254
      %v2263 = vpack.c.bf16 %v2255, %v2255
      %v2264 = vpack.c.bf16 %v2256, %v2256
      %v2265 = vpack.c.bf16 %v2257, %v2257
      %v2266 = vpack.c.bf16 %v2258, %v2258
      %2267 = vst [vmem:[%s292] sm:$0xf] %v2259
      %2268 = vst [vmem:[%s292 + $0x4] sm:$0xf] %v2260
      %2269 = vst [vmem:[%s292 + $0x8] sm:$0xf] %v2261
      %2270 = vst [vmem:[%s292 + $0xc] sm:$0xf] %v2262
      %2271 = vst [vmem:[%s292 + $0x10] sm:$0xf] %v2263
      %2272 = vst [vmem:[%s292 + $0x14] sm:$0xf] %v2264
      %2273 = vst [vmem:[%s292 + $0x18] sm:$0xf] %v2265
      %2274 = vst [vmem:[%s292 + $0x1c] sm:$0xf] %v2266
      %s2275 = smul.u32 8, %s22
      %p2276 = scmp.lt.s32.totalorder %s21, 1
      %s2277 = scalar_select %p2276, %s21, 1
      %p2278 = scmp.lt.s32.totalorder %s2275, 7
      %s2279 = scalar_select %p2278, %s2275, 7
      %p2280 = scmp.lt.s32.totalorder %s20, 0
      %s2281 = scalar_select %p2280, %s20, 0
      %s2282 = sadd.s32 %s2281, %s2279
      %s2283 = smul.addr %s2277, 8
      %s2284 = sadd.s32 %s2282, %s2283
      %s2285 = smul.addr %s2284, 4
      %s2286 = scalar_lea.vmem %s4, %s2285
      // Predicated region
      $region37: #{cnn_forward.11} parent=35 // pred_check
        %p2287 = pneg %p159
      $region38: #{cnn_forward.11} parent=35 // pred_check_branch
        %2289 = sbr.rel (%p2287) target = $region40
      $region39: #{cnn_forward.11} parent=35 // pred_region
        %s2290 = smul.u32 8, %s22
      $region40: #{cnn_forward.11} parent=35 // pred_fallthru
        _
    $region36: #{cnn_forward.11} parent=5 // pred_fallthru
      _
    %p2291 = scmp.le.s32.totalorder 2, %s10
    // Predicated region
    $region41: #{cnn_forward.11} parent=5 // pred_check
      %p2292 = pneg %p2291
    $region42: #{cnn_forward.11} parent=5 // pred_check_branch
      %2294 = sbr.rel (%p2292) target = $region44
    $region43: #{cnn_forward.11} parent=5 // pred_region
      %s2295 = ssub.s32 %s10, 2
      // Predicated region
      $region45: #{cnn_forward.11} parent=43 // pred_check
        %p2296 = pneg %p165
      $region46: #{cnn_forward.11} parent=43 // pred_check_branch
        %2298 = sbr.rel (%p2296) target = $region48
      $region47: #{cnn_forward.11} parent=43 // pred_region
        %s2299 = smul.u32 8, %s25
        %p2300 = scmp.lt.s32.totalorder %s24, 1
        %s2301 = scalar_select %p2300, %s24, 1
        %p2302 = scmp.lt.s32.totalorder %s2299, 7
        %s2303 = scalar_select %p2302, %s2299, 7
        %p2304 = scmp.lt.s32.totalorder %s23, 0
        %s2305 = scalar_select %p2304, %s23, 0
        %s2306 = sadd.s32 %s2305, %s2303
        %s2307 = smul.addr %s2301, 8
        %s2308 = sadd.s32 %s2306, %s2307
        %s2309 = smul.addr %s2308, 4
        %s2310 = scalar_lea.vmem %s4, %s2309
      $region48: #{cnn_forward.11} parent=43 // pred_fallthru
        _
    $region44: #{cnn_forward.11} parent=5 // pred_fallthru
      _
  $region6: #{cnn_forward.11} parent=0 // loop_footer
    %s14 = sadd.s32 1, %s10
  $region7: #{cnn_forward.11} parent=0 // loop_footer_branch
    %9 = sbr.rel target = $region3
  $region8: #{cnn_forward.11} parent=0 // loop_exit
    _

// kernel: cnn_forward.10
$region0: #{cnn_forward.10}
  #allocation0 [shape = 'u32[]', space=smem, size = 0x4, offset = 0x4, fixed_abs, tag = 'smem constant byte address 0x4 - core index']
  #allocation1 [shape = 'u32[144,128]{1,0:T(1,128)}', space=vmem, size = 0x12000, scoped, tag = 'internal scratch']
  %s0 = inlined_call_operand.vmem [shape: bf16[20,10,128], index: 0, kind: input, shape index: {}]
  %s1 = inlined_call_operand.vmem [shape: bf16[9,128,128], index: 1, kind: input, shape index: {}]
  %s2 = inlined_call_operand.vmem [shape: f32[1,128], index: 2, kind: input, shape index: {}]
  %s3 = inlined_call_operand.vmem [shape: bf16[2,8,8,128], index: 3, kind: output, shape index: {}]
  %s4 = sld [smem:[#allocation0]]
  $region45: #{cnn_forward.10} parent=0
    _
  %s6 = ssub.s32 1, %s4
  %s7 = scalar_select 0, %s6, %s4
  loop: start=0, step=1, limit=4
  $region2: #{cnn_forward.10} parent=0 // loop_pre_header
    _
  $region3: #{cnn_forward.10} parent=0 // loop_header
    %s9 = sphi 0, %s13
    %p10 = scmp.ge.s32.totalorder %s9, 4
    %s16 = sphi 0, %s35
    %s17 = sphi 0, %s31
    %s18 = sphi 0, %s27
    %s19 = sphi 0, %s16
    %s20 = sphi 0, %s17
    %s21 = sphi 0, %s18
    %s22 = sphi 0, %s19
    %s23 = sphi 0, %s20
    %s24 = sphi 0, %s21
    %s36 = sphi 0, %s36
    %s38 = sphi 0, %s36
    %s39 = sphi 0, %s38
    %s53 = sphi 0, %s39
    %s59 = sphi 0, %s61
    %s62 = sphi 0, %s59
    %s63 = sphi 0, %s62
    %s79 = sphi 0, %s63
    %s85 = sphi 0, %s87
    %s88 = sphi 0, %s85
    %s89 = sphi 0, %s88
    %s105 = sphi 0, %s89
    %s115 = sphi 0, %s117
    %s118 = sphi 0, %s115
    %s119 = sphi 0, %s118
    %s135 = sphi 0, %s119
  $region4: #{cnn_forward.10} parent=0 // loop_header_branch
    %12 = sbr.rel (%p10) target = $region8
  $region5: #{cnn_forward.10} parent=0 // loop_body
    %s14 = ssub.s32 %s9, 1
    %s15 = ssub.s32 %s9, 2
    %s25 = sadd.s32 1, %s18
    %p26 = scmp.ge.s32.totalorder %s25, 1
    %s27 = scalar_select %p26, 0, %s25
    %s28 = sadd.s32 1, %s17
    %s29 = scalar_select %p26, %s28, %s17
    %p30 = scmp.ge.s32.totalorder %s29, 2
    %s31 = scalar_select %p30, 0, %s29
    %s32 = sadd.s32 1, %s16
    %s33 = scalar_select %p30, %s32, %s16
    %p34 = scmp.ge.s32.totalorder %s33, 1
    %s35 = scalar_select %p34, 0, %s33
    %s37 = sadd.s32 %s36, 1
    %p40 = scmp.eq.s32.totalorder %s9, 1
    %p41 = scmp.ne.s32.totalorder %s36, %s38
    %p42 = scmp.eq.s32.totalorder %s9, 0
    %p43 = por %p41, %p42
    %p44 = scmp.ne.s32.totalorder %s36, %s38
    %p45 = scmp.eq.s32.totalorder %s14, 1
    %p46 = por %p44, %p45
    %p47 = scmp.ne.s32.totalorder %s38, %s39
    %p48 = scmp.eq.s32.totalorder %s14, 0
    %p49 = por %p47, %p48
    %p50 = scmp.ne.s32.totalorder %s38, %s39
    %p51 = scmp.eq.s32.totalorder %s15, 1
    %p52 = por %p50, %p51
    %p54 = scmp.ne.s32.totalorder %s39, %s53
    %p55 = scmp.eq.s32.totalorder %s15, 0
    %p56 = por %p54, %p55
    %s57 = ssub.s32 %s16, %s35
    %p58 = scmp.eq.s32.totalorder %s57, 0
    %s60 = sadd.s32 %s59, 1
    %s61 = scalar_select %p58, %s59, %s60
    %p64 = pneg %p58
    %p65 = scmp.eq.s32.totalorder %s9, 1
    %p66 = por %p64, %p65
    %p67 = scmp.ne.s32.totalorder %s59, %s62
    %p68 = scmp.eq.s32.totalorder %s9, 0
    %p69 = por %p67, %p68
    %p70 = scmp.ne.s32.totalorder %s59, %s62
    %p71 = scmp.eq.s32.totalorder %s14, 1
    %p72 = por %p70, %p71
    %p73 = scmp.ne.s32.totalorder %s62, %s63
    %p74 = scmp.eq.s32.totalorder %s14, 0
    %p75 = por %p73, %p74
    %p76 = scmp.ne.s32.totalorder %s62, %s63
    %p77 = scmp.eq.s32.totalorder %s15, 1
    %p78 = por %p76, %p77
    %p80 = scmp.ne.s32.totalorder %s63, %s79
    %p81 = scmp.eq.s32.totalorder %s15, 0
    %p82 = por %p80, %p81
    %s83 = ssub.s32 %s16, %s35
    %p84 = scmp.eq.s32.totalorder %s83, 0
    %s86 = sadd.s32 %s85, 1
    %s87 = scalar_select %p84, %s85, %s86
    %p90 = pneg %p84
    %p91 = scmp.eq.s32.totalorder %s9, 1
    %p92 = por %p90, %p91
    %p93 = scmp.ne.s32.totalorder %s85, %s88
    %p94 = scmp.eq.s32.totalorder %s9, 0
    %p95 = por %p93, %p94
    %p96 = scmp.ne.s32.totalorder %s85, %s88
    %p97 = scmp.eq.s32.totalorder %s14, 1
    %p98 = por %p96, %p97
    %p99 = scmp.ne.s32.totalorder %s88, %s89
    %p100 = scmp.eq.s32.totalorder %s14, 0
    %p101 = por %p99, %p100
    %p102 = scmp.ne.s32.totalorder %s88, %s89
    %p103 = scmp.eq.s32.totalorder %s15, 1
    %p104 = por %p102, %p103
    %p106 = scmp.ne.s32.totalorder %s89, %s105
    %p107 = scmp.eq.s32.totalorder %s15, 0
    %p108 = por %p106, %p107
    %s109 = ssub.s32 %s17, %s31
    %s110 = ssub.s32 %s18, %s27
    %s111 = sor.u32 %s109, %s110
    %s112 = ssub.s32 %s16, %s35
    %s113 = sor.u32 %s111, %s112
    %p114 = scmp.eq.s32.totalorder %s113, 0
    %s116 = sadd.s32 %s115, 1
    %s117 = scalar_select %p114, %s115, %s116
    %p120 = pneg %p114
    %p121 = scmp.eq.s32.totalorder %s9, 1
    %p122 = por %p120, %p121
    %p123 = scmp.ne.s32.totalorder %s115, %s118
    %p124 = scmp.eq.s32.totalorder %s9, 0
    %p125 = por %p123, %p124
    %p126 = scmp.ne.s32.totalorder %s115, %s118
    %p127 = scmp.eq.s32.totalorder %s14, 1
    %p128 = por %p126, %p127
    %p129 = scmp.ne.s32.totalorder %s118, %s119
    %p130 = scmp.eq.s32.totalorder %s14, 0
    %p131 = por %p129, %p130
    %p132 = scmp.ne.s32.totalorder %s118, %s119
    %p133 = scmp.eq.s32.totalorder %s15, 1
    %p134 = por %p132, %p133
    %p136 = scmp.ne.s32.totalorder %s119, %s135
    %p137 = scmp.eq.s32.totalorder %s15, 0
    %p138 = por %p136, %p137
    %p139 = scmp.le.s32.totalorder 1, %s9
    %p140 = scmp.lt.s32.totalorder %s9, 3
    %p141 = pnand %p139, %p140
    %p142 = pneg %p141
    // Predicated region
    $region9: #{cnn_forward.10} parent=5 // pred_check
      _
    $region10: #{cnn_forward.10} parent=5 // pred_check_branch
      %144 = sbr.rel (%p141) target = $region12
    $region11: #{cnn_forward.10} parent=5 // pred_region
      %s145 = ssub.s32 %s9, 1
      // Predicated region
      $region13: #{cnn_forward.10} parent=11 // pred_check
        %p146 = pneg %p49
      $region14: #{cnn_forward.10} parent=11 // pred_check_branch
        %148 = sbr.rel (%p146) target = $region16
      $region15: #{cnn_forward.10} parent=11 // pred_region
        _
      $region16: #{cnn_forward.10} parent=11 // pred_fallthru
        _
      // Predicated region
      $region17: #{cnn_forward.10} parent=11 // pred_check
        %p149 = pneg %p75
      $region18: #{cnn_forward.10} parent=11 // pred_check_branch
        %151 = sbr.rel (%p149) target = $region20
      $region19: #{cnn_forward.10} parent=11 // pred_region
        %p152 = scmp.lt.s32.totalorder %s19, 0
        %s153 = scalar_select %p152, %s19, 0
        %s154 = smul.addr %s153, 4
        %s155 = scalar_lea.vmem %s1, %s154
      $region20: #{cnn_forward.10} parent=11 // pred_fallthru
        _
      // Predicated region
      $region21: #{cnn_forward.10} parent=11 // pred_check
        %p156 = pneg %p101
      $region22: #{cnn_forward.10} parent=11 // pred_check_branch
        %158 = sbr.rel (%p156) target = $region24
      $region23: #{cnn_forward.10} parent=11 // pred_region
        %p159 = scmp.lt.s32.totalorder %s19, 0
        %s160 = scalar_select %p159, %s19, 0
        %s161 = scalar_lea.vmem %s2, %s160
      $region24: #{cnn_forward.10} parent=11 // pred_fallthru
        _
    $region12: #{cnn_forward.10} parent=5 // pred_fallthru
      _
    %p162 = scmp.lt.s32.totalorder %s9, 2
    // Predicated region
    $region25: #{cnn_forward.10} parent=5 // pred_check
      %p163 = pneg %p162
    $region26: #{cnn_forward.10} parent=5 // pred_check_branch
      %165 = sbr.rel (%p163) target = $region28
    $region27: #{cnn_forward.10} parent=5 // pred_region
      _
    $region28: #{cnn_forward.10} parent=5 // pred_fallthru
      _
    %p166 = scmp.le.s32.totalorder 1, %s9
    %p167 = scmp.lt.s32.totalorder %s9, 3
    %p168 = pnand %p166, %p167
    %p169 = pneg %p168
    // Predicated region
    $region29: #{cnn_forward.10} parent=5 // pred_check
      _
    $region30: #{cnn_forward.10} parent=5 // pred_check_branch
      %171 = sbr.rel (%p168) target = $region32
    $region31: #{cnn_forward.10} parent=5 // pred_region
      %s172 = ssub.s32 %s9, 1
      %p173 = pneg %p49
      %p174 = pneg %p46
      %p175 = scmp.lt.s32.totalorder %s19, 0
      %s176 = scalar_select %p175, %s19, 0
      %s177 = smul.addr %s176, 4
      %s178 = scalar_lea.vmem %s1, %s177
      %p179 = pneg %p75
      %p180 = pneg %p72
      %p181 = scmp.lt.s32.totalorder %s19, 0
      %s182 = scalar_select %p181, %s19, 0
      %s183 = scalar_lea.vmem %s2, %s182
      %p184 = pneg %p101
      %p185 = pneg %p98
      %p186 = pneg %p131
      %p187 = pneg %p128
      %s188 = smul.u32 8, %s21
      %p189 = scmp.lt.s32.totalorder %s20, 1
      %s190 = scalar_select %p189, %s20, 1
      %p191 = scmp.lt.s32.totalorder %s188, 7
      %s192 = scalar_select %p191, %s188, 7
      %p193 = scmp.lt.s32.totalorder %s19, 0
      %s194 = scalar_select %p193, %s19, 0
      %s195 = sadd.s32 %s194, %s192
      %s196 = smul.addr %s190, 8
      %s197 = sadd.s32 %s195, %s196
      %s198 = smul.addr %s197, 4
      %s199 = scalar_lea.vmem %s3, %s198
      %p200 = scmp.lt.s32.totalorder %s19, 0
      %s201 = scalar_select %p200, %s19, 0
      %s202 = smul.addr %s201, 4
      %s203 = scalar_lea.vmem %s1, %s202
      %p204 = scmp.lt.s32.totalorder %s19, 0
      %s205 = scalar_select %p204, %s19, 0
      %s206 = scalar_lea.vmem %s2, %s205
      %s207 = smul.u32 8, %s21
      %p208 = scmp.lt.s32.totalorder %s20, 1
      %s209 = scalar_select %p208, %s20, 1
      %p210 = scmp.lt.s32.totalorder %s207, 7
      %s211 = scalar_select %p210, %s207, 7
      %p212 = scmp.lt.s32.totalorder %s19, 0
      %s213 = scalar_select %p212, %s19, 0
      %s214 = sadd.s32 %s213, %s211
      %s215 = smul.addr %s209, 8
      %s216 = sadd.s32 %s214, %s215
      %s217 = smul.addr %s216, 4
      %s218 = scalar_lea.vmem %s3, %s217
      %s219 = smul.u32 8, %s21
      %s221 = smul.u32 %s20, 10
      %s222 = smul.u32 %s21, 8
      %s223 = sadd.s32 %s221, %s222
      %s224 = smul.u32 %s223, 2
      %s225 = smul.addr %s224, 4
      %s226 = scalar_lea.vmem %s0, %s225
      %v227 = vld [vmem:[%s226] sm:$0xf]
      %v228 = vld [vmem:[%s226 + $0x4] sm:$0x1]
      %v229 = vld [vmem:[%s226 + $0x8] sm:$0xf]
      %v230 = vld [vmem:[%s226 + $0xc] sm:$0x1]
      %v231 = vld [vmem:[%s226 + $0x10] sm:$0xf]
      %v232 = vld [vmem:[%s226 + $0x14] sm:$0x1]
      %v233 = vld [vmem:[%s226 + $0x18] sm:$0xf]
      %v234 = vld [vmem:[%s226 + $0x1c] sm:$0x1]
      %v235 = vld [vmem:[%s226 + $0x20] sm:$0xf]
      %v236 = vld [vmem:[%s226 + $0x24] sm:$0x1]
      %v237 = vld [vmem:[%s226 + $0x28] sm:$0xf]
      %v238 = vld [vmem:[%s226 + $0x2c] sm:$0x1]
      %v239 = vld [vmem:[%s226 + $0x30] sm:$0xf]
      %v240 = vld [vmem:[%s226 + $0x34] sm:$0x1]
      %v241 = vld [vmem:[%s226 + $0x38] sm:$0xf]
      %v242 = vld [vmem:[%s226 + $0x3c] sm:$0x1]
      %v243 = vld [vmem:[%s203] sm:$0xf]
      %v244 = vld [vmem:[%s203 + $0x4] sm:$0xf]
      %v245 = vld [vmem:[%s203 + $0x8] sm:$0xf]
      %v246 = vld [vmem:[%s203 + $0xc] sm:$0xf]
      %v247 = vld [vmem:[%s203 + $0x10] sm:$0xf]
      %v248 = vld [vmem:[%s203 + $0x14] sm:$0xf]
      %v249 = vld [vmem:[%s203 + $0x18] sm:$0xf]
      %v250 = vld [vmem:[%s203 + $0x1c] sm:$0xf]
      %v251 = vld [vmem:[%s203 + $0x20] sm:$0xf]
      %v252 = vld [vmem:[%s203 + $0x24] sm:$0xf]
      %v253 = vld [vmem:[%s203 + $0x28] sm:$0xf]
      %v254 = vld [vmem:[%s203 + $0x2c] sm:$0xf]
      %v255 = vld [vmem:[%s203 + $0x30] sm:$0xf]
      %v256 = vld [vmem:[%s203 + $0x34] sm:$0xf]
      %v257 = vld [vmem:[%s203 + $0x38] sm:$0xf]
      %v258 = vld [vmem:[%s203 + $0x3c] sm:$0xf]
      %vm259 = vsmask.f32 3328
      %vm260 = vsmask.f32 7440
      %vm261 = vmor %vm259, %vm260
      %v263 = vshrl.u32 %v227, 16
      %v265 = vrot.slane %v263, 4
      %v266 = vshll.u32 %v227, 16
      %v268 = vrot.slane %v266, 5
      %v269 = vor.u32 %v265, %v268
      %v270 = vrot.slane %v269, 4
      %v272 = vshll.u32 %v228, 16
      %v274 = vrot.slane %v272, 5
      %v275 = vsel %vm261, %v270, %v274
      %v277 = vshrl.u32 %v229, 16
      %v279 = vrot.slane %v277, 4
      %v280 = vshll.u32 %v229, 16
      %v282 = vrot.slane %v280, 5
      %v283 = vor.u32 %v279, %v282
      %v284 = vrot.slane %v283, 4
      %v286 = vshll.u32 %v230, 16
      %v288 = vrot.slane %v286, 5
      %v289 = vsel %vm261, %v284, %v288
      %v291 = vshrl.u32 %v231, 16
      %v293 = vrot.slane %v291, 4
      %v294 = vshll.u32 %v231, 16
      %v296 = vrot.slane %v294, 5
      %v297 = vor.u32 %v293, %v296
      %v298 = vrot.slane %v297, 4
      %v300 = vshll.u32 %v232, 16
      %v302 = vrot.slane %v300, 5
      %v303 = vsel %vm261, %v298, %v302
      %v305 = vshrl.u32 %v233, 16
      %v307 = vrot.slane %v305, 4
      %v308 = vshll.u32 %v233, 16
      %v310 = vrot.slane %v308, 5
      %v311 = vor.u32 %v307, %v310
      %v312 = vrot.slane %v311, 4
      %v314 = vshll.u32 %v234, 16
      %v316 = vrot.slane %v314, 5
      %v317 = vsel %vm261, %v312, %v316
      %v319 = vshrl.u32 %v235, 16
      %v321 = vrot.slane %v319, 4
      %v322 = vshll.u32 %v235, 16
      %v324 = vrot.slane %v322, 5
      %v325 = vor.u32 %v321, %v324
      %v326 = vrot.slane %v325, 4
      %v328 = vshll.u32 %v236, 16
      %v330 = vrot.slane %v328, 5
      %v331 = vsel %vm261, %v326, %v330
      %v333 = vshrl.u32 %v237, 16
      %v335 = vrot.slane %v333, 4
      %v336 = vshll.u32 %v237, 16
      %v338 = vrot.slane %v336, 5
      %v339 = vor.u32 %v335, %v338
      %v340 = vrot.slane %v339, 4
      %v342 = vshll.u32 %v238, 16
      %v344 = vrot.slane %v342, 5
      %v345 = vsel %vm261, %v340, %v344
      %v347 = vshrl.u32 %v239, 16
      %v349 = vrot.slane %v347, 4
      %v350 = vshll.u32 %v239, 16
      %v352 = vrot.slane %v350, 5
      %v353 = vor.u32 %v349, %v352
      %v354 = vrot.slane %v353, 4
      %v356 = vshll.u32 %v240, 16
      %v358 = vrot.slane %v356, 5
      %v359 = vsel %vm261, %v354, %v358
      %v361 = vshrl.u32 %v241, 16
      %v363 = vrot.slane %v361, 4
      %v364 = vshll.u32 %v241, 16
      %v366 = vrot.slane %v364, 5
      %v367 = vor.u32 %v363, %v366
      %v368 = vrot.slane %v367, 4
      %v370 = vshll.u32 %v242, 16
      %v372 = vrot.slane %v370, 5
      %v373 = vsel %vm261, %v368, %v372
      %s374 = scalar_lea.vmem %s203, 64
      %v375 = vld [vmem:[%s374] sm:$0xf]
      %v376 = vld [vmem:[%s374 + $0x4] sm:$0xf]
      %v377 = vld [vmem:[%s374 + $0x8] sm:$0xf]
      %v378 = vld [vmem:[%s374 + $0xc] sm:$0xf]
      %v379 = vld [vmem:[%s374 + $0x10] sm:$0xf]
      %v380 = vld [vmem:[%s374 + $0x14] sm:$0xf]
      %v381 = vld [vmem:[%s374 + $0x18] sm:$0xf]
      %v382 = vld [vmem:[%s374 + $0x1c] sm:$0xf]
      %v383 = vld [vmem:[%s374 + $0x20] sm:$0xf]
      %v384 = vld [vmem:[%s374 + $0x24] sm:$0xf]
      %v385 = vld [vmem:[%s374 + $0x28] sm:$0xf]
      %v386 = vld [vmem:[%s374 + $0x2c] sm:$0xf]
      %v387 = vld [vmem:[%s374 + $0x30] sm:$0xf]
      %v388 = vld [vmem:[%s374 + $0x34] sm:$0xf]
      %v389 = vld [vmem:[%s374 + $0x38] sm:$0xf]
      %v390 = vld [vmem:[%s374 + $0x3c] sm:$0xf]
      %v391 = vunpack.c.l.b16 %v275
      %v392 = vunpack.c.l.b16 %v289
      %v393 = vunpack.c.l.b16 %v303
      %v394 = vunpack.c.l.b16 %v317
      %v395 = vunpack.c.l.b16 %v331
      %v396 = vunpack.c.l.b16 %v345
      %v397 = vunpack.c.l.b16 %v359
      %v398 = vunpack.c.l.b16 %v373
      %v399 = vpack.c.b16 %v392, %v391
      %v400 = vpack.c.b16 %v394, %v393
      %v401 = vpack.c.b16 %v396, %v395
      %v402 = vpack.c.b16 %v398, %v397
      %v423 = vunpack.c.l.b16 %v375
      %v424 = vunpack.c.l.b16 %v376
      %v425 = vunpack.c.l.b16 %v377
      %v426 = vunpack.c.l.b16 %v378
      %v427 = vunpack.c.l.b16 %v379
      %v428 = vunpack.c.l.b16 %v380
      %v429 = vunpack.c.l.b16 %v381
      %v430 = vunpack.c.l.b16 %v382
      %v431 = vunpack.c.l.b16 %v383
      %v432 = vunpack.c.l.b16 %v384
      %v433 = vunpack.c.l.b16 %v385
      %v434 = vunpack.c.l.b16 %v386
      %v435 = vunpack.c.l.b16 %v387
      %v436 = vunpack.c.l.b16 %v388
      %v437 = vunpack.c.l.b16 %v389
      %v438 = vunpack.c.l.b16 %v390
      %v439 = vpack.c.b16 %v424, %v423
      %v440 = vpack.c.b16 %v426, %v425
      %v441 = vpack.c.b16 %v428, %v427
      %v442 = vpack.c.b16 %v430, %v429
      %v443 = vpack.c.b16 %v432, %v431
      %v444 = vpack.c.b16 %v434, %v433
      %v445 = vpack.c.b16 %v436, %v435
      %v446 = vpack.c.b16 %v438, %v437
      %455 = vmatprep.subr.bf16.mxu0 0
      %456 = vmatpush1.bf16.msra.mxu0 %v439
      %457 = vmatprep.subr.bf16.mxu0 0
      %458 = vmatpush1.bf16.msra.mxu0 %v440
      %459 = vmatprep.subr.bf16.mxu0 0
      %460 = vmatpush1.bf16.msra.mxu0 %v441
      %461 = vmatprep.subr.bf16.mxu0 0
      %462 = vmatpush1.bf16.msra.mxu0 %v442
      %463 = vmatprep.subr.bf16.mxu0 0
      %464 = vmatpush1.bf16.msra.mxu0 %v443
      %465 = vmatprep.subr.bf16.mxu0 0
      %466 = vmatpush1.bf16.msra.mxu0 %v444
      %467 = vmatprep.subr.bf16.mxu0 0
      %468 = vmatpush1.bf16.msra.mxu0 %v445
      %469 = vmatprep.subr.bf16.mxu0 0
      %470 = vmatpush1.bf16.msra.mxu0 %v446
      %471 = vmatprep.subr.bf16.mxu0 0
      %472 = vmatpush1.bf16.msra.mxu0 0
      %473 = vmatprep.subr.bf16.mxu0 0
      %474 = vmatpush1.bf16.msra.mxu0 0
      %475 = vmatprep.subr.bf16.mxu0 0
      %476 = vmatpush1.bf16.msra.mxu0 0
      %477 = vmatprep.subr.bf16.mxu0 0
      %478 = vmatpush1.bf16.msra.mxu0 0
      %479 = vmatprep.subr.bf16.mxu0 0
      %480 = vmatpush1.bf16.msra.mxu0 0
      %481 = vmatprep.subr.bf16.mxu0 0
      %482 = vmatpush1.bf16.msra.mxu0 0
      %483 = vmatprep.subr.bf16.mxu0 0
      %484 = vmatpush1.bf16.msra.mxu0 0
      %485 = vmatprep.subr.bf16.mxu0 0
      %486 = vmatpush1.bf16.msra.mxu0 0
      %487 = vmatprep.mubr.bf16.mxu0 0
      %488 = vmatmul.mubr.bf16.gmra.mrb[0].mxu0 %v399
      %v489 = vpop.f32.mrb[0].mxu0
      %v490 = vadd.f32 0.0, %v489
      %v491 = vpop.f32.mrb[0].mxu0
      %v492 = vpop.f32.mrb[0].mxu0
      %v493 = vadd.f32 0.0, %v492
      %v494 = vpop.f32.mrb[0].mxu0
      %495 = vmatprep.mubr.bf16.mxu0 0
      %496 = vmatmul.mubr.bf16.gmra.mrb[0].mxu0 %v400
      %v497 = vpop.f32.mrb[0].mxu0
      %v498 = vadd.f32 0.0, %v497
      %v499 = vpop.f32.mrb[0].mxu0
      %v500 = vpop.f32.mrb[0].mxu0
      %v501 = vadd.f32 0.0, %v500
      %v502 = vpop.f32.mrb[0].mxu0
      %503 = vmatprep.mubr.bf16.mxu0 0
      %504 = vmatmul.mubr.bf16.gmra.mrb[0].mxu0 %v401
      %v505 = vpop.f32.mrb[0].mxu0
      %v506 = vadd.f32 0.0, %v505
      %v507 = vpop.f32.mrb[0].mxu0
      %v508 = vpop.f32.mrb[0].mxu0
      %v509 = vadd.f32 0.0, %v508
      %v510 = vpop.f32.mrb[0].mxu0
      %511 = vmatprep.mubr.bf16.mxu0 0
      %512 = vmatmul.mubr.bf16.gmra.mrb[0].mxu0 %v402
      %v513 = vpop.f32.mrb[0].mxu0
      %v514 = vadd.f32 0.0, %v513
      %v515 = vpop.f32.mrb[0].mxu0
      %v516 = vpop.f32.mrb[0].mxu0
      %v517 = vadd.f32 0.0, %v516
      %v518 = vpop.f32.mrb[0].mxu0
      %519 = vdwg.mxu0
      %v528 = vunpack.c.l.b16 %v227
      %v529 = vunpack.c.l.b16 %v229
      %v530 = vunpack.c.l.b16 %v231
      %v531 = vunpack.c.l.b16 %v233
      %v532 = vunpack.c.l.b16 %v235
      %v533 = vunpack.c.l.b16 %v237
      %v534 = vunpack.c.l.b16 %v239
      %v535 = vunpack.c.l.b16 %v241
      %v536 = vpack.c.b16 %v529, %v528
      %v537 = vpack.c.b16 %v531, %v530
      %v538 = vpack.c.b16 %v533, %v532
      %v539 = vpack.c.b16 %v535, %v534
      %v560 = vunpack.c.l.b16 %v243
      %v561 = vunpack.c.l.b16 %v244
      %v562 = vunpack.c.l.b16 %v245
      %v563 = vunpack.c.l.b16 %v246
      %v564 = vunpack.c.l.b16 %v247
      %v565 = vunpack.c.l.b16 %v248
      %v566 = vunpack.c.l.b16 %v249
      %v567 = vunpack.c.l.b16 %v250
      %v568 = vunpack.c.l.b16 %v251
      %v569 = vunpack.c.l.b16 %v252
      %v570 = vunpack.c.l.b16 %v253
      %v571 = vunpack.c.l.b16 %v254
      %v572 = vunpack.c.l.b16 %v255
      %v573 = vunpack.c.l.b16 %v256
      %v574 = vunpack.c.l.b16 %v257
      %v575 = vunpack.c.l.b16 %v258
      %v576 = vpack.c.b16 %v561, %v560
      %v577 = vpack.c.b16 %v563, %v562
      %v578 = vpack.c.b16 %v565, %v564
      %v579 = vpack.c.b16 %v567, %v566
      %v580 = vpack.c.b16 %v569, %v568
      %v581 = vpack.c.b16 %v571, %v570
      %v582 = vpack.c.b16 %v573, %v572
      %v583 = vpack.c.b16 %v575, %v574
      %592 = vmatprep.subr.bf16.mxu0 0
      %593 = vmatpush1.bf16.msra.mxu0 %v576
      %594 = vmatprep.subr.bf16.mxu0 0
      %595 = vmatpush1.bf16.msra.mxu0 %v577
      %596 = vmatprep.subr.bf16.mxu0 0
      %597 = vmatpush1.bf16.msra.mxu0 %v578
      %598 = vmatprep.subr.bf16.mxu0 0
      %599 = vmatpush1.bf16.msra.mxu0 %v579
      %600 = vmatprep.subr.bf16.mxu0 0
      %601 = vmatpush1.bf16.msra.mxu0 %v580
      %602 = vmatprep.subr.bf16.mxu0 0
      %603 = vmatpush1.bf16.msra.mxu0 %v581
      %604 = vmatprep.subr.bf16.mxu0 0
      %605 = vmatpush1.bf16.msra.mxu0 %v582
      %606 = vmatprep.subr.bf16.mxu0 0
      %607 = vmatpush1.bf16.msra.mxu0 %v583
      %608 = vmatprep.subr.bf16.mxu0 0
      %609 = vmatpush1.bf16.msra.mxu0 0
      %610 = vmatprep.subr.bf16.mxu0 0
      %611 = vmatpush1.bf16.msra.mxu0 0
      %612 = vmatprep.subr.bf16.mxu0 0
      %613 = vmatpush1.bf16.msra.mxu0 0
      %614 = vmatprep.subr.bf16.mxu0 0
      %615 = vmatpush1.bf16.msra.mxu0 0
      %616 = vmatprep.subr.bf16.mxu0 0
      %617 = vmatpush1.bf16.msra.mxu0 0
      %618 = vmatprep.subr.bf16.mxu0 0
      %619 = vmatpush1.bf16.msra.mxu0 0
      %620 = vmatprep.subr.bf16.mxu0 0
      %621 = vmatpush1.bf16.msra.mxu0 0
      %622 = vmatprep.subr.bf16.mxu0 0
      %623 = vmatpush1.bf16.msra.mxu0 0
      %624 = vmatprep.mubr.bf16.mxu0 0
      %625 = vmatmul.mubr.bf16.gmra.mrb[0].mxu0 %v536
      %v626 = vpop.f32.mrb[0].mxu0
      %v627 = vadd.f32 %v490, %v626
      %v628 = vpop.f32.mrb[0].mxu0
      %v629 = vpop.f32.mrb[0].mxu0
      %v630 = vadd.f32 %v493, %v629
      %v631 = vpop.f32.mrb[0].mxu0
      %632 = vmatprep.mubr.bf16.mxu0 0
      %633 = vmatmul.mubr.bf16.gmra.mrb[0].mxu0 %v537
      %v634 = vpop.f32.mrb[0].mxu0
      %v635 = vadd.f32 %v498, %v634
      %v636 = vpop.f32.mrb[0].mxu0
      %v637 = vpop.f32.mrb[0].mxu0
      %v638 = vadd.f32 %v501, %v637
      %v639 = vpop.f32.mrb[0].mxu0
      %640 = vmatprep.mubr.bf16.mxu0 0
      %641 = vmatmul.mubr.bf16.gmra.mrb[0].mxu0 %v538
      %v642 = vpop.f32.mrb[0].mxu0
      %v643 = vadd.f32 %v506, %v642
      %v644 = vpop.f32.mrb[0].mxu0
      %v645 = vpop.f32.mrb[0].mxu0
      %v646 = vadd.f32 %v509, %v645
      %v647 = vpop.f32.mrb[0].mxu0
      %648 = vmatprep.mubr.bf16.mxu0 0
      %649 = vmatmul.mubr.bf16.gmra.mrb[0].mxu0 %v539
      %v650 = vpop.f32.mrb[0].mxu0
      %v651 = vadd.f32 %v514, %v650
      %v652 = vpop.f32.mrb[0].mxu0
      %v653 = vpop.f32.mrb[0].mxu0
      %v654 = vadd.f32 %v517, %v653
      %v655 = vpop.f32.mrb[0].mxu0
      %656 = vdwg.mxu0
      %vm665 = vcmask 1042432
      %vm666 = vcmask 1046532
      %vm667 = vmor %vm665, %vm666
      %v668 = vrot.slane %v227, 5
      %v669 = vrot.slane %v668, 4
      %v670 = vrot.slane %v228, 5
      %v671 = vsel %vm667, %v669, %v670
      %v672 = vrot.slane %v229, 5
      %v673 = vrot.slane %v672, 4
      %v674 = vrot.slane %v230, 5
      %v675 = vsel %vm667, %v673, %v674
      %v676 = vrot.slane %v231, 5
      %v677 = vrot.slane %v676, 4
      %v678 = vrot.slane %v232, 5
      %v679 = vsel %vm667, %v677, %v678
      %v680 = vrot.slane %v233, 5
      %v681 = vrot.slane %v680, 4
      %v682 = vrot.slane %v234, 5
      %v683 = vsel %vm667, %v681, %v682
      %v684 = vrot.slane %v235, 5
      %v685 = vrot.slane %v684, 4
      %v686 = vrot.slane %v236, 5
      %v687 = vsel %vm667, %v685, %v686
      %v688 = vrot.slane %v237, 5
      %v689 = vrot.slane %v688, 4
      %v690 = vrot.slane %v238, 5
      %v691 = vsel %vm667, %v689, %v690
      %v692 = vrot.slane %v239, 5
      %v693 = vrot.slane %v692, 4
      %v694 = vrot.slane %v240, 5
      %v695 = vsel %vm667, %v693, %v694
      %v696 = vrot.slane %v241, 5
      %v697 = vrot.slane %v696, 4
      %v698 = vrot.slane %v242, 5
      %v699 = vsel %vm667, %v697, %v698
      %s700 = scalar_lea.vmem %s203, 128
      %v701 = vld [vmem:[%s700] sm:$0xf]
      %v702 = vld [vmem:[%s700 + $0x4] sm:$0xf]
      %v703 = vld [vmem:[%s700 + $0x8] sm:$0xf]
      %v704 = vld [vmem:[%s700 + $0xc] sm:$0xf]
      %v705 = vld [vmem:[%s700 + $0x10] sm:$0xf]
      %v706 = vld [vmem:[%s700 + $0x14] sm:$0xf]
      %v707 = vld [vmem:[%s700 + $0x18] sm:$0xf]
      %v708 = vld [vmem:[%s700 + $0x1c] sm:$0xf]
      %v709 = vld [vmem:[%s700 + $0x20] sm:$0xf]
      %v710 = vld [vmem:[%s700 + $0x24] sm:$0xf]
      %v711 = vld [vmem:[%s700 + $0x28] sm:$0xf]
      %v712 = vld [vmem:[%s700 + $0x2c] sm:$0xf]
      %v713 = vld [vmem:[%s700 + $0x30] sm:$0xf]
      %v714 = vld [vmem:[%s700 + $0x34] sm:$0xf]
      %v715 = vld [vmem:[%s700 + $0x38] sm:$0xf]
      %v716 = vld [vmem:[%s700 + $0x3c] sm:$0xf]
      %v717 = vunpack.c.l.b16 %v671
      %v718 = vunpack.c.l.b16 %v675
      %v719 = vunpack.c.l.b16 %v679
      %v720 = vunpack.c.l.b16 %v683
      %v721 = vunpack.c.l.b16 %v687
      %v722 = vunpack.c.l.b16 %v691
      %v723 = vunpack.c.l.b16 %v695
      %v724 = vunpack.c.l.b16 %v699
      %v725 = vpack.c.b16 %v718, %v717
      %v726 = vpack.c.b16 %v720, %v719
      %v727 = vpack.c.b16 %v722, %v721
      %v728 = vpack.c.b16 %v724, %v723
      %v749 = vunpack.c.l.b16 %v701
      %v750 = vunpack.c.l.b16 %v702
      %v751 = vunpack.c.l.b16 %v703
      %v752 = vunpack.c.l.b16 %v704
      %v753 = vunpack.c.l.b16 %v705
      %v754 = vunpack.c.l.b16 %v706
      %v755 = vunpack.c.l.b16 %v707
      %v756 = vunpack.c.l.b16 %v708
      %v757 = vunpack.c.l.b16 %v709
      %v758 = vunpack.c.l.b16 %v710
      %v759 = vunpack.c.l.b16 %v711
      %v760 = vunpack.c.l.b16 %v712
      %v761 = vunpack.c.l.b16 %v713
      %v762 = vunpack.c.l.b16 %v714
      %v763 = vunpack.c.l.b16 %v715
      %v764 = vunpack.c.l.b16 %v716
      %v765 = vpack.c.b16 %v750, %v749
      %v766 = vpack.c.b16 %v752, %v751
      %v767 = vpack.c.b16 %v754, %v753
      %v768 = vpack.c.b16 %v756, %v755
      %v769 = vpack.c.b16 %v758, %v757
      %v770 = vpack.c.b16 %v760, %v759
      %v771 = vpack.c.b16 %v762, %v761
      %v772 = vpack.c.b16 %v764, %v763
      %781 = vmatprep.subr.bf16.mxu0 0
      %782 = vmatpush1.bf16.msra.mxu0 %v765
      %783 = vmatprep.subr.bf16.mxu0 0
      %784 = vmatpush1.bf16.msra.mxu0 %v766
      %785 = vmatprep.subr.bf16.mxu0 0
      %786 = vmatpush1.bf16.msra.mxu0 %v767
      %787 = vmatprep.subr.bf16.mxu0 0
      %788 = vmatpush1.bf16.msra.mxu0 %v768
      %789 = vmatprep.subr.bf16.mxu0 0
      %790 = vmatpush1.bf16.msra.mxu0 %v769
      %791 = vmatprep.subr.bf16.mxu0 0
      %792 = vmatpush1.bf16.msra.mxu0 %v770
      %793 = vmatprep.subr.bf16.mxu0 0
      %794 = vmatpush1.bf16.msra.mxu0 %v771
      %795 = vmatprep.subr.bf16.mxu0 0
      %796 = vmatpush1.bf16.msra.mxu0 %v772
      %797 = vmatprep.subr.bf16.mxu0 0
      %798 = vmatpush1.bf16.msra.mxu0 0
      %799 = vmatprep.subr.bf16.mxu0 0
      %800 = vmatpush1.bf16.msra.mxu0 0
      %801 = vmatprep.subr.bf16.mxu0 0
      %802 = vmatpush1.bf16.msra.mxu0 0
      %803 = vmatprep.subr.bf16.mxu0 0
      %804 = vmatpush1.bf16.msra.mxu0 0
      %805 = vmatprep.subr.bf16.mxu0 0
      %806 = vmatpush1.bf16.msra.mxu0 0
      %807 = vmatprep.subr.bf16.mxu0 0
      %808 = vmatpush1.bf16.msra.mxu0 0
      %809 = vmatprep.subr.bf16.mxu0 0
      %810 = vmatpush1.bf16.msra.mxu0 0
      %811 = vmatprep.subr.bf16.mxu0 0
      %812 = vmatpush1.bf16.msra.mxu0 0
      %813 = vmatprep.mubr.bf16.mxu0 0
      %814 = vmatmul.mubr.bf16.gmra.mrb[0].mxu0 %v725
      %v815 = vpop.f32.mrb[0].mxu0
      %v816 = vadd.f32 0.0, %v815
      %v817 = vpop.f32.mrb[0].mxu0
      %v818 = vpop.f32.mrb[0].mxu0
      %v819 = vadd.f32 0.0, %v818
      %v820 = vpop.f32.mrb[0].mxu0
      %821 = vmatprep.mubr.bf16.mxu0 0
      %822 = vmatmul.mubr.bf16.gmra.mrb[0].mxu0 %v726
      %v823 = vpop.f32.mrb[0].mxu0
      %v824 = vadd.f32 0.0, %v823
      %v825 = vpop.f32.mrb[0].mxu0
      %v826 = vpop.f32.mrb[0].mxu0
      %v827 = vadd.f32 0.0, %v826
      %v828 = vpop.f32.mrb[0].mxu0
      %829 = vmatprep.mubr.bf16.mxu0 0
      %830 = vmatmul.mubr.bf16.gmra.mrb[0].mxu0 %v727
      %v831 = vpop.f32.mrb[0].mxu0
      %v832 = vadd.f32 0.0, %v831
      %v833 = vpop.f32.mrb[0].mxu0
      %v834 = vpop.f32.mrb[0].mxu0
      %v835 = vadd.f32 0.0, %v834
      %v836 = vpop.f32.mrb[0].mxu0
      %837 = vmatprep.mubr.bf16.mxu0 0
      %838 = vmatmul.mubr.bf16.gmra.mrb[0].mxu0 %v728
      %v839 = vpop.f32.mrb[0].mxu0
      %v840 = vadd.f32 0.0, %v839
      %v841 = vpop.f32.mrb[0].mxu0
      %v842 = vpop.f32.mrb[0].mxu0
      %v843 = vadd.f32 0.0, %v842
      %v844 = vpop.f32.mrb[0].mxu0
      %845 = vdwg.mxu0
      %v846 = vadd.f32 %v627, %v816
      %v847 = vadd.f32 %v630, %v819
      %v848 = vadd.f32 %v635, %v824
      %v849 = vadd.f32 %v638, %v827
      %v850 = vadd.f32 %v643, %v832
      %v851 = vadd.f32 %v646, %v835
      %v852 = vadd.f32 %v651, %v840
      %v853 = vadd.f32 %v654, %v843
      %s854 = sadd.s32 %s223, 1
      %s855 = smul.u32 %s854, 2
      %s856 = smul.addr %s855, 4
      %s857 = scalar_lea.vmem %s0, %s856
      %v858 = vld [vmem:[%s857] sm:$0xf]
      %v859 = vld [vmem:[%s857 + $0x4] sm:$0x1]
      %v860 = vld [vmem:[%s857 + $0x8] sm:$0xf]
      %v861 = vld [vmem:[%s857 + $0xc] sm:$0x1]
      %v862 = vld [vmem:[%s857 + $0x10] sm:$0xf]
      %v863 = vld [vmem:[%s857 + $0x14] sm:$0x1]
      %v864 = vld [vmem:[%s857 + $0x18] sm:$0xf]
      %v865 = vld [vmem:[%s857 + $0x1c] sm:$0x1]
      %v866 = vld [vmem:[%s857 + $0x20] sm:$0xf]
      %v867 = vld [vmem:[%s857 + $0x24] sm:$0x1]
      %v868 = vld [vmem:[%s857 + $0x28] sm:$0xf]
      %v869 = vld [vmem:[%s857 + $0x2c] sm:$0x1]
      %v870 = vld [vmem:[%s857 + $0x30] sm:$0xf]
      %v871 = vld [vmem:[%s857 + $0x34] sm:$0x1]
      %v872 = vld [vmem:[%s857 + $0x38] sm:$0xf]
      %v873 = vld [vmem:[%s857 + $0x3c] sm:$0x1]
      %s874 = scalar_lea.vmem %s203, 192
      %v875 = vld [vmem:[%s874] sm:$0xf]
      %v876 = vld [vmem:[%s874 + $0x4] sm:$0xf]
      %v877 = vld [vmem:[%s874 + $0x8] sm:$0xf]
      %v878 = vld [vmem:[%s874 + $0xc] sm:$0xf]
      %v879 = vld [vmem:[%s874 + $0x10] sm:$0xf]
      %v880 = vld [vmem:[%s874 + $0x14] sm:$0xf]
      %v881 = vld [vmem:[%s874 + $0x18] sm:$0xf]
      %v882 = vld [vmem:[%s874 + $0x1c] sm:$0xf]
      %v883 = vld [vmem:[%s874 + $0x20] sm:$0xf]
      %v884 = vld [vmem:[%s874 + $0x24] sm:$0xf]
      %v885 = vld [vmem:[%s874 + $0x28] sm:$0xf]
      %v886 = vld [vmem:[%s874 + $0x2c] sm:$0xf]
      %v887 = vld [vmem:[%s874 + $0x30] sm:$0xf]
      %v888 = vld [vmem:[%s874 + $0x34] sm:$0xf]
      %v889 = vld [vmem:[%s874 + $0x38] sm:$0xf]
      %v890 = vld [vmem:[%s874 + $0x3c] sm:$0xf]
      %v899 = vunpack.c.l.b16 %v858
      %v900 = vunpack.c.l.b16 %v860
      %v901 = vunpack.c.l.b16 %v862
      %v902 = vunpack.c.l.b16 %v864
      %v903 = vunpack.c.l.b16 %v866
      %v904 = vunpack.c.l.b16 %v868
      %v905 = vunpack.c.l.b16 %v870
      %v906 = vunpack.c.l.b16 %v872
      %v907 = vpack.c.b16 %v900, %v899
      %v908 = vpack.c.b16 %v902, %v901
      %v909 = vpack.c.b16 %v904, %v903
      %v910 = vpack.c.b16 %v906, %v905
      %v931 = vunpack.c.l.b16 %v875
      %v932 = vunpack.c.l.b16 %v876
      %v933 = vunpack.c.l.b16 %v877
      %v934 = vunpack.c.l.b16 %v878
      %v935 = vunpack.c.l.b16 %v879
      %v936 = vunpack.c.l.b16 %v880
      %v937 = vunpack.c.l.b16 %v881
      %v938 = vunpack.c.l.b16 %v882
      %v939 = vunpack.c.l.b16 %v883
      %v940 = vunpack.c.l.b16 %v884
      %v941 = vunpack.c.l.b16 %v885
      %v942 = vunpack.c.l.b16 %v886
      %v943 = vunpack.c.l.b16 %v887
      %v944 = vunpack.c.l.b16 %v888
      %v945 = vunpack.c.l.b16 %v889
      %v946 = vunpack.c.l.b16 %v890
      %v947 = vpack.c.b16 %v932, %v931
      %v948 = vpack.c.b16 %v934, %v933
      %v949 = vpack.c.b16 %v936, %v935
      %v950 = vpack.c.b16 %v938, %v937
      %v951 = vpack.c.b16 %v940, %v939
      %v952 = vpack.c.b16 %v942, %v941
      %v953 = vpack.c.b16 %v944, %v943
      %v954 = vpack.c.b16 %v946, %v945
      %963 = vmatprep.subr.bf16.mxu0 0
      %964 = vmatpush1.bf16.msra.mxu0 %v947
      %965 = vmatprep.subr.bf16.mxu0 0
      %966 = vmatpush1.bf16.msra.mxu0 %v948
      %967 = vmatprep.subr.bf16.mxu0 0
      %968 = vmatpush1.bf16.msra.mxu0 %v949
      %969 = vmatprep.subr.bf16.mxu0 0
      %970 = vmatpush1.bf16.msra.mxu0 %v950
      %971 = vmatprep.subr.bf16.mxu0 0
      %972 = vmatpush1.bf16.msra.mxu0 %v951
      %973 = vmatprep.subr.bf16.mxu0 0
      %974 = vmatpush1.bf16.msra.mxu0 %v952
      %975 = vmatprep.subr.bf16.mxu0 0
      %976 = vmatpush1.bf16.msra.mxu0 %v953
      %977 = vmatprep.subr.bf16.mxu0 0
      %978 = vmatpush1.bf16.msra.mxu0 %v954
      %979 = vmatprep.subr.bf16.mxu0 0
      %980 = vmatpush1.bf16.msra.mxu0 0
      %981 = vmatprep.subr.bf16.mxu0 0
      %982 = vmatpush1.bf16.msra.mxu0 0
      %983 = vmatprep.subr.bf16.mxu0 0
      %984 = vmatpush1.bf16.msra.mxu0 0
      %985 = vmatprep.subr.bf16.mxu0 0
      %986 = vmatpush1.bf16.msra.mxu0 0
      %987 = vmatprep.subr.bf16.mxu0 0
      %988 = vmatpush1.bf16.msra.mxu0 0
      %989 = vmatprep.subr.bf16.mxu0 0
      %990 = vmatpush1.bf16.msra.mxu0 0
      %991 = vmatprep.subr.bf16.mxu0 0
      %992 = vmatpush1.bf16.msra.mxu0 0
      %993 = vmatprep.subr.bf16.mxu0 0
      %994 = vmatpush1.bf16.msra.mxu0 0
      %995 = vmatprep.mubr.bf16.mxu0 0
      %996 = vmatmul.mubr.bf16.gmra.mrb[0].mxu0 %v907
      %v997 = vpop.f32.mrb[0].mxu0
      %v998 = vadd.f32 0.0, %v997
      %v999 = vpop.f32.mrb[0].mxu0
      %v1000 = vpop.f32.mrb[0].mxu0
      %v1001 = vadd.f32 0.0, %v1000
      %v1002 = vpop.f32.mrb[0].mxu0
      %1003 = vmatprep.mubr.bf16.mxu0 0
      %1004 = vmatmul.mubr.bf16.gmra.mrb[0].mxu0 %v908
      %v1005 = vpop.f32.mrb[0].mxu0
      %v1006 = vadd.f32 0.0, %v1005
      %v1007 = vpop.f32.mrb[0].mxu0
      %v1008 = vpop.f32.mrb[0].mxu0
      %v1009 = vadd.f32 0.0, %v1008
      %v1010 = vpop.f32.mrb[0].mxu0
      %1011 = vmatprep.mubr.bf16.mxu0 0
      %1012 = vmatmul.mubr.bf16.gmra.mrb[0].mxu0 %v909
      %v1013 = vpop.f32.mrb[0].mxu0
      %v1014 = vadd.f32 0.0, %v1013
      %v1015 = vpop.f32.mrb[0].mxu0
      %v1016 = vpop.f32.mrb[0].mxu0
      %v1017 = vadd.f32 0.0, %v1016
      %v1018 = vpop.f32.mrb[0].mxu0
      %1019 = vmatprep.mubr.bf16.mxu0 0
      %1020 = vmatmul.mubr.bf16.gmra.mrb[0].mxu0 %v910
      %v1021 = vpop.f32.mrb[0].mxu0
      %v1022 = vadd.f32 0.0, %v1021
      %v1023 = vpop.f32.mrb[0].mxu0
      %v1024 = vpop.f32.mrb[0].mxu0
      %v1025 = vadd.f32 0.0, %v1024
      %v1026 = vpop.f32.mrb[0].mxu0
      %1027 = vdwg.mxu0
      %v1028 = vadd.f32 %v846, %v998
      %v1029 = vadd.f32 %v847, %v1001
      %v1030 = vadd.f32 %v848, %v1006
      %v1031 = vadd.f32 %v849, %v1009
      %v1032 = vadd.f32 %v850, %v1014
      %v1033 = vadd.f32 %v851, %v1017
      %v1034 = vadd.f32 %v852, %v1022
      %v1035 = vadd.f32 %v853, %v1025
      %v1037 = vshrl.u32 %v858, 16
      %v1039 = vrot.slane %v1037, 4
      %v1040 = vshll.u32 %v858, 16
      %v1042 = vrot.slane %v1040, 5
      %v1043 = vor.u32 %v1039, %v1042
      %v1044 = vrot.slane %v1043, 4
      %v1046 = vshll.u32 %v859, 16
      %v1048 = vrot.slane %v1046, 5
      %v1049 = vsel %vm261, %v1044, %v1048
      %v1051 = vshrl.u32 %v860, 16
      %v1053 = vrot.slane %v1051, 4
      %v1054 = vshll.u32 %v860, 16
      %v1056 = vrot.slane %v1054, 5
      %v1057 = vor.u32 %v1053, %v1056
      %v1058 = vrot.slane %v1057, 4
      %v1060 = vshll.u32 %v861, 16
      %v1062 = vrot.slane %v1060, 5
      %v1063 = vsel %vm261, %v1058, %v1062
      %v1065 = vshrl.u32 %v862, 16
      %v1067 = vrot.slane %v1065, 4
      %v1068 = vshll.u32 %v862, 16
      %v1070 = vrot.slane %v1068, 5
      %v1071 = vor.u32 %v1067, %v1070
      %v1072 = vrot.slane %v1071, 4
      %v1074 = vshll.u32 %v863, 16
      %v1076 = vrot.slane %v1074, 5
      %v1077 = vsel %vm261, %v1072, %v1076
      %v1079 = vshrl.u32 %v864, 16
      %v1081 = vrot.slane %v1079, 4
      %v1082 = vshll.u32 %v864, 16
      %v1084 = vrot.slane %v1082, 5
      %v1085 = vor.u32 %v1081, %v1084
      %v1086 = vrot.slane %v1085, 4
      %v1088 = vshll.u32 %v865, 16
      %v1090 = vrot.slane %v1088, 5
      %v1091 = vsel %vm261, %v1086, %v1090
      %v1093 = vshrl.u32 %v866, 16
      %v1095 = vrot.slane %v1093, 4
      %v1096 = vshll.u32 %v866, 16
      %v1098 = vrot.slane %v1096, 5
      %v1099 = vor.u32 %v1095, %v1098
      %v1100 = vrot.slane %v1099, 4
      %v1102 = vshll.u32 %v867, 16
      %v1104 = vrot.slane %v1102, 5
      %v1105 = vsel %vm261, %v1100, %v1104
      %v1107 = vshrl.u32 %v868, 16
      %v1109 = vrot.slane %v1107, 4
      %v1110 = vshll.u32 %v868, 16
      %v1112 = vrot.slane %v1110, 5
      %v1113 = vor.u32 %v1109, %v1112
      %v1114 = vrot.slane %v1113, 4
      %v1116 = vshll.u32 %v869, 16
      %v1118 = vrot.slane %v1116, 5
      %v1119 = vsel %vm261, %v1114, %v1118
      %v1121 = vshrl.u32 %v870, 16
      %v1123 = vrot.slane %v1121, 4
      %v1124 = vshll.u32 %v870, 16
      %v1126 = vrot.slane %v1124, 5
      %v1127 = vor.u32 %v1123, %v1126
      %v1128 = vrot.slane %v1127, 4
      %v1130 = vshll.u32 %v871, 16
      %v1132 = vrot.slane %v1130, 5
      %v1133 = vsel %vm261, %v1128, %v1132
      %v1135 = vshrl.u32 %v872, 16
      %v1137 = vrot.slane %v1135, 4
      %v1138 = vshll.u32 %v872, 16
      %v1140 = vrot.slane %v1138, 5
      %v1141 = vor.u32 %v1137, %v1140
      %v1142 = vrot.slane %v1141, 4
      %v1144 = vshll.u32 %v873, 16
      %v1146 = vrot.slane %v1144, 5
      %v1147 = vsel %vm261, %v1142, %v1146
      %s1148 = scalar_lea.vmem %s203, 256
      %v1149 = vld [vmem:[%s1148] sm:$0xf]
      %v1150 = vld [vmem:[%s1148 + $0x4] sm:$0xf]
      %v1151 = vld [vmem:[%s1148 + $0x8] sm:$0xf]
      %v1152 = vld [vmem:[%s1148 + $0xc] sm:$0xf]
      %v1153 = vld [vmem:[%s1148 + $0x10] sm:$0xf]
      %v1154 = vld [vmem:[%s1148 + $0x14] sm:$0xf]
      %v1155 = vld [vmem:[%s1148 + $0x18] sm:$0xf]
      %v1156 = vld [vmem:[%s1148 + $0x1c] sm:$0xf]
      %v1157 = vld [vmem:[%s1148 + $0x20] sm:$0xf]
      %v1158 = vld [vmem:[%s1148 + $0x24] sm:$0xf]
      %v1159 = vld [vmem:[%s1148 + $0x28] sm:$0xf]
      %v1160 = vld [vmem:[%s1148 + $0x2c] sm:$0xf]
      %v1161 = vld [vmem:[%s1148 + $0x30] sm:$0xf]
      %v1162 = vld [vmem:[%s1148 + $0x34] sm:$0xf]
      %v1163 = vld [vmem:[%s1148 + $0x38] sm:$0xf]
      %v1164 = vld [vmem:[%s1148 + $0x3c] sm:$0xf]
      %v1165 = vunpack.c.l.b16 %v1049
      %v1166 = vunpack.c.l.b16 %v1063
      %v1167 = vunpack.c.l.b16 %v1077
      %v1168 = vunpack.c.l.b16 %v1091
      %v1169 = vunpack.c.l.b16 %v1105
      %v1170 = vunpack.c.l.b16 %v1119
      %v1171 = vunpack.c.l.b16 %v1133
      %v1172 = vunpack.c.l.b16 %v1147
      %v1173 = vpack.c.b16 %v1166, %v1165
      %v1174 = vpack.c.b16 %v1168, %v1167
      %v1175 = vpack.c.b16 %v1170, %v1169
      %v1176 = vpack.c.b16 %v1172, %v1171
      %v1197 = vunpack.c.l.b16 %v1149
      %v1198 = vunpack.c.l.b16 %v1150
      %v1199 = vunpack.c.l.b16 %v1151
      %v1200 = vunpack.c.l.b16 %v1152
      %v1201 = vunpack.c.l.b16 %v1153
      %v1202 = vunpack.c.l.b16 %v1154
      %v1203 = vunpack.c.l.b16 %v1155
      %v1204 = vunpack.c.l.b16 %v1156
      %v1205 = vunpack.c.l.b16 %v1157
      %v1206 = vunpack.c.l.b16 %v1158
      %v1207 = vunpack.c.l.b16 %v1159
      %v1208 = vunpack.c.l.b16 %v1160
      %v1209 = vunpack.c.l.b16 %v1161
      %v1210 = vunpack.c.l.b16 %v1162
      %v1211 = vunpack.c.l.b16 %v1163
      %v1212 = vunpack.c.l.b16 %v1164
      %v1213 = vpack.c.b16 %v1198, %v1197
      %v1214 = vpack.c.b16 %v1200, %v1199
      %v1215 = vpack.c.b16 %v1202, %v1201
      %v1216 = vpack.c.b16 %v1204, %v1203
      %v1217 = vpack.c.b16 %v1206, %v1205
      %v1218 = vpack.c.b16 %v1208, %v1207
      %v1219 = vpack.c.b16 %v1210, %v1209
      %v1220 = vpack.c.b16 %v1212, %v1211
      %1229 = vmatprep.subr.bf16.mxu0 0
      %1230 = vmatpush1.bf16.msra.mxu0 %v1213
      %1231 = vmatprep.subr.bf16.mxu0 0
      %1232 = vmatpush1.bf16.msra.mxu0 %v1214
      %1233 = vmatprep.subr.bf16.mxu0 0
      %1234 = vmatpush1.bf16.msra.mxu0 %v1215
      %1235 = vmatprep.subr.bf16.mxu0 0
      %1236 = vmatpush1.bf16.msra.mxu0 %v1216
      %1237 = vmatprep.subr.bf16.mxu0 0
      %1238 = vmatpush1.bf16.msra.mxu0 %v1217
      %1239 = vmatprep.subr.bf16.mxu0 0
      %1240 = vmatpush1.bf16.msra.mxu0 %v1218
      %1241 = vmatprep.subr.bf16.mxu0 0
      %1242 = vmatpush1.bf16.msra.mxu0 %v1219
      %1243 = vmatprep.subr.bf16.mxu0 0
      %1244 = vmatpush1.bf16.msra.mxu0 %v1220
      %1245 = vmatprep.subr.bf16.mxu0 0
      %1246 = vmatpush1.bf16.msra.mxu0 0
      %1247 = vmatprep.subr.bf16.mxu0 0
      %1248 = vmatpush1.bf16.msra.mxu0 0
      %1249 = vmatprep.subr.bf16.mxu0 0
      %1250 = vmatpush1.bf16.msra.mxu0 0
      %1251 = vmatprep.subr.bf16.mxu0 0
      %1252 = vmatpush1.bf16.msra.mxu0 0
      %1253 = vmatprep.subr.bf16.mxu0 0
      %1254 = vmatpush1.bf16.msra.mxu0 0
      %1255 = vmatprep.subr.bf16.mxu0 0
      %1256 = vmatpush1.bf16.msra.mxu0 0
      %1257 = vmatprep.subr.bf16.mxu0 0
      %1258 = vmatpush1.bf16.msra.mxu0 0
      %1259 = vmatprep.subr.bf16.mxu0 0
      %1260 = vmatpush1.bf16.msra.mxu0 0
      %1261 = vmatprep.mubr.bf16.mxu0 0
      %1262 = vmatmul.mubr.bf16.gmra.mrb[0].mxu0 %v1173
      %v1263 = vpop.f32.mrb[0].mxu0
      %v1264 = vadd.f32 0.0, %v1263
      %v1265 = vpop.f32.mrb[0].mxu0
      %v1266 = vpop.f32.mrb[0].mxu0
      %v1267 = vadd.f32 0.0, %v1266
      %v1268 = vpop.f32.mrb[0].mxu0
      %1269 = vmatprep.mubr.bf16.mxu0 0
      %1270 = vmatmul.mubr.bf16.gmra.mrb[0].mxu0 %v1174
      %v1271 = vpop.f32.mrb[0].mxu0
      %v1272 = vadd.f32 0.0, %v1271
      %v1273 = vpop.f32.mrb[0].mxu0
      %v1274 = vpop.f32.mrb[0].mxu0
      %v1275 = vadd.f32 0.0, %v1274
      %v1276 = vpop.f32.mrb[0].mxu0
      %1277 = vmatprep.mubr.bf16.mxu0 0
      %1278 = vmatmul.mubr.bf16.gmra.mrb[0].mxu0 %v1175
      %v1279 = vpop.f32.mrb[0].mxu0
      %v1280 = vadd.f32 0.0, %v1279
      %v1281 = vpop.f32.mrb[0].mxu0
      %v1282 = vpop.f32.mrb[0].mxu0
      %v1283 = vadd.f32 0.0, %v1282
      %v1284 = vpop.f32.mrb[0].mxu0
      %1285 = vmatprep.mubr.bf16.mxu0 0
      %1286 = vmatmul.mubr.bf16.gmra.mrb[0].mxu0 %v1176
      %v1287 = vpop.f32.mrb[0].mxu0
      %v1288 = vadd.f32 0.0, %v1287
      %v1289 = vpop.f32.mrb[0].mxu0
      %v1290 = vpop.f32.mrb[0].mxu0
      %v1291 = vadd.f32 0.0, %v1290
      %v1292 = vpop.f32.mrb[0].mxu0
      %1293 = vdwg.mxu0
      %v1294 = vadd.f32 %v1028, %v1264
      %v1295 = vadd.f32 %v1029, %v1267
      %v1296 = vadd.f32 %v1030, %v1272
      %v1297 = vadd.f32 %v1031, %v1275
      %v1298 = vadd.f32 %v1032, %v1280
      %v1299 = vadd.f32 %v1033, %v1283
      %v1300 = vadd.f32 %v1034, %v1288
      %v1301 = vadd.f32 %v1035, %v1291
      %v1310 = vrot.slane %v858, 5
      %v1311 = vrot.slane %v1310, 4
      %v1312 = vrot.slane %v859, 5
      %v1313 = vsel %vm667, %v1311, %v1312
      %v1314 = vrot.slane %v860, 5
      %v1315 = vrot.slane %v1314, 4
      %v1316 = vrot.slane %v861, 5
      %v1317 = vsel %vm667, %v1315, %v1316
      %v1318 = vrot.slane %v862, 5
      %v1319 = vrot.slane %v1318, 4
      %v1320 = vrot.slane %v863, 5
      %v1321 = vsel %vm667, %v1319, %v1320
      %v1322 = vrot.slane %v864, 5
      %v1323 = vrot.slane %v1322, 4
      %v1324 = vrot.slane %v865, 5
      %v1325 = vsel %vm667, %v1323, %v1324
      %v1326 = vrot.slane %v866, 5
      %v1327 = vrot.slane %v1326, 4
      %v1328 = vrot.slane %v867, 5
      %v1329 = vsel %vm667, %v1327, %v1328
      %v1330 = vrot.slane %v868, 5
      %v1331 = vrot.slane %v1330, 4
      %v1332 = vrot.slane %v869, 5
      %v1333 = vsel %vm667, %v1331, %v1332
      %v1334 = vrot.slane %v870, 5
      %v1335 = vrot.slane %v1334, 4
      %v1336 = vrot.slane %v871, 5
      %v1337 = vsel %vm667, %v1335, %v1336
      %v1338 = vrot.slane %v872, 5
      %v1339 = vrot.slane %v1338, 4
      %v1340 = vrot.slane %v873, 5
      %v1341 = vsel %vm667, %v1339, %v1340
      %s1342 = scalar_lea.vmem %s203, 320
      %v1343 = vld [vmem:[%s1342] sm:$0xf]
      %v1344 = vld [vmem:[%s1342 + $0x4] sm:$0xf]
      %v1345 = vld [vmem:[%s1342 + $0x8] sm:$0xf]
      %v1346 = vld [vmem:[%s1342 + $0xc] sm:$0xf]
      %v1347 = vld [vmem:[%s1342 + $0x10] sm:$0xf]
      %v1348 = vld [vmem:[%s1342 + $0x14] sm:$0xf]
      %v1349 = vld [vmem:[%s1342 + $0x18] sm:$0xf]
      %v1350 = vld [vmem:[%s1342 + $0x1c] sm:$0xf]
      %v1351 = vld [vmem:[%s1342 + $0x20] sm:$0xf]
      %v1352 = vld [vmem:[%s1342 + $0x24] sm:$0xf]
      %v1353 = vld [vmem:[%s1342 + $0x28] sm:$0xf]
      %v1354 = vld [vmem:[%s1342 + $0x2c] sm:$0xf]
      %v1355 = vld [vmem:[%s1342 + $0x30] sm:$0xf]
      %v1356 = vld [vmem:[%s1342 + $0x34] sm:$0xf]
      %v1357 = vld [vmem:[%s1342 + $0x38] sm:$0xf]
      %v1358 = vld [vmem:[%s1342 + $0x3c] sm:$0xf]
      %v1359 = vunpack.c.l.b16 %v1313
      %v1360 = vunpack.c.l.b16 %v1317
      %v1361 = vunpack.c.l.b16 %v1321
      %v1362 = vunpack.c.l.b16 %v1325
      %v1363 = vunpack.c.l.b16 %v1329
      %v1364 = vunpack.c.l.b16 %v1333
      %v1365 = vunpack.c.l.b16 %v1337
      %v1366 = vunpack.c.l.b16 %v1341
      %v1367 = vpack.c.b16 %v1360, %v1359
      %v1368 = vpack.c.b16 %v1362, %v1361
      %v1369 = vpack.c.b16 %v1364, %v1363
      %v1370 = vpack.c.b16 %v1366, %v1365
      %v1391 = vunpack.c.l.b16 %v1343
      %v1392 = vunpack.c.l.b16 %v1344
      %v1393 = vunpack.c.l.b16 %v1345
      %v1394 = vunpack.c.l.b16 %v1346
      %v1395 = vunpack.c.l.b16 %v1347
      %v1396 = vunpack.c.l.b16 %v1348
      %v1397 = vunpack.c.l.b16 %v1349
      %v1398 = vunpack.c.l.b16 %v1350
      %v1399 = vunpack.c.l.b16 %v1351
      %v1400 = vunpack.c.l.b16 %v1352
      %v1401 = vunpack.c.l.b16 %v1353
      %v1402 = vunpack.c.l.b16 %v1354
      %v1403 = vunpack.c.l.b16 %v1355
      %v1404 = vunpack.c.l.b16 %v1356
      %v1405 = vunpack.c.l.b16 %v1357
      %v1406 = vunpack.c.l.b16 %v1358
      %v1407 = vpack.c.b16 %v1392, %v1391
      %v1408 = vpack.c.b16 %v1394, %v1393
      %v1409 = vpack.c.b16 %v1396, %v1395
      %v1410 = vpack.c.b16 %v1398, %v1397
      %v1411 = vpack.c.b16 %v1400, %v1399
      %v1412 = vpack.c.b16 %v1402, %v1401
      %v1413 = vpack.c.b16 %v1404, %v1403
      %v1414 = vpack.c.b16 %v1406, %v1405
      %1423 = vmatprep.subr.bf16.mxu0 0
      %1424 = vmatpush1.bf16.msra.mxu0 %v1407
      %1425 = vmatprep.subr.bf16.mxu0 0
      %1426 = vmatpush1.bf16.msra.mxu0 %v1408
      %1427 = vmatprep.subr.bf16.mxu0 0
      %1428 = vmatpush1.bf16.msra.mxu0 %v1409
      %1429 = vmatprep.subr.bf16.mxu0 0
      %1430 = vmatpush1.bf16.msra.mxu0 %v1410
      %1431 = vmatprep.subr.bf16.mxu0 0
      %1432 = vmatpush1.bf16.msra.mxu0 %v1411
      %1433 = vmatprep.subr.bf16.mxu0 0
      %1434 = vmatpush1.bf16.msra.mxu0 %v1412
      %1435 = vmatprep.subr.bf16.mxu0 0
      %1436 = vmatpush1.bf16.msra.mxu0 %v1413
      %1437 = vmatprep.subr.bf16.mxu0 0
      %1438 = vmatpush1.bf16.msra.mxu0 %v1414
      %1439 = vmatprep.subr.bf16.mxu0 0
      %1440 = vmatpush1.bf16.msra.mxu0 0
      %1441 = vmatprep.subr.bf16.mxu0 0
      %1442 = vmatpush1.bf16.msra.mxu0 0
      %1443 = vmatprep.subr.bf16.mxu0 0
      %1444 = vmatpush1.bf16.msra.mxu0 0
      %1445 = vmatprep.subr.bf16.mxu0 0
      %1446 = vmatpush1.bf16.msra.mxu0 0
      %1447 = vmatprep.subr.bf16.mxu0 0
      %1448 = vmatpush1.bf16.msra.mxu0 0
      %1449 = vmatprep.subr.bf16.mxu0 0
      %1450 = vmatpush1.bf16.msra.mxu0 0
      %1451 = vmatprep.subr.bf16.mxu0 0
      %1452 = vmatpush1.bf16.msra.mxu0 0
      %1453 = vmatprep.subr.bf16.mxu0 0
      %1454 = vmatpush1.bf16.msra.mxu0 0
      %1455 = vmatprep.mubr.bf16.mxu0 0
      %1456 = vmatmul.mubr.bf16.gmra.mrb[0].mxu0 %v1367
      %v1457 = vpop.f32.mrb[0].mxu0
      %v1458 = vadd.f32 0.0, %v1457
      %v1459 = vpop.f32.mrb[0].mxu0
      %v1460 = vpop.f32.mrb[0].mxu0
      %v1461 = vadd.f32 0.0, %v1460
      %v1462 = vpop.f32.mrb[0].mxu0
      %1463 = vmatprep.mubr.bf16.mxu0 0
      %1464 = vmatmul.mubr.bf16.gmra.mrb[0].mxu0 %v1368
      %v1465 = vpop.f32.mrb[0].mxu0
      %v1466 = vadd.f32 0.0, %v1465
      %v1467 = vpop.f32.mrb[0].mxu0
      %v1468 = vpop.f32.mrb[0].mxu0
      %v1469 = vadd.f32 0.0, %v1468
      %v1470 = vpop.f32.mrb[0].mxu0
      %1471 = vmatprep.mubr.bf16.mxu0 0
      %1472 = vmatmul.mubr.bf16.gmra.mrb[0].mxu0 %v1369
      %v1473 = vpop.f32.mrb[0].mxu0
      %v1474 = vadd.f32 0.0, %v1473
      %v1475 = vpop.f32.mrb[0].mxu0
      %v1476 = vpop.f32.mrb[0].mxu0
      %v1477 = vadd.f32 0.0, %v1476
      %v1478 = vpop.f32.mrb[0].mxu0
      %1479 = vmatprep.mubr.bf16.mxu0 0
      %1480 = vmatmul.mubr.bf16.gmra.mrb[0].mxu0 %v1370
      %v1481 = vpop.f32.mrb[0].mxu0
      %v1482 = vadd.f32 0.0, %v1481
      %v1483 = vpop.f32.mrb[0].mxu0
      %v1484 = vpop.f32.mrb[0].mxu0
      %v1485 = vadd.f32 0.0, %v1484
      %v1486 = vpop.f32.mrb[0].mxu0
      %1487 = vdwg.mxu0
      %v1488 = vadd.f32 %v1294, %v1458
      %v1489 = vadd.f32 %v1295, %v1461
      %v1490 = vadd.f32 %v1296, %v1466
      %v1491 = vadd.f32 %v1297, %v1469
      %v1492 = vadd.f32 %v1298, %v1474
      %v1493 = vadd.f32 %v1299, %v1477
      %v1494 = vadd.f32 %v1300, %v1482
      %v1495 = vadd.f32 %v1301, %v1485
      %s1496 = sadd.s32 %s223, 2
      %s1497 = smul.u32 %s1496, 2
      %s1498 = smul.addr %s1497, 4
      %s1499 = scalar_lea.vmem %s0, %s1498
      %v1500 = vld [vmem:[%s1499] sm:$0xf]
      %v1501 = vld [vmem:[%s1499 + $0x4] sm:$0x1]
      %v1502 = vld [vmem:[%s1499 + $0x8] sm:$0xf]
      %v1503 = vld [vmem:[%s1499 + $0xc] sm:$0x1]
      %v1504 = vld [vmem:[%s1499 + $0x10] sm:$0xf]
      %v1505 = vld [vmem:[%s1499 + $0x14] sm:$0x1]
      %v1506 = vld [vmem:[%s1499 + $0x18] sm:$0xf]
      %v1507 = vld [vmem:[%s1499 + $0x1c] sm:$0x1]
      %v1508 = vld [vmem:[%s1499 + $0x20] sm:$0xf]
      %v1509 = vld [vmem:[%s1499 + $0x24] sm:$0x1]
      %v1510 = vld [vmem:[%s1499 + $0x28] sm:$0xf]
      %v1511 = vld [vmem:[%s1499 + $0x2c] sm:$0x1]
      %v1512 = vld [vmem:[%s1499 + $0x30] sm:$0xf]
      %v1513 = vld [vmem:[%s1499 + $0x34] sm:$0x1]
      %v1514 = vld [vmem:[%s1499 + $0x38] sm:$0xf]
      %v1515 = vld [vmem:[%s1499 + $0x3c] sm:$0x1]
      %s1516 = scalar_lea.vmem %s203, 384
      %v1517 = vld [vmem:[%s1516] sm:$0xf]
      %v1518 = vld [vmem:[%s1516 + $0x4] sm:$0xf]
      %v1519 = vld [vmem:[%s1516 + $0x8] sm:$0xf]
      %v1520 = vld [vmem:[%s1516 + $0xc] sm:$0xf]
      %v1521 = vld [vmem:[%s1516 + $0x10] sm:$0xf]
      %v1522 = vld [vmem:[%s1516 + $0x14] sm:$0xf]
      %v1523 = vld [vmem:[%s1516 + $0x18] sm:$0xf]
      %v1524 = vld [vmem:[%s1516 + $0x1c] sm:$0xf]
      %v1525 = vld [vmem:[%s1516 + $0x20] sm:$0xf]
      %v1526 = vld [vmem:[%s1516 + $0x24] sm:$0xf]
      %v1527 = vld [vmem:[%s1516 + $0x28] sm:$0xf]
      %v1528 = vld [vmem:[%s1516 + $0x2c] sm:$0xf]
      %v1529 = vld [vmem:[%s1516 + $0x30] sm:$0xf]
      %v1530 = vld [vmem:[%s1516 + $0x34] sm:$0xf]
      %v1531 = vld [vmem:[%s1516 + $0x38] sm:$0xf]
      %v1532 = vld [vmem:[%s1516 + $0x3c] sm:$0xf]
      %v1541 = vunpack.c.l.b16 %v1500
      %v1542 = vunpack.c.l.b16 %v1502
      %v1543 = vunpack.c.l.b16 %v1504
      %v1544 = vunpack.c.l.b16 %v1506
      %v1545 = vunpack.c.l.b16 %v1508
      %v1546 = vunpack.c.l.b16 %v1510
      %v1547 = vunpack.c.l.b16 %v1512
      %v1548 = vunpack.c.l.b16 %v1514
      %v1549 = vpack.c.b16 %v1542, %v1541
      %v1550 = vpack.c.b16 %v1544, %v1543
      %v1551 = vpack.c.b16 %v1546, %v1545
      %v1552 = vpack.c.b16 %v1548, %v1547
      %v1573 = vunpack.c.l.b16 %v1517
      %v1574 = vunpack.c.l.b16 %v1518
      %v1575 = vunpack.c.l.b16 %v1519
      %v1576 = vunpack.c.l.b16 %v1520
      %v1577 = vunpack.c.l.b16 %v1521
      %v1578 = vunpack.c.l.b16 %v1522
      %v1579 = vunpack.c.l.b16 %v1523
      %v1580 = vunpack.c.l.b16 %v1524
      %v1581 = vunpack.c.l.b16 %v1525
      %v1582 = vunpack.c.l.b16 %v1526
      %v1583 = vunpack.c.l.b16 %v1527
      %v1584 = vunpack.c.l.b16 %v1528
      %v1585 = vunpack.c.l.b16 %v1529
      %v1586 = vunpack.c.l.b16 %v1530
      %v1587 = vunpack.c.l.b16 %v1531
      %v1588 = vunpack.c.l.b16 %v1532
      %v1589 = vpack.c.b16 %v1574, %v1573
      %v1590 = vpack.c.b16 %v1576, %v1575
      %v1591 = vpack.c.b16 %v1578, %v1577
      %v1592 = vpack.c.b16 %v1580, %v1579
      %v1593 = vpack.c.b16 %v1582, %v1581
      %v1594 = vpack.c.b16 %v1584, %v1583
      %v1595 = vpack.c.b16 %v1586, %v1585
      %v1596 = vpack.c.b16 %v1588, %v1587
      %1605 = vmatprep.subr.bf16.mxu0 0
      %1606 = vmatpush1.bf16.msra.mxu0 %v1589
      %1607 = vmatprep.subr.bf16.mxu0 0
      %1608 = vmatpush1.bf16.msra.mxu0 %v1590
      %1609 = vmatprep.subr.bf16.mxu0 0
      %1610 = vmatpush1.bf16.msra.mxu0 %v1591
      %1611 = vmatprep.subr.bf16.mxu0 0
      %1612 = vmatpush1.bf16.msra.mxu0 %v1592
      %1613 = vmatprep.subr.bf16.mxu0 0
      %1614 = vmatpush1.bf16.msra.mxu0 %v1593
      %1615 = vmatprep.subr.bf16.mxu0 0
      %1616 = vmatpush1.bf16.msra.mxu0 %v1594
      %1617 = vmatprep.subr.bf16.mxu0 0
      %1618 = vmatpush1.bf16.msra.mxu0 %v1595
      %1619 = vmatprep.subr.bf16.mxu0 0
      %1620 = vmatpush1.bf16.msra.mxu0 %v1596
      %1621 = vmatprep.subr.bf16.mxu0 0
      %1622 = vmatpush1.bf16.msra.mxu0 0
      %1623 = vmatprep.subr.bf16.mxu0 0
      %1624 = vmatpush1.bf16.msra.mxu0 0
      %1625 = vmatprep.subr.bf16.mxu0 0
      %1626 = vmatpush1.bf16.msra.mxu0 0
      %1627 = vmatprep.subr.bf16.mxu0 0
      %1628 = vmatpush1.bf16.msra.mxu0 0
      %1629 = vmatprep.subr.bf16.mxu0 0
      %1630 = vmatpush1.bf16.msra.mxu0 0
      %1631 = vmatprep.subr.bf16.mxu0 0
      %1632 = vmatpush1.bf16.msra.mxu0 0
      %1633 = vmatprep.subr.bf16.mxu0 0
      %1634 = vmatpush1.bf16.msra.mxu0 0
      %1635 = vmatprep.subr.bf16.mxu0 0
      %1636 = vmatpush1.bf16.msra.mxu0 0
      %1637 = vmatprep.mubr.bf16.mxu0 0
      %1638 = vmatmul.mubr.bf16.gmra.mrb[0].mxu0 %v1549
      %v1639 = vpop.f32.mrb[0].mxu0
      %v1640 = vadd.f32 0.0, %v1639
      %v1641 = vpop.f32.mrb[0].mxu0
      %v1642 = vpop.f32.mrb[0].mxu0
      %v1643 = vadd.f32 0.0, %v1642
      %v1644 = vpop.f32.mrb[0].mxu0
      %1645 = vmatprep.mubr.bf16.mxu0 0
      %1646 = vmatmul.mubr.bf16.gmra.mrb[0].mxu0 %v1550
      %v1647 = vpop.f32.mrb[0].mxu0
      %v1648 = vadd.f32 0.0, %v1647
      %v1649 = vpop.f32.mrb[0].mxu0
      %v1650 = vpop.f32.mrb[0].mxu0
      %v1651 = vadd.f32 0.0, %v1650
      %v1652 = vpop.f32.mrb[0].mxu0
      %1653 = vmatprep.mubr.bf16.mxu0 0
      %1654 = vmatmul.mubr.bf16.gmra.mrb[0].mxu0 %v1551
      %v1655 = vpop.f32.mrb[0].mxu0
      %v1656 = vadd.f32 0.0, %v1655
      %v1657 = vpop.f32.mrb[0].mxu0
      %v1658 = vpop.f32.mrb[0].mxu0
      %v1659 = vadd.f32 0.0, %v1658
      %v1660 = vpop.f32.mrb[0].mxu0
      %1661 = vmatprep.mubr.bf16.mxu0 0
      %1662 = vmatmul.mubr.bf16.gmra.mrb[0].mxu0 %v1552
      %v1663 = vpop.f32.mrb[0].mxu0
      %v1664 = vadd.f32 0.0, %v1663
      %v1665 = vpop.f32.mrb[0].mxu0
      %v1666 = vpop.f32.mrb[0].mxu0
      %v1667 = vadd.f32 0.0, %v1666
      %v1668 = vpop.f32.mrb[0].mxu0
      %1669 = vdwg.mxu0
      %v1670 = vadd.f32 %v1488, %v1640
      %v1671 = vadd.f32 %v1489, %v1643
      %v1672 = vadd.f32 %v1490, %v1648
      %v1673 = vadd.f32 %v1491, %v1651
      %v1674 = vadd.f32 %v1492, %v1656
      %v1675 = vadd.f32 %v1493, %v1659
      %v1676 = vadd.f32 %v1494, %v1664
      %v1677 = vadd.f32 %v1495, %v1667
      %v1679 = vshrl.u32 %v1500, 16
      %v1681 = vrot.slane %v1679, 4
      %v1682 = vshll.u32 %v1500, 16
      %v1684 = vrot.slane %v1682, 5
      %v1685 = vor.u32 %v1681, %v1684
      %v1686 = vrot.slane %v1685, 4
      %v1688 = vshll.u32 %v1501, 16
      %v1690 = vrot.slane %v1688, 5
      %v1691 = vsel %vm261, %v1686, %v1690
      %v1693 = vshrl.u32 %v1502, 16
      %v1695 = vrot.slane %v1693, 4
      %v1696 = vshll.u32 %v1502, 16
      %v1698 = vrot.slane %v1696, 5
      %v1699 = vor.u32 %v1695, %v1698
      %v1700 = vrot.slane %v1699, 4
      %v1702 = vshll.u32 %v1503, 16
      %v1704 = vrot.slane %v1702, 5
      %v1705 = vsel %vm261, %v1700, %v1704
      %v1707 = vshrl.u32 %v1504, 16
      %v1709 = vrot.slane %v1707, 4
      %v1710 = vshll.u32 %v1504, 16
      %v1712 = vrot.slane %v1710, 5
      %v1713 = vor.u32 %v1709, %v1712
      %v1714 = vrot.slane %v1713, 4
      %v1716 = vshll.u32 %v1505, 16
      %v1718 = vrot.slane %v1716, 5
      %v1719 = vsel %vm261, %v1714, %v1718
      %v1721 = vshrl.u32 %v1506, 16
      %v1723 = vrot.slane %v1721, 4
      %v1724 = vshll.u32 %v1506, 16
      %v1726 = vrot.slane %v1724, 5
      %v1727 = vor.u32 %v1723, %v1726
      %v1728 = vrot.slane %v1727, 4
      %v1730 = vshll.u32 %v1507, 16
      %v1732 = vrot.slane %v1730, 5
      %v1733 = vsel %vm261, %v1728, %v1732
      %v1735 = vshrl.u32 %v1508, 16
      %v1737 = vrot.slane %v1735, 4
      %v1738 = vshll.u32 %v1508, 16
      %v1740 = vrot.slane %v1738, 5
      %v1741 = vor.u32 %v1737, %v1740
      %v1742 = vrot.slane %v1741, 4
      %v1744 = vshll.u32 %v1509, 16
      %v1746 = vrot.slane %v1744, 5
      %v1747 = vsel %vm261, %v1742, %v1746
      %v1749 = vshrl.u32 %v1510, 16
      %v1751 = vrot.slane %v1749, 4
      %v1752 = vshll.u32 %v1510, 16
      %v1754 = vrot.slane %v1752, 5
      %v1755 = vor.u32 %v1751, %v1754
      %v1756 = vrot.slane %v1755, 4
      %v1758 = vshll.u32 %v1511, 16
      %v1760 = vrot.slane %v1758, 5
      %v1761 = vsel %vm261, %v1756, %v1760
      %v1763 = vshrl.u32 %v1512, 16
      %v1765 = vrot.slane %v1763, 4
      %v1766 = vshll.u32 %v1512, 16
      %v1768 = vrot.slane %v1766, 5
      %v1769 = vor.u32 %v1765, %v1768
      %v1770 = vrot.slane %v1769, 4
      %v1772 = vshll.u32 %v1513, 16
      %v1774 = vrot.slane %v1772, 5
      %v1775 = vsel %vm261, %v1770, %v1774
      %v1777 = vshrl.u32 %v1514, 16
      %v1779 = vrot.slane %v1777, 4
      %v1780 = vshll.u32 %v1514, 16
      %v1782 = vrot.slane %v1780, 5
      %v1783 = vor.u32 %v1779, %v1782
      %v1784 = vrot.slane %v1783, 4
      %v1786 = vshll.u32 %v1515, 16
      %v1788 = vrot.slane %v1786, 5
      %v1789 = vsel %vm261, %v1784, %v1788
      %s1790 = scalar_lea.vmem %s203, 448
      %v1791 = vld [vmem:[%s1790] sm:$0xf]
      %v1792 = vld [vmem:[%s1790 + $0x4] sm:$0xf]
      %v1793 = vld [vmem:[%s1790 + $0x8] sm:$0xf]
      %v1794 = vld [vmem:[%s1790 + $0xc] sm:$0xf]
      %v1795 = vld [vmem:[%s1790 + $0x10] sm:$0xf]
      %v1796 = vld [vmem:[%s1790 + $0x14] sm:$0xf]
      %v1797 = vld [vmem:[%s1790 + $0x18] sm:$0xf]
      %v1798 = vld [vmem:[%s1790 + $0x1c] sm:$0xf]
      %v1799 = vld [vmem:[%s1790 + $0x20] sm:$0xf]
      %v1800 = vld [vmem:[%s1790 + $0x24] sm:$0xf]
      %v1801 = vld [vmem:[%s1790 + $0x28] sm:$0xf]
      %v1802 = vld [vmem:[%s1790 + $0x2c] sm:$0xf]
      %v1803 = vld [vmem:[%s1790 + $0x30] sm:$0xf]
      %v1804 = vld [vmem:[%s1790 + $0x34] sm:$0xf]
      %v1805 = vld [vmem:[%s1790 + $0x38] sm:$0xf]
      %v1806 = vld [vmem:[%s1790 + $0x3c] sm:$0xf]
      %v1807 = vunpack.c.l.b16 %v1691
      %v1808 = vunpack.c.l.b16 %v1705
      %v1809 = vunpack.c.l.b16 %v1719
      %v1810 = vunpack.c.l.b16 %v1733
      %v1811 = vunpack.c.l.b16 %v1747
      %v1812 = vunpack.c.l.b16 %v1761
      %v1813 = vunpack.c.l.b16 %v1775
      %v1814 = vunpack.c.l.b16 %v1789
      %v1815 = vpack.c.b16 %v1808, %v1807
      %v1816 = vpack.c.b16 %v1810, %v1809
      %v1817 = vpack.c.b16 %v1812, %v1811
      %v1818 = vpack.c.b16 %v1814, %v1813
      %v1839 = vunpack.c.l.b16 %v1791
      %v1840 = vunpack.c.l.b16 %v1792
      %v1841 = vunpack.c.l.b16 %v1793
      %v1842 = vunpack.c.l.b16 %v1794
      %v1843 = vunpack.c.l.b16 %v1795
      %v1844 = vunpack.c.l.b16 %v1796
      %v1845 = vunpack.c.l.b16 %v1797
      %v1846 = vunpack.c.l.b16 %v1798
      %v1847 = vunpack.c.l.b16 %v1799
      %v1848 = vunpack.c.l.b16 %v1800
      %v1849 = vunpack.c.l.b16 %v1801
      %v1850 = vunpack.c.l.b16 %v1802
      %v1851 = vunpack.c.l.b16 %v1803
      %v1852 = vunpack.c.l.b16 %v1804
      %v1853 = vunpack.c.l.b16 %v1805
      %v1854 = vunpack.c.l.b16 %v1806
      %v1855 = vpack.c.b16 %v1840, %v1839
      %v1856 = vpack.c.b16 %v1842, %v1841
      %v1857 = vpack.c.b16 %v1844, %v1843
      %v1858 = vpack.c.b16 %v1846, %v1845
      %v1859 = vpack.c.b16 %v1848, %v1847
      %v1860 = vpack.c.b16 %v1850, %v1849
      %v1861 = vpack.c.b16 %v1852, %v1851
      %v1862 = vpack.c.b16 %v1854, %v1853
      %1871 = vmatprep.subr.bf16.mxu0 0
      %1872 = vmatpush1.bf16.msra.mxu0 %v1855
      %1873 = vmatprep.subr.bf16.mxu0 0
      %1874 = vmatpush1.bf16.msra.mxu0 %v1856
      %1875 = vmatprep.subr.bf16.mxu0 0
      %1876 = vmatpush1.bf16.msra.mxu0 %v1857
      %1877 = vmatprep.subr.bf16.mxu0 0
      %1878 = vmatpush1.bf16.msra.mxu0 %v1858
      %1879 = vmatprep.subr.bf16.mxu0 0
      %1880 = vmatpush1.bf16.msra.mxu0 %v1859
      %1881 = vmatprep.subr.bf16.mxu0 0
      %1882 = vmatpush1.bf16.msra.mxu0 %v1860
      %1883 = vmatprep.subr.bf16.mxu0 0
      %1884 = vmatpush1.bf16.msra.mxu0 %v1861
      %1885 = vmatprep.subr.bf16.mxu0 0
      %1886 = vmatpush1.bf16.msra.mxu0 %v1862
      %1887 = vmatprep.subr.bf16.mxu0 0
      %1888 = vmatpush1.bf16.msra.mxu0 0
      %1889 = vmatprep.subr.bf16.mxu0 0
      %1890 = vmatpush1.bf16.msra.mxu0 0
      %1891 = vmatprep.subr.bf16.mxu0 0
      %1892 = vmatpush1.bf16.msra.mxu0 0
      %1893 = vmatprep.subr.bf16.mxu0 0
      %1894 = vmatpush1.bf16.msra.mxu0 0
      %1895 = vmatprep.subr.bf16.mxu0 0
      %1896 = vmatpush1.bf16.msra.mxu0 0
      %1897 = vmatprep.subr.bf16.mxu0 0
      %1898 = vmatpush1.bf16.msra.mxu0 0
      %1899 = vmatprep.subr.bf16.mxu0 0
      %1900 = vmatpush1.bf16.msra.mxu0 0
      %1901 = vmatprep.subr.bf16.mxu0 0
      %1902 = vmatpush1.bf16.msra.mxu0 0
      %1903 = vmatprep.mubr.bf16.mxu0 0
      %1904 = vmatmul.mubr.bf16.gmra.mrb[0].mxu0 %v1815
      %v1905 = vpop.f32.mrb[0].mxu0
      %v1906 = vadd.f32 0.0, %v1905
      %v1907 = vpop.f32.mrb[0].mxu0
      %v1908 = vpop.f32.mrb[0].mxu0
      %v1909 = vadd.f32 0.0, %v1908
      %v1910 = vpop.f32.mrb[0].mxu0
      %1911 = vmatprep.mubr.bf16.mxu0 0
      %1912 = vmatmul.mubr.bf16.gmra.mrb[0].mxu0 %v1816
      %v1913 = vpop.f32.mrb[0].mxu0
      %v1914 = vadd.f32 0.0, %v1913
      %v1915 = vpop.f32.mrb[0].mxu0
      %v1916 = vpop.f32.mrb[0].mxu0
      %v1917 = vadd.f32 0.0, %v1916
      %v1918 = vpop.f32.mrb[0].mxu0
      %1919 = vmatprep.mubr.bf16.mxu0 0
      %1920 = vmatmul.mubr.bf16.gmra.mrb[0].mxu0 %v1817
      %v1921 = vpop.f32.mrb[0].mxu0
      %v1922 = vadd.f32 0.0, %v1921
      %v1923 = vpop.f32.mrb[0].mxu0
      %v1924 = vpop.f32.mrb[0].mxu0
      %v1925 = vadd.f32 0.0, %v1924
      %v1926 = vpop.f32.mrb[0].mxu0
      %1927 = vmatprep.mubr.bf16.mxu0 0
      %1928 = vmatmul.mubr.bf16.gmra.mrb[0].mxu0 %v1818
      %v1929 = vpop.f32.mrb[0].mxu0
      %v1930 = vadd.f32 0.0, %v1929
      %v1931 = vpop.f32.mrb[0].mxu0
      %v1932 = vpop.f32.mrb[0].mxu0
      %v1933 = vadd.f32 0.0, %v1932
      %v1934 = vpop.f32.mrb[0].mxu0
      %1935 = vdwg.mxu0
      %v1936 = vadd.f32 %v1670, %v1906
      %v1937 = vadd.f32 %v1671, %v1909
      %v1938 = vadd.f32 %v1672, %v1914
      %v1939 = vadd.f32 %v1673, %v1917
      %v1940 = vadd.f32 %v1674, %v1922
      %v1941 = vadd.f32 %v1675, %v1925
      %v1942 = vadd.f32 %v1676, %v1930
      %v1943 = vadd.f32 %v1677, %v1933
      %v1952 = vrot.slane %v1500, 5
      %v1953 = vrot.slane %v1952, 4
      %v1954 = vrot.slane %v1501, 5
      %v1955 = vsel %vm667, %v1953, %v1954
      %v1956 = vrot.slane %v1502, 5
      %v1957 = vrot.slane %v1956, 4
      %v1958 = vrot.slane %v1503, 5
      %v1959 = vsel %vm667, %v1957, %v1958
      %v1960 = vrot.slane %v1504, 5
      %v1961 = vrot.slane %v1960, 4
      %v1962 = vrot.slane %v1505, 5
      %v1963 = vsel %vm667, %v1961, %v1962
      %v1964 = vrot.slane %v1506, 5
      %v1965 = vrot.slane %v1964, 4
      %v1966 = vrot.slane %v1507, 5
      %v1967 = vsel %vm667, %v1965, %v1966
      %v1968 = vrot.slane %v1508, 5
      %v1969 = vrot.slane %v1968, 4
      %v1970 = vrot.slane %v1509, 5
      %v1971 = vsel %vm667, %v1969, %v1970
      %v1972 = vrot.slane %v1510, 5
      %v1973 = vrot.slane %v1972, 4
      %v1974 = vrot.slane %v1511, 5
      %v1975 = vsel %vm667, %v1973, %v1974
      %v1976 = vrot.slane %v1512, 5
      %v1977 = vrot.slane %v1976, 4
      %v1978 = vrot.slane %v1513, 5
      %v1979 = vsel %vm667, %v1977, %v1978
      %v1980 = vrot.slane %v1514, 5
      %v1981 = vrot.slane %v1980, 4
      %v1982 = vrot.slane %v1515, 5
      %v1983 = vsel %vm667, %v1981, %v1982
      %s1984 = scalar_lea.vmem %s203, 512
      %v1985 = vld [vmem:[%s1984] sm:$0xf]
      %v1986 = vld [vmem:[%s1984 + $0x4] sm:$0xf]
      %v1987 = vld [vmem:[%s1984 + $0x8] sm:$0xf]
      %v1988 = vld [vmem:[%s1984 + $0xc] sm:$0xf]
      %v1989 = vld [vmem:[%s1984 + $0x10] sm:$0xf]
      %v1990 = vld [vmem:[%s1984 + $0x14] sm:$0xf]
      %v1991 = vld [vmem:[%s1984 + $0x18] sm:$0xf]
      %v1992 = vld [vmem:[%s1984 + $0x1c] sm:$0xf]
      %v1993 = vld [vmem:[%s1984 + $0x20] sm:$0xf]
      %v1994 = vld [vmem:[%s1984 + $0x24] sm:$0xf]
      %v1995 = vld [vmem:[%s1984 + $0x28] sm:$0xf]
      %v1996 = vld [vmem:[%s1984 + $0x2c] sm:$0xf]
      %v1997 = vld [vmem:[%s1984 + $0x30] sm:$0xf]
      %v1998 = vld [vmem:[%s1984 + $0x34] sm:$0xf]
      %v1999 = vld [vmem:[%s1984 + $0x38] sm:$0xf]
      %v2000 = vld [vmem:[%s1984 + $0x3c] sm:$0xf]
      %v2001 = vunpack.c.l.b16 %v1955
      %v2002 = vunpack.c.l.b16 %v1959
      %v2003 = vunpack.c.l.b16 %v1963
      %v2004 = vunpack.c.l.b16 %v1967
      %v2005 = vunpack.c.l.b16 %v1971
      %v2006 = vunpack.c.l.b16 %v1975
      %v2007 = vunpack.c.l.b16 %v1979
      %v2008 = vunpack.c.l.b16 %v1983
      %v2009 = vpack.c.b16 %v2002, %v2001
      %v2010 = vpack.c.b16 %v2004, %v2003
      %v2011 = vpack.c.b16 %v2006, %v2005
      %v2012 = vpack.c.b16 %v2008, %v2007
      %v2033 = vunpack.c.l.b16 %v1985
      %v2034 = vunpack.c.l.b16 %v1986
      %v2035 = vunpack.c.l.b16 %v1987
      %v2036 = vunpack.c.l.b16 %v1988
      %v2037 = vunpack.c.l.b16 %v1989
      %v2038 = vunpack.c.l.b16 %v1990
      %v2039 = vunpack.c.l.b16 %v1991
      %v2040 = vunpack.c.l.b16 %v1992
      %v2041 = vunpack.c.l.b16 %v1993
      %v2042 = vunpack.c.l.b16 %v1994
      %v2043 = vunpack.c.l.b16 %v1995
      %v2044 = vunpack.c.l.b16 %v1996
      %v2045 = vunpack.c.l.b16 %v1997
      %v2046 = vunpack.c.l.b16 %v1998
      %v2047 = vunpack.c.l.b16 %v1999
      %v2048 = vunpack.c.l.b16 %v2000
      %v2049 = vpack.c.b16 %v2034, %v2033
      %v2050 = vpack.c.b16 %v2036, %v2035
      %v2051 = vpack.c.b16 %v2038, %v2037
      %v2052 = vpack.c.b16 %v2040, %v2039
      %v2053 = vpack.c.b16 %v2042, %v2041
      %v2054 = vpack.c.b16 %v2044, %v2043
      %v2055 = vpack.c.b16 %v2046, %v2045
      %v2056 = vpack.c.b16 %v2048, %v2047
      %2065 = vmatprep.subr.bf16.mxu0 0
      %2066 = vmatpush1.bf16.msra.mxu0 %v2049
      %2067 = vmatprep.subr.bf16.mxu0 0
      %2068 = vmatpush1.bf16.msra.mxu0 %v2050
      %2069 = vmatprep.subr.bf16.mxu0 0
      %2070 = vmatpush1.bf16.msra.mxu0 %v2051
      %2071 = vmatprep.subr.bf16.mxu0 0
      %2072 = vmatpush1.bf16.msra.mxu0 %v2052
      %2073 = vmatprep.subr.bf16.mxu0 0
      %2074 = vmatpush1.bf16.msra.mxu0 %v2053
      %2075 = vmatprep.subr.bf16.mxu0 0
      %2076 = vmatpush1.bf16.msra.mxu0 %v2054
      %2077 = vmatprep.subr.bf16.mxu0 0
      %2078 = vmatpush1.bf16.msra.mxu0 %v2055
      %2079 = vmatprep.subr.bf16.mxu0 0
      %2080 = vmatpush1.bf16.msra.mxu0 %v2056
      %2081 = vmatprep.subr.bf16.mxu0 0
      %2082 = vmatpush1.bf16.msra.mxu0 0
      %2083 = vmatprep.subr.bf16.mxu0 0
      %2084 = vmatpush1.bf16.msra.mxu0 0
      %2085 = vmatprep.subr.bf16.mxu0 0
      %2086 = vmatpush1.bf16.msra.mxu0 0
      %2087 = vmatprep.subr.bf16.mxu0 0
      %2088 = vmatpush1.bf16.msra.mxu0 0
      %2089 = vmatprep.subr.bf16.mxu0 0
      %2090 = vmatpush1.bf16.msra.mxu0 0
      %2091 = vmatprep.subr.bf16.mxu0 0
      %2092 = vmatpush1.bf16.msra.mxu0 0
      %2093 = vmatprep.subr.bf16.mxu0 0
      %2094 = vmatpush1.bf16.msra.mxu0 0
      %2095 = vmatprep.subr.bf16.mxu0 0
      %2096 = vmatpush1.bf16.msra.mxu0 0
      %2097 = vmatprep.mubr.bf16.mxu0 0
      %2098 = vmatmul.mubr.bf16.gmra.mrb[0].mxu0 %v2009
      %v2099 = vpop.f32.mrb[0].mxu0
      %v2100 = vadd.f32 0.0, %v2099
      %v2101 = vpop.f32.mrb[0].mxu0
      %v2102 = vpop.f32.mrb[0].mxu0
      %v2103 = vadd.f32 0.0, %v2102
      %v2104 = vpop.f32.mrb[0].mxu0
      %2105 = vmatprep.mubr.bf16.mxu0 0
      %2106 = vmatmul.mubr.bf16.gmra.mrb[0].mxu0 %v2010
      %v2107 = vpop.f32.mrb[0].mxu0
      %v2108 = vadd.f32 0.0, %v2107
      %v2109 = vpop.f32.mrb[0].mxu0
      %v2110 = vpop.f32.mrb[0].mxu0
      %v2111 = vadd.f32 0.0, %v2110
      %v2112 = vpop.f32.mrb[0].mxu0
      %2113 = vmatprep.mubr.bf16.mxu0 0
      %2114 = vmatmul.mubr.bf16.gmra.mrb[0].mxu0 %v2011
      %v2115 = vpop.f32.mrb[0].mxu0
      %v2116 = vadd.f32 0.0, %v2115
      %v2117 = vpop.f32.mrb[0].mxu0
      %v2118 = vpop.f32.mrb[0].mxu0
      %v2119 = vadd.f32 0.0, %v2118
      %v2120 = vpop.f32.mrb[0].mxu0
      %2121 = vmatprep.mubr.bf16.mxu0 0
      %2122 = vmatmul.mubr.bf16.gmra.mrb[0].mxu0 %v2012
      %v2123 = vpop.f32.mrb[0].mxu0
      %v2124 = vadd.f32 0.0, %v2123
      %v2125 = vpop.f32.mrb[0].mxu0
      %v2126 = vpop.f32.mrb[0].mxu0
      %v2127 = vadd.f32 0.0, %v2126
      %v2128 = vpop.f32.mrb[0].mxu0
      %2129 = vdwg.mxu0
      %v2130 = vadd.f32 %v1936, %v2100
      %v2131 = vadd.f32 %v1937, %v2103
      %v2132 = vadd.f32 %v1938, %v2108
      %v2133 = vadd.f32 %v1939, %v2111
      %v2134 = vadd.f32 %v1940, %v2116
      %v2135 = vadd.f32 %v1941, %v2119
      %v2136 = vadd.f32 %v1942, %v2124
      %v2137 = vadd.f32 %v1943, %v2127
      %v2138 = vld [vmem:[%s206] sm:$0x1]
      %v2140 = vlaneseq
      %v2141 = vshrl.u32 %v2140, 7
      %v2142 = vsub.s32 0, %v2141
      %v2143 = vrot.slane %v2138, %v2142
      %v2145 = vadd.f32 %v2130, %v2143
      %v2146 = vadd.f32 %v2131, %v2143
      %v2147 = vadd.f32 %v2132, %v2143
      %v2148 = vadd.f32 %v2133, %v2143
      %v2149 = vadd.f32 %v2134, %v2143
      %v2150 = vadd.f32 %v2135, %v2143
      %v2151 = vadd.f32 %v2136, %v2143
      %v2152 = vadd.f32 %v2137, %v2143
      %v2153 = vmax.f32 %v2145, 0.0
      %v2154 = vmax.f32 %v2146, 0.0
      %v2155 = vmax.f32 %v2147, 0.0
      %v2156 = vmax.f32 %v2148, 0.0
      %v2157 = vmax.f32 %v2149, 0.0
      %v2158 = vmax.f32 %v2150, 0.0
      %v2159 = vmax.f32 %v2151, 0.0
      %v2160 = vmax.f32 %v2152, 0.0
      %v2161 = vpack.c.bf16 %v2153, %v2153
      %v2162 = vpack.c.bf16 %v2154, %v2154
      %v2163 = vpack.c.bf16 %v2155, %v2155
      %v2164 = vpack.c.bf16 %v2156, %v2156
      %v2165 = vpack.c.bf16 %v2157, %v2157
      %v2166 = vpack.c.bf16 %v2158, %v2158
      %v2167 = vpack.c.bf16 %v2159, %v2159
      %v2168 = vpack.c.bf16 %v2160, %v2160
      %2169 = vst [vmem:[%s218] sm:$0xf] %v2161
      %2170 = vst [vmem:[%s218 + $0x4] sm:$0xf] %v2162
      %2171 = vst [vmem:[%s218 + $0x8] sm:$0xf] %v2163
      %2172 = vst [vmem:[%s218 + $0xc] sm:$0xf] %v2164
      %2173 = vst [vmem:[%s218 + $0x10] sm:$0xf] %v2165
      %2174 = vst [vmem:[%s218 + $0x14] sm:$0xf] %v2166
      %2175 = vst [vmem:[%s218 + $0x18] sm:$0xf] %v2167
      %2176 = vst [vmem:[%s218 + $0x1c] sm:$0xf] %v2168
      %s2177 = smul.u32 8, %s21
      %p2178 = scmp.lt.s32.totalorder %s20, 1
      %s2179 = scalar_select %p2178, %s20, 1
      %p2180 = scmp.lt.s32.totalorder %s2177, 7
      %s2181 = scalar_select %p2180, %s2177, 7
      %p2182 = scmp.lt.s32.totalorder %s19, 0
      %s2183 = scalar_select %p2182, %s19, 0
      %s2184 = sadd.s32 %s2183, %s2181
      %s2185 = smul.addr %s2179, 8
      %s2186 = sadd.s32 %s2184, %s2185
      %s2187 = smul.addr %s2186, 4
      %s2188 = scalar_lea.vmem %s3, %s2187
      // Predicated region
      $region33: #{cnn_forward.10} parent=31 // pred_check
        %p2189 = pneg %p128
      $region34: #{cnn_forward.10} parent=31 // pred_check_branch
        %2191 = sbr.rel (%p2189) target = $region36
      $region35: #{cnn_forward.10} parent=31 // pred_region
        %s2192 = smul.u32 8, %s21
      $region36: #{cnn_forward.10} parent=31 // pred_fallthru
        _
    $region32: #{cnn_forward.10} parent=5 // pred_fallthru
      _
    %p2193 = scmp.le.s32.totalorder 2, %s9
    // Predicated region
    $region37: #{cnn_forward.10} parent=5 // pred_check
      %p2194 = pneg %p2193
    $region38: #{cnn_forward.10} parent=5 // pred_check_branch
      %2196 = sbr.rel (%p2194) target = $region40
    $region39: #{cnn_forward.10} parent=5 // pred_region
      %s2197 = ssub.s32 %s9, 2
      // Predicated region
      $region41: #{cnn_forward.10} parent=39 // pred_check
        %p2198 = pneg %p134
      $region42: #{cnn_forward.10} parent=39 // pred_check_branch
        %2200 = sbr.rel (%p2198) target = $region44
      $region43: #{cnn_forward.10} parent=39 // pred_region
        %s2201 = smul.u32 8, %s24
        %p2202 = scmp.lt.s32.totalorder %s23, 1
        %s2203 = scalar_select %p2202, %s23, 1
        %p2204 = scmp.lt.s32.totalorder %s2201, 7
        %s2205 = scalar_select %p2204, %s2201, 7
        %p2206 = scmp.lt.s32.totalorder %s22, 0
        %s2207 = scalar_select %p2206, %s22, 0
        %s2208 = sadd.s32 %s2207, %s2205
        %s2209 = smul.addr %s2203, 8
        %s2210 = sadd.s32 %s2208, %s2209
        %s2211 = smul.addr %s2210, 4
        %s2212 = scalar_lea.vmem %s3, %s2211
      $region44: #{cnn_forward.10} parent=39 // pred_fallthru
        _
    $region40: #{cnn_forward.10} parent=5 // pred_fallthru
      _
  $region6: #{cnn_forward.10} parent=0 // loop_footer
    %s13 = sadd.s32 1, %s9
  $region7: #{cnn_forward.10} parent=0 // loop_footer_branch
    %8 = sbr.rel target = $region3
  $region8: #{cnn_forward.10} parent=0 // loop_exit
    _

// kernel: cnn_forward.14
$region0: #{cnn_forward.14}
  #allocation0 [shape = 'u32[]', space=smem, size = 0x4, offset = 0x4, fixed_abs, tag = 'smem constant byte address 0x4 - core index']
  #allocation1 [shape = 'u32[144,128]{1,0:T(1,128)}', space=vmem, size = 0x12000, scoped, tag = 'internal scratch']
  %s0 = inlined_call_operand.vmem [shape: bf16[10,5,128], index: 0, kind: input, shape index: {}]
  %s1 = inlined_call_operand.vmem [shape: bf16[10,5,128], index: 1, kind: input, shape index: {}]
  %s2 = inlined_call_operand.vmem [shape: bf16[10,5,128], index: 2, kind: input, shape index: {}]
  %s3 = inlined_call_operand.vmem [shape: bf16[10,5,128], index: 3, kind: input, shape index: {}]
  %s4 = inlined_call_operand.vmem [shape: bf16[9,128,128], index: 4, kind: input, shape index: {}]
  %s5 = inlined_call_operand.vmem [shape: f32[1,128], index: 5, kind: input, shape index: {}]
  %s6 = inlined_call_operand.vmem [shape: bf16[2,4,4,128], index: 6, kind: output, shape index: {}]
  %s7 = sld [smem:[#allocation0]]
  $region57: #{cnn_forward.14} parent=0
    _
  %s9 = ssub.s32 1, %s7
  %s10 = scalar_select 0, %s9, %s7
  loop: start=0, step=1, limit=4
  $region2: #{cnn_forward.14} parent=0 // loop_pre_header
    _
  $region3: #{cnn_forward.14} parent=0 // loop_header
    %s12 = sphi 0, %s16
    %p13 = scmp.ge.s32.totalorder %s12, 4
    %s19 = sphi 0, %s38
    %s20 = sphi 0, %s34
    %s21 = sphi 0, %s30
    %s22 = sphi 0, %s19
    %s23 = sphi 0, %s20
    %s24 = sphi 0, %s21
    %s25 = sphi 0, %s22
    %s26 = sphi 0, %s23
    %s27 = sphi 0, %s24
    %s39 = sphi 0, %s39
    %s41 = sphi 0, %s39
    %s42 = sphi 0, %s41
    %s56 = sphi 0, %s42
    %s60 = sphi 0, %s60
    %s62 = sphi 0, %s60
    %s63 = sphi 0, %s62
    %s77 = sphi 0, %s63
    %s81 = sphi 0, %s81
    %s83 = sphi 0, %s81
    %s84 = sphi 0, %s83
    %s98 = sphi 0, %s84
    %s102 = sphi 0, %s102
    %s104 = sphi 0, %s102
    %s105 = sphi 0, %s104
    %s119 = sphi 0, %s105
    %s125 = sphi 0, %s127
    %s128 = sphi 0, %s125
    %s129 = sphi 0, %s128
    %s145 = sphi 0, %s129
    %s151 = sphi 0, %s153
    %s154 = sphi 0, %s151
    %s155 = sphi 0, %s154
    %s171 = sphi 0, %s155
    %s181 = sphi 0, %s183
    %s184 = sphi 0, %s181
    %s185 = sphi 0, %s184
    %s201 = sphi 0, %s185
  $region4: #{cnn_forward.14} parent=0 // loop_header_branch
    %15 = sbr.rel (%p13) target = $region8
  $region5: #{cnn_forward.14} parent=0 // loop_body
    %s17 = ssub.s32 %s12, 1
    %s18 = ssub.s32 %s12, 2
    %s28 = sadd.s32 1, %s21
    %p29 = scmp.ge.s32.totalorder %s28, 1
    %s30 = scalar_select %p29, 0, %s28
    %s31 = sadd.s32 1, %s20
    %s32 = scalar_select %p29, %s31, %s20
    %p33 = scmp.ge.s32.totalorder %s32, 2
    %s34 = scalar_select %p33, 0, %s32
    %s35 = sadd.s32 1, %s19
    %s36 = scalar_select %p33, %s35, %s19
    %p37 = scmp.ge.s32.totalorder %s36, 1
    %s38 = scalar_select %p37, 0, %s36
    %s40 = sadd.s32 %s39, 1
    %p43 = scmp.eq.s32.totalorder %s12, 1
    %p44 = scmp.ne.s32.totalorder %s39, %s41
    %p45 = scmp.eq.s32.totalorder %s12, 0
    %p46 = por %p44, %p45
    %p47 = scmp.ne.s32.totalorder %s39, %s41
    %p48 = scmp.eq.s32.totalorder %s17, 1
    %p49 = por %p47, %p48
    %p50 = scmp.ne.s32.totalorder %s41, %s42
    %p51 = scmp.eq.s32.totalorder %s17, 0
    %p52 = por %p50, %p51
    %p53 = scmp.ne.s32.totalorder %s41, %s42
    %p54 = scmp.eq.s32.totalorder %s18, 1
    %p55 = por %p53, %p54
    %p57 = scmp.ne.s32.totalorder %s42, %s56
    %p58 = scmp.eq.s32.totalorder %s18, 0
    %p59 = por %p57, %p58
    %s61 = sadd.s32 %s60, 1
    %p64 = scmp.eq.s32.totalorder %s12, 1
    %p65 = scmp.ne.s32.totalorder %s60, %s62
    %p66 = scmp.eq.s32.totalorder %s12, 0
    %p67 = por %p65, %p66
    %p68 = scmp.ne.s32.totalorder %s60, %s62
    %p69 = scmp.eq.s32.totalorder %s17, 1
    %p70 = por %p68, %p69
    %p71 = scmp.ne.s32.totalorder %s62, %s63
    %p72 = scmp.eq.s32.totalorder %s17, 0
    %p73 = por %p71, %p72
    %p74 = scmp.ne.s32.totalorder %s62, %s63
    %p75 = scmp.eq.s32.totalorder %s18, 1
    %p76 = por %p74, %p75
    %p78 = scmp.ne.s32.totalorder %s63, %s77
    %p79 = scmp.eq.s32.totalorder %s18, 0
    %p80 = por %p78, %p79
    %s82 = sadd.s32 %s81, 1
    %p85 = scmp.eq.s32.totalorder %s12, 1
    %p86 = scmp.ne.s32.totalorder %s81, %s83
    %p87 = scmp.eq.s32.totalorder %s12, 0
    %p88 = por %p86, %p87
    %p89 = scmp.ne.s32.totalorder %s81, %s83
    %p90 = scmp.eq.s32.totalorder %s17, 1
    %p91 = por %p89, %p90
    %p92 = scmp.ne.s32.totalorder %s83, %s84
    %p93 = scmp.eq.s32.totalorder %s17, 0
    %p94 = por %p92, %p93
    %p95 = scmp.ne.s32.totalorder %s83, %s84
    %p96 = scmp.eq.s32.totalorder %s18, 1
    %p97 = por %p95, %p96
    %p99 = scmp.ne.s32.totalorder %s84, %s98
    %p100 = scmp.eq.s32.totalorder %s18, 0
    %p101 = por %p99, %p100
    %s103 = sadd.s32 %s102, 1
    %p106 = scmp.eq.s32.totalorder %s12, 1
    %p107 = scmp.ne.s32.totalorder %s102, %s104
    %p108 = scmp.eq.s32.totalorder %s12, 0
    %p109 = por %p107, %p108
    %p110 = scmp.ne.s32.totalorder %s102, %s104
    %p111 = scmp.eq.s32.totalorder %s17, 1
    %p112 = por %p110, %p111
    %p113 = scmp.ne.s32.totalorder %s104, %s105
    %p114 = scmp.eq.s32.totalorder %s17, 0
    %p115 = por %p113, %p114
    %p116 = scmp.ne.s32.totalorder %s104, %s105
    %p117 = scmp.eq.s32.totalorder %s18, 1
    %p118 = por %p116, %p117
    %p120 = scmp.ne.s32.totalorder %s105, %s119
    %p121 = scmp.eq.s32.totalorder %s18, 0
    %p122 = por %p120, %p121
    %s123 = ssub.s32 %s19, %s38
    %p124 = scmp.eq.s32.totalorder %s123, 0
    %s126 = sadd.s32 %s125, 1
    %s127 = scalar_select %p124, %s125, %s126
    %p130 = pneg %p124
    %p131 = scmp.eq.s32.totalorder %s12, 1
    %p132 = por %p130, %p131
    %p133 = scmp.ne.s32.totalorder %s125, %s128
    %p134 = scmp.eq.s32.totalorder %s12, 0
    %p135 = por %p133, %p134
    %p136 = scmp.ne.s32.totalorder %s125, %s128
    %p137 = scmp.eq.s32.totalorder %s17, 1
    %p138 = por %p136, %p137
    %p139 = scmp.ne.s32.totalorder %s128, %s129
    %p140 = scmp.eq.s32.totalorder %s17, 0
    %p141 = por %p139, %p140
    %p142 = scmp.ne.s32.totalorder %s128, %s129
    %p143 = scmp.eq.s32.totalorder %s18, 1
    %p144 = por %p142, %p143
    %p146 = scmp.ne.s32.totalorder %s129, %s145
    %p147 = scmp.eq.s32.totalorder %s18, 0
    %p148 = por %p146, %p147
    %s149 = ssub.s32 %s19, %s38
    %p150 = scmp.eq.s32.totalorder %s149, 0
    %s152 = sadd.s32 %s151, 1
    %s153 = scalar_select %p150, %s151, %s152
    %p156 = pneg %p150
    %p157 = scmp.eq.s32.totalorder %s12, 1
    %p158 = por %p156, %p157
    %p159 = scmp.ne.s32.totalorder %s151, %s154
    %p160 = scmp.eq.s32.totalorder %s12, 0
    %p161 = por %p159, %p160
    %p162 = scmp.ne.s32.totalorder %s151, %s154
    %p163 = scmp.eq.s32.totalorder %s17, 1
    %p164 = por %p162, %p163
    %p165 = scmp.ne.s32.totalorder %s154, %s155
    %p166 = scmp.eq.s32.totalorder %s17, 0
    %p167 = por %p165, %p166
    %p168 = scmp.ne.s32.totalorder %s154, %s155
    %p169 = scmp.eq.s32.totalorder %s18, 1
    %p170 = por %p168, %p169
    %p172 = scmp.ne.s32.totalorder %s155, %s171
    %p173 = scmp.eq.s32.totalorder %s18, 0
    %p174 = por %p172, %p173
    %s175 = ssub.s32 %s20, %s34
    %s176 = ssub.s32 %s21, %s30
    %s177 = sor.u32 %s175, %s176
    %s178 = ssub.s32 %s19, %s38
    %s179 = sor.u32 %s177, %s178
    %p180 = scmp.eq.s32.totalorder %s179, 0
    %s182 = sadd.s32 %s181, 1
    %s183 = scalar_select %p180, %s181, %s182
    %p186 = pneg %p180
    %p187 = scmp.eq.s32.totalorder %s12, 1
    %p188 = por %p186, %p187
    %p189 = scmp.ne.s32.totalorder %s181, %s184
    %p190 = scmp.eq.s32.totalorder %s12, 0
    %p191 = por %p189, %p190
    %p192 = scmp.ne.s32.totalorder %s181, %s184
    %p193 = scmp.eq.s32.totalorder %s17, 1
    %p194 = por %p192, %p193
    %p195 = scmp.ne.s32.totalorder %s184, %s185
    %p196 = scmp.eq.s32.totalorder %s17, 0
    %p197 = por %p195, %p196
    %p198 = scmp.ne.s32.totalorder %s184, %s185
    %p199 = scmp.eq.s32.totalorder %s18, 1
    %p200 = por %p198, %p199
    %p202 = scmp.ne.s32.totalorder %s185, %s201
    %p203 = scmp.eq.s32.totalorder %s18, 0
    %p204 = por %p202, %p203
    %p205 = scmp.le.s32.totalorder 1, %s12
    %p206 = scmp.lt.s32.totalorder %s12, 3
    %p207 = pnand %p205, %p206
    %p208 = pneg %p207
    // Predicated region
    $region9: #{cnn_forward.14} parent=5 // pred_check
      _
    $region10: #{cnn_forward.14} parent=5 // pred_check_branch
      %210 = sbr.rel (%p207) target = $region12
    $region11: #{cnn_forward.14} parent=5 // pred_region
      %s211 = ssub.s32 %s12, 1
      // Predicated region
      $region13: #{cnn_forward.14} parent=11 // pred_check
        %p212 = pneg %p52
      $region14: #{cnn_forward.14} parent=11 // pred_check_branch
        %214 = sbr.rel (%p212) target = $region16
      $region15: #{cnn_forward.14} parent=11 // pred_region
        _
      $region16: #{cnn_forward.14} parent=11 // pred_fallthru
        _
      // Predicated region
      $region17: #{cnn_forward.14} parent=11 // pred_check
        %p215 = pneg %p73
      $region18: #{cnn_forward.14} parent=11 // pred_check_branch
        %217 = sbr.rel (%p215) target = $region20
      $region19: #{cnn_forward.14} parent=11 // pred_region
        _
      $region20: #{cnn_forward.14} parent=11 // pred_fallthru
        _
      // Predicated region
      $region21: #{cnn_forward.14} parent=11 // pred_check
        %p218 = pneg %p94
      $region22: #{cnn_forward.14} parent=11 // pred_check_branch
        %220 = sbr.rel (%p218) target = $region24
      $region23: #{cnn_forward.14} parent=11 // pred_region
        _
      $region24: #{cnn_forward.14} parent=11 // pred_fallthru
        _
      // Predicated region
      $region25: #{cnn_forward.14} parent=11 // pred_check
        %p221 = pneg %p115
      $region26: #{cnn_forward.14} parent=11 // pred_check_branch
        %223 = sbr.rel (%p221) target = $region28
      $region27: #{cnn_forward.14} parent=11 // pred_region
        _
      $region28: #{cnn_forward.14} parent=11 // pred_fallthru
        _
      // Predicated region
      $region29: #{cnn_forward.14} parent=11 // pred_check
        %p224 = pneg %p141
      $region30: #{cnn_forward.14} parent=11 // pred_check_branch
        %226 = sbr.rel (%p224) target = $region32
      $region31: #{cnn_forward.14} parent=11 // pred_region
        %p227 = scmp.lt.s32.totalorder %s22, 0
        %s228 = scalar_select %p227, %s22, 0
        %s229 = smul.addr %s228, 4
        %s230 = scalar_lea.vmem %s4, %s229
      $region32: #{cnn_forward.14} parent=11 // pred_fallthru
        _
      // Predicated region
      $region33: #{cnn_forward.14} parent=11 // pred_check
        %p231 = pneg %p167
      $region34: #{cnn_forward.14} parent=11 // pred_check_branch
        %233 = sbr.rel (%p231) target = $region36
      $region35: #{cnn_forward.14} parent=11 // pred_region
        %p234 = scmp.lt.s32.totalorder %s22, 0
        %s235 = scalar_select %p234, %s22, 0
        %s236 = scalar_lea.vmem %s5, %s235
      $region36: #{cnn_forward.14} parent=11 // pred_fallthru
        _
    $region12: #{cnn_forward.14} parent=5 // pred_fallthru
      _
    %p237 = scmp.lt.s32.totalorder %s12, 2
    // Predicated region
    $region37: #{cnn_forward.14} parent=5 // pred_check
      %p238 = pneg %p237
    $region38: #{cnn_forward.14} parent=5 // pred_check_branch
      %240 = sbr.rel (%p238) target = $region40
    $region39: #{cnn_forward.14} parent=5 // pred_region
      _
    $region40: #{cnn_forward.14} parent=5 // pred_fallthru
      _
    %p241 = scmp.le.s32.totalorder 1, %s12
    %p242 = scmp.lt.s32.totalorder %s12, 3
    %p243 = pnand %p241, %p242
    %p244 = pneg %p243
    // Predicated region
    $region41: #{cnn_forward.14} parent=5 // pred_check
      _
    $region42: #{cnn_forward.14} parent=5 // pred_check_branch
      %246 = sbr.rel (%p243) target = $region44
    $region43: #{cnn_forward.14} parent=5 // pred_region
      %s247 = ssub.s32 %s12, 1
      %p248 = pneg %p52
      %p249 = pneg %p49
      %p250 = pneg %p73
      %p251 = pneg %p70
      %p252 = pneg %p94
      %p253 = pneg %p91
      %p254 = pneg %p115
      %p255 = pneg %p112
      %p256 = scmp.lt.s32.totalorder %s22, 0
      %s257 = scalar_select %p256, %s22, 0
      %s258 = smul.addr %s257, 4
      %s259 = scalar_lea.vmem %s4, %s258
      %p260 = pneg %p141
      %p261 = pneg %p138
      %p262 = scmp.lt.s32.totalorder %s22, 0
      %s263 = scalar_select %p262, %s22, 0
      %s264 = scalar_lea.vmem %s5, %s263
      %p265 = pneg %p167
      %p266 = pneg %p164
      %p267 = pneg %p197
      %p268 = pneg %p194
      %s269 = smul.u32 4, %s24
      %p270 = scmp.lt.s32.totalorder %s23, 1
      %s271 = scalar_select %p270, %s23, 1
      %p272 = scmp.lt.s32.totalorder %s269, 3
      %s273 = scalar_select %p272, %s269, 3
      %p274 = scmp.lt.s32.totalorder %s22, 0
      %s275 = scalar_select %p274, %s22, 0
      %s276 = sadd.s32 %s275, %s273
      %s277 = smul.addr %s271, 4
      %s278 = sadd.s32 %s276, %s277
      %s279 = smul.addr %s278, 2
      %s280 = scalar_lea.vmem %s6, %s279
      %p281 = scmp.lt.s32.totalorder %s22, 0
      %s282 = scalar_select %p281, %s22, 0
      %s283 = smul.addr %s282, 4
      %s284 = scalar_lea.vmem %s4, %s283
      %p285 = scmp.lt.s32.totalorder %s22, 0
      %s286 = scalar_select %p285, %s22, 0
      %s287 = scalar_lea.vmem %s5, %s286
      %s288 = smul.u32 4, %s24
      %p289 = scmp.lt.s32.totalorder %s23, 1
      %s290 = scalar_select %p289, %s23, 1
      %p291 = scmp.lt.s32.totalorder %s288, 3
      %s292 = scalar_select %p291, %s288, 3
      %p293 = scmp.lt.s32.totalorder %s22, 0
      %s294 = scalar_select %p293, %s22, 0
      %s295 = sadd.s32 %s294, %s292
      %s296 = smul.addr %s290, 4
      %s297 = sadd.s32 %s295, %s296
      %s298 = smul.addr %s297, 2
      %s299 = scalar_lea.vmem %s6, %s298
      %s300 = smul.u32 4, %s24
      %s302 = smul.u32 %s23, 5
      %s303 = smul.u32 %s24, 4
      %s304 = sadd.s32 %s302, %s303
      %s305 = smul.addr %s304, 4
      %s306 = scalar_lea.vmem %s0, %s305
      %v307 = vld [vmem:[%s306] sm:$0x7]
      %v308 = vld [vmem:[%s306 + $0x4] sm:$0x7]
      %v309 = vld [vmem:[%s306 + $0x8] sm:$0x7]
      %v310 = vld [vmem:[%s306 + $0xc] sm:$0x7]
      %v311 = vld [vmem:[%s284] sm:$0xf]
      %v312 = vld [vmem:[%s284 + $0x4] sm:$0xf]
      %v313 = vld [vmem:[%s284 + $0x8] sm:$0xf]
      %v314 = vld [vmem:[%s284 + $0xc] sm:$0xf]
      %v315 = vld [vmem:[%s284 + $0x10] sm:$0xf]
      %v316 = vld [vmem:[%s284 + $0x14] sm:$0xf]
      %v317 = vld [vmem:[%s284 + $0x18] sm:$0xf]
      %v318 = vld [vmem:[%s284 + $0x1c] sm:$0xf]
      %v319 = vld [vmem:[%s284 + $0x20] sm:$0xf]
      %v320 = vld [vmem:[%s284 + $0x24] sm:$0xf]
      %v321 = vld [vmem:[%s284 + $0x28] sm:$0xf]
      %v322 = vld [vmem:[%s284 + $0x2c] sm:$0xf]
      %v323 = vld [vmem:[%s284 + $0x30] sm:$0xf]
      %v324 = vld [vmem:[%s284 + $0x34] sm:$0xf]
      %v325 = vld [vmem:[%s284 + $0x38] sm:$0xf]
      %v326 = vld [vmem:[%s284 + $0x3c] sm:$0xf]
      %v332 = vunpack.c.l.s4 1983009808
      %v333 = vunpack.c.0.s8 %v332
      %v334 = vlaneseq
      %v335 = vshrl.u32 %v334, 7
      %v336 = vsub.s32 %v333, %v335
      %v337 = vrot.slane %v307, %v336
      %v338 = vcombine.high %v337, %v337
      %v340 = vunpack.c.l.s4 1983009808
      %v341 = vunpack.c.0.s8 %v340
      %v342 = vlaneseq
      %v343 = vshrl.u32 %v342, 7
      %v344 = vsub.s32 %v341, %v343
      %v345 = vrot.slane %v308, %v344
      %v346 = vcombine.high %v345, %v345
      %v348 = vunpack.c.l.s4 1983009808
      %v349 = vunpack.c.0.s8 %v348
      %v350 = vlaneseq
      %v351 = vshrl.u32 %v350, 7
      %v352 = vsub.s32 %v349, %v351
      %v353 = vrot.slane %v309, %v352
      %v354 = vcombine.high %v353, %v353
      %v356 = vunpack.c.l.s4 1983009808
      %v357 = vunpack.c.0.s8 %v356
      %v358 = vlaneseq
      %v359 = vshrl.u32 %v358, 7
      %v360 = vsub.s32 %v357, %v359
      %v361 = vrot.slane %v310, %v360
      %v362 = vcombine.high %v361, %v361
      %vm363 = vsmask.f32 1280
      %vm364 = vsmask.f32 3336
      %vm365 = vmor %vm363, %vm364
      %vm366 = vsmask.f32 5392
      %vm367 = vmor %vm365, %vm366
      %vm368 = vsmask.f32 7448
      %vm369 = vmor %vm367, %vm368
      %v371 = vshrl.u32 %v337, 16
      %v373 = vrot.slane %v371, 6
      %v374 = vshll.u32 %v337, 16
      %v376 = vrot.slane %v374, 7
      %v377 = vor.u32 %v373, %v376
      %v378 = vrot.slane %v377, 2
      %v380 = vshll.u32 %v338, 16
      %v382 = vrot.slane %v380, 7
      %v383 = vsel %vm369, %v378, %v382
      %v385 = vshrl.u32 %v345, 16
      %v387 = vrot.slane %v385, 6
      %v388 = vshll.u32 %v345, 16
      %v390 = vrot.slane %v388, 7
      %v391 = vor.u32 %v387, %v390
      %v392 = vrot.slane %v391, 2
      %v394 = vshll.u32 %v346, 16
      %v396 = vrot.slane %v394, 7
      %v397 = vsel %vm369, %v392, %v396
      %v399 = vshrl.u32 %v353, 16
      %v401 = vrot.slane %v399, 6
      %v402 = vshll.u32 %v353, 16
      %v404 = vrot.slane %v402, 7
      %v405 = vor.u32 %v401, %v404
      %v406 = vrot.slane %v405, 2
      %v408 = vshll.u32 %v354, 16
      %v410 = vrot.slane %v408, 7
      %v411 = vsel %vm369, %v406, %v410
      %v413 = vshrl.u32 %v361, 16
      %v415 = vrot.slane %v413, 6
      %v416 = vshll.u32 %v361, 16
      %v418 = vrot.slane %v416, 7
      %v419 = vor.u32 %v415, %v418
      %v420 = vrot.slane %v419, 2
      %v422 = vshll.u32 %v362, 16
      %v424 = vrot.slane %v422, 7
      %v425 = vsel %vm369, %v420, %v424
      %s426 = scalar_lea.vmem %s284, 128
      %v427 = vld [vmem:[%s426] sm:$0xf]
      %v428 = vld [vmem:[%s426 + $0x4] sm:$0xf]
      %v429 = vld [vmem:[%s426 + $0x8] sm:$0xf]
      %v430 = vld [vmem:[%s426 + $0xc] sm:$0xf]
      %v431 = vld [vmem:[%s426 + $0x10] sm:$0xf]
      %v432 = vld [vmem:[%s426 + $0x14] sm:$0xf]
      %v433 = vld [vmem:[%s426 + $0x18] sm:$0xf]
      %v434 = vld [vmem:[%s426 + $0x1c] sm:$0xf]
      %v435 = vld [vmem:[%s426 + $0x20] sm:$0xf]
      %v436 = vld [vmem:[%s426 + $0x24] sm:$0xf]
      %v437 = vld [vmem:[%s426 + $0x28] sm:$0xf]
      %v438 = vld [vmem:[%s426 + $0x2c] sm:$0xf]
      %v439 = vld [vmem:[%s426 + $0x30] sm:$0xf]
      %v440 = vld [vmem:[%s426 + $0x34] sm:$0xf]
      %v441 = vld [vmem:[%s426 + $0x38] sm:$0xf]
      %v442 = vld [vmem:[%s426 + $0x3c] sm:$0xf]
      %v443 = vcombine.low %v383, %v397
      %v444 = vcombine.low %v411, %v425
      %v446 = vunpack.c.l.s4 1983009808
      %v447 = vunpack.c.0.s8 %v446
      %v448 = vlaneseq
      %v449 = vshrl.u32 %v448, 7
      %v450 = vsub.s32 %v447, %v449
      %v451 = vrot.slane %v443, %v450
      %v453 = vunpack.c.l.s4 1983009808
      %v454 = vunpack.c.0.s8 %v453
      %v455 = vlaneseq
      %v456 = vshrl.u32 %v455, 7
      %v457 = vsub.s32 %v454, %v456
      %v458 = vrot.slane %v444, %v457
      %v459 = vcombine.low %v451, %v458
      %v477 = vunpack.c.l.b16 %v427
      %v478 = vunpack.c.l.b16 %v428
      %v479 = vunpack.c.l.b16 %v429
      %v480 = vunpack.c.l.b16 %v430
      %v481 = vunpack.c.l.b16 %v431
      %v482 = vunpack.c.l.b16 %v432
      %v483 = vunpack.c.l.b16 %v433
      %v484 = vunpack.c.l.b16 %v434
      %v485 = vunpack.c.l.b16 %v435
      %v486 = vunpack.c.l.b16 %v436
      %v487 = vunpack.c.l.b16 %v437
      %v488 = vunpack.c.l.b16 %v438
      %v489 = vunpack.c.l.b16 %v439
      %v490 = vunpack.c.l.b16 %v440
      %v491 = vunpack.c.l.b16 %v441
      %v492 = vunpack.c.l.b16 %v442
      %v493 = vpack.c.b16 %v478, %v477
      %v494 = vpack.c.b16 %v480, %v479
      %v495 = vpack.c.b16 %v482, %v481
      %v496 = vpack.c.b16 %v484, %v483
      %v497 = vpack.c.b16 %v486, %v485
      %v498 = vpack.c.b16 %v488, %v487
      %v499 = vpack.c.b16 %v490, %v489
      %v500 = vpack.c.b16 %v492, %v491
      %509 = vmatprep.subr.bf16.mxu0 0
      %510 = vmatpush1.bf16.msra.mxu0 %v493
      %511 = vmatprep.subr.bf16.mxu0 0
      %512 = vmatpush1.bf16.msra.mxu0 %v494
      %513 = vmatprep.subr.bf16.mxu0 0
      %514 = vmatpush1.bf16.msra.mxu0 %v495
      %515 = vmatprep.subr.bf16.mxu0 0
      %516 = vmatpush1.bf16.msra.mxu0 %v496
      %517 = vmatprep.subr.bf16.mxu0 0
      %518 = vmatpush1.bf16.msra.mxu0 %v497
      %519 = vmatprep.subr.bf16.mxu0 0
      %520 = vmatpush1.bf16.msra.mxu0 %v498
      %521 = vmatprep.subr.bf16.mxu0 0
      %522 = vmatpush1.bf16.msra.mxu0 %v499
      %523 = vmatprep.subr.bf16.mxu0 0
      %524 = vmatpush1.bf16.msra.mxu0 %v500
      %525 = vmatprep.subr.bf16.mxu0 0
      %526 = vmatpush1.bf16.msra.mxu0 0
      %527 = vmatprep.subr.bf16.mxu0 0
      %528 = vmatpush1.bf16.msra.mxu0 0
      %529 = vmatprep.subr.bf16.mxu0 0
      %530 = vmatpush1.bf16.msra.mxu0 0
      %531 = vmatprep.subr.bf16.mxu0 0
      %532 = vmatpush1.bf16.msra.mxu0 0
      %533 = vmatprep.subr.bf16.mxu0 0
      %534 = vmatpush1.bf16.msra.mxu0 0
      %535 = vmatprep.subr.bf16.mxu0 0
      %536 = vmatpush1.bf16.msra.mxu0 0
      %537 = vmatprep.subr.bf16.mxu0 0
      %538 = vmatpush1.bf16.msra.mxu0 0
      %539 = vmatprep.subr.bf16.mxu0 0
      %540 = vmatpush1.bf16.msra.mxu0 0
      %541 = vmatprep.mubr.bf16.mxu0 0
      %542 = vmatmul.mubr.bf16.gmra.mrb[0].mxu0 %v459
      %v543 = vpop.f32.mrb[0].mxu0
      %v544 = vadd.f32 0.0, %v543
      %v545 = vpop.f32.mrb[0].mxu0
      %v546 = vpop.f32.mrb[0].mxu0
      %v547 = vadd.f32 0.0, %v546
      %v548 = vpop.f32.mrb[0].mxu0
      %549 = vdwg.mxu0
      %v550 = vcombine.low %v307, %v308
      %v551 = vcombine.low %v309, %v310
      %v553 = vunpack.c.l.s4 1983009808
      %v554 = vunpack.c.0.s8 %v553
      %v555 = vlaneseq
      %v556 = vshrl.u32 %v555, 7
      %v557 = vsub.s32 %v554, %v556
      %v558 = vrot.slane %v550, %v557
      %v560 = vunpack.c.l.s4 1983009808
      %v561 = vunpack.c.0.s8 %v560
      %v562 = vlaneseq
      %v563 = vshrl.u32 %v562, 7
      %v564 = vsub.s32 %v561, %v563
      %v565 = vrot.slane %v551, %v564
      %v566 = vcombine.low %v558, %v565
      %v584 = vunpack.c.l.b16 %v311
      %v585 = vunpack.c.l.b16 %v312
      %v586 = vunpack.c.l.b16 %v313
      %v587 = vunpack.c.l.b16 %v314
      %v588 = vunpack.c.l.b16 %v315
      %v589 = vunpack.c.l.b16 %v316
      %v590 = vunpack.c.l.b16 %v317
      %v591 = vunpack.c.l.b16 %v318
      %v592 = vunpack.c.l.b16 %v319
      %v593 = vunpack.c.l.b16 %v320
      %v594 = vunpack.c.l.b16 %v321
      %v595 = vunpack.c.l.b16 %v322
      %v596 = vunpack.c.l.b16 %v323
      %v597 = vunpack.c.l.b16 %v324
      %v598 = vunpack.c.l.b16 %v325
      %v599 = vunpack.c.l.b16 %v326
      %v600 = vpack.c.b16 %v585, %v584
      %v601 = vpack.c.b16 %v587, %v586
      %v602 = vpack.c.b16 %v589, %v588
      %v603 = vpack.c.b16 %v591, %v590
      %v604 = vpack.c.b16 %v593, %v592
      %v605 = vpack.c.b16 %v595, %v594
      %v606 = vpack.c.b16 %v597, %v596
      %v607 = vpack.c.b16 %v599, %v598
      %616 = vmatprep.subr.bf16.mxu0 0
      %617 = vmatpush1.bf16.msra.mxu0 %v600
      %618 = vmatprep.subr.bf16.mxu0 0
      %619 = vmatpush1.bf16.msra.mxu0 %v601
      %620 = vmatprep.subr.bf16.mxu0 0
      %621 = vmatpush1.bf16.msra.mxu0 %v602
      %622 = vmatprep.subr.bf16.mxu0 0
      %623 = vmatpush1.bf16.msra.mxu0 %v603
      %624 = vmatprep.subr.bf16.mxu0 0
      %625 = vmatpush1.bf16.msra.mxu0 %v604
      %626 = vmatprep.subr.bf16.mxu0 0
      %627 = vmatpush1.bf16.msra.mxu0 %v605
      %628 = vmatprep.subr.bf16.mxu0 0
      %629 = vmatpush1.bf16.msra.mxu0 %v606
      %630 = vmatprep.subr.bf16.mxu0 0
      %631 = vmatpush1.bf16.msra.mxu0 %v607
      %632 = vmatprep.subr.bf16.mxu0 0
      %633 = vmatpush1.bf16.msra.mxu0 0
      %634 = vmatprep.subr.bf16.mxu0 0
      %635 = vmatpush1.bf16.msra.mxu0 0
      %636 = vmatprep.subr.bf16.mxu0 0
      %637 = vmatpush1.bf16.msra.mxu0 0
      %638 = vmatprep.subr.bf16.mxu0 0
      %639 = vmatpush1.bf16.msra.mxu0 0
      %640 = vmatprep.subr.bf16.mxu0 0
      %641 = vmatpush1.bf16.msra.mxu0 0
      %642 = vmatprep.subr.bf16.mxu0 0
      %643 = vmatpush1.bf16.msra.mxu0 0
      %644 = vmatprep.subr.bf16.mxu0 0
      %645 = vmatpush1.bf16.msra.mxu0 0
      %646 = vmatprep.subr.bf16.mxu0 0
      %647 = vmatpush1.bf16.msra.mxu0 0
      %648 = vmatprep.mubr.bf16.mxu0 0
      %649 = vmatmul.mubr.bf16.gmra.mrb[0].mxu0 %v566
      %v650 = vpop.f32.mrb[0].mxu0
      %v651 = vadd.f32 %v544, %v650
      %v652 = vpop.f32.mrb[0].mxu0
      %v653 = vpop.f32.mrb[0].mxu0
      %v654 = vadd.f32 %v547, %v653
      %v655 = vpop.f32.mrb[0].mxu0
      %656 = vdwg.mxu0
      %s657 = sadd.s32 %s304, 1
      %s658 = smul.addr %s657, 4
      %s659 = scalar_lea.vmem %s0, %s658
      %v660 = vld [vmem:[%s659] sm:$0x7]
      %v661 = vld [vmem:[%s659 + $0x4] sm:$0x7]
      %v662 = vld [vmem:[%s659 + $0x8] sm:$0x7]
      %v663 = vld [vmem:[%s659 + $0xc] sm:$0x7]
      %s664 = scalar_lea.vmem %s284, 384
      %v665 = vld [vmem:[%s664] sm:$0xf]
      %v666 = vld [vmem:[%s664 + $0x4] sm:$0xf]
      %v667 = vld [vmem:[%s664 + $0x8] sm:$0xf]
      %v668 = vld [vmem:[%s664 + $0xc] sm:$0xf]
      %v669 = vld [vmem:[%s664 + $0x10] sm:$0xf]
      %v670 = vld [vmem:[%s664 + $0x14] sm:$0xf]
      %v671 = vld [vmem:[%s664 + $0x18] sm:$0xf]
      %v672 = vld [vmem:[%s664 + $0x1c] sm:$0xf]
      %v673 = vld [vmem:[%s664 + $0x20] sm:$0xf]
      %v674 = vld [vmem:[%s664 + $0x24] sm:$0xf]
      %v675 = vld [vmem:[%s664 + $0x28] sm:$0xf]
      %v676 = vld [vmem:[%s664 + $0x2c] sm:$0xf]
      %v677 = vld [vmem:[%s664 + $0x30] sm:$0xf]
      %v678 = vld [vmem:[%s664 + $0x34] sm:$0xf]
      %v679 = vld [vmem:[%s664 + $0x38] sm:$0xf]
      %v680 = vld [vmem:[%s664 + $0x3c] sm:$0xf]
      %v685 = vcombine.low %v660, %v661
      %v686 = vcombine.low %v662, %v663
      %v688 = vunpack.c.l.s4 1983009808
      %v689 = vunpack.c.0.s8 %v688
      %v690 = vlaneseq
      %v691 = vshrl.u32 %v690, 7
      %v692 = vsub.s32 %v689, %v691
      %v693 = vrot.slane %v685, %v692
      %v695 = vunpack.c.l.s4 1983009808
      %v696 = vunpack.c.0.s8 %v695
      %v697 = vlaneseq
      %v698 = vshrl.u32 %v697, 7
      %v699 = vsub.s32 %v696, %v698
      %v700 = vrot.slane %v686, %v699
      %v701 = vcombine.low %v693, %v700
      %v719 = vunpack.c.l.b16 %v665
      %v720 = vunpack.c.l.b16 %v666
      %v721 = vunpack.c.l.b16 %v667
      %v722 = vunpack.c.l.b16 %v668
      %v723 = vunpack.c.l.b16 %v669
      %v724 = vunpack.c.l.b16 %v670
      %v725 = vunpack.c.l.b16 %v671
      %v726 = vunpack.c.l.b16 %v672
      %v727 = vunpack.c.l.b16 %v673
      %v728 = vunpack.c.l.b16 %v674
      %v729 = vunpack.c.l.b16 %v675
      %v730 = vunpack.c.l.b16 %v676
      %v731 = vunpack.c.l.b16 %v677
      %v732 = vunpack.c.l.b16 %v678
      %v733 = vunpack.c.l.b16 %v679
      %v734 = vunpack.c.l.b16 %v680
      %v735 = vpack.c.b16 %v720, %v719
      %v736 = vpack.c.b16 %v722, %v721
      %v737 = vpack.c.b16 %v724, %v723
      %v738 = vpack.c.b16 %v726, %v725
      %v739 = vpack.c.b16 %v728, %v727
      %v740 = vpack.c.b16 %v730, %v729
      %v741 = vpack.c.b16 %v732, %v731
      %v742 = vpack.c.b16 %v734, %v733
      %751 = vmatprep.subr.bf16.mxu0 0
      %752 = vmatpush1.bf16.msra.mxu0 %v735
      %753 = vmatprep.subr.bf16.mxu0 0
      %754 = vmatpush1.bf16.msra.mxu0 %v736
      %755 = vmatprep.subr.bf16.mxu0 0
      %756 = vmatpush1.bf16.msra.mxu0 %v737
      %757 = vmatprep.subr.bf16.mxu0 0
      %758 = vmatpush1.bf16.msra.mxu0 %v738
      %759 = vmatprep.subr.bf16.mxu0 0
      %760 = vmatpush1.bf16.msra.mxu0 %v739
      %761 = vmatprep.subr.bf16.mxu0 0
      %762 = vmatpush1.bf16.msra.mxu0 %v740
      %763 = vmatprep.subr.bf16.mxu0 0
      %764 = vmatpush1.bf16.msra.mxu0 %v741
      %765 = vmatprep.subr.bf16.mxu0 0
      %766 = vmatpush1.bf16.msra.mxu0 %v742
      %767 = vmatprep.subr.bf16.mxu0 0
      %768 = vmatpush1.bf16.msra.mxu0 0
      %769 = vmatprep.subr.bf16.mxu0 0
      %770 = vmatpush1.bf16.msra.mxu0 0
      %771 = vmatprep.subr.bf16.mxu0 0
      %772 = vmatpush1.bf16.msra.mxu0 0
      %773 = vmatprep.subr.bf16.mxu0 0
      %774 = vmatpush1.bf16.msra.mxu0 0
      %775 = vmatprep.subr.bf16.mxu0 0
      %776 = vmatpush1.bf16.msra.mxu0 0
      %777 = vmatprep.subr.bf16.mxu0 0
      %778 = vmatpush1.bf16.msra.mxu0 0
      %779 = vmatprep.subr.bf16.mxu0 0
      %780 = vmatpush1.bf16.msra.mxu0 0
      %781 = vmatprep.subr.bf16.mxu0 0
      %782 = vmatpush1.bf16.msra.mxu0 0
      %783 = vmatprep.mubr.bf16.mxu0 0
      %784 = vmatmul.mubr.bf16.gmra.mrb[0].mxu0 %v701
      %v785 = vpop.f32.mrb[0].mxu0
      %v786 = vadd.f32 0.0, %v785
      %v787 = vpop.f32.mrb[0].mxu0
      %v788 = vpop.f32.mrb[0].mxu0
      %v789 = vadd.f32 0.0, %v788
      %v790 = vpop.f32.mrb[0].mxu0
      %791 = vdwg.mxu0
      %v792 = vadd.f32 %v651, %v786
      %v793 = vadd.f32 %v654, %v789
      %v795 = vunpack.c.l.s4 1983009808
      %v796 = vunpack.c.0.s8 %v795
      %v797 = vlaneseq
      %v798 = vshrl.u32 %v797, 7
      %v799 = vsub.s32 %v796, %v798
      %v800 = vrot.slane %v660, %v799
      %v801 = vcombine.high %v800, %v800
      %v803 = vunpack.c.l.s4 1983009808
      %v804 = vunpack.c.0.s8 %v803
      %v805 = vlaneseq
      %v806 = vshrl.u32 %v805, 7
      %v807 = vsub.s32 %v804, %v806
      %v808 = vrot.slane %v661, %v807
      %v809 = vcombine.high %v808, %v808
      %v811 = vunpack.c.l.s4 1983009808
      %v812 = vunpack.c.0.s8 %v811
      %v813 = vlaneseq
      %v814 = vshrl.u32 %v813, 7
      %v815 = vsub.s32 %v812, %v814
      %v816 = vrot.slane %v662, %v815
      %v817 = vcombine.high %v816, %v816
      %v819 = vunpack.c.l.s4 1983009808
      %v820 = vunpack.c.0.s8 %v819
      %v821 = vlaneseq
      %v822 = vshrl.u32 %v821, 7
      %v823 = vsub.s32 %v820, %v822
      %v824 = vrot.slane %v663, %v823
      %v825 = vcombine.high %v824, %v824
      %v827 = vshrl.u32 %v800, 16
      %v829 = vrot.slane %v827, 6
      %v830 = vshll.u32 %v800, 16
      %v832 = vrot.slane %v830, 7
      %v833 = vor.u32 %v829, %v832
      %v834 = vrot.slane %v833, 2
      %v836 = vshll.u32 %v801, 16
      %v838 = vrot.slane %v836, 7
      %v839 = vsel %vm369, %v834, %v838
      %v841 = vshrl.u32 %v808, 16
      %v843 = vrot.slane %v841, 6
      %v844 = vshll.u32 %v808, 16
      %v846 = vrot.slane %v844, 7
      %v847 = vor.u32 %v843, %v846
      %v848 = vrot.slane %v847, 2
      %v850 = vshll.u32 %v809, 16
      %v852 = vrot.slane %v850, 7
      %v853 = vsel %vm369, %v848, %v852
      %v855 = vshrl.u32 %v816, 16
      %v857 = vrot.slane %v855, 6
      %v858 = vshll.u32 %v816, 16
      %v860 = vrot.slane %v858, 7
      %v861 = vor.u32 %v857, %v860
      %v862 = vrot.slane %v861, 2
      %v864 = vshll.u32 %v817, 16
      %v866 = vrot.slane %v864, 7
      %v867 = vsel %vm369, %v862, %v866
      %v869 = vshrl.u32 %v824, 16
      %v871 = vrot.slane %v869, 6
      %v872 = vshll.u32 %v824, 16
      %v874 = vrot.slane %v872, 7
      %v875 = vor.u32 %v871, %v874
      %v876 = vrot.slane %v875, 2
      %v878 = vshll.u32 %v825, 16
      %v880 = vrot.slane %v878, 7
      %v881 = vsel %vm369, %v876, %v880
      %s882 = scalar_lea.vmem %s284, 512
      %v883 = vld [vmem:[%s882] sm:$0xf]
      %v884 = vld [vmem:[%s882 + $0x4] sm:$0xf]
      %v885 = vld [vmem:[%s882 + $0x8] sm:$0xf]
      %v886 = vld [vmem:[%s882 + $0xc] sm:$0xf]
      %v887 = vld [vmem:[%s882 + $0x10] sm:$0xf]
      %v888 = vld [vmem:[%s882 + $0x14] sm:$0xf]
      %v889 = vld [vmem:[%s882 + $0x18] sm:$0xf]
      %v890 = vld [vmem:[%s882 + $0x1c] sm:$0xf]
      %v891 = vld [vmem:[%s882 + $0x20] sm:$0xf]
      %v892 = vld [vmem:[%s882 + $0x24] sm:$0xf]
      %v893 = vld [vmem:[%s882 + $0x28] sm:$0xf]
      %v894 = vld [vmem:[%s882 + $0x2c] sm:$0xf]
      %v895 = vld [vmem:[%s882 + $0x30] sm:$0xf]
      %v896 = vld [vmem:[%s882 + $0x34] sm:$0xf]
      %v897 = vld [vmem:[%s882 + $0x38] sm:$0xf]
      %v898 = vld [vmem:[%s882 + $0x3c] sm:$0xf]
      %v899 = vcombine.low %v839, %v853
      %v900 = vcombine.low %v867, %v881
      %v902 = vunpack.c.l.s4 1983009808
      %v903 = vunpack.c.0.s8 %v902
      %v904 = vlaneseq
      %v905 = vshrl.u32 %v904, 7
      %v906 = vsub.s32 %v903, %v905
      %v907 = vrot.slane %v899, %v906
      %v909 = vunpack.c.l.s4 1983009808
      %v910 = vunpack.c.0.s8 %v909
      %v911 = vlaneseq
      %v912 = vshrl.u32 %v911, 7
      %v913 = vsub.s32 %v910, %v912
      %v914 = vrot.slane %v900, %v913
      %v915 = vcombine.low %v907, %v914
      %v933 = vunpack.c.l.b16 %v883
      %v934 = vunpack.c.l.b16 %v884
      %v935 = vunpack.c.l.b16 %v885
      %v936 = vunpack.c.l.b16 %v886
      %v937 = vunpack.c.l.b16 %v887
      %v938 = vunpack.c.l.b16 %v888
      %v939 = vunpack.c.l.b16 %v889
      %v940 = vunpack.c.l.b16 %v890
      %v941 = vunpack.c.l.b16 %v891
      %v942 = vunpack.c.l.b16 %v892
      %v943 = vunpack.c.l.b16 %v893
      %v944 = vunpack.c.l.b16 %v894
      %v945 = vunpack.c.l.b16 %v895
      %v946 = vunpack.c.l.b16 %v896
      %v947 = vunpack.c.l.b16 %v897
      %v948 = vunpack.c.l.b16 %v898
      %v949 = vpack.c.b16 %v934, %v933
      %v950 = vpack.c.b16 %v936, %v935
      %v951 = vpack.c.b16 %v938, %v937
      %v952 = vpack.c.b16 %v940, %v939
      %v953 = vpack.c.b16 %v942, %v941
      %v954 = vpack.c.b16 %v944, %v943
      %v955 = vpack.c.b16 %v946, %v945
      %v956 = vpack.c.b16 %v948, %v947
      %965 = vmatprep.subr.bf16.mxu0 0
      %966 = vmatpush1.bf16.msra.mxu0 %v949
      %967 = vmatprep.subr.bf16.mxu0 0
      %968 = vmatpush1.bf16.msra.mxu0 %v950
      %969 = vmatprep.subr.bf16.mxu0 0
      %970 = vmatpush1.bf16.msra.mxu0 %v951
      %971 = vmatprep.subr.bf16.mxu0 0
      %972 = vmatpush1.bf16.msra.mxu0 %v952
      %973 = vmatprep.subr.bf16.mxu0 0
      %974 = vmatpush1.bf16.msra.mxu0 %v953
      %975 = vmatprep.subr.bf16.mxu0 0
      %976 = vmatpush1.bf16.msra.mxu0 %v954
      %977 = vmatprep.subr.bf16.mxu0 0
      %978 = vmatpush1.bf16.msra.mxu0 %v955
      %979 = vmatprep.subr.bf16.mxu0 0
      %980 = vmatpush1.bf16.msra.mxu0 %v956
      %981 = vmatprep.subr.bf16.mxu0 0
      %982 = vmatpush1.bf16.msra.mxu0 0
      %983 = vmatprep.subr.bf16.mxu0 0
      %984 = vmatpush1.bf16.msra.mxu0 0
      %985 = vmatprep.subr.bf16.mxu0 0
      %986 = vmatpush1.bf16.msra.mxu0 0
      %987 = vmatprep.subr.bf16.mxu0 0
      %988 = vmatpush1.bf16.msra.mxu0 0
      %989 = vmatprep.subr.bf16.mxu0 0
      %990 = vmatpush1.bf16.msra.mxu0 0
      %991 = vmatprep.subr.bf16.mxu0 0
      %992 = vmatpush1.bf16.msra.mxu0 0
      %993 = vmatprep.subr.bf16.mxu0 0
      %994 = vmatpush1.bf16.msra.mxu0 0
      %995 = vmatprep.subr.bf16.mxu0 0
      %996 = vmatpush1.bf16.msra.mxu0 0
      %997 = vmatprep.mubr.bf16.mxu0 0
      %998 = vmatmul.mubr.bf16.gmra.mrb[0].mxu0 %v915
      %v999 = vpop.f32.mrb[0].mxu0
      %v1000 = vadd.f32 0.0, %v999
      %v1001 = vpop.f32.mrb[0].mxu0
      %v1002 = vpop.f32.mrb[0].mxu0
      %v1003 = vadd.f32 0.0, %v1002
      %v1004 = vpop.f32.mrb[0].mxu0
      %1005 = vdwg.mxu0
      %v1006 = vadd.f32 %v792, %v1000
      %v1007 = vadd.f32 %v793, %v1003
      %s1008 = smul.addr %s304, 4
      %s1009 = scalar_lea.vmem %s1, %s1008
      %v1010 = vld [vmem:[%s1009] sm:$0x3]
      %v1011 = vld [vmem:[%s1009 + $0x4] sm:$0x3]
      %v1012 = vld [vmem:[%s1009 + $0x8] sm:$0x3]
      %v1013 = vld [vmem:[%s1009 + $0xc] sm:$0x3]
      %s1014 = scalar_lea.vmem %s284, 64
      %v1015 = vld [vmem:[%s1014] sm:$0xf]
      %v1016 = vld [vmem:[%s1014 + $0x4] sm:$0xf]
      %v1017 = vld [vmem:[%s1014 + $0x8] sm:$0xf]
      %v1018 = vld [vmem:[%s1014 + $0xc] sm:$0xf]
      %v1019 = vld [vmem:[%s1014 + $0x10] sm:$0xf]
      %v1020 = vld [vmem:[%s1014 + $0x14] sm:$0xf]
      %v1021 = vld [vmem:[%s1014 + $0x18] sm:$0xf]
      %v1022 = vld [vmem:[%s1014 + $0x1c] sm:$0xf]
      %v1023 = vld [vmem:[%s1014 + $0x20] sm:$0xf]
      %v1024 = vld [vmem:[%s1014 + $0x24] sm:$0xf]
      %v1025 = vld [vmem:[%s1014 + $0x28] sm:$0xf]
      %v1026 = vld [vmem:[%s1014 + $0x2c] sm:$0xf]
      %v1027 = vld [vmem:[%s1014 + $0x30] sm:$0xf]
      %v1028 = vld [vmem:[%s1014 + $0x34] sm:$0xf]
      %v1029 = vld [vmem:[%s1014 + $0x38] sm:$0xf]
      %v1030 = vld [vmem:[%s1014 + $0x3c] sm:$0xf]
      %v1035 = vcombine.low %v1010, %v1011
      %v1036 = vcombine.low %v1012, %v1013
      %v1038 = vunpack.c.l.s4 1983009808
      %v1039 = vunpack.c.0.s8 %v1038
      %v1040 = vlaneseq
      %v1041 = vshrl.u32 %v1040, 7
      %v1042 = vsub.s32 %v1039, %v1041
      %v1043 = vrot.slane %v1035, %v1042
      %v1045 = vunpack.c.l.s4 1983009808
      %v1046 = vunpack.c.0.s8 %v1045
      %v1047 = vlaneseq
      %v1048 = vshrl.u32 %v1047, 7
      %v1049 = vsub.s32 %v1046, %v1048
      %v1050 = vrot.slane %v1036, %v1049
      %v1051 = vcombine.low %v1043, %v1050
      %v1069 = vunpack.c.l.b16 %v1015
      %v1070 = vunpack.c.l.b16 %v1016
      %v1071 = vunpack.c.l.b16 %v1017
      %v1072 = vunpack.c.l.b16 %v1018
      %v1073 = vunpack.c.l.b16 %v1019
      %v1074 = vunpack.c.l.b16 %v1020
      %v1075 = vunpack.c.l.b16 %v1021
      %v1076 = vunpack.c.l.b16 %v1022
      %v1077 = vunpack.c.l.b16 %v1023
      %v1078 = vunpack.c.l.b16 %v1024
      %v1079 = vunpack.c.l.b16 %v1025
      %v1080 = vunpack.c.l.b16 %v1026
      %v1081 = vunpack.c.l.b16 %v1027
      %v1082 = vunpack.c.l.b16 %v1028
      %v1083 = vunpack.c.l.b16 %v1029
      %v1084 = vunpack.c.l.b16 %v1030
      %v1085 = vpack.c.b16 %v1070, %v1069
      %v1086 = vpack.c.b16 %v1072, %v1071
      %v1087 = vpack.c.b16 %v1074, %v1073
      %v1088 = vpack.c.b16 %v1076, %v1075
      %v1089 = vpack.c.b16 %v1078, %v1077
      %v1090 = vpack.c.b16 %v1080, %v1079
      %v1091 = vpack.c.b16 %v1082, %v1081
      %v1092 = vpack.c.b16 %v1084, %v1083
      %1101 = vmatprep.subr.bf16.mxu0 0
      %1102 = vmatpush1.bf16.msra.mxu0 %v1085
      %1103 = vmatprep.subr.bf16.mxu0 0
      %1104 = vmatpush1.bf16.msra.mxu0 %v1086
      %1105 = vmatprep.subr.bf16.mxu0 0
      %1106 = vmatpush1.bf16.msra.mxu0 %v1087
      %1107 = vmatprep.subr.bf16.mxu0 0
      %1108 = vmatpush1.bf16.msra.mxu0 %v1088
      %1109 = vmatprep.subr.bf16.mxu0 0
      %1110 = vmatpush1.bf16.msra.mxu0 %v1089
      %1111 = vmatprep.subr.bf16.mxu0 0
      %1112 = vmatpush1.bf16.msra.mxu0 %v1090
      %1113 = vmatprep.subr.bf16.mxu0 0
      %1114 = vmatpush1.bf16.msra.mxu0 %v1091
      %1115 = vmatprep.subr.bf16.mxu0 0
      %1116 = vmatpush1.bf16.msra.mxu0 %v1092
      %1117 = vmatprep.subr.bf16.mxu0 0
      %1118 = vmatpush1.bf16.msra.mxu0 0
      %1119 = vmatprep.subr.bf16.mxu0 0
      %1120 = vmatpush1.bf16.msra.mxu0 0
      %1121 = vmatprep.subr.bf16.mxu0 0
      %1122 = vmatpush1.bf16.msra.mxu0 0
      %1123 = vmatprep.subr.bf16.mxu0 0
      %1124 = vmatpush1.bf16.msra.mxu0 0
      %1125 = vmatprep.subr.bf16.mxu0 0
      %1126 = vmatpush1.bf16.msra.mxu0 0
      %1127 = vmatprep.subr.bf16.mxu0 0
      %1128 = vmatpush1.bf16.msra.mxu0 0
      %1129 = vmatprep.subr.bf16.mxu0 0
      %1130 = vmatpush1.bf16.msra.mxu0 0
      %1131 = vmatprep.subr.bf16.mxu0 0
      %1132 = vmatpush1.bf16.msra.mxu0 0
      %1133 = vmatprep.mubr.bf16.mxu0 0
      %1134 = vmatmul.mubr.bf16.gmra.mrb[0].mxu0 %v1051
      %v1135 = vpop.f32.mrb[0].mxu0
      %v1136 = vadd.f32 0.0, %v1135
      %v1137 = vpop.f32.mrb[0].mxu0
      %v1138 = vpop.f32.mrb[0].mxu0
      %v1139 = vadd.f32 0.0, %v1138
      %v1140 = vpop.f32.mrb[0].mxu0
      %1141 = vdwg.mxu0
      %v1142 = vadd.f32 %v1006, %v1136
      %v1143 = vadd.f32 %v1007, %v1139
      %s1144 = smul.addr %s657, 4
      %s1145 = scalar_lea.vmem %s1, %s1144
      %v1146 = vld [vmem:[%s1145] sm:$0x3]
      %v1147 = vld [vmem:[%s1145 + $0x4] sm:$0x3]
      %v1148 = vld [vmem:[%s1145 + $0x8] sm:$0x3]
      %v1149 = vld [vmem:[%s1145 + $0xc] sm:$0x3]
      %s1150 = scalar_lea.vmem %s284, 448
      %v1151 = vld [vmem:[%s1150] sm:$0xf]
      %v1152 = vld [vmem:[%s1150 + $0x4] sm:$0xf]
      %v1153 = vld [vmem:[%s1150 + $0x8] sm:$0xf]
      %v1154 = vld [vmem:[%s1150 + $0xc] sm:$0xf]
      %v1155 = vld [vmem:[%s1150 + $0x10] sm:$0xf]
      %v1156 = vld [vmem:[%s1150 + $0x14] sm:$0xf]
      %v1157 = vld [vmem:[%s1150 + $0x18] sm:$0xf]
      %v1158 = vld [vmem:[%s1150 + $0x1c] sm:$0xf]
      %v1159 = vld [vmem:[%s1150 + $0x20] sm:$0xf]
      %v1160 = vld [vmem:[%s1150 + $0x24] sm:$0xf]
      %v1161 = vld [vmem:[%s1150 + $0x28] sm:$0xf]
      %v1162 = vld [vmem:[%s1150 + $0x2c] sm:$0xf]
      %v1163 = vld [vmem:[%s1150 + $0x30] sm:$0xf]
      %v1164 = vld [vmem:[%s1150 + $0x34] sm:$0xf]
      %v1165 = vld [vmem:[%s1150 + $0x38] sm:$0xf]
      %v1166 = vld [vmem:[%s1150 + $0x3c] sm:$0xf]
      %v1171 = vcombine.low %v1146, %v1147
      %v1172 = vcombine.low %v1148, %v1149
      %v1174 = vunpack.c.l.s4 1983009808
      %v1175 = vunpack.c.0.s8 %v1174
      %v1176 = vlaneseq
      %v1177 = vshrl.u32 %v1176, 7
      %v1178 = vsub.s32 %v1175, %v1177
      %v1179 = vrot.slane %v1171, %v1178
      %v1181 = vunpack.c.l.s4 1983009808
      %v1182 = vunpack.c.0.s8 %v1181
      %v1183 = vlaneseq
      %v1184 = vshrl.u32 %v1183, 7
      %v1185 = vsub.s32 %v1182, %v1184
      %v1186 = vrot.slane %v1172, %v1185
      %v1187 = vcombine.low %v1179, %v1186
      %v1205 = vunpack.c.l.b16 %v1151
      %v1206 = vunpack.c.l.b16 %v1152
      %v1207 = vunpack.c.l.b16 %v1153
      %v1208 = vunpack.c.l.b16 %v1154
      %v1209 = vunpack.c.l.b16 %v1155
      %v1210 = vunpack.c.l.b16 %v1156
      %v1211 = vunpack.c.l.b16 %v1157
      %v1212 = vunpack.c.l.b16 %v1158
      %v1213 = vunpack.c.l.b16 %v1159
      %v1214 = vunpack.c.l.b16 %v1160
      %v1215 = vunpack.c.l.b16 %v1161
      %v1216 = vunpack.c.l.b16 %v1162
      %v1217 = vunpack.c.l.b16 %v1163
      %v1218 = vunpack.c.l.b16 %v1164
      %v1219 = vunpack.c.l.b16 %v1165
      %v1220 = vunpack.c.l.b16 %v1166
      %v1221 = vpack.c.b16 %v1206, %v1205
      %v1222 = vpack.c.b16 %v1208, %v1207
      %v1223 = vpack.c.b16 %v1210, %v1209
      %v1224 = vpack.c.b16 %v1212, %v1211
      %v1225 = vpack.c.b16 %v1214, %v1213
      %v1226 = vpack.c.b16 %v1216, %v1215
      %v1227 = vpack.c.b16 %v1218, %v1217
      %v1228 = vpack.c.b16 %v1220, %v1219
      %1237 = vmatprep.subr.bf16.mxu0 0
      %1238 = vmatpush1.bf16.msra.mxu0 %v1221
      %1239 = vmatprep.subr.bf16.mxu0 0
      %1240 = vmatpush1.bf16.msra.mxu0 %v1222
      %1241 = vmatprep.subr.bf16.mxu0 0
      %1242 = vmatpush1.bf16.msra.mxu0 %v1223
      %1243 = vmatprep.subr.bf16.mxu0 0
      %1244 = vmatpush1.bf16.msra.mxu0 %v1224
      %1245 = vmatprep.subr.bf16.mxu0 0
      %1246 = vmatpush1.bf16.msra.mxu0 %v1225
      %1247 = vmatprep.subr.bf16.mxu0 0
      %1248 = vmatpush1.bf16.msra.mxu0 %v1226
      %1249 = vmatprep.subr.bf16.mxu0 0
      %1250 = vmatpush1.bf16.msra.mxu0 %v1227
      %1251 = vmatprep.subr.bf16.mxu0 0
      %1252 = vmatpush1.bf16.msra.mxu0 %v1228
      %1253 = vmatprep.subr.bf16.mxu0 0
      %1254 = vmatpush1.bf16.msra.mxu0 0
      %1255 = vmatprep.subr.bf16.mxu0 0
      %1256 = vmatpush1.bf16.msra.mxu0 0
      %1257 = vmatprep.subr.bf16.mxu0 0
      %1258 = vmatpush1.bf16.msra.mxu0 0
      %1259 = vmatprep.subr.bf16.mxu0 0
      %1260 = vmatpush1.bf16.msra.mxu0 0
      %1261 = vmatprep.subr.bf16.mxu0 0
      %1262 = vmatpush1.bf16.msra.mxu0 0
      %1263 = vmatprep.subr.bf16.mxu0 0
      %1264 = vmatpush1.bf16.msra.mxu0 0
      %1265 = vmatprep.subr.bf16.mxu0 0
      %1266 = vmatpush1.bf16.msra.mxu0 0
      %1267 = vmatprep.subr.bf16.mxu0 0
      %1268 = vmatpush1.bf16.msra.mxu0 0
      %1269 = vmatprep.mubr.bf16.mxu0 0
      %1270 = vmatmul.mubr.bf16.gmra.mrb[0].mxu0 %v1187
      %v1271 = vpop.f32.mrb[0].mxu0
      %v1272 = vadd.f32 0.0, %v1271
      %v1273 = vpop.f32.mrb[0].mxu0
      %v1274 = vpop.f32.mrb[0].mxu0
      %v1275 = vadd.f32 0.0, %v1274
      %v1276 = vpop.f32.mrb[0].mxu0
      %1277 = vdwg.mxu0
      %v1278 = vadd.f32 %v1142, %v1272
      %v1279 = vadd.f32 %v1143, %v1275
      %s1280 = smul.addr %s304, 4
      %s1281 = scalar_lea.vmem %s2, %s1280
      %v1282 = vld [vmem:[%s1281] sm:$0x7]
      %v1283 = vld [vmem:[%s1281 + $0x4] sm:$0x7]
      %v1284 = vld [vmem:[%s1281 + $0x8] sm:$0x7]
      %v1285 = vld [vmem:[%s1281 + $0xc] sm:$0x7]
      %s1286 = scalar_lea.vmem %s284, 192
      %v1287 = vld [vmem:[%s1286] sm:$0xf]
      %v1288 = vld [vmem:[%s1286 + $0x4] sm:$0xf]
      %v1289 = vld [vmem:[%s1286 + $0x8] sm:$0xf]
      %v1290 = vld [vmem:[%s1286 + $0xc] sm:$0xf]
      %v1291 = vld [vmem:[%s1286 + $0x10] sm:$0xf]
      %v1292 = vld [vmem:[%s1286 + $0x14] sm:$0xf]
      %v1293 = vld [vmem:[%s1286 + $0x18] sm:$0xf]
      %v1294 = vld [vmem:[%s1286 + $0x1c] sm:$0xf]
      %v1295 = vld [vmem:[%s1286 + $0x20] sm:$0xf]
      %v1296 = vld [vmem:[%s1286 + $0x24] sm:$0xf]
      %v1297 = vld [vmem:[%s1286 + $0x28] sm:$0xf]
      %v1298 = vld [vmem:[%s1286 + $0x2c] sm:$0xf]
      %v1299 = vld [vmem:[%s1286 + $0x30] sm:$0xf]
      %v1300 = vld [vmem:[%s1286 + $0x34] sm:$0xf]
      %v1301 = vld [vmem:[%s1286 + $0x38] sm:$0xf]
      %v1302 = vld [vmem:[%s1286 + $0x3c] sm:$0xf]
      %v1307 = vcombine.low %v1282, %v1283
      %v1308 = vcombine.low %v1284, %v1285
      %v1310 = vunpack.c.l.s4 1983009808
      %v1311 = vunpack.c.0.s8 %v1310
      %v1312 = vlaneseq
      %v1313 = vshrl.u32 %v1312, 7
      %v1314 = vsub.s32 %v1311, %v1313
      %v1315 = vrot.slane %v1307, %v1314
      %v1317 = vunpack.c.l.s4 1983009808
      %v1318 = vunpack.c.0.s8 %v1317
      %v1319 = vlaneseq
      %v1320 = vshrl.u32 %v1319, 7
      %v1321 = vsub.s32 %v1318, %v1320
      %v1322 = vrot.slane %v1308, %v1321
      %v1323 = vcombine.low %v1315, %v1322
      %v1341 = vunpack.c.l.b16 %v1287
      %v1342 = vunpack.c.l.b16 %v1288
      %v1343 = vunpack.c.l.b16 %v1289
      %v1344 = vunpack.c.l.b16 %v1290
      %v1345 = vunpack.c.l.b16 %v1291
      %v1346 = vunpack.c.l.b16 %v1292
      %v1347 = vunpack.c.l.b16 %v1293
      %v1348 = vunpack.c.l.b16 %v1294
      %v1349 = vunpack.c.l.b16 %v1295
      %v1350 = vunpack.c.l.b16 %v1296
      %v1351 = vunpack.c.l.b16 %v1297
      %v1352 = vunpack.c.l.b16 %v1298
      %v1353 = vunpack.c.l.b16 %v1299
      %v1354 = vunpack.c.l.b16 %v1300
      %v1355 = vunpack.c.l.b16 %v1301
      %v1356 = vunpack.c.l.b16 %v1302
      %v1357 = vpack.c.b16 %v1342, %v1341
      %v1358 = vpack.c.b16 %v1344, %v1343
      %v1359 = vpack.c.b16 %v1346, %v1345
      %v1360 = vpack.c.b16 %v1348, %v1347
      %v1361 = vpack.c.b16 %v1350, %v1349
      %v1362 = vpack.c.b16 %v1352, %v1351
      %v1363 = vpack.c.b16 %v1354, %v1353
      %v1364 = vpack.c.b16 %v1356, %v1355
      %1373 = vmatprep.subr.bf16.mxu0 0
      %1374 = vmatpush1.bf16.msra.mxu0 %v1357
      %1375 = vmatprep.subr.bf16.mxu0 0
      %1376 = vmatpush1.bf16.msra.mxu0 %v1358
      %1377 = vmatprep.subr.bf16.mxu0 0
      %1378 = vmatpush1.bf16.msra.mxu0 %v1359
      %1379 = vmatprep.subr.bf16.mxu0 0
      %1380 = vmatpush1.bf16.msra.mxu0 %v1360
      %1381 = vmatprep.subr.bf16.mxu0 0
      %1382 = vmatpush1.bf16.msra.mxu0 %v1361
      %1383 = vmatprep.subr.bf16.mxu0 0
      %1384 = vmatpush1.bf16.msra.mxu0 %v1362
      %1385 = vmatprep.subr.bf16.mxu0 0
      %1386 = vmatpush1.bf16.msra.mxu0 %v1363
      %1387 = vmatprep.subr.bf16.mxu0 0
      %1388 = vmatpush1.bf16.msra.mxu0 %v1364
      %1389 = vmatprep.subr.bf16.mxu0 0
      %1390 = vmatpush1.bf16.msra.mxu0 0
      %1391 = vmatprep.subr.bf16.mxu0 0
      %1392 = vmatpush1.bf16.msra.mxu0 0
      %1393 = vmatprep.subr.bf16.mxu0 0
      %1394 = vmatpush1.bf16.msra.mxu0 0
      %1395 = vmatprep.subr.bf16.mxu0 0
      %1396 = vmatpush1.bf16.msra.mxu0 0
      %1397 = vmatprep.subr.bf16.mxu0 0
      %1398 = vmatpush1.bf16.msra.mxu0 0
      %1399 = vmatprep.subr.bf16.mxu0 0
      %1400 = vmatpush1.bf16.msra.mxu0 0
      %1401 = vmatprep.subr.bf16.mxu0 0
      %1402 = vmatpush1.bf16.msra.mxu0 0
      %1403 = vmatprep.subr.bf16.mxu0 0
      %1404 = vmatpush1.bf16.msra.mxu0 0
      %1405 = vmatprep.mubr.bf16.mxu0 0
      %1406 = vmatmul.mubr.bf16.gmra.mrb[0].mxu0 %v1323
      %v1407 = vpop.f32.mrb[0].mxu0
      %v1408 = vadd.f32 0.0, %v1407
      %v1409 = vpop.f32.mrb[0].mxu0
      %v1410 = vpop.f32.mrb[0].mxu0
      %v1411 = vadd.f32 0.0, %v1410
      %v1412 = vpop.f32.mrb[0].mxu0
      %1413 = vdwg.mxu0
      %v1414 = vadd.f32 %v1278, %v1408
      %v1415 = vadd.f32 %v1279, %v1411
      %v1417 = vunpack.c.l.s4 1983009808
      %v1418 = vunpack.c.0.s8 %v1417
      %v1419 = vlaneseq
      %v1420 = vshrl.u32 %v1419, 7
      %v1421 = vsub.s32 %v1418, %v1420
      %v1422 = vrot.slane %v1282, %v1421
      %v1423 = vcombine.high %v1422, %v1422
      %v1425 = vunpack.c.l.s4 1983009808
      %v1426 = vunpack.c.0.s8 %v1425
      %v1427 = vlaneseq
      %v1428 = vshrl.u32 %v1427, 7
      %v1429 = vsub.s32 %v1426, %v1428
      %v1430 = vrot.slane %v1283, %v1429
      %v1431 = vcombine.high %v1430, %v1430
      %v1433 = vunpack.c.l.s4 1983009808
      %v1434 = vunpack.c.0.s8 %v1433
      %v1435 = vlaneseq
      %v1436 = vshrl.u32 %v1435, 7
      %v1437 = vsub.s32 %v1434, %v1436
      %v1438 = vrot.slane %v1284, %v1437
      %v1439 = vcombine.high %v1438, %v1438
      %v1441 = vunpack.c.l.s4 1983009808
      %v1442 = vunpack.c.0.s8 %v1441
      %v1443 = vlaneseq
      %v1444 = vshrl.u32 %v1443, 7
      %v1445 = vsub.s32 %v1442, %v1444
      %v1446 = vrot.slane %v1285, %v1445
      %v1447 = vcombine.high %v1446, %v1446
      %v1449 = vshrl.u32 %v1422, 16
      %v1451 = vrot.slane %v1449, 6
      %v1452 = vshll.u32 %v1422, 16
      %v1454 = vrot.slane %v1452, 7
      %v1455 = vor.u32 %v1451, %v1454
      %v1456 = vrot.slane %v1455, 2
      %v1458 = vshll.u32 %v1423, 16
      %v1460 = vrot.slane %v1458, 7
      %v1461 = vsel %vm369, %v1456, %v1460
      %v1463 = vshrl.u32 %v1430, 16
      %v1465 = vrot.slane %v1463, 6
      %v1466 = vshll.u32 %v1430, 16
      %v1468 = vrot.slane %v1466, 7
      %v1469 = vor.u32 %v1465, %v1468
      %v1470 = vrot.slane %v1469, 2
      %v1472 = vshll.u32 %v1431, 16
      %v1474 = vrot.slane %v1472, 7
      %v1475 = vsel %vm369, %v1470, %v1474
      %v1477 = vshrl.u32 %v1438, 16
      %v1479 = vrot.slane %v1477, 6
      %v1480 = vshll.u32 %v1438, 16
      %v1482 = vrot.slane %v1480, 7
      %v1483 = vor.u32 %v1479, %v1482
      %v1484 = vrot.slane %v1483, 2
      %v1486 = vshll.u32 %v1439, 16
      %v1488 = vrot.slane %v1486, 7
      %v1489 = vsel %vm369, %v1484, %v1488
      %v1491 = vshrl.u32 %v1446, 16
      %v1493 = vrot.slane %v1491, 6
      %v1494 = vshll.u32 %v1446, 16
      %v1496 = vrot.slane %v1494, 7
      %v1497 = vor.u32 %v1493, %v1496
      %v1498 = vrot.slane %v1497, 2
      %v1500 = vshll.u32 %v1447, 16
      %v1502 = vrot.slane %v1500, 7
      %v1503 = vsel %vm369, %v1498, %v1502
      %s1504 = scalar_lea.vmem %s284, 320
      %v1505 = vld [vmem:[%s1504] sm:$0xf]
      %v1506 = vld [vmem:[%s1504 + $0x4] sm:$0xf]
      %v1507 = vld [vmem:[%s1504 + $0x8] sm:$0xf]
      %v1508 = vld [vmem:[%s1504 + $0xc] sm:$0xf]
      %v1509 = vld [vmem:[%s1504 + $0x10] sm:$0xf]
      %v1510 = vld [vmem:[%s1504 + $0x14] sm:$0xf]
      %v1511 = vld [vmem:[%s1504 + $0x18] sm:$0xf]
      %v1512 = vld [vmem:[%s1504 + $0x1c] sm:$0xf]
      %v1513 = vld [vmem:[%s1504 + $0x20] sm:$0xf]
      %v1514 = vld [vmem:[%s1504 + $0x24] sm:$0xf]
      %v1515 = vld [vmem:[%s1504 + $0x28] sm:$0xf]
      %v1516 = vld [vmem:[%s1504 + $0x2c] sm:$0xf]
      %v1517 = vld [vmem:[%s1504 + $0x30] sm:$0xf]
      %v1518 = vld [vmem:[%s1504 + $0x34] sm:$0xf]
      %v1519 = vld [vmem:[%s1504 + $0x38] sm:$0xf]
      %v1520 = vld [vmem:[%s1504 + $0x3c] sm:$0xf]
      %v1521 = vcombine.low %v1461, %v1475
      %v1522 = vcombine.low %v1489, %v1503
      %v1524 = vunpack.c.l.s4 1983009808
      %v1525 = vunpack.c.0.s8 %v1524
      %v1526 = vlaneseq
      %v1527 = vshrl.u32 %v1526, 7
      %v1528 = vsub.s32 %v1525, %v1527
      %v1529 = vrot.slane %v1521, %v1528
      %v1531 = vunpack.c.l.s4 1983009808
      %v1532 = vunpack.c.0.s8 %v1531
      %v1533 = vlaneseq
      %v1534 = vshrl.u32 %v1533, 7
      %v1535 = vsub.s32 %v1532, %v1534
      %v1536 = vrot.slane %v1522, %v1535
      %v1537 = vcombine.low %v1529, %v1536
      %v1555 = vunpack.c.l.b16 %v1505
      %v1556 = vunpack.c.l.b16 %v1506
      %v1557 = vunpack.c.l.b16 %v1507
      %v1558 = vunpack.c.l.b16 %v1508
      %v1559 = vunpack.c.l.b16 %v1509
      %v1560 = vunpack.c.l.b16 %v1510
      %v1561 = vunpack.c.l.b16 %v1511
      %v1562 = vunpack.c.l.b16 %v1512
      %v1563 = vunpack.c.l.b16 %v1513
      %v1564 = vunpack.c.l.b16 %v1514
      %v1565 = vunpack.c.l.b16 %v1515
      %v1566 = vunpack.c.l.b16 %v1516
      %v1567 = vunpack.c.l.b16 %v1517
      %v1568 = vunpack.c.l.b16 %v1518
      %v1569 = vunpack.c.l.b16 %v1519
      %v1570 = vunpack.c.l.b16 %v1520
      %v1571 = vpack.c.b16 %v1556, %v1555
      %v1572 = vpack.c.b16 %v1558, %v1557
      %v1573 = vpack.c.b16 %v1560, %v1559
      %v1574 = vpack.c.b16 %v1562, %v1561
      %v1575 = vpack.c.b16 %v1564, %v1563
      %v1576 = vpack.c.b16 %v1566, %v1565
      %v1577 = vpack.c.b16 %v1568, %v1567
      %v1578 = vpack.c.b16 %v1570, %v1569
      %1587 = vmatprep.subr.bf16.mxu0 0
      %1588 = vmatpush1.bf16.msra.mxu0 %v1571
      %1589 = vmatprep.subr.bf16.mxu0 0
      %1590 = vmatpush1.bf16.msra.mxu0 %v1572
      %1591 = vmatprep.subr.bf16.mxu0 0
      %1592 = vmatpush1.bf16.msra.mxu0 %v1573
      %1593 = vmatprep.subr.bf16.mxu0 0
      %1594 = vmatpush1.bf16.msra.mxu0 %v1574
      %1595 = vmatprep.subr.bf16.mxu0 0
      %1596 = vmatpush1.bf16.msra.mxu0 %v1575
      %1597 = vmatprep.subr.bf16.mxu0 0
      %1598 = vmatpush1.bf16.msra.mxu0 %v1576
      %1599 = vmatprep.subr.bf16.mxu0 0
      %1600 = vmatpush1.bf16.msra.mxu0 %v1577
      %1601 = vmatprep.subr.bf16.mxu0 0
      %1602 = vmatpush1.bf16.msra.mxu0 %v1578
      %1603 = vmatprep.subr.bf16.mxu0 0
      %1604 = vmatpush1.bf16.msra.mxu0 0
      %1605 = vmatprep.subr.bf16.mxu0 0
      %1606 = vmatpush1.bf16.msra.mxu0 0
      %1607 = vmatprep.subr.bf16.mxu0 0
      %1608 = vmatpush1.bf16.msra.mxu0 0
      %1609 = vmatprep.subr.bf16.mxu0 0
      %1610 = vmatpush1.bf16.msra.mxu0 0
      %1611 = vmatprep.subr.bf16.mxu0 0
      %1612 = vmatpush1.bf16.msra.mxu0 0
      %1613 = vmatprep.subr.bf16.mxu0 0
      %1614 = vmatpush1.bf16.msra.mxu0 0
      %1615 = vmatprep.subr.bf16.mxu0 0
      %1616 = vmatpush1.bf16.msra.mxu0 0
      %1617 = vmatprep.subr.bf16.mxu0 0
      %1618 = vmatpush1.bf16.msra.mxu0 0
      %1619 = vmatprep.mubr.bf16.mxu0 0
      %1620 = vmatmul.mubr.bf16.gmra.mrb[0].mxu0 %v1537
      %v1621 = vpop.f32.mrb[0].mxu0
      %v1622 = vadd.f32 0.0, %v1621
      %v1623 = vpop.f32.mrb[0].mxu0
      %v1624 = vpop.f32.mrb[0].mxu0
      %v1625 = vadd.f32 0.0, %v1624
      %v1626 = vpop.f32.mrb[0].mxu0
      %1627 = vdwg.mxu0
      %v1628 = vadd.f32 %v1414, %v1622
      %v1629 = vadd.f32 %v1415, %v1625
      %s1630 = smul.addr %s304, 4
      %s1631 = scalar_lea.vmem %s3, %s1630
      %v1632 = vld [vmem:[%s1631] sm:$0x3]
      %v1633 = vld [vmem:[%s1631 + $0x4] sm:$0x3]
      %v1634 = vld [vmem:[%s1631 + $0x8] sm:$0x3]
      %v1635 = vld [vmem:[%s1631 + $0xc] sm:$0x3]
      %s1636 = scalar_lea.vmem %s284, 256
      %v1637 = vld [vmem:[%s1636] sm:$0xf]
      %v1638 = vld [vmem:[%s1636 + $0x4] sm:$0xf]
      %v1639 = vld [vmem:[%s1636 + $0x8] sm:$0xf]
      %v1640 = vld [vmem:[%s1636 + $0xc] sm:$0xf]
      %v1641 = vld [vmem:[%s1636 + $0x10] sm:$0xf]
      %v1642 = vld [vmem:[%s1636 + $0x14] sm:$0xf]
      %v1643 = vld [vmem:[%s1636 + $0x18] sm:$0xf]
      %v1644 = vld [vmem:[%s1636 + $0x1c] sm:$0xf]
      %v1645 = vld [vmem:[%s1636 + $0x20] sm:$0xf]
      %v1646 = vld [vmem:[%s1636 + $0x24] sm:$0xf]
      %v1647 = vld [vmem:[%s1636 + $0x28] sm:$0xf]
      %v1648 = vld [vmem:[%s1636 + $0x2c] sm:$0xf]
      %v1649 = vld [vmem:[%s1636 + $0x30] sm:$0xf]
      %v1650 = vld [vmem:[%s1636 + $0x34] sm:$0xf]
      %v1651 = vld [vmem:[%s1636 + $0x38] sm:$0xf]
      %v1652 = vld [vmem:[%s1636 + $0x3c] sm:$0xf]
      %v1657 = vcombine.low %v1632, %v1633
      %v1658 = vcombine.low %v1634, %v1635
      %v1660 = vunpack.c.l.s4 1983009808
      %v1661 = vunpack.c.0.s8 %v1660
      %v1662 = vlaneseq
      %v1663 = vshrl.u32 %v1662, 7
      %v1664 = vsub.s32 %v1661, %v1663
      %v1665 = vrot.slane %v1657, %v1664
      %v1667 = vunpack.c.l.s4 1983009808
      %v1668 = vunpack.c.0.s8 %v1667
      %v1669 = vlaneseq
      %v1670 = vshrl.u32 %v1669, 7
      %v1671 = vsub.s32 %v1668, %v1670
      %v1672 = vrot.slane %v1658, %v1671
      %v1673 = vcombine.low %v1665, %v1672
      %v1691 = vunpack.c.l.b16 %v1637
      %v1692 = vunpack.c.l.b16 %v1638
      %v1693 = vunpack.c.l.b16 %v1639
      %v1694 = vunpack.c.l.b16 %v1640
      %v1695 = vunpack.c.l.b16 %v1641
      %v1696 = vunpack.c.l.b16 %v1642
      %v1697 = vunpack.c.l.b16 %v1643
      %v1698 = vunpack.c.l.b16 %v1644
      %v1699 = vunpack.c.l.b16 %v1645
      %v1700 = vunpack.c.l.b16 %v1646
      %v1701 = vunpack.c.l.b16 %v1647
      %v1702 = vunpack.c.l.b16 %v1648
      %v1703 = vunpack.c.l.b16 %v1649
      %v1704 = vunpack.c.l.b16 %v1650
      %v1705 = vunpack.c.l.b16 %v1651
      %v1706 = vunpack.c.l.b16 %v1652
      %v1707 = vpack.c.b16 %v1692, %v1691
      %v1708 = vpack.c.b16 %v1694, %v1693
      %v1709 = vpack.c.b16 %v1696, %v1695
      %v1710 = vpack.c.b16 %v1698, %v1697
      %v1711 = vpack.c.b16 %v1700, %v1699
      %v1712 = vpack.c.b16 %v1702, %v1701
      %v1713 = vpack.c.b16 %v1704, %v1703
      %v1714 = vpack.c.b16 %v1706, %v1705
      %1723 = vmatprep.subr.bf16.mxu0 0
      %1724 = vmatpush1.bf16.msra.mxu0 %v1707
      %1725 = vmatprep.subr.bf16.mxu0 0
      %1726 = vmatpush1.bf16.msra.mxu0 %v1708
      %1727 = vmatprep.subr.bf16.mxu0 0
      %1728 = vmatpush1.bf16.msra.mxu0 %v1709
      %1729 = vmatprep.subr.bf16.mxu0 0
      %1730 = vmatpush1.bf16.msra.mxu0 %v1710
      %1731 = vmatprep.subr.bf16.mxu0 0
      %1732 = vmatpush1.bf16.msra.mxu0 %v1711
      %1733 = vmatprep.subr.bf16.mxu0 0
      %1734 = vmatpush1.bf16.msra.mxu0 %v1712
      %1735 = vmatprep.subr.bf16.mxu0 0
      %1736 = vmatpush1.bf16.msra.mxu0 %v1713
      %1737 = vmatprep.subr.bf16.mxu0 0
      %1738 = vmatpush1.bf16.msra.mxu0 %v1714
      %1739 = vmatprep.subr.bf16.mxu0 0
      %1740 = vmatpush1.bf16.msra.mxu0 0
      %1741 = vmatprep.subr.bf16.mxu0 0
      %1742 = vmatpush1.bf16.msra.mxu0 0
      %1743 = vmatprep.subr.bf16.mxu0 0
      %1744 = vmatpush1.bf16.msra.mxu0 0
      %1745 = vmatprep.subr.bf16.mxu0 0
      %1746 = vmatpush1.bf16.msra.mxu0 0
      %1747 = vmatprep.subr.bf16.mxu0 0
      %1748 = vmatpush1.bf16.msra.mxu0 0
      %1749 = vmatprep.subr.bf16.mxu0 0
      %1750 = vmatpush1.bf16.msra.mxu0 0
      %1751 = vmatprep.subr.bf16.mxu0 0
      %1752 = vmatpush1.bf16.msra.mxu0 0
      %1753 = vmatprep.subr.bf16.mxu0 0
      %1754 = vmatpush1.bf16.msra.mxu0 0
      %1755 = vmatprep.mubr.bf16.mxu0 0
      %1756 = vmatmul.mubr.bf16.gmra.mrb[0].mxu0 %v1673
      %v1757 = vpop.f32.mrb[0].mxu0
      %v1758 = vadd.f32 0.0, %v1757
      %v1759 = vpop.f32.mrb[0].mxu0
      %v1760 = vpop.f32.mrb[0].mxu0
      %v1761 = vadd.f32 0.0, %v1760
      %v1762 = vpop.f32.mrb[0].mxu0
      %1763 = vdwg.mxu0
      %v1764 = vadd.f32 %v1628, %v1758
      %v1765 = vadd.f32 %v1629, %v1761
      %v1766 = vld [vmem:[%s287] sm:$0x1]
      %v1768 = vlaneseq
      %v1769 = vshrl.u32 %v1768, 7
      %v1770 = vsub.s32 0, %v1769
      %v1771 = vrot.slane %v1766, %v1770
      %v1773 = vadd.f32 %v1764, %v1771
      %v1774 = vadd.f32 %v1765, %v1771
      %v1777 = vcombine.high %v1773, %v1773
      %v1778 = vcombine.high %v1774, %v1774
      %v1781 = vmax.f32 %v1773, 0.0
      %v1782 = vmax.f32 %v1777, 0.0
      %v1783 = vmax.f32 %v1774, 0.0
      %v1784 = vmax.f32 %v1778, 0.0
      %v1785 = vpack.c.bf16 %v1781, %v1781
      %v1786 = vpack.c.bf16 %v1782, %v1782
      %v1787 = vpack.c.bf16 %v1783, %v1783
      %v1788 = vpack.c.bf16 %v1784, %v1784
      %1789 = vst [vmem:[%s299] sm:$0x3] %v1785
      %1790 = vst [vmem:[%s299 + $0x2] sm:$0x3] %v1786
      %1791 = vst [vmem:[%s299 + $0x4] sm:$0x3] %v1787
      %1792 = vst [vmem:[%s299 + $0x6] sm:$0x3] %v1788
      %s1793 = smul.u32 4, %s24
      %p1794 = scmp.lt.s32.totalorder %s23, 1
      %s1795 = scalar_select %p1794, %s23, 1
      %p1796 = scmp.lt.s32.totalorder %s1793, 3
      %s1797 = scalar_select %p1796, %s1793, 3
      %p1798 = scmp.lt.s32.totalorder %s22, 0
      %s1799 = scalar_select %p1798, %s22, 0
      %s1800 = sadd.s32 %s1799, %s1797
      %s1801 = smul.addr %s1795, 4
      %s1802 = sadd.s32 %s1800, %s1801
      %s1803 = smul.addr %s1802, 2
      %s1804 = scalar_lea.vmem %s6, %s1803
      // Predicated region
      $region45: #{cnn_forward.14} parent=43 // pred_check
        %p1805 = pneg %p194
      $region46: #{cnn_forward.14} parent=43 // pred_check_branch
        %1807 = sbr.rel (%p1805) target = $region48
      $region47: #{cnn_forward.14} parent=43 // pred_region
        %s1808 = smul.u32 4, %s24
      $region48: #{cnn_forward.14} parent=43 // pred_fallthru
        _
    $region44: #{cnn_forward.14} parent=5 // pred_fallthru
      _
    %p1809 = scmp.le.s32.totalorder 2, %s12
    // Predicated region
    $region49: #{cnn_forward.14} parent=5 // pred_check
      %p1810 = pneg %p1809
    $region50: #{cnn_forward.14} parent=5 // pred_check_branch
      %1812 = sbr.rel (%p1810) target = $region52
    $region51: #{cnn_forward.14} parent=5 // pred_region
      %s1813 = ssub.s32 %s12, 2
      // Predicated region
      $region53: #{cnn_forward.14} parent=51 // pred_check
        %p1814 = pneg %p200
      $region54: #{cnn_forward.14} parent=51 // pred_check_branch
        %1816 = sbr.rel (%p1814) target = $region56
      $region55: #{cnn_forward.14} parent=51 // pred_region
        %s1817 = smul.u32 4, %s27
        %p1818 = scmp.lt.s32.totalorder %s26, 1
        %s1819 = scalar_select %p1818, %s26, 1
        %p1820 = scmp.lt.s32.totalorder %s1817, 3
        %s1821 = scalar_select %p1820, %s1817, 3
        %p1822 = scmp.lt.s32.totalorder %s25, 0
        %s1823 = scalar_select %p1822, %s25, 0
        %s1824 = sadd.s32 %s1823, %s1821
        %s1825 = smul.addr %s1819, 4
        %s1826 = sadd.s32 %s1824, %s1825
        %s1827 = smul.addr %s1826, 2
        %s1828 = scalar_lea.vmem %s6, %s1827
      $region56: #{cnn_forward.14} parent=51 // pred_fallthru
        _
    $region52: #{cnn_forward.14} parent=5 // pred_fallthru
      _
  $region6: #{cnn_forward.14} parent=0 // loop_footer
    %s16 = sadd.s32 1, %s12
  $region7: #{cnn_forward.14} parent=0 // loop_footer_branch
    %11 = sbr.rel target = $region3
  $region8: #{cnn_forward.14} parent=0 // loop_exit
    _

// kernel: cnn_forward.15
$region0: #{cnn_forward.15}
  #allocation0 [shape = 'u32[]', space=smem, size = 0x4, offset = 0x4, fixed_abs, tag = 'smem constant byte address 0x4 - core index']
  #allocation1 [shape = 'u32[144,128]{1,0:T(1,128)}', space=vmem, size = 0x12000, scoped, tag = 'internal scratch']
  %s0 = inlined_call_operand.vmem [shape: bf16[12,6,128], index: 0, kind: input, shape index: {}]
  %s1 = inlined_call_operand.vmem [shape: bf16[9,128,128], index: 1, kind: input, shape index: {}]
  %s2 = inlined_call_operand.vmem [shape: f32[1,128], index: 2, kind: input, shape index: {}]
  %s3 = inlined_call_operand.vmem [shape: bf16[2,4,4,128], index: 3, kind: input, shape index: {}]
  %s4 = inlined_call_operand.vmem [shape: bf16[2,4,4,128], index: 4, kind: output, shape index: {}]
  %s5 = sld [smem:[#allocation0]]
  $region49: #{cnn_forward.15} parent=0
    _
  %s7 = ssub.s32 1, %s5
  %s8 = scalar_select 0, %s7, %s5
  loop: start=0, step=1, limit=4
  $region2: #{cnn_forward.15} parent=0 // loop_pre_header
    _
  $region3: #{cnn_forward.15} parent=0 // loop_header
    %s10 = sphi 0, %s14
    %p11 = scmp.ge.s32.totalorder %s10, 4
    %s17 = sphi 0, %s36
    %s18 = sphi 0, %s32
    %s19 = sphi 0, %s28
    %s20 = sphi 0, %s17
    %s21 = sphi 0, %s18
    %s22 = sphi 0, %s19
    %s23 = sphi 0, %s20
    %s24 = sphi 0, %s21
    %s25 = sphi 0, %s22
    %s37 = sphi 0, %s37
    %s39 = sphi 0, %s37
    %s40 = sphi 0, %s39
    %s54 = sphi 0, %s40
    %s60 = sphi 0, %s62
    %s63 = sphi 0, %s60
    %s64 = sphi 0, %s63
    %s80 = sphi 0, %s64
    %s86 = sphi 0, %s88
    %s89 = sphi 0, %s86
    %s90 = sphi 0, %s89
    %s106 = sphi 0, %s90
    %s116 = sphi 0, %s118
    %s119 = sphi 0, %s116
    %s120 = sphi 0, %s119
    %s136 = sphi 0, %s120
    %s146 = sphi 0, %s148
    %s149 = sphi 0, %s146
    %s150 = sphi 0, %s149
    %s166 = sphi 0, %s150
  $region4: #{cnn_forward.15} parent=0 // loop_header_branch
    %13 = sbr.rel (%p11) target = $region8
  $region5: #{cnn_forward.15} parent=0 // loop_body
    %s15 = ssub.s32 %s10, 1
    %s16 = ssub.s32 %s10, 2
    %s26 = sadd.s32 1, %s19
    %p27 = scmp.ge.s32.totalorder %s26, 1
    %s28 = scalar_select %p27, 0, %s26
    %s29 = sadd.s32 1, %s18
    %s30 = scalar_select %p27, %s29, %s18
    %p31 = scmp.ge.s32.totalorder %s30, 2
    %s32 = scalar_select %p31, 0, %s30
    %s33 = sadd.s32 1, %s17
    %s34 = scalar_select %p31, %s33, %s17
    %p35 = scmp.ge.s32.totalorder %s34, 1
    %s36 = scalar_select %p35, 0, %s34
    %s38 = sadd.s32 %s37, 1
    %p41 = scmp.eq.s32.totalorder %s10, 1
    %p42 = scmp.ne.s32.totalorder %s37, %s39
    %p43 = scmp.eq.s32.totalorder %s10, 0
    %p44 = por %p42, %p43
    %p45 = scmp.ne.s32.totalorder %s37, %s39
    %p46 = scmp.eq.s32.totalorder %s15, 1
    %p47 = por %p45, %p46
    %p48 = scmp.ne.s32.totalorder %s39, %s40
    %p49 = scmp.eq.s32.totalorder %s15, 0
    %p50 = por %p48, %p49
    %p51 = scmp.ne.s32.totalorder %s39, %s40
    %p52 = scmp.eq.s32.totalorder %s16, 1
    %p53 = por %p51, %p52
    %p55 = scmp.ne.s32.totalorder %s40, %s54
    %p56 = scmp.eq.s32.totalorder %s16, 0
    %p57 = por %p55, %p56
    %s58 = ssub.s32 %s17, %s36
    %p59 = scmp.eq.s32.totalorder %s58, 0
    %s61 = sadd.s32 %s60, 1
    %s62 = scalar_select %p59, %s60, %s61
    %p65 = pneg %p59
    %p66 = scmp.eq.s32.totalorder %s10, 1
    %p67 = por %p65, %p66
    %p68 = scmp.ne.s32.totalorder %s60, %s63
    %p69 = scmp.eq.s32.totalorder %s10, 0
    %p70 = por %p68, %p69
    %p71 = scmp.ne.s32.totalorder %s60, %s63
    %p72 = scmp.eq.s32.totalorder %s15, 1
    %p73 = por %p71, %p72
    %p74 = scmp.ne.s32.totalorder %s63, %s64
    %p75 = scmp.eq.s32.totalorder %s15, 0
    %p76 = por %p74, %p75
    %p77 = scmp.ne.s32.totalorder %s63, %s64
    %p78 = scmp.eq.s32.totalorder %s16, 1
    %p79 = por %p77, %p78
    %p81 = scmp.ne.s32.totalorder %s64, %s80
    %p82 = scmp.eq.s32.totalorder %s16, 0
    %p83 = por %p81, %p82
    %s84 = ssub.s32 %s17, %s36
    %p85 = scmp.eq.s32.totalorder %s84, 0
    %s87 = sadd.s32 %s86, 1
    %s88 = scalar_select %p85, %s86, %s87
    %p91 = pneg %p85
    %p92 = scmp.eq.s32.totalorder %s10, 1
    %p93 = por %p91, %p92
    %p94 = scmp.ne.s32.totalorder %s86, %s89
    %p95 = scmp.eq.s32.totalorder %s10, 0
    %p96 = por %p94, %p95
    %p97 = scmp.ne.s32.totalorder %s86, %s89
    %p98 = scmp.eq.s32.totalorder %s15, 1
    %p99 = por %p97, %p98
    %p100 = scmp.ne.s32.totalorder %s89, %s90
    %p101 = scmp.eq.s32.totalorder %s15, 0
    %p102 = por %p100, %p101
    %p103 = scmp.ne.s32.totalorder %s89, %s90
    %p104 = scmp.eq.s32.totalorder %s16, 1
    %p105 = por %p103, %p104
    %p107 = scmp.ne.s32.totalorder %s90, %s106
    %p108 = scmp.eq.s32.totalorder %s16, 0
    %p109 = por %p107, %p108
    %s110 = ssub.s32 %s18, %s32
    %s111 = ssub.s32 %s19, %s28
    %s112 = sor.u32 %s110, %s111
    %s113 = ssub.s32 %s17, %s36
    %s114 = sor.u32 %s112, %s113
    %p115 = scmp.eq.s32.totalorder %s114, 0
    %s117 = sadd.s32 %s116, 1
    %s118 = scalar_select %p115, %s116, %s117
    %p121 = pneg %p115
    %p122 = scmp.eq.s32.totalorder %s10, 1
    %p123 = por %p121, %p122
    %p124 = scmp.ne.s32.totalorder %s116, %s119
    %p125 = scmp.eq.s32.totalorder %s10, 0
    %p126 = por %p124, %p125
    %p127 = scmp.ne.s32.totalorder %s116, %s119
    %p128 = scmp.eq.s32.totalorder %s15, 1
    %p129 = por %p127, %p128
    %p130 = scmp.ne.s32.totalorder %s119, %s120
    %p131 = scmp.eq.s32.totalorder %s15, 0
    %p132 = por %p130, %p131
    %p133 = scmp.ne.s32.totalorder %s119, %s120
    %p134 = scmp.eq.s32.totalorder %s16, 1
    %p135 = por %p133, %p134
    %p137 = scmp.ne.s32.totalorder %s120, %s136
    %p138 = scmp.eq.s32.totalorder %s16, 0
    %p139 = por %p137, %p138
    %s140 = ssub.s32 %s18, %s32
    %s141 = ssub.s32 %s19, %s28
    %s142 = sor.u32 %s140, %s141
    %s143 = ssub.s32 %s17, %s36
    %s144 = sor.u32 %s142, %s143
    %p145 = scmp.eq.s32.totalorder %s144, 0
    %s147 = sadd.s32 %s146, 1
    %s148 = scalar_select %p145, %s146, %s147
    %p151 = pneg %p145
    %p152 = scmp.eq.s32.totalorder %s10, 1
    %p153 = por %p151, %p152
    %p154 = scmp.ne.s32.totalorder %s146, %s149
    %p155 = scmp.eq.s32.totalorder %s10, 0
    %p156 = por %p154, %p155
    %p157 = scmp.ne.s32.totalorder %s146, %s149
    %p158 = scmp.eq.s32.totalorder %s15, 1
    %p159 = por %p157, %p158
    %p160 = scmp.ne.s32.totalorder %s149, %s150
    %p161 = scmp.eq.s32.totalorder %s15, 0
    %p162 = por %p160, %p161
    %p163 = scmp.ne.s32.totalorder %s149, %s150
    %p164 = scmp.eq.s32.totalorder %s16, 1
    %p165 = por %p163, %p164
    %p167 = scmp.ne.s32.totalorder %s150, %s166
    %p168 = scmp.eq.s32.totalorder %s16, 0
    %p169 = por %p167, %p168
    %p170 = scmp.le.s32.totalorder 1, %s10
    %p171 = scmp.lt.s32.totalorder %s10, 3
    %p172 = pnand %p170, %p171
    %p173 = pneg %p172
    // Predicated region
    $region9: #{cnn_forward.15} parent=5 // pred_check
      _
    $region10: #{cnn_forward.15} parent=5 // pred_check_branch
      %175 = sbr.rel (%p172) target = $region12
    $region11: #{cnn_forward.15} parent=5 // pred_region
      %s176 = ssub.s32 %s10, 1
      // Predicated region
      $region13: #{cnn_forward.15} parent=11 // pred_check
        %p177 = pneg %p50
      $region14: #{cnn_forward.15} parent=11 // pred_check_branch
        %179 = sbr.rel (%p177) target = $region16
      $region15: #{cnn_forward.15} parent=11 // pred_region
        _
      $region16: #{cnn_forward.15} parent=11 // pred_fallthru
        _
      // Predicated region
      $region17: #{cnn_forward.15} parent=11 // pred_check
        %p180 = pneg %p76
      $region18: #{cnn_forward.15} parent=11 // pred_check_branch
        %182 = sbr.rel (%p180) target = $region20
      $region19: #{cnn_forward.15} parent=11 // pred_region
        %p183 = scmp.lt.s32.totalorder %s20, 0
        %s184 = scalar_select %p183, %s20, 0
        %s185 = smul.addr %s184, 4
        %s186 = scalar_lea.vmem %s1, %s185
      $region20: #{cnn_forward.15} parent=11 // pred_fallthru
        _
      // Predicated region
      $region21: #{cnn_forward.15} parent=11 // pred_check
        %p187 = pneg %p102
      $region22: #{cnn_forward.15} parent=11 // pred_check_branch
        %189 = sbr.rel (%p187) target = $region24
      $region23: #{cnn_forward.15} parent=11 // pred_region
        %p190 = scmp.lt.s32.totalorder %s20, 0
        %s191 = scalar_select %p190, %s20, 0
        %s192 = scalar_lea.vmem %s2, %s191
      $region24: #{cnn_forward.15} parent=11 // pred_fallthru
        _
    $region12: #{cnn_forward.15} parent=5 // pred_fallthru
      _
    %p193 = scmp.lt.s32.totalorder %s10, 2
    // Predicated region
    $region25: #{cnn_forward.15} parent=5 // pred_check
      %p194 = pneg %p193
    $region26: #{cnn_forward.15} parent=5 // pred_check_branch
      %196 = sbr.rel (%p194) target = $region28
    $region27: #{cnn_forward.15} parent=5 // pred_region
      // Predicated region
      $region29: #{cnn_forward.15} parent=27 // pred_check
        %p197 = pneg %p126
      $region30: #{cnn_forward.15} parent=27 // pred_check_branch
        %199 = sbr.rel (%p197) target = $region32
      $region31: #{cnn_forward.15} parent=27 // pred_region
        %s200 = smul.u32 4, %s19
        %p201 = scmp.lt.s32.totalorder %s18, 1
        %s202 = scalar_select %p201, %s18, 1
        %p203 = scmp.lt.s32.totalorder %s200, 3
        %s204 = scalar_select %p203, %s200, 3
        %p205 = scmp.lt.s32.totalorder %s17, 0
        %s206 = scalar_select %p205, %s17, 0
        %s207 = sadd.s32 %s206, %s204
        %s208 = smul.addr %s202, 4
        %s209 = sadd.s32 %s207, %s208
        %s210 = smul.addr %s209, 2
        %s211 = scalar_lea.vmem %s3, %s210
        %s212 = smul.u32 4, %s19
      $region32: #{cnn_forward.15} parent=27 // pred_fallthru
        _
    $region28: #{cnn_forward.15} parent=5 // pred_fallthru
      _
    %p213 = scmp.le.s32.totalorder 1, %s10
    %p214 = scmp.lt.s32.totalorder %s10, 3
    %p215 = pnand %p213, %p214
    %p216 = pneg %p215
    // Predicated region
    $region33: #{cnn_forward.15} parent=5 // pred_check
      _
    $region34: #{cnn_forward.15} parent=5 // pred_check_branch
      %218 = sbr.rel (%p215) target = $region36
    $region35: #{cnn_forward.15} parent=5 // pred_region
      %s219 = ssub.s32 %s10, 1
      %p220 = pneg %p50
      %p221 = pneg %p47
      %p222 = scmp.lt.s32.totalorder %s20, 0
      %s223 = scalar_select %p222, %s20, 0
      %s224 = smul.addr %s223, 4
      %s225 = scalar_lea.vmem %s1, %s224
      %p226 = pneg %p76
      %p227 = pneg %p73
      %p228 = scmp.lt.s32.totalorder %s20, 0
      %s229 = scalar_select %p228, %s20, 0
      %s230 = scalar_lea.vmem %s2, %s229
      %p231 = pneg %p102
      %p232 = pneg %p99
      %s233 = smul.u32 4, %s22
      %p234 = scmp.lt.s32.totalorder %s21, 1
      %s235 = scalar_select %p234, %s21, 1
      %p236 = scmp.lt.s32.totalorder %s233, 3
      %s237 = scalar_select %p236, %s233, 3
      %p238 = scmp.lt.s32.totalorder %s20, 0
      %s239 = scalar_select %p238, %s20, 0
      %s240 = sadd.s32 %s239, %s237
      %s241 = smul.addr %s235, 4
      %s242 = sadd.s32 %s240, %s241
      %s243 = smul.addr %s242, 2
      %s244 = scalar_lea.vmem %s3, %s243
      %p245 = pneg %p132
      %p246 = pneg %p129
      %p247 = pneg %p162
      %p248 = pneg %p159
      %s249 = smul.u32 4, %s22
      %p250 = scmp.lt.s32.totalorder %s21, 1
      %s251 = scalar_select %p250, %s21, 1
      %p252 = scmp.lt.s32.totalorder %s249, 3
      %s253 = scalar_select %p252, %s249, 3
      %p254 = scmp.lt.s32.totalorder %s20, 0
      %s255 = scalar_select %p254, %s20, 0
      %s256 = sadd.s32 %s255, %s253
      %s257 = smul.addr %s251, 4
      %s258 = sadd.s32 %s256, %s257
      %s259 = smul.addr %s258, 2
      %s260 = scalar_lea.vmem %s4, %s259
      %p261 = scmp.lt.s32.totalorder %s20, 0
      %s262 = scalar_select %p261, %s20, 0
      %s263 = smul.addr %s262, 4
      %s264 = scalar_lea.vmem %s1, %s263
      %p265 = scmp.lt.s32.totalorder %s20, 0
      %s266 = scalar_select %p265, %s20, 0
      %s267 = scalar_lea.vmem %s2, %s266
      %s268 = smul.u32 4, %s22
      %p269 = scmp.lt.s32.totalorder %s21, 1
      %s270 = scalar_select %p269, %s21, 1
      %p271 = scmp.lt.s32.totalorder %s268, 3
      %s272 = scalar_select %p271, %s268, 3
      %p273 = scmp.lt.s32.totalorder %s20, 0
      %s274 = scalar_select %p273, %s20, 0
      %s275 = sadd.s32 %s274, %s272
      %s276 = smul.addr %s270, 4
      %s277 = sadd.s32 %s275, %s276
      %s278 = smul.addr %s277, 2
      %s279 = scalar_lea.vmem %s3, %s278
      %s280 = smul.u32 4, %s22
      %s281 = smul.u32 4, %s22
      %p282 = scmp.lt.s32.totalorder %s21, 1
      %s283 = scalar_select %p282, %s21, 1
      %p284 = scmp.lt.s32.totalorder %s281, 3
      %s285 = scalar_select %p284, %s281, 3
      %p286 = scmp.lt.s32.totalorder %s20, 0
      %s287 = scalar_select %p286, %s20, 0
      %s288 = sadd.s32 %s287, %s285
      %s289 = smul.addr %s283, 4
      %s290 = sadd.s32 %s288, %s289
      %s291 = smul.addr %s290, 2
      %s292 = scalar_lea.vmem %s4, %s291
      %s293 = smul.u32 4, %s22
      %s295 = smul.u32 %s21, 6
      %s296 = smul.u32 %s22, 4
      %s297 = sadd.s32 %s295, %s296
      %s298 = smul.addr %s297, 4
      %s299 = scalar_lea.vmem %s0, %s298
      %v300 = vld [vmem:[%s299] sm:$0x7]
      %v301 = vld [vmem:[%s299 + $0x4] sm:$0x7]
      %v302 = vld [vmem:[%s299 + $0x8] sm:$0x7]
      %v303 = vld [vmem:[%s299 + $0xc] sm:$0x7]
      %v304 = vld [vmem:[%s264] sm:$0xf]
      %v305 = vld [vmem:[%s264 + $0x4] sm:$0xf]
      %v306 = vld [vmem:[%s264 + $0x8] sm:$0xf]
      %v307 = vld [vmem:[%s264 + $0xc] sm:$0xf]
      %v308 = vld [vmem:[%s264 + $0x10] sm:$0xf]
      %v309 = vld [vmem:[%s264 + $0x14] sm:$0xf]
      %v310 = vld [vmem:[%s264 + $0x18] sm:$0xf]
      %v311 = vld [vmem:[%s264 + $0x1c] sm:$0xf]
      %v312 = vld [vmem:[%s264 + $0x20] sm:$0xf]
      %v313 = vld [vmem:[%s264 + $0x24] sm:$0xf]
      %v314 = vld [vmem:[%s264 + $0x28] sm:$0xf]
      %v315 = vld [vmem:[%s264 + $0x2c] sm:$0xf]
      %v316 = vld [vmem:[%s264 + $0x30] sm:$0xf]
      %v317 = vld [vmem:[%s264 + $0x34] sm:$0xf]
      %v318 = vld [vmem:[%s264 + $0x38] sm:$0xf]
      %v319 = vld [vmem:[%s264 + $0x3c] sm:$0xf]
      %v325 = vunpack.c.l.s4 1983009808
      %v326 = vunpack.c.0.s8 %v325
      %v327 = vlaneseq
      %v328 = vshrl.u32 %v327, 7
      %v329 = vsub.s32 %v326, %v328
      %v330 = vrot.slane %v300, %v329
      %v331 = vcombine.high %v330, %v330
      %v333 = vunpack.c.l.s4 1983009808
      %v334 = vunpack.c.0.s8 %v333
      %v335 = vlaneseq
      %v336 = vshrl.u32 %v335, 7
      %v337 = vsub.s32 %v334, %v336
      %v338 = vrot.slane %v301, %v337
      %v339 = vcombine.high %v338, %v338
      %v341 = vunpack.c.l.s4 1983009808
      %v342 = vunpack.c.0.s8 %v341
      %v343 = vlaneseq
      %v344 = vshrl.u32 %v343, 7
      %v345 = vsub.s32 %v342, %v344
      %v346 = vrot.slane %v302, %v345
      %v347 = vcombine.high %v346, %v346
      %v349 = vunpack.c.l.s4 1983009808
      %v350 = vunpack.c.0.s8 %v349
      %v351 = vlaneseq
      %v352 = vshrl.u32 %v351, 7
      %v353 = vsub.s32 %v350, %v352
      %v354 = vrot.slane %v303, %v353
      %v355 = vcombine.high %v354, %v354
      %vm356 = vsmask.f32 1280
      %vm357 = vsmask.f32 3336
      %vm358 = vmor %vm356, %vm357
      %vm359 = vsmask.f32 5392
      %vm360 = vmor %vm358, %vm359
      %vm361 = vsmask.f32 7448
      %vm362 = vmor %vm360, %vm361
      %v364 = vshrl.u32 %v330, 16
      %v366 = vrot.slane %v364, 6
      %v367 = vshll.u32 %v330, 16
      %v369 = vrot.slane %v367, 7
      %v370 = vor.u32 %v366, %v369
      %v371 = vrot.slane %v370, 2
      %v373 = vshll.u32 %v331, 16
      %v375 = vrot.slane %v373, 7
      %v376 = vsel %vm362, %v371, %v375
      %v378 = vshrl.u32 %v338, 16
      %v380 = vrot.slane %v378, 6
      %v381 = vshll.u32 %v338, 16
      %v383 = vrot.slane %v381, 7
      %v384 = vor.u32 %v380, %v383
      %v385 = vrot.slane %v384, 2
      %v387 = vshll.u32 %v339, 16
      %v389 = vrot.slane %v387, 7
      %v390 = vsel %vm362, %v385, %v389
      %v392 = vshrl.u32 %v346, 16
      %v394 = vrot.slane %v392, 6
      %v395 = vshll.u32 %v346, 16
      %v397 = vrot.slane %v395, 7
      %v398 = vor.u32 %v394, %v397
      %v399 = vrot.slane %v398, 2
      %v401 = vshll.u32 %v347, 16
      %v403 = vrot.slane %v401, 7
      %v404 = vsel %vm362, %v399, %v403
      %v406 = vshrl.u32 %v354, 16
      %v408 = vrot.slane %v406, 6
      %v409 = vshll.u32 %v354, 16
      %v411 = vrot.slane %v409, 7
      %v412 = vor.u32 %v408, %v411
      %v413 = vrot.slane %v412, 2
      %v415 = vshll.u32 %v355, 16
      %v417 = vrot.slane %v415, 7
      %v418 = vsel %vm362, %v413, %v417
      %s419 = scalar_lea.vmem %s264, 64
      %v420 = vld [vmem:[%s419] sm:$0xf]
      %v421 = vld [vmem:[%s419 + $0x4] sm:$0xf]
      %v422 = vld [vmem:[%s419 + $0x8] sm:$0xf]
      %v423 = vld [vmem:[%s419 + $0xc] sm:$0xf]
      %v424 = vld [vmem:[%s419 + $0x10] sm:$0xf]
      %v425 = vld [vmem:[%s419 + $0x14] sm:$0xf]
      %v426 = vld [vmem:[%s419 + $0x18] sm:$0xf]
      %v427 = vld [vmem:[%s419 + $0x1c] sm:$0xf]
      %v428 = vld [vmem:[%s419 + $0x20] sm:$0xf]
      %v429 = vld [vmem:[%s419 + $0x24] sm:$0xf]
      %v430 = vld [vmem:[%s419 + $0x28] sm:$0xf]
      %v431 = vld [vmem:[%s419 + $0x2c] sm:$0xf]
      %v432 = vld [vmem:[%s419 + $0x30] sm:$0xf]
      %v433 = vld [vmem:[%s419 + $0x34] sm:$0xf]
      %v434 = vld [vmem:[%s419 + $0x38] sm:$0xf]
      %v435 = vld [vmem:[%s419 + $0x3c] sm:$0xf]
      %v436 = vcombine.low %v376, %v390
      %v437 = vcombine.low %v404, %v418
      %v439 = vunpack.c.l.s4 1983009808
      %v440 = vunpack.c.0.s8 %v439
      %v441 = vlaneseq
      %v442 = vshrl.u32 %v441, 7
      %v443 = vsub.s32 %v440, %v442
      %v444 = vrot.slane %v436, %v443
      %v446 = vunpack.c.l.s4 1983009808
      %v447 = vunpack.c.0.s8 %v446
      %v448 = vlaneseq
      %v449 = vshrl.u32 %v448, 7
      %v450 = vsub.s32 %v447, %v449
      %v451 = vrot.slane %v437, %v450
      %v452 = vcombine.low %v444, %v451
      %v470 = vunpack.c.l.b16 %v420
      %v471 = vunpack.c.l.b16 %v421
      %v472 = vunpack.c.l.b16 %v422
      %v473 = vunpack.c.l.b16 %v423
      %v474 = vunpack.c.l.b16 %v424
      %v475 = vunpack.c.l.b16 %v425
      %v476 = vunpack.c.l.b16 %v426
      %v477 = vunpack.c.l.b16 %v427
      %v478 = vunpack.c.l.b16 %v428
      %v479 = vunpack.c.l.b16 %v429
      %v480 = vunpack.c.l.b16 %v430
      %v481 = vunpack.c.l.b16 %v431
      %v482 = vunpack.c.l.b16 %v432
      %v483 = vunpack.c.l.b16 %v433
      %v484 = vunpack.c.l.b16 %v434
      %v485 = vunpack.c.l.b16 %v435
      %v486 = vpack.c.b16 %v471, %v470
      %v487 = vpack.c.b16 %v473, %v472
      %v488 = vpack.c.b16 %v475, %v474
      %v489 = vpack.c.b16 %v477, %v476
      %v490 = vpack.c.b16 %v479, %v478
      %v491 = vpack.c.b16 %v481, %v480
      %v492 = vpack.c.b16 %v483, %v482
      %v493 = vpack.c.b16 %v485, %v484
      %502 = vmatprep.subr.bf16.mxu0 0
      %503 = vmatpush1.bf16.msra.mxu0 %v486
      %504 = vmatprep.subr.bf16.mxu0 0
      %505 = vmatpush1.bf16.msra.mxu0 %v487
      %506 = vmatprep.subr.bf16.mxu0 0
      %507 = vmatpush1.bf16.msra.mxu0 %v488
      %508 = vmatprep.subr.bf16.mxu0 0
      %509 = vmatpush1.bf16.msra.mxu0 %v489
      %510 = vmatprep.subr.bf16.mxu0 0
      %511 = vmatpush1.bf16.msra.mxu0 %v490
      %512 = vmatprep.subr.bf16.mxu0 0
      %513 = vmatpush1.bf16.msra.mxu0 %v491
      %514 = vmatprep.subr.bf16.mxu0 0
      %515 = vmatpush1.bf16.msra.mxu0 %v492
      %516 = vmatprep.subr.bf16.mxu0 0
      %517 = vmatpush1.bf16.msra.mxu0 %v493
      %518 = vmatprep.subr.bf16.mxu0 0
      %519 = vmatpush1.bf16.msra.mxu0 0
      %520 = vmatprep.subr.bf16.mxu0 0
      %521 = vmatpush1.bf16.msra.mxu0 0
      %522 = vmatprep.subr.bf16.mxu0 0
      %523 = vmatpush1.bf16.msra.mxu0 0
      %524 = vmatprep.subr.bf16.mxu0 0
      %525 = vmatpush1.bf16.msra.mxu0 0
      %526 = vmatprep.subr.bf16.mxu0 0
      %527 = vmatpush1.bf16.msra.mxu0 0
      %528 = vmatprep.subr.bf16.mxu0 0
      %529 = vmatpush1.bf16.msra.mxu0 0
      %530 = vmatprep.subr.bf16.mxu0 0
      %531 = vmatpush1.bf16.msra.mxu0 0
      %532 = vmatprep.subr.bf16.mxu0 0
      %533 = vmatpush1.bf16.msra.mxu0 0
      %534 = vmatprep.mubr.bf16.mxu0 0
      %535 = vmatmul.mubr.bf16.gmra.mrb[0].mxu0 %v452
      %v536 = vpop.f32.mrb[0].mxu0
      %v537 = vadd.f32 0.0, %v536
      %v538 = vpop.f32.mrb[0].mxu0
      %v539 = vpop.f32.mrb[0].mxu0
      %v540 = vadd.f32 0.0, %v539
      %v541 = vpop.f32.mrb[0].mxu0
      %542 = vdwg.mxu0
      %v543 = vcombine.low %v300, %v301
      %v544 = vcombine.low %v302, %v303
      %v546 = vunpack.c.l.s4 1983009808
      %v547 = vunpack.c.0.s8 %v546
      %v548 = vlaneseq
      %v549 = vshrl.u32 %v548, 7
      %v550 = vsub.s32 %v547, %v549
      %v551 = vrot.slane %v543, %v550
      %v553 = vunpack.c.l.s4 1983009808
      %v554 = vunpack.c.0.s8 %v553
      %v555 = vlaneseq
      %v556 = vshrl.u32 %v555, 7
      %v557 = vsub.s32 %v554, %v556
      %v558 = vrot.slane %v544, %v557
      %v559 = vcombine.low %v551, %v558
      %v577 = vunpack.c.l.b16 %v304
      %v578 = vunpack.c.l.b16 %v305
      %v579 = vunpack.c.l.b16 %v306
      %v580 = vunpack.c.l.b16 %v307
      %v581 = vunpack.c.l.b16 %v308
      %v582 = vunpack.c.l.b16 %v309
      %v583 = vunpack.c.l.b16 %v310
      %v584 = vunpack.c.l.b16 %v311
      %v585 = vunpack.c.l.b16 %v312
      %v586 = vunpack.c.l.b16 %v313
      %v587 = vunpack.c.l.b16 %v314
      %v588 = vunpack.c.l.b16 %v315
      %v589 = vunpack.c.l.b16 %v316
      %v590 = vunpack.c.l.b16 %v317
      %v591 = vunpack.c.l.b16 %v318
      %v592 = vunpack.c.l.b16 %v319
      %v593 = vpack.c.b16 %v578, %v577
      %v594 = vpack.c.b16 %v580, %v579
      %v595 = vpack.c.b16 %v582, %v581
      %v596 = vpack.c.b16 %v584, %v583
      %v597 = vpack.c.b16 %v586, %v585
      %v598 = vpack.c.b16 %v588, %v587
      %v599 = vpack.c.b16 %v590, %v589
      %v600 = vpack.c.b16 %v592, %v591
      %609 = vmatprep.subr.bf16.mxu0 0
      %610 = vmatpush1.bf16.msra.mxu0 %v593
      %611 = vmatprep.subr.bf16.mxu0 0
      %612 = vmatpush1.bf16.msra.mxu0 %v594
      %613 = vmatprep.subr.bf16.mxu0 0
      %614 = vmatpush1.bf16.msra.mxu0 %v595
      %615 = vmatprep.subr.bf16.mxu0 0
      %616 = vmatpush1.bf16.msra.mxu0 %v596
      %617 = vmatprep.subr.bf16.mxu0 0
      %618 = vmatpush1.bf16.msra.mxu0 %v597
      %619 = vmatprep.subr.bf16.mxu0 0
      %620 = vmatpush1.bf16.msra.mxu0 %v598
      %621 = vmatprep.subr.bf16.mxu0 0
      %622 = vmatpush1.bf16.msra.mxu0 %v599
      %623 = vmatprep.subr.bf16.mxu0 0
      %624 = vmatpush1.bf16.msra.mxu0 %v600
      %625 = vmatprep.subr.bf16.mxu0 0
      %626 = vmatpush1.bf16.msra.mxu0 0
      %627 = vmatprep.subr.bf16.mxu0 0
      %628 = vmatpush1.bf16.msra.mxu0 0
      %629 = vmatprep.subr.bf16.mxu0 0
      %630 = vmatpush1.bf16.msra.mxu0 0
      %631 = vmatprep.subr.bf16.mxu0 0
      %632 = vmatpush1.bf16.msra.mxu0 0
      %633 = vmatprep.subr.bf16.mxu0 0
      %634 = vmatpush1.bf16.msra.mxu0 0
      %635 = vmatprep.subr.bf16.mxu0 0
      %636 = vmatpush1.bf16.msra.mxu0 0
      %637 = vmatprep.subr.bf16.mxu0 0
      %638 = vmatpush1.bf16.msra.mxu0 0
      %639 = vmatprep.subr.bf16.mxu0 0
      %640 = vmatpush1.bf16.msra.mxu0 0
      %641 = vmatprep.mubr.bf16.mxu0 0
      %642 = vmatmul.mubr.bf16.gmra.mrb[0].mxu0 %v559
      %v643 = vpop.f32.mrb[0].mxu0
      %v644 = vadd.f32 %v537, %v643
      %v645 = vpop.f32.mrb[0].mxu0
      %v646 = vpop.f32.mrb[0].mxu0
      %v647 = vadd.f32 %v540, %v646
      %v648 = vpop.f32.mrb[0].mxu0
      %649 = vdwg.mxu0
      %vm650 = vcmask 1040384
      %vm651 = vcmask 1042434
      %vm652 = vmor %vm650, %vm651
      %vm653 = vcmask 1044484
      %vm654 = vmor %vm652, %vm653
      %vm655 = vcmask 1046534
      %vm656 = vmor %vm654, %vm655
      %v657 = vrot.slane %v330, 7
      %v658 = vrot.slane %v657, 2
      %v659 = vrot.slane %v331, 7
      %v660 = vsel %vm656, %v658, %v659
      %v661 = vrot.slane %v338, 7
      %v662 = vrot.slane %v661, 2
      %v663 = vrot.slane %v339, 7
      %v664 = vsel %vm656, %v662, %v663
      %v665 = vrot.slane %v346, 7
      %v666 = vrot.slane %v665, 2
      %v667 = vrot.slane %v347, 7
      %v668 = vsel %vm656, %v666, %v667
      %v669 = vrot.slane %v354, 7
      %v670 = vrot.slane %v669, 2
      %v671 = vrot.slane %v355, 7
      %v672 = vsel %vm656, %v670, %v671
      %s673 = scalar_lea.vmem %s264, 128
      %v674 = vld [vmem:[%s673] sm:$0xf]
      %v675 = vld [vmem:[%s673 + $0x4] sm:$0xf]
      %v676 = vld [vmem:[%s673 + $0x8] sm:$0xf]
      %v677 = vld [vmem:[%s673 + $0xc] sm:$0xf]
      %v678 = vld [vmem:[%s673 + $0x10] sm:$0xf]
      %v679 = vld [vmem:[%s673 + $0x14] sm:$0xf]
      %v680 = vld [vmem:[%s673 + $0x18] sm:$0xf]
      %v681 = vld [vmem:[%s673 + $0x1c] sm:$0xf]
      %v682 = vld [vmem:[%s673 + $0x20] sm:$0xf]
      %v683 = vld [vmem:[%s673 + $0x24] sm:$0xf]
      %v684 = vld [vmem:[%s673 + $0x28] sm:$0xf]
      %v685 = vld [vmem:[%s673 + $0x2c] sm:$0xf]
      %v686 = vld [vmem:[%s673 + $0x30] sm:$0xf]
      %v687 = vld [vmem:[%s673 + $0x34] sm:$0xf]
      %v688 = vld [vmem:[%s673 + $0x38] sm:$0xf]
      %v689 = vld [vmem:[%s673 + $0x3c] sm:$0xf]
      %v690 = vcombine.low %v660, %v664
      %v691 = vcombine.low %v668, %v672
      %v693 = vunpack.c.l.s4 1983009808
      %v694 = vunpack.c.0.s8 %v693
      %v695 = vlaneseq
      %v696 = vshrl.u32 %v695, 7
      %v697 = vsub.s32 %v694, %v696
      %v698 = vrot.slane %v690, %v697
      %v700 = vunpack.c.l.s4 1983009808
      %v701 = vunpack.c.0.s8 %v700
      %v702 = vlaneseq
      %v703 = vshrl.u32 %v702, 7
      %v704 = vsub.s32 %v701, %v703
      %v705 = vrot.slane %v691, %v704
      %v706 = vcombine.low %v698, %v705
      %v724 = vunpack.c.l.b16 %v674
      %v725 = vunpack.c.l.b16 %v675
      %v726 = vunpack.c.l.b16 %v676
      %v727 = vunpack.c.l.b16 %v677
      %v728 = vunpack.c.l.b16 %v678
      %v729 = vunpack.c.l.b16 %v679
      %v730 = vunpack.c.l.b16 %v680
      %v731 = vunpack.c.l.b16 %v681
      %v732 = vunpack.c.l.b16 %v682
      %v733 = vunpack.c.l.b16 %v683
      %v734 = vunpack.c.l.b16 %v684
      %v735 = vunpack.c.l.b16 %v685
      %v736 = vunpack.c.l.b16 %v686
      %v737 = vunpack.c.l.b16 %v687
      %v738 = vunpack.c.l.b16 %v688
      %v739 = vunpack.c.l.b16 %v689
      %v740 = vpack.c.b16 %v725, %v724
      %v741 = vpack.c.b16 %v727, %v726
      %v742 = vpack.c.b16 %v729, %v728
      %v743 = vpack.c.b16 %v731, %v730
      %v744 = vpack.c.b16 %v733, %v732
      %v745 = vpack.c.b16 %v735, %v734
      %v746 = vpack.c.b16 %v737, %v736
      %v747 = vpack.c.b16 %v739, %v738
      %756 = vmatprep.subr.bf16.mxu0 0
      %757 = vmatpush1.bf16.msra.mxu0 %v740
      %758 = vmatprep.subr.bf16.mxu0 0
      %759 = vmatpush1.bf16.msra.mxu0 %v741
      %760 = vmatprep.subr.bf16.mxu0 0
      %761 = vmatpush1.bf16.msra.mxu0 %v742
      %762 = vmatprep.subr.bf16.mxu0 0
      %763 = vmatpush1.bf16.msra.mxu0 %v743
      %764 = vmatprep.subr.bf16.mxu0 0
      %765 = vmatpush1.bf16.msra.mxu0 %v744
      %766 = vmatprep.subr.bf16.mxu0 0
      %767 = vmatpush1.bf16.msra.mxu0 %v745
      %768 = vmatprep.subr.bf16.mxu0 0
      %769 = vmatpush1.bf16.msra.mxu0 %v746
      %770 = vmatprep.subr.bf16.mxu0 0
      %771 = vmatpush1.bf16.msra.mxu0 %v747
      %772 = vmatprep.subr.bf16.mxu0 0
      %773 = vmatpush1.bf16.msra.mxu0 0
      %774 = vmatprep.subr.bf16.mxu0 0
      %775 = vmatpush1.bf16.msra.mxu0 0
      %776 = vmatprep.subr.bf16.mxu0 0
      %777 = vmatpush1.bf16.msra.mxu0 0
      %778 = vmatprep.subr.bf16.mxu0 0
      %779 = vmatpush1.bf16.msra.mxu0 0
      %780 = vmatprep.subr.bf16.mxu0 0
      %781 = vmatpush1.bf16.msra.mxu0 0
      %782 = vmatprep.subr.bf16.mxu0 0
      %783 = vmatpush1.bf16.msra.mxu0 0
      %784 = vmatprep.subr.bf16.mxu0 0
      %785 = vmatpush1.bf16.msra.mxu0 0
      %786 = vmatprep.subr.bf16.mxu0 0
      %787 = vmatpush1.bf16.msra.mxu0 0
      %788 = vmatprep.mubr.bf16.mxu0 0
      %789 = vmatmul.mubr.bf16.gmra.mrb[0].mxu0 %v706
      %v790 = vpop.f32.mrb[0].mxu0
      %v791 = vadd.f32 0.0, %v790
      %v792 = vpop.f32.mrb[0].mxu0
      %v793 = vpop.f32.mrb[0].mxu0
      %v794 = vadd.f32 0.0, %v793
      %v795 = vpop.f32.mrb[0].mxu0
      %796 = vdwg.mxu0
      %v797 = vadd.f32 %v644, %v791
      %v798 = vadd.f32 %v647, %v794
      %s799 = sadd.s32 %s297, 1
      %s800 = smul.addr %s799, 4
      %s801 = scalar_lea.vmem %s0, %s800
      %v802 = vld [vmem:[%s801] sm:$0x7]
      %v803 = vld [vmem:[%s801 + $0x4] sm:$0x7]
      %v804 = vld [vmem:[%s801 + $0x8] sm:$0x7]
      %v805 = vld [vmem:[%s801 + $0xc] sm:$0x7]
      %s806 = scalar_lea.vmem %s264, 192
      %v807 = vld [vmem:[%s806] sm:$0xf]
      %v808 = vld [vmem:[%s806 + $0x4] sm:$0xf]
      %v809 = vld [vmem:[%s806 + $0x8] sm:$0xf]
      %v810 = vld [vmem:[%s806 + $0xc] sm:$0xf]
      %v811 = vld [vmem:[%s806 + $0x10] sm:$0xf]
      %v812 = vld [vmem:[%s806 + $0x14] sm:$0xf]
      %v813 = vld [vmem:[%s806 + $0x18] sm:$0xf]
      %v814 = vld [vmem:[%s806 + $0x1c] sm:$0xf]
      %v815 = vld [vmem:[%s806 + $0x20] sm:$0xf]
      %v816 = vld [vmem:[%s806 + $0x24] sm:$0xf]
      %v817 = vld [vmem:[%s806 + $0x28] sm:$0xf]
      %v818 = vld [vmem:[%s806 + $0x2c] sm:$0xf]
      %v819 = vld [vmem:[%s806 + $0x30] sm:$0xf]
      %v820 = vld [vmem:[%s806 + $0x34] sm:$0xf]
      %v821 = vld [vmem:[%s806 + $0x38] sm:$0xf]
      %v822 = vld [vmem:[%s806 + $0x3c] sm:$0xf]
      %v827 = vcombine.low %v802, %v803
      %v828 = vcombine.low %v804, %v805
      %v830 = vunpack.c.l.s4 1983009808
      %v831 = vunpack.c.0.s8 %v830
      %v832 = vlaneseq
      %v833 = vshrl.u32 %v832, 7
      %v834 = vsub.s32 %v831, %v833
      %v835 = vrot.slane %v827, %v834
      %v837 = vunpack.c.l.s4 1983009808
      %v838 = vunpack.c.0.s8 %v837
      %v839 = vlaneseq
      %v840 = vshrl.u32 %v839, 7
      %v841 = vsub.s32 %v838, %v840
      %v842 = vrot.slane %v828, %v841
      %v843 = vcombine.low %v835, %v842
      %v861 = vunpack.c.l.b16 %v807
      %v862 = vunpack.c.l.b16 %v808
      %v863 = vunpack.c.l.b16 %v809
      %v864 = vunpack.c.l.b16 %v810
      %v865 = vunpack.c.l.b16 %v811
      %v866 = vunpack.c.l.b16 %v812
      %v867 = vunpack.c.l.b16 %v813
      %v868 = vunpack.c.l.b16 %v814
      %v869 = vunpack.c.l.b16 %v815
      %v870 = vunpack.c.l.b16 %v816
      %v871 = vunpack.c.l.b16 %v817
      %v872 = vunpack.c.l.b16 %v818
      %v873 = vunpack.c.l.b16 %v819
      %v874 = vunpack.c.l.b16 %v820
      %v875 = vunpack.c.l.b16 %v821
      %v876 = vunpack.c.l.b16 %v822
      %v877 = vpack.c.b16 %v862, %v861
      %v878 = vpack.c.b16 %v864, %v863
      %v879 = vpack.c.b16 %v866, %v865
      %v880 = vpack.c.b16 %v868, %v867
      %v881 = vpack.c.b16 %v870, %v869
      %v882 = vpack.c.b16 %v872, %v871
      %v883 = vpack.c.b16 %v874, %v873
      %v884 = vpack.c.b16 %v876, %v875
      %893 = vmatprep.subr.bf16.mxu0 0
      %894 = vmatpush1.bf16.msra.mxu0 %v877
      %895 = vmatprep.subr.bf16.mxu0 0
      %896 = vmatpush1.bf16.msra.mxu0 %v878
      %897 = vmatprep.subr.bf16.mxu0 0
      %898 = vmatpush1.bf16.msra.mxu0 %v879
      %899 = vmatprep.subr.bf16.mxu0 0
      %900 = vmatpush1.bf16.msra.mxu0 %v880
      %901 = vmatprep.subr.bf16.mxu0 0
      %902 = vmatpush1.bf16.msra.mxu0 %v881
      %903 = vmatprep.subr.bf16.mxu0 0
      %904 = vmatpush1.bf16.msra.mxu0 %v882
      %905 = vmatprep.subr.bf16.mxu0 0
      %906 = vmatpush1.bf16.msra.mxu0 %v883
      %907 = vmatprep.subr.bf16.mxu0 0
      %908 = vmatpush1.bf16.msra.mxu0 %v884
      %909 = vmatprep.subr.bf16.mxu0 0
      %910 = vmatpush1.bf16.msra.mxu0 0
      %911 = vmatprep.subr.bf16.mxu0 0
      %912 = vmatpush1.bf16.msra.mxu0 0
      %913 = vmatprep.subr.bf16.mxu0 0
      %914 = vmatpush1.bf16.msra.mxu0 0
      %915 = vmatprep.subr.bf16.mxu0 0
      %916 = vmatpush1.bf16.msra.mxu0 0
      %917 = vmatprep.subr.bf16.mxu0 0
      %918 = vmatpush1.bf16.msra.mxu0 0
      %919 = vmatprep.subr.bf16.mxu0 0
      %920 = vmatpush1.bf16.msra.mxu0 0
      %921 = vmatprep.subr.bf16.mxu0 0
      %922 = vmatpush1.bf16.msra.mxu0 0
      %923 = vmatprep.subr.bf16.mxu0 0
      %924 = vmatpush1.bf16.msra.mxu0 0
      %925 = vmatprep.mubr.bf16.mxu0 0
      %926 = vmatmul.mubr.bf16.gmra.mrb[0].mxu0 %v843
      %v927 = vpop.f32.mrb[0].mxu0
      %v928 = vadd.f32 0.0, %v927
      %v929 = vpop.f32.mrb[0].mxu0
      %v930 = vpop.f32.mrb[0].mxu0
      %v931 = vadd.f32 0.0, %v930
      %v932 = vpop.f32.mrb[0].mxu0
      %933 = vdwg.mxu0
      %v934 = vadd.f32 %v797, %v928
      %v935 = vadd.f32 %v798, %v931
      %v937 = vunpack.c.l.s4 1983009808
      %v938 = vunpack.c.0.s8 %v937
      %v939 = vlaneseq
      %v940 = vshrl.u32 %v939, 7
      %v941 = vsub.s32 %v938, %v940
      %v942 = vrot.slane %v802, %v941
      %v943 = vcombine.high %v942, %v942
      %v945 = vunpack.c.l.s4 1983009808
      %v946 = vunpack.c.0.s8 %v945
      %v947 = vlaneseq
      %v948 = vshrl.u32 %v947, 7
      %v949 = vsub.s32 %v946, %v948
      %v950 = vrot.slane %v803, %v949
      %v951 = vcombine.high %v950, %v950
      %v953 = vunpack.c.l.s4 1983009808
      %v954 = vunpack.c.0.s8 %v953
      %v955 = vlaneseq
      %v956 = vshrl.u32 %v955, 7
      %v957 = vsub.s32 %v954, %v956
      %v958 = vrot.slane %v804, %v957
      %v959 = vcombine.high %v958, %v958
      %v961 = vunpack.c.l.s4 1983009808
      %v962 = vunpack.c.0.s8 %v961
      %v963 = vlaneseq
      %v964 = vshrl.u32 %v963, 7
      %v965 = vsub.s32 %v962, %v964
      %v966 = vrot.slane %v805, %v965
      %v967 = vcombine.high %v966, %v966
      %v969 = vshrl.u32 %v942, 16
      %v971 = vrot.slane %v969, 6
      %v972 = vshll.u32 %v942, 16
      %v974 = vrot.slane %v972, 7
      %v975 = vor.u32 %v971, %v974
      %v976 = vrot.slane %v975, 2
      %v978 = vshll.u32 %v943, 16
      %v980 = vrot.slane %v978, 7
      %v981 = vsel %vm362, %v976, %v980
      %v983 = vshrl.u32 %v950, 16
      %v985 = vrot.slane %v983, 6
      %v986 = vshll.u32 %v950, 16
      %v988 = vrot.slane %v986, 7
      %v989 = vor.u32 %v985, %v988
      %v990 = vrot.slane %v989, 2
      %v992 = vshll.u32 %v951, 16
      %v994 = vrot.slane %v992, 7
      %v995 = vsel %vm362, %v990, %v994
      %v997 = vshrl.u32 %v958, 16
      %v999 = vrot.slane %v997, 6
      %v1000 = vshll.u32 %v958, 16
      %v1002 = vrot.slane %v1000, 7
      %v1003 = vor.u32 %v999, %v1002
      %v1004 = vrot.slane %v1003, 2
      %v1006 = vshll.u32 %v959, 16
      %v1008 = vrot.slane %v1006, 7
      %v1009 = vsel %vm362, %v1004, %v1008
      %v1011 = vshrl.u32 %v966, 16
      %v1013 = vrot.slane %v1011, 6
      %v1014 = vshll.u32 %v966, 16
      %v1016 = vrot.slane %v1014, 7
      %v1017 = vor.u32 %v1013, %v1016
      %v1018 = vrot.slane %v1017, 2
      %v1020 = vshll.u32 %v967, 16
      %v1022 = vrot.slane %v1020, 7
      %v1023 = vsel %vm362, %v1018, %v1022
      %s1024 = scalar_lea.vmem %s264, 256
      %v1025 = vld [vmem:[%s1024] sm:$0xf]
      %v1026 = vld [vmem:[%s1024 + $0x4] sm:$0xf]
      %v1027 = vld [vmem:[%s1024 + $0x8] sm:$0xf]
      %v1028 = vld [vmem:[%s1024 + $0xc] sm:$0xf]
      %v1029 = vld [vmem:[%s1024 + $0x10] sm:$0xf]
      %v1030 = vld [vmem:[%s1024 + $0x14] sm:$0xf]
      %v1031 = vld [vmem:[%s1024 + $0x18] sm:$0xf]
      %v1032 = vld [vmem:[%s1024 + $0x1c] sm:$0xf]
      %v1033 = vld [vmem:[%s1024 + $0x20] sm:$0xf]
      %v1034 = vld [vmem:[%s1024 + $0x24] sm:$0xf]
      %v1035 = vld [vmem:[%s1024 + $0x28] sm:$0xf]
      %v1036 = vld [vmem:[%s1024 + $0x2c] sm:$0xf]
      %v1037 = vld [vmem:[%s1024 + $0x30] sm:$0xf]
      %v1038 = vld [vmem:[%s1024 + $0x34] sm:$0xf]
      %v1039 = vld [vmem:[%s1024 + $0x38] sm:$0xf]
      %v1040 = vld [vmem:[%s1024 + $0x3c] sm:$0xf]
      %v1041 = vcombine.low %v981, %v995
      %v1042 = vcombine.low %v1009, %v1023
      %v1044 = vunpack.c.l.s4 1983009808
      %v1045 = vunpack.c.0.s8 %v1044
      %v1046 = vlaneseq
      %v1047 = vshrl.u32 %v1046, 7
      %v1048 = vsub.s32 %v1045, %v1047
      %v1049 = vrot.slane %v1041, %v1048
      %v1051 = vunpack.c.l.s4 1983009808
      %v1052 = vunpack.c.0.s8 %v1051
      %v1053 = vlaneseq
      %v1054 = vshrl.u32 %v1053, 7
      %v1055 = vsub.s32 %v1052, %v1054
      %v1056 = vrot.slane %v1042, %v1055
      %v1057 = vcombine.low %v1049, %v1056
      %v1075 = vunpack.c.l.b16 %v1025
      %v1076 = vunpack.c.l.b16 %v1026
      %v1077 = vunpack.c.l.b16 %v1027
      %v1078 = vunpack.c.l.b16 %v1028
      %v1079 = vunpack.c.l.b16 %v1029
      %v1080 = vunpack.c.l.b16 %v1030
      %v1081 = vunpack.c.l.b16 %v1031
      %v1082 = vunpack.c.l.b16 %v1032
      %v1083 = vunpack.c.l.b16 %v1033
      %v1084 = vunpack.c.l.b16 %v1034
      %v1085 = vunpack.c.l.b16 %v1035
      %v1086 = vunpack.c.l.b16 %v1036
      %v1087 = vunpack.c.l.b16 %v1037
      %v1088 = vunpack.c.l.b16 %v1038
      %v1089 = vunpack.c.l.b16 %v1039
      %v1090 = vunpack.c.l.b16 %v1040
      %v1091 = vpack.c.b16 %v1076, %v1075
      %v1092 = vpack.c.b16 %v1078, %v1077
      %v1093 = vpack.c.b16 %v1080, %v1079
      %v1094 = vpack.c.b16 %v1082, %v1081
      %v1095 = vpack.c.b16 %v1084, %v1083
      %v1096 = vpack.c.b16 %v1086, %v1085
      %v1097 = vpack.c.b16 %v1088, %v1087
      %v1098 = vpack.c.b16 %v1090, %v1089
      %1107 = vmatprep.subr.bf16.mxu0 0
      %1108 = vmatpush1.bf16.msra.mxu0 %v1091
      %1109 = vmatprep.subr.bf16.mxu0 0
      %1110 = vmatpush1.bf16.msra.mxu0 %v1092
      %1111 = vmatprep.subr.bf16.mxu0 0
      %1112 = vmatpush1.bf16.msra.mxu0 %v1093
      %1113 = vmatprep.subr.bf16.mxu0 0
      %1114 = vmatpush1.bf16.msra.mxu0 %v1094
      %1115 = vmatprep.subr.bf16.mxu0 0
      %1116 = vmatpush1.bf16.msra.mxu0 %v1095
      %1117 = vmatprep.subr.bf16.mxu0 0
      %1118 = vmatpush1.bf16.msra.mxu0 %v1096
      %1119 = vmatprep.subr.bf16.mxu0 0
      %1120 = vmatpush1.bf16.msra.mxu0 %v1097
      %1121 = vmatprep.subr.bf16.mxu0 0
      %1122 = vmatpush1.bf16.msra.mxu0 %v1098
      %1123 = vmatprep.subr.bf16.mxu0 0
      %1124 = vmatpush1.bf16.msra.mxu0 0
      %1125 = vmatprep.subr.bf16.mxu0 0
      %1126 = vmatpush1.bf16.msra.mxu0 0
      %1127 = vmatprep.subr.bf16.mxu0 0
      %1128 = vmatpush1.bf16.msra.mxu0 0
      %1129 = vmatprep.subr.bf16.mxu0 0
      %1130 = vmatpush1.bf16.msra.mxu0 0
      %1131 = vmatprep.subr.bf16.mxu0 0
      %1132 = vmatpush1.bf16.msra.mxu0 0
      %1133 = vmatprep.subr.bf16.mxu0 0
      %1134 = vmatpush1.bf16.msra.mxu0 0
      %1135 = vmatprep.subr.bf16.mxu0 0
      %1136 = vmatpush1.bf16.msra.mxu0 0
      %1137 = vmatprep.subr.bf16.mxu0 0
      %1138 = vmatpush1.bf16.msra.mxu0 0
      %1139 = vmatprep.mubr.bf16.mxu0 0
      %1140 = vmatmul.mubr.bf16.gmra.mrb[0].mxu0 %v1057
      %v1141 = vpop.f32.mrb[0].mxu0
      %v1142 = vadd.f32 0.0, %v1141
      %v1143 = vpop.f32.mrb[0].mxu0
      %v1144 = vpop.f32.mrb[0].mxu0
      %v1145 = vadd.f32 0.0, %v1144
      %v1146 = vpop.f32.mrb[0].mxu0
      %1147 = vdwg.mxu0
      %v1148 = vadd.f32 %v934, %v1142
      %v1149 = vadd.f32 %v935, %v1145
      %v1150 = vrot.slane %v942, 7
      %v1151 = vrot.slane %v1150, 2
      %v1152 = vrot.slane %v943, 7
      %v1153 = vsel %vm656, %v1151, %v1152
      %v1154 = vrot.slane %v950, 7
      %v1155 = vrot.slane %v1154, 2
      %v1156 = vrot.slane %v951, 7
      %v1157 = vsel %vm656, %v1155, %v1156
      %v1158 = vrot.slane %v958, 7
      %v1159 = vrot.slane %v1158, 2
      %v1160 = vrot.slane %v959, 7
      %v1161 = vsel %vm656, %v1159, %v1160
      %v1162 = vrot.slane %v966, 7
      %v1163 = vrot.slane %v1162, 2
      %v1164 = vrot.slane %v967, 7
      %v1165 = vsel %vm656, %v1163, %v1164
      %s1166 = scalar_lea.vmem %s264, 320
      %v1167 = vld [vmem:[%s1166] sm:$0xf]
      %v1168 = vld [vmem:[%s1166 + $0x4] sm:$0xf]
      %v1169 = vld [vmem:[%s1166 + $0x8] sm:$0xf]
      %v1170 = vld [vmem:[%s1166 + $0xc] sm:$0xf]
      %v1171 = vld [vmem:[%s1166 + $0x10] sm:$0xf]
      %v1172 = vld [vmem:[%s1166 + $0x14] sm:$0xf]
      %v1173 = vld [vmem:[%s1166 + $0x18] sm:$0xf]
      %v1174 = vld [vmem:[%s1166 + $0x1c] sm:$0xf]
      %v1175 = vld [vmem:[%s1166 + $0x20] sm:$0xf]
      %v1176 = vld [vmem:[%s1166 + $0x24] sm:$0xf]
      %v1177 = vld [vmem:[%s1166 + $0x28] sm:$0xf]
      %v1178 = vld [vmem:[%s1166 + $0x2c] sm:$0xf]
      %v1179 = vld [vmem:[%s1166 + $0x30] sm:$0xf]
      %v1180 = vld [vmem:[%s1166 + $0x34] sm:$0xf]
      %v1181 = vld [vmem:[%s1166 + $0x38] sm:$0xf]
      %v1182 = vld [vmem:[%s1166 + $0x3c] sm:$0xf]
      %v1183 = vcombine.low %v1153, %v1157
      %v1184 = vcombine.low %v1161, %v1165
      %v1186 = vunpack.c.l.s4 1983009808
      %v1187 = vunpack.c.0.s8 %v1186
      %v1188 = vlaneseq
      %v1189 = vshrl.u32 %v1188, 7
      %v1190 = vsub.s32 %v1187, %v1189
      %v1191 = vrot.slane %v1183, %v1190
      %v1193 = vunpack.c.l.s4 1983009808
      %v1194 = vunpack.c.0.s8 %v1193
      %v1195 = vlaneseq
      %v1196 = vshrl.u32 %v1195, 7
      %v1197 = vsub.s32 %v1194, %v1196
      %v1198 = vrot.slane %v1184, %v1197
      %v1199 = vcombine.low %v1191, %v1198
      %v1217 = vunpack.c.l.b16 %v1167
      %v1218 = vunpack.c.l.b16 %v1168
      %v1219 = vunpack.c.l.b16 %v1169
      %v1220 = vunpack.c.l.b16 %v1170
      %v1221 = vunpack.c.l.b16 %v1171
      %v1222 = vunpack.c.l.b16 %v1172
      %v1223 = vunpack.c.l.b16 %v1173
      %v1224 = vunpack.c.l.b16 %v1174
      %v1225 = vunpack.c.l.b16 %v1175
      %v1226 = vunpack.c.l.b16 %v1176
      %v1227 = vunpack.c.l.b16 %v1177
      %v1228 = vunpack.c.l.b16 %v1178
      %v1229 = vunpack.c.l.b16 %v1179
      %v1230 = vunpack.c.l.b16 %v1180
      %v1231 = vunpack.c.l.b16 %v1181
      %v1232 = vunpack.c.l.b16 %v1182
      %v1233 = vpack.c.b16 %v1218, %v1217
      %v1234 = vpack.c.b16 %v1220, %v1219
      %v1235 = vpack.c.b16 %v1222, %v1221
      %v1236 = vpack.c.b16 %v1224, %v1223
      %v1237 = vpack.c.b16 %v1226, %v1225
      %v1238 = vpack.c.b16 %v1228, %v1227
      %v1239 = vpack.c.b16 %v1230, %v1229
      %v1240 = vpack.c.b16 %v1232, %v1231
      %1249 = vmatprep.subr.bf16.mxu0 0
      %1250 = vmatpush1.bf16.msra.mxu0 %v1233
      %1251 = vmatprep.subr.bf16.mxu0 0
      %1252 = vmatpush1.bf16.msra.mxu0 %v1234
      %1253 = vmatprep.subr.bf16.mxu0 0
      %1254 = vmatpush1.bf16.msra.mxu0 %v1235
      %1255 = vmatprep.subr.bf16.mxu0 0
      %1256 = vmatpush1.bf16.msra.mxu0 %v1236
      %1257 = vmatprep.subr.bf16.mxu0 0
      %1258 = vmatpush1.bf16.msra.mxu0 %v1237
      %1259 = vmatprep.subr.bf16.mxu0 0
      %1260 = vmatpush1.bf16.msra.mxu0 %v1238
      %1261 = vmatprep.subr.bf16.mxu0 0
      %1262 = vmatpush1.bf16.msra.mxu0 %v1239
      %1263 = vmatprep.subr.bf16.mxu0 0
      %1264 = vmatpush1.bf16.msra.mxu0 %v1240
      %1265 = vmatprep.subr.bf16.mxu0 0
      %1266 = vmatpush1.bf16.msra.mxu0 0
      %1267 = vmatprep.subr.bf16.mxu0 0
      %1268 = vmatpush1.bf16.msra.mxu0 0
      %1269 = vmatprep.subr.bf16.mxu0 0
      %1270 = vmatpush1.bf16.msra.mxu0 0
      %1271 = vmatprep.subr.bf16.mxu0 0
      %1272 = vmatpush1.bf16.msra.mxu0 0
      %1273 = vmatprep.subr.bf16.mxu0 0
      %1274 = vmatpush1.bf16.msra.mxu0 0
      %1275 = vmatprep.subr.bf16.mxu0 0
      %1276 = vmatpush1.bf16.msra.mxu0 0
      %1277 = vmatprep.subr.bf16.mxu0 0
      %1278 = vmatpush1.bf16.msra.mxu0 0
      %1279 = vmatprep.subr.bf16.mxu0 0
      %1280 = vmatpush1.bf16.msra.mxu0 0
      %1281 = vmatprep.mubr.bf16.mxu0 0
      %1282 = vmatmul.mubr.bf16.gmra.mrb[0].mxu0 %v1199
      %v1283 = vpop.f32.mrb[0].mxu0
      %v1284 = vadd.f32 0.0, %v1283
      %v1285 = vpop.f32.mrb[0].mxu0
      %v1286 = vpop.f32.mrb[0].mxu0
      %v1287 = vadd.f32 0.0, %v1286
      %v1288 = vpop.f32.mrb[0].mxu0
      %1289 = vdwg.mxu0
      %v1290 = vadd.f32 %v1148, %v1284
      %v1291 = vadd.f32 %v1149, %v1287
      %s1292 = sadd.s32 %s297, 2
      %s1293 = smul.addr %s1292, 4
      %s1294 = scalar_lea.vmem %s0, %s1293
      %v1295 = vld [vmem:[%s1294] sm:$0x7]
      %v1296 = vld [vmem:[%s1294 + $0x4] sm:$0x7]
      %v1297 = vld [vmem:[%s1294 + $0x8] sm:$0x7]
      %v1298 = vld [vmem:[%s1294 + $0xc] sm:$0x7]
      %s1299 = scalar_lea.vmem %s264, 384
      %v1300 = vld [vmem:[%s1299] sm:$0xf]
      %v1301 = vld [vmem:[%s1299 + $0x4] sm:$0xf]
      %v1302 = vld [vmem:[%s1299 + $0x8] sm:$0xf]
      %v1303 = vld [vmem:[%s1299 + $0xc] sm:$0xf]
      %v1304 = vld [vmem:[%s1299 + $0x10] sm:$0xf]
      %v1305 = vld [vmem:[%s1299 + $0x14] sm:$0xf]
      %v1306 = vld [vmem:[%s1299 + $0x18] sm:$0xf]
      %v1307 = vld [vmem:[%s1299 + $0x1c] sm:$0xf]
      %v1308 = vld [vmem:[%s1299 + $0x20] sm:$0xf]
      %v1309 = vld [vmem:[%s1299 + $0x24] sm:$0xf]
      %v1310 = vld [vmem:[%s1299 + $0x28] sm:$0xf]
      %v1311 = vld [vmem:[%s1299 + $0x2c] sm:$0xf]
      %v1312 = vld [vmem:[%s1299 + $0x30] sm:$0xf]
      %v1313 = vld [vmem:[%s1299 + $0x34] sm:$0xf]
      %v1314 = vld [vmem:[%s1299 + $0x38] sm:$0xf]
      %v1315 = vld [vmem:[%s1299 + $0x3c] sm:$0xf]
      %v1320 = vcombine.low %v1295, %v1296
      %v1321 = vcombine.low %v1297, %v1298
      %v1323 = vunpack.c.l.s4 1983009808
      %v1324 = vunpack.c.0.s8 %v1323
      %v1325 = vlaneseq
      %v1326 = vshrl.u32 %v1325, 7
      %v1327 = vsub.s32 %v1324, %v1326
      %v1328 = vrot.slane %v1320, %v1327
      %v1330 = vunpack.c.l.s4 1983009808
      %v1331 = vunpack.c.0.s8 %v1330
      %v1332 = vlaneseq
      %v1333 = vshrl.u32 %v1332, 7
      %v1334 = vsub.s32 %v1331, %v1333
      %v1335 = vrot.slane %v1321, %v1334
      %v1336 = vcombine.low %v1328, %v1335
      %v1354 = vunpack.c.l.b16 %v1300
      %v1355 = vunpack.c.l.b16 %v1301
      %v1356 = vunpack.c.l.b16 %v1302
      %v1357 = vunpack.c.l.b16 %v1303
      %v1358 = vunpack.c.l.b16 %v1304
      %v1359 = vunpack.c.l.b16 %v1305
      %v1360 = vunpack.c.l.b16 %v1306
      %v1361 = vunpack.c.l.b16 %v1307
      %v1362 = vunpack.c.l.b16 %v1308
      %v1363 = vunpack.c.l.b16 %v1309
      %v1364 = vunpack.c.l.b16 %v1310
      %v1365 = vunpack.c.l.b16 %v1311
      %v1366 = vunpack.c.l.b16 %v1312
      %v1367 = vunpack.c.l.b16 %v1313
      %v1368 = vunpack.c.l.b16 %v1314
      %v1369 = vunpack.c.l.b16 %v1315
      %v1370 = vpack.c.b16 %v1355, %v1354
      %v1371 = vpack.c.b16 %v1357, %v1356
      %v1372 = vpack.c.b16 %v1359, %v1358
      %v1373 = vpack.c.b16 %v1361, %v1360
      %v1374 = vpack.c.b16 %v1363, %v1362
      %v1375 = vpack.c.b16 %v1365, %v1364
      %v1376 = vpack.c.b16 %v1367, %v1366
      %v1377 = vpack.c.b16 %v1369, %v1368
      %1386 = vmatprep.subr.bf16.mxu0 0
      %1387 = vmatpush1.bf16.msra.mxu0 %v1370
      %1388 = vmatprep.subr.bf16.mxu0 0
      %1389 = vmatpush1.bf16.msra.mxu0 %v1371
      %1390 = vmatprep.subr.bf16.mxu0 0
      %1391 = vmatpush1.bf16.msra.mxu0 %v1372
      %1392 = vmatprep.subr.bf16.mxu0 0
      %1393 = vmatpush1.bf16.msra.mxu0 %v1373
      %1394 = vmatprep.subr.bf16.mxu0 0
      %1395 = vmatpush1.bf16.msra.mxu0 %v1374
      %1396 = vmatprep.subr.bf16.mxu0 0
      %1397 = vmatpush1.bf16.msra.mxu0 %v1375
      %1398 = vmatprep.subr.bf16.mxu0 0
      %1399 = vmatpush1.bf16.msra.mxu0 %v1376
      %1400 = vmatprep.subr.bf16.mxu0 0
      %1401 = vmatpush1.bf16.msra.mxu0 %v1377
      %1402 = vmatprep.subr.bf16.mxu0 0
      %1403 = vmatpush1.bf16.msra.mxu0 0
      %1404 = vmatprep.subr.bf16.mxu0 0
      %1405 = vmatpush1.bf16.msra.mxu0 0
      %1406 = vmatprep.subr.bf16.mxu0 0
      %1407 = vmatpush1.bf16.msra.mxu0 0
      %1408 = vmatprep.subr.bf16.mxu0 0
      %1409 = vmatpush1.bf16.msra.mxu0 0
      %1410 = vmatprep.subr.bf16.mxu0 0
      %1411 = vmatpush1.bf16.msra.mxu0 0
      %1412 = vmatprep.subr.bf16.mxu0 0
      %1413 = vmatpush1.bf16.msra.mxu0 0
      %1414 = vmatprep.subr.bf16.mxu0 0
      %1415 = vmatpush1.bf16.msra.mxu0 0
      %1416 = vmatprep.subr.bf16.mxu0 0
      %1417 = vmatpush1.bf16.msra.mxu0 0
      %1418 = vmatprep.mubr.bf16.mxu0 0
      %1419 = vmatmul.mubr.bf16.gmra.mrb[0].mxu0 %v1336
      %v1420 = vpop.f32.mrb[0].mxu0
      %v1421 = vadd.f32 0.0, %v1420
      %v1422 = vpop.f32.mrb[0].mxu0
      %v1423 = vpop.f32.mrb[0].mxu0
      %v1424 = vadd.f32 0.0, %v1423
      %v1425 = vpop.f32.mrb[0].mxu0
      %1426 = vdwg.mxu0
      %v1427 = vadd.f32 %v1290, %v1421
      %v1428 = vadd.f32 %v1291, %v1424
      %v1430 = vunpack.c.l.s4 1983009808
      %v1431 = vunpack.c.0.s8 %v1430
      %v1432 = vlaneseq
      %v1433 = vshrl.u32 %v1432, 7
      %v1434 = vsub.s32 %v1431, %v1433
      %v1435 = vrot.slane %v1295, %v1434
      %v1436 = vcombine.high %v1435, %v1435
      %v1438 = vunpack.c.l.s4 1983009808
      %v1439 = vunpack.c.0.s8 %v1438
      %v1440 = vlaneseq
      %v1441 = vshrl.u32 %v1440, 7
      %v1442 = vsub.s32 %v1439, %v1441
      %v1443 = vrot.slane %v1296, %v1442
      %v1444 = vcombine.high %v1443, %v1443
      %v1446 = vunpack.c.l.s4 1983009808
      %v1447 = vunpack.c.0.s8 %v1446
      %v1448 = vlaneseq
      %v1449 = vshrl.u32 %v1448, 7
      %v1450 = vsub.s32 %v1447, %v1449
      %v1451 = vrot.slane %v1297, %v1450
      %v1452 = vcombine.high %v1451, %v1451
      %v1454 = vunpack.c.l.s4 1983009808
      %v1455 = vunpack.c.0.s8 %v1454
      %v1456 = vlaneseq
      %v1457 = vshrl.u32 %v1456, 7
      %v1458 = vsub.s32 %v1455, %v1457
      %v1459 = vrot.slane %v1298, %v1458
      %v1460 = vcombine.high %v1459, %v1459
      %v1462 = vshrl.u32 %v1435, 16
      %v1464 = vrot.slane %v1462, 6
      %v1465 = vshll.u32 %v1435, 16
      %v1467 = vrot.slane %v1465, 7
      %v1468 = vor.u32 %v1464, %v1467
      %v1469 = vrot.slane %v1468, 2
      %v1471 = vshll.u32 %v1436, 16
      %v1473 = vrot.slane %v1471, 7
      %v1474 = vsel %vm362, %v1469, %v1473
      %v1476 = vshrl.u32 %v1443, 16
      %v1478 = vrot.slane %v1476, 6
      %v1479 = vshll.u32 %v1443, 16
      %v1481 = vrot.slane %v1479, 7
      %v1482 = vor.u32 %v1478, %v1481
      %v1483 = vrot.slane %v1482, 2
      %v1485 = vshll.u32 %v1444, 16
      %v1487 = vrot.slane %v1485, 7
      %v1488 = vsel %vm362, %v1483, %v1487
      %v1490 = vshrl.u32 %v1451, 16
      %v1492 = vrot.slane %v1490, 6
      %v1493 = vshll.u32 %v1451, 16
      %v1495 = vrot.slane %v1493, 7
      %v1496 = vor.u32 %v1492, %v1495
      %v1497 = vrot.slane %v1496, 2
      %v1499 = vshll.u32 %v1452, 16
      %v1501 = vrot.slane %v1499, 7
      %v1502 = vsel %vm362, %v1497, %v1501
      %v1504 = vshrl.u32 %v1459, 16
      %v1506 = vrot.slane %v1504, 6
      %v1507 = vshll.u32 %v1459, 16
      %v1509 = vrot.slane %v1507, 7
      %v1510 = vor.u32 %v1506, %v1509
      %v1511 = vrot.slane %v1510, 2
      %v1513 = vshll.u32 %v1460, 16
      %v1515 = vrot.slane %v1513, 7
      %v1516 = vsel %vm362, %v1511, %v1515
      %s1517 = scalar_lea.vmem %s264, 448
      %v1518 = vld [vmem:[%s1517] sm:$0xf]
      %v1519 = vld [vmem:[%s1517 + $0x4] sm:$0xf]
      %v1520 = vld [vmem:[%s1517 + $0x8] sm:$0xf]
      %v1521 = vld [vmem:[%s1517 + $0xc] sm:$0xf]
      %v1522 = vld [vmem:[%s1517 + $0x10] sm:$0xf]
      %v1523 = vld [vmem:[%s1517 + $0x14] sm:$0xf]
      %v1524 = vld [vmem:[%s1517 + $0x18] sm:$0xf]
      %v1525 = vld [vmem:[%s1517 + $0x1c] sm:$0xf]
      %v1526 = vld [vmem:[%s1517 + $0x20] sm:$0xf]
      %v1527 = vld [vmem:[%s1517 + $0x24] sm:$0xf]
      %v1528 = vld [vmem:[%s1517 + $0x28] sm:$0xf]
      %v1529 = vld [vmem:[%s1517 + $0x2c] sm:$0xf]
      %v1530 = vld [vmem:[%s1517 + $0x30] sm:$0xf]
      %v1531 = vld [vmem:[%s1517 + $0x34] sm:$0xf]
      %v1532 = vld [vmem:[%s1517 + $0x38] sm:$0xf]
      %v1533 = vld [vmem:[%s1517 + $0x3c] sm:$0xf]
      %v1534 = vcombine.low %v1474, %v1488
      %v1535 = vcombine.low %v1502, %v1516
      %v1537 = vunpack.c.l.s4 1983009808
      %v1538 = vunpack.c.0.s8 %v1537
      %v1539 = vlaneseq
      %v1540 = vshrl.u32 %v1539, 7
      %v1541 = vsub.s32 %v1538, %v1540
      %v1542 = vrot.slane %v1534, %v1541
      %v1544 = vunpack.c.l.s4 1983009808
      %v1545 = vunpack.c.0.s8 %v1544
      %v1546 = vlaneseq
      %v1547 = vshrl.u32 %v1546, 7
      %v1548 = vsub.s32 %v1545, %v1547
      %v1549 = vrot.slane %v1535, %v1548
      %v1550 = vcombine.low %v1542, %v1549
      %v1568 = vunpack.c.l.b16 %v1518
      %v1569 = vunpack.c.l.b16 %v1519
      %v1570 = vunpack.c.l.b16 %v1520
      %v1571 = vunpack.c.l.b16 %v1521
      %v1572 = vunpack.c.l.b16 %v1522
      %v1573 = vunpack.c.l.b16 %v1523
      %v1574 = vunpack.c.l.b16 %v1524
      %v1575 = vunpack.c.l.b16 %v1525
      %v1576 = vunpack.c.l.b16 %v1526
      %v1577 = vunpack.c.l.b16 %v1527
      %v1578 = vunpack.c.l.b16 %v1528
      %v1579 = vunpack.c.l.b16 %v1529
      %v1580 = vunpack.c.l.b16 %v1530
      %v1581 = vunpack.c.l.b16 %v1531
      %v1582 = vunpack.c.l.b16 %v1532
      %v1583 = vunpack.c.l.b16 %v1533
      %v1584 = vpack.c.b16 %v1569, %v1568
      %v1585 = vpack.c.b16 %v1571, %v1570
      %v1586 = vpack.c.b16 %v1573, %v1572
      %v1587 = vpack.c.b16 %v1575, %v1574
      %v1588 = vpack.c.b16 %v1577, %v1576
      %v1589 = vpack.c.b16 %v1579, %v1578
      %v1590 = vpack.c.b16 %v1581, %v1580
      %v1591 = vpack.c.b16 %v1583, %v1582
      %1600 = vmatprep.subr.bf16.mxu0 0
      %1601 = vmatpush1.bf16.msra.mxu0 %v1584
      %1602 = vmatprep.subr.bf16.mxu0 0
      %1603 = vmatpush1.bf16.msra.mxu0 %v1585
      %1604 = vmatprep.subr.bf16.mxu0 0
      %1605 = vmatpush1.bf16.msra.mxu0 %v1586
      %1606 = vmatprep.subr.bf16.mxu0 0
      %1607 = vmatpush1.bf16.msra.mxu0 %v1587
      %1608 = vmatprep.subr.bf16.mxu0 0
      %1609 = vmatpush1.bf16.msra.mxu0 %v1588
      %1610 = vmatprep.subr.bf16.mxu0 0
      %1611 = vmatpush1.bf16.msra.mxu0 %v1589
      %1612 = vmatprep.subr.bf16.mxu0 0
      %1613 = vmatpush1.bf16.msra.mxu0 %v1590
      %1614 = vmatprep.subr.bf16.mxu0 0
      %1615 = vmatpush1.bf16.msra.mxu0 %v1591
      %1616 = vmatprep.subr.bf16.mxu0 0
      %1617 = vmatpush1.bf16.msra.mxu0 0
      %1618 = vmatprep.subr.bf16.mxu0 0
      %1619 = vmatpush1.bf16.msra.mxu0 0
      %1620 = vmatprep.subr.bf16.mxu0 0
      %1621 = vmatpush1.bf16.msra.mxu0 0
      %1622 = vmatprep.subr.bf16.mxu0 0
      %1623 = vmatpush1.bf16.msra.mxu0 0
      %1624 = vmatprep.subr.bf16.mxu0 0
      %1625 = vmatpush1.bf16.msra.mxu0 0
      %1626 = vmatprep.subr.bf16.mxu0 0
      %1627 = vmatpush1.bf16.msra.mxu0 0
      %1628 = vmatprep.subr.bf16.mxu0 0
      %1629 = vmatpush1.bf16.msra.mxu0 0
      %1630 = vmatprep.subr.bf16.mxu0 0
      %1631 = vmatpush1.bf16.msra.mxu0 0
      %1632 = vmatprep.mubr.bf16.mxu0 0
      %1633 = vmatmul.mubr.bf16.gmra.mrb[0].mxu0 %v1550
      %v1634 = vpop.f32.mrb[0].mxu0
      %v1635 = vadd.f32 0.0, %v1634
      %v1636 = vpop.f32.mrb[0].mxu0
      %v1637 = vpop.f32.mrb[0].mxu0
      %v1638 = vadd.f32 0.0, %v1637
      %v1639 = vpop.f32.mrb[0].mxu0
      %1640 = vdwg.mxu0
      %v1641 = vadd.f32 %v1427, %v1635
      %v1642 = vadd.f32 %v1428, %v1638
      %v1643 = vrot.slane %v1435, 7
      %v1644 = vrot.slane %v1643, 2
      %v1645 = vrot.slane %v1436, 7
      %v1646 = vsel %vm656, %v1644, %v1645
      %v1647 = vrot.slane %v1443, 7
      %v1648 = vrot.slane %v1647, 2
      %v1649 = vrot.slane %v1444, 7
      %v1650 = vsel %vm656, %v1648, %v1649
      %v1651 = vrot.slane %v1451, 7
      %v1652 = vrot.slane %v1651, 2
      %v1653 = vrot.slane %v1452, 7
      %v1654 = vsel %vm656, %v1652, %v1653
      %v1655 = vrot.slane %v1459, 7
      %v1656 = vrot.slane %v1655, 2
      %v1657 = vrot.slane %v1460, 7
      %v1658 = vsel %vm656, %v1656, %v1657
      %s1659 = scalar_lea.vmem %s264, 512
      %v1660 = vld [vmem:[%s1659] sm:$0xf]
      %v1661 = vld [vmem:[%s1659 + $0x4] sm:$0xf]
      %v1662 = vld [vmem:[%s1659 + $0x8] sm:$0xf]
      %v1663 = vld [vmem:[%s1659 + $0xc] sm:$0xf]
      %v1664 = vld [vmem:[%s1659 + $0x10] sm:$0xf]
      %v1665 = vld [vmem:[%s1659 + $0x14] sm:$0xf]
      %v1666 = vld [vmem:[%s1659 + $0x18] sm:$0xf]
      %v1667 = vld [vmem:[%s1659 + $0x1c] sm:$0xf]
      %v1668 = vld [vmem:[%s1659 + $0x20] sm:$0xf]
      %v1669 = vld [vmem:[%s1659 + $0x24] sm:$0xf]
      %v1670 = vld [vmem:[%s1659 + $0x28] sm:$0xf]
      %v1671 = vld [vmem:[%s1659 + $0x2c] sm:$0xf]
      %v1672 = vld [vmem:[%s1659 + $0x30] sm:$0xf]
      %v1673 = vld [vmem:[%s1659 + $0x34] sm:$0xf]
      %v1674 = vld [vmem:[%s1659 + $0x38] sm:$0xf]
      %v1675 = vld [vmem:[%s1659 + $0x3c] sm:$0xf]
      %v1676 = vcombine.low %v1646, %v1650
      %v1677 = vcombine.low %v1654, %v1658
      %v1679 = vunpack.c.l.s4 1983009808
      %v1680 = vunpack.c.0.s8 %v1679
      %v1681 = vlaneseq
      %v1682 = vshrl.u32 %v1681, 7
      %v1683 = vsub.s32 %v1680, %v1682
      %v1684 = vrot.slane %v1676, %v1683
      %v1686 = vunpack.c.l.s4 1983009808
      %v1687 = vunpack.c.0.s8 %v1686
      %v1688 = vlaneseq
      %v1689 = vshrl.u32 %v1688, 7
      %v1690 = vsub.s32 %v1687, %v1689
      %v1691 = vrot.slane %v1677, %v1690
      %v1692 = vcombine.low %v1684, %v1691
      %v1710 = vunpack.c.l.b16 %v1660
      %v1711 = vunpack.c.l.b16 %v1661
      %v1712 = vunpack.c.l.b16 %v1662
      %v1713 = vunpack.c.l.b16 %v1663
      %v1714 = vunpack.c.l.b16 %v1664
      %v1715 = vunpack.c.l.b16 %v1665
      %v1716 = vunpack.c.l.b16 %v1666
      %v1717 = vunpack.c.l.b16 %v1667
      %v1718 = vunpack.c.l.b16 %v1668
      %v1719 = vunpack.c.l.b16 %v1669
      %v1720 = vunpack.c.l.b16 %v1670
      %v1721 = vunpack.c.l.b16 %v1671
      %v1722 = vunpack.c.l.b16 %v1672
      %v1723 = vunpack.c.l.b16 %v1673
      %v1724 = vunpack.c.l.b16 %v1674
      %v1725 = vunpack.c.l.b16 %v1675
      %v1726 = vpack.c.b16 %v1711, %v1710
      %v1727 = vpack.c.b16 %v1713, %v1712
      %v1728 = vpack.c.b16 %v1715, %v1714
      %v1729 = vpack.c.b16 %v1717, %v1716
      %v1730 = vpack.c.b16 %v1719, %v1718
      %v1731 = vpack.c.b16 %v1721, %v1720
      %v1732 = vpack.c.b16 %v1723, %v1722
      %v1733 = vpack.c.b16 %v1725, %v1724
      %1742 = vmatprep.subr.bf16.mxu0 0
      %1743 = vmatpush1.bf16.msra.mxu0 %v1726
      %1744 = vmatprep.subr.bf16.mxu0 0
      %1745 = vmatpush1.bf16.msra.mxu0 %v1727
      %1746 = vmatprep.subr.bf16.mxu0 0
      %1747 = vmatpush1.bf16.msra.mxu0 %v1728
      %1748 = vmatprep.subr.bf16.mxu0 0
      %1749 = vmatpush1.bf16.msra.mxu0 %v1729
      %1750 = vmatprep.subr.bf16.mxu0 0
      %1751 = vmatpush1.bf16.msra.mxu0 %v1730
      %1752 = vmatprep.subr.bf16.mxu0 0
      %1753 = vmatpush1.bf16.msra.mxu0 %v1731
      %1754 = vmatprep.subr.bf16.mxu0 0
      %1755 = vmatpush1.bf16.msra.mxu0 %v1732
      %1756 = vmatprep.subr.bf16.mxu0 0
      %1757 = vmatpush1.bf16.msra.mxu0 %v1733
      %1758 = vmatprep.subr.bf16.mxu0 0
      %1759 = vmatpush1.bf16.msra.mxu0 0
      %1760 = vmatprep.subr.bf16.mxu0 0
      %1761 = vmatpush1.bf16.msra.mxu0 0
      %1762 = vmatprep.subr.bf16.mxu0 0
      %1763 = vmatpush1.bf16.msra.mxu0 0
      %1764 = vmatprep.subr.bf16.mxu0 0
      %1765 = vmatpush1.bf16.msra.mxu0 0
      %1766 = vmatprep.subr.bf16.mxu0 0
      %1767 = vmatpush1.bf16.msra.mxu0 0
      %1768 = vmatprep.subr.bf16.mxu0 0
      %1769 = vmatpush1.bf16.msra.mxu0 0
      %1770 = vmatprep.subr.bf16.mxu0 0
      %1771 = vmatpush1.bf16.msra.mxu0 0
      %1772 = vmatprep.subr.bf16.mxu0 0
      %1773 = vmatpush1.bf16.msra.mxu0 0
      %1774 = vmatprep.mubr.bf16.mxu0 0
      %1775 = vmatmul.mubr.bf16.gmra.mrb[0].mxu0 %v1692
      %v1776 = vpop.f32.mrb[0].mxu0
      %v1777 = vadd.f32 0.0, %v1776
      %v1778 = vpop.f32.mrb[0].mxu0
      %v1779 = vpop.f32.mrb[0].mxu0
      %v1780 = vadd.f32 0.0, %v1779
      %v1781 = vpop.f32.mrb[0].mxu0
      %1782 = vdwg.mxu0
      %v1783 = vadd.f32 %v1641, %v1777
      %v1784 = vadd.f32 %v1642, %v1780
      %v1785 = vld [vmem:[%s267] sm:$0x1]
      %v1787 = vlaneseq
      %v1788 = vshrl.u32 %v1787, 7
      %v1789 = vsub.s32 0, %v1788
      %v1790 = vrot.slane %v1785, %v1789
      %v1792 = vadd.f32 %v1783, %v1790
      %v1793 = vadd.f32 %v1784, %v1790
      %v1796 = vcombine.high %v1792, %v1792
      %v1797 = vcombine.high %v1793, %v1793
      %v1800 = vld [vmem:[%s279] sm:$0x3]
      %v1801 = vld [vmem:[%s279 + $0x2] sm:$0x3]
      %v1802 = vld [vmem:[%s279 + $0x4] sm:$0x3]
      %v1803 = vld [vmem:[%s279 + $0x6] sm:$0x3]
      %v1804 = vunpack.c.l.bf16 %v1800
      %v1805 = vunpack.c.l.bf16 %v1801
      %v1806 = vunpack.c.l.bf16 %v1802
      %v1807 = vunpack.c.l.bf16 %v1803
      %v1808 = vadd.f32 %v1792, %v1804
      %v1809 = vadd.f32 %v1796, %v1805
      %v1810 = vadd.f32 %v1793, %v1806
      %v1811 = vadd.f32 %v1797, %v1807
      %v1812 = vmax.f32 %v1808, 0.0
      %v1813 = vmax.f32 %v1809, 0.0
      %v1814 = vmax.f32 %v1810, 0.0
      %v1815 = vmax.f32 %v1811, 0.0
      %v1816 = vpack.c.bf16 %v1812, %v1812
      %v1817 = vpack.c.bf16 %v1813, %v1813
      %v1818 = vpack.c.bf16 %v1814, %v1814
      %v1819 = vpack.c.bf16 %v1815, %v1815
      %1820 = vst [vmem:[%s292] sm:$0x3] %v1816
      %1821 = vst [vmem:[%s292 + $0x2] sm:$0x3] %v1817
      %1822 = vst [vmem:[%s292 + $0x4] sm:$0x3] %v1818
      %1823 = vst [vmem:[%s292 + $0x6] sm:$0x3] %v1819
      %s1824 = smul.u32 4, %s22
      %p1825 = scmp.lt.s32.totalorder %s21, 1
      %s1826 = scalar_select %p1825, %s21, 1
      %p1827 = scmp.lt.s32.totalorder %s1824, 3
      %s1828 = scalar_select %p1827, %s1824, 3
      %p1829 = scmp.lt.s32.totalorder %s20, 0
      %s1830 = scalar_select %p1829, %s20, 0
      %s1831 = sadd.s32 %s1830, %s1828
      %s1832 = smul.addr %s1826, 4
      %s1833 = sadd.s32 %s1831, %s1832
      %s1834 = smul.addr %s1833, 2
      %s1835 = scalar_lea.vmem %s4, %s1834
      // Predicated region
      $region37: #{cnn_forward.15} parent=35 // pred_check
        %p1836 = pneg %p159
      $region38: #{cnn_forward.15} parent=35 // pred_check_branch
        %1838 = sbr.rel (%p1836) target = $region40
      $region39: #{cnn_forward.15} parent=35 // pred_region
        %s1839 = smul.u32 4, %s22
      $region40: #{cnn_forward.15} parent=35 // pred_fallthru
        _
    $region36: #{cnn_forward.15} parent=5 // pred_fallthru
      _
    %p1840 = scmp.le.s32.totalorder 2, %s10
    // Predicated region
    $region41: #{cnn_forward.15} parent=5 // pred_check
      %p1841 = pneg %p1840
    $region42: #{cnn_forward.15} parent=5 // pred_check_branch
      %1843 = sbr.rel (%p1841) target = $region44
    $region43: #{cnn_forward.15} parent=5 // pred_region
      %s1844 = ssub.s32 %s10, 2
      // Predicated region
      $region45: #{cnn_forward.15} parent=43 // pred_check
        %p1845 = pneg %p165
      $region46: #{cnn_forward.15} parent=43 // pred_check_branch
        %1847 = sbr.rel (%p1845) target = $region48
      $region47: #{cnn_forward.15} parent=43 // pred_region
        %s1848 = smul.u32 4, %s25
        %p1849 = scmp.lt.s32.totalorder %s24, 1
        %s1850 = scalar_select %p1849, %s24, 1
        %p1851 = scmp.lt.s32.totalorder %s1848, 3
        %s1852 = scalar_select %p1851, %s1848, 3
        %p1853 = scmp.lt.s32.totalorder %s23, 0
        %s1854 = scalar_select %p1853, %s23, 0
        %s1855 = sadd.s32 %s1854, %s1852
        %s1856 = smul.addr %s1850, 4
        %s1857 = sadd.s32 %s1855, %s1856
        %s1858 = smul.addr %s1857, 2
        %s1859 = scalar_lea.vmem %s4, %s1858
      $region48: #{cnn_forward.15} parent=43 // pred_fallthru
        _
    $region44: #{cnn_forward.15} parent=5 // pred_fallthru
      _
  $region6: #{cnn_forward.15} parent=0 // loop_footer
    %s14 = sadd.s32 1, %s10
  $region7: #{cnn_forward.15} parent=0 // loop_footer_branch
    %9 = sbr.rel target = $region3
  $region8: #{cnn_forward.15} parent=0 // loop_exit
    _

// kernel: cnn_forward.16
$region0: #{cnn_forward.16}
  #allocation0 [shape = 'u32[]', space=smem, size = 0x4, offset = 0x4, fixed_abs, tag = 'smem constant byte address 0x4 - core index']
  #allocation1 [shape = 'u32[144,128]{1,0:T(1,128)}', space=vmem, size = 0x12000, scoped, tag = 'internal scratch']
  %s0 = inlined_call_operand.vmem [shape: bf16[12,6,128], index: 0, kind: input, shape index: {}]
  %s1 = inlined_call_operand.vmem [shape: bf16[9,128,128], index: 1, kind: input, shape index: {}]
  %s2 = inlined_call_operand.vmem [shape: f32[1,128], index: 2, kind: input, shape index: {}]
  %s3 = inlined_call_operand.vmem [shape: bf16[2,4,4,128], index: 3, kind: output, shape index: {}]
  %s4 = sld [smem:[#allocation0]]
  $region45: #{cnn_forward.16} parent=0
    _
  %s6 = ssub.s32 1, %s4
  %s7 = scalar_select 0, %s6, %s4
  loop: start=0, step=1, limit=4
  $region2: #{cnn_forward.16} parent=0 // loop_pre_header
    _
  $region3: #{cnn_forward.16} parent=0 // loop_header
    %s9 = sphi 0, %s13
    %p10 = scmp.ge.s32.totalorder %s9, 4
    %s16 = sphi 0, %s35
    %s17 = sphi 0, %s31
    %s18 = sphi 0, %s27
    %s19 = sphi 0, %s16
    %s20 = sphi 0, %s17
    %s21 = sphi 0, %s18
    %s22 = sphi 0, %s19
    %s23 = sphi 0, %s20
    %s24 = sphi 0, %s21
    %s36 = sphi 0, %s36
    %s38 = sphi 0, %s36
    %s39 = sphi 0, %s38
    %s53 = sphi 0, %s39
    %s59 = sphi 0, %s61
    %s62 = sphi 0, %s59
    %s63 = sphi 0, %s62
    %s79 = sphi 0, %s63
    %s85 = sphi 0, %s87
    %s88 = sphi 0, %s85
    %s89 = sphi 0, %s88
    %s105 = sphi 0, %s89
    %s115 = sphi 0, %s117
    %s118 = sphi 0, %s115
    %s119 = sphi 0, %s118
    %s135 = sphi 0, %s119
  $region4: #{cnn_forward.16} parent=0 // loop_header_branch
    %12 = sbr.rel (%p10) target = $region8
  $region5: #{cnn_forward.16} parent=0 // loop_body
    %s14 = ssub.s32 %s9, 1
    %s15 = ssub.s32 %s9, 2
    %s25 = sadd.s32 1, %s18
    %p26 = scmp.ge.s32.totalorder %s25, 1
    %s27 = scalar_select %p26, 0, %s25
    %s28 = sadd.s32 1, %s17
    %s29 = scalar_select %p26, %s28, %s17
    %p30 = scmp.ge.s32.totalorder %s29, 2
    %s31 = scalar_select %p30, 0, %s29
    %s32 = sadd.s32 1, %s16
    %s33 = scalar_select %p30, %s32, %s16
    %p34 = scmp.ge.s32.totalorder %s33, 1
    %s35 = scalar_select %p34, 0, %s33
    %s37 = sadd.s32 %s36, 1
    %p40 = scmp.eq.s32.totalorder %s9, 1
    %p41 = scmp.ne.s32.totalorder %s36, %s38
    %p42 = scmp.eq.s32.totalorder %s9, 0
    %p43 = por %p41, %p42
    %p44 = scmp.ne.s32.totalorder %s36, %s38
    %p45 = scmp.eq.s32.totalorder %s14, 1
    %p46 = por %p44, %p45
    %p47 = scmp.ne.s32.totalorder %s38, %s39
    %p48 = scmp.eq.s32.totalorder %s14, 0
    %p49 = por %p47, %p48
    %p50 = scmp.ne.s32.totalorder %s38, %s39
    %p51 = scmp.eq.s32.totalorder %s15, 1
    %p52 = por %p50, %p51
    %p54 = scmp.ne.s32.totalorder %s39, %s53
    %p55 = scmp.eq.s32.totalorder %s15, 0
    %p56 = por %p54, %p55
    %s57 = ssub.s32 %s16, %s35
    %p58 = scmp.eq.s32.totalorder %s57, 0
    %s60 = sadd.s32 %s59, 1
    %s61 = scalar_select %p58, %s59, %s60
    %p64 = pneg %p58
    %p65 = scmp.eq.s32.totalorder %s9, 1
    %p66 = por %p64, %p65
    %p67 = scmp.ne.s32.totalorder %s59, %s62
    %p68 = scmp.eq.s32.totalorder %s9, 0
    %p69 = por %p67, %p68
    %p70 = scmp.ne.s32.totalorder %s59, %s62
    %p71 = scmp.eq.s32.totalorder %s14, 1
    %p72 = por %p70, %p71
    %p73 = scmp.ne.s32.totalorder %s62, %s63
    %p74 = scmp.eq.s32.totalorder %s14, 0
    %p75 = por %p73, %p74
    %p76 = scmp.ne.s32.totalorder %s62, %s63
    %p77 = scmp.eq.s32.totalorder %s15, 1
    %p78 = por %p76, %p77
    %p80 = scmp.ne.s32.totalorder %s63, %s79
    %p81 = scmp.eq.s32.totalorder %s15, 0
    %p82 = por %p80, %p81
    %s83 = ssub.s32 %s16, %s35
    %p84 = scmp.eq.s32.totalorder %s83, 0
    %s86 = sadd.s32 %s85, 1
    %s87 = scalar_select %p84, %s85, %s86
    %p90 = pneg %p84
    %p91 = scmp.eq.s32.totalorder %s9, 1
    %p92 = por %p90, %p91
    %p93 = scmp.ne.s32.totalorder %s85, %s88
    %p94 = scmp.eq.s32.totalorder %s9, 0
    %p95 = por %p93, %p94
    %p96 = scmp.ne.s32.totalorder %s85, %s88
    %p97 = scmp.eq.s32.totalorder %s14, 1
    %p98 = por %p96, %p97
    %p99 = scmp.ne.s32.totalorder %s88, %s89
    %p100 = scmp.eq.s32.totalorder %s14, 0
    %p101 = por %p99, %p100
    %p102 = scmp.ne.s32.totalorder %s88, %s89
    %p103 = scmp.eq.s32.totalorder %s15, 1
    %p104 = por %p102, %p103
    %p106 = scmp.ne.s32.totalorder %s89, %s105
    %p107 = scmp.eq.s32.totalorder %s15, 0
    %p108 = por %p106, %p107
    %s109 = ssub.s32 %s17, %s31
    %s110 = ssub.s32 %s18, %s27
    %s111 = sor.u32 %s109, %s110
    %s112 = ssub.s32 %s16, %s35
    %s113 = sor.u32 %s111, %s112
    %p114 = scmp.eq.s32.totalorder %s113, 0
    %s116 = sadd.s32 %s115, 1
    %s117 = scalar_select %p114, %s115, %s116
    %p120 = pneg %p114
    %p121 = scmp.eq.s32.totalorder %s9, 1
    %p122 = por %p120, %p121
    %p123 = scmp.ne.s32.totalorder %s115, %s118
    %p124 = scmp.eq.s32.totalorder %s9, 0
    %p125 = por %p123, %p124
    %p126 = scmp.ne.s32.totalorder %s115, %s118
    %p127 = scmp.eq.s32.totalorder %s14, 1
    %p128 = por %p126, %p127
    %p129 = scmp.ne.s32.totalorder %s118, %s119
    %p130 = scmp.eq.s32.totalorder %s14, 0
    %p131 = por %p129, %p130
    %p132 = scmp.ne.s32.totalorder %s118, %s119
    %p133 = scmp.eq.s32.totalorder %s15, 1
    %p134 = por %p132, %p133
    %p136 = scmp.ne.s32.totalorder %s119, %s135
    %p137 = scmp.eq.s32.totalorder %s15, 0
    %p138 = por %p136, %p137
    %p139 = scmp.le.s32.totalorder 1, %s9
    %p140 = scmp.lt.s32.totalorder %s9, 3
    %p141 = pnand %p139, %p140
    %p142 = pneg %p141
    // Predicated region
    $region9: #{cnn_forward.16} parent=5 // pred_check
      _
    $region10: #{cnn_forward.16} parent=5 // pred_check_branch
      %144 = sbr.rel (%p141) target = $region12
    $region11: #{cnn_forward.16} parent=5 // pred_region
      %s145 = ssub.s32 %s9, 1
      // Predicated region
      $region13: #{cnn_forward.16} parent=11 // pred_check
        %p146 = pneg %p49
      $region14: #{cnn_forward.16} parent=11 // pred_check_branch
        %148 = sbr.rel (%p146) target = $region16
      $region15: #{cnn_forward.16} parent=11 // pred_region
        _
      $region16: #{cnn_forward.16} parent=11 // pred_fallthru
        _
      // Predicated region
      $region17: #{cnn_forward.16} parent=11 // pred_check
        %p149 = pneg %p75
      $region18: #{cnn_forward.16} parent=11 // pred_check_branch
        %151 = sbr.rel (%p149) target = $region20
      $region19: #{cnn_forward.16} parent=11 // pred_region
        %p152 = scmp.lt.s32.totalorder %s19, 0
        %s153 = scalar_select %p152, %s19, 0
        %s154 = smul.addr %s153, 4
        %s155 = scalar_lea.vmem %s1, %s154
      $region20: #{cnn_forward.16} parent=11 // pred_fallthru
        _
      // Predicated region
      $region21: #{cnn_forward.16} parent=11 // pred_check
        %p156 = pneg %p101
      $region22: #{cnn_forward.16} parent=11 // pred_check_branch
        %158 = sbr.rel (%p156) target = $region24
      $region23: #{cnn_forward.16} parent=11 // pred_region
        %p159 = scmp.lt.s32.totalorder %s19, 0
        %s160 = scalar_select %p159, %s19, 0
        %s161 = scalar_lea.vmem %s2, %s160
      $region24: #{cnn_forward.16} parent=11 // pred_fallthru
        _
    $region12: #{cnn_forward.16} parent=5 // pred_fallthru
      _
    %p162 = scmp.lt.s32.totalorder %s9, 2
    // Predicated region
    $region25: #{cnn_forward.16} parent=5 // pred_check
      %p163 = pneg %p162
    $region26: #{cnn_forward.16} parent=5 // pred_check_branch
      %165 = sbr.rel (%p163) target = $region28
    $region27: #{cnn_forward.16} parent=5 // pred_region
      _
    $region28: #{cnn_forward.16} parent=5 // pred_fallthru
      _
    %p166 = scmp.le.s32.totalorder 1, %s9
    %p167 = scmp.lt.s32.totalorder %s9, 3
    %p168 = pnand %p166, %p167
    %p169 = pneg %p168
    // Predicated region
    $region29: #{cnn_forward.16} parent=5 // pred_check
      _
    $region30: #{cnn_forward.16} parent=5 // pred_check_branch
      %171 = sbr.rel (%p168) target = $region32
    $region31: #{cnn_forward.16} parent=5 // pred_region
      %s172 = ssub.s32 %s9, 1
      %p173 = pneg %p49
      %p174 = pneg %p46
      %p175 = scmp.lt.s32.totalorder %s19, 0
      %s176 = scalar_select %p175, %s19, 0
      %s177 = smul.addr %s176, 4
      %s178 = scalar_lea.vmem %s1, %s177
      %p179 = pneg %p75
      %p180 = pneg %p72
      %p181 = scmp.lt.s32.totalorder %s19, 0
      %s182 = scalar_select %p181, %s19, 0
      %s183 = scalar_lea.vmem %s2, %s182
      %p184 = pneg %p101
      %p185 = pneg %p98
      %p186 = pneg %p131
      %p187 = pneg %p128
      %s188 = smul.u32 4, %s21
      %p189 = scmp.lt.s32.totalorder %s20, 1
      %s190 = scalar_select %p189, %s20, 1
      %p191 = scmp.lt.s32.totalorder %s188, 3
      %s192 = scalar_select %p191, %s188, 3
      %p193 = scmp.lt.s32.totalorder %s19, 0
      %s194 = scalar_select %p193, %s19, 0
      %s195 = sadd.s32 %s194, %s192
      %s196 = smul.addr %s190, 4
      %s197 = sadd.s32 %s195, %s196
      %s198 = smul.addr %s197, 2
      %s199 = scalar_lea.vmem %s3, %s198
      %p200 = scmp.lt.s32.totalorder %s19, 0
      %s201 = scalar_select %p200, %s19, 0
      %s202 = smul.addr %s201, 4
      %s203 = scalar_lea.vmem %s1, %s202
      %p204 = scmp.lt.s32.totalorder %s19, 0
      %s205 = scalar_select %p204, %s19, 0
      %s206 = scalar_lea.vmem %s2, %s205
      %s207 = smul.u32 4, %s21
      %p208 = scmp.lt.s32.totalorder %s20, 1
      %s209 = scalar_select %p208, %s20, 1
      %p210 = scmp.lt.s32.totalorder %s207, 3
      %s211 = scalar_select %p210, %s207, 3
      %p212 = scmp.lt.s32.totalorder %s19, 0
      %s213 = scalar_select %p212, %s19, 0
      %s214 = sadd.s32 %s213, %s211
      %s215 = smul.addr %s209, 4
      %s216 = sadd.s32 %s214, %s215
      %s217 = smul.addr %s216, 2
      %s218 = scalar_lea.vmem %s3, %s217
      %s219 = smul.u32 4, %s21
      %s221 = smul.u32 %s20, 6
      %s222 = smul.u32 %s21, 4
      %s223 = sadd.s32 %s221, %s222
      %s224 = smul.addr %s223, 4
      %s225 = scalar_lea.vmem %s0, %s224
      %v226 = vld [vmem:[%s225] sm:$0x7]
      %v227 = vld [vmem:[%s225 + $0x4] sm:$0x7]
      %v228 = vld [vmem:[%s225 + $0x8] sm:$0x7]
      %v229 = vld [vmem:[%s225 + $0xc] sm:$0x7]
      %v230 = vld [vmem:[%s203] sm:$0xf]
      %v231 = vld [vmem:[%s203 + $0x4] sm:$0xf]
      %v232 = vld [vmem:[%s203 + $0x8] sm:$0xf]
      %v233 = vld [vmem:[%s203 + $0xc] sm:$0xf]
      %v234 = vld [vmem:[%s203 + $0x10] sm:$0xf]
      %v235 = vld [vmem:[%s203 + $0x14] sm:$0xf]
      %v236 = vld [vmem:[%s203 + $0x18] sm:$0xf]
      %v237 = vld [vmem:[%s203 + $0x1c] sm:$0xf]
      %v238 = vld [vmem:[%s203 + $0x20] sm:$0xf]
      %v239 = vld [vmem:[%s203 + $0x24] sm:$0xf]
      %v240 = vld [vmem:[%s203 + $0x28] sm:$0xf]
      %v241 = vld [vmem:[%s203 + $0x2c] sm:$0xf]
      %v242 = vld [vmem:[%s203 + $0x30] sm:$0xf]
      %v243 = vld [vmem:[%s203 + $0x34] sm:$0xf]
      %v244 = vld [vmem:[%s203 + $0x38] sm:$0xf]
      %v245 = vld [vmem:[%s203 + $0x3c] sm:$0xf]
      %v251 = vunpack.c.l.s4 1983009808
      %v252 = vunpack.c.0.s8 %v251
      %v253 = vlaneseq
      %v254 = vshrl.u32 %v253, 7
      %v255 = vsub.s32 %v252, %v254
      %v256 = vrot.slane %v226, %v255
      %v257 = vcombine.high %v256, %v256
      %v259 = vunpack.c.l.s4 1983009808
      %v260 = vunpack.c.0.s8 %v259
      %v261 = vlaneseq
      %v262 = vshrl.u32 %v261, 7
      %v263 = vsub.s32 %v260, %v262
      %v264 = vrot.slane %v227, %v263
      %v265 = vcombine.high %v264, %v264
      %v267 = vunpack.c.l.s4 1983009808
      %v268 = vunpack.c.0.s8 %v267
      %v269 = vlaneseq
      %v270 = vshrl.u32 %v269, 7
      %v271 = vsub.s32 %v268, %v270
      %v272 = vrot.slane %v228, %v271
      %v273 = vcombine.high %v272, %v272
      %v275 = vunpack.c.l.s4 1983009808
      %v276 = vunpack.c.0.s8 %v275
      %v277 = vlaneseq
      %v278 = vshrl.u32 %v277, 7
      %v279 = vsub.s32 %v276, %v278
      %v280 = vrot.slane %v229, %v279
      %v281 = vcombine.high %v280, %v280
      %vm282 = vsmask.f32 1280
      %vm283 = vsmask.f32 3336
      %vm284 = vmor %vm282, %vm283
      %vm285 = vsmask.f32 5392
      %vm286 = vmor %vm284, %vm285
      %vm287 = vsmask.f32 7448
      %vm288 = vmor %vm286, %vm287
      %v290 = vshrl.u32 %v256, 16
      %v292 = vrot.slane %v290, 6
      %v293 = vshll.u32 %v256, 16
      %v295 = vrot.slane %v293, 7
      %v296 = vor.u32 %v292, %v295
      %v297 = vrot.slane %v296, 2
      %v299 = vshll.u32 %v257, 16
      %v301 = vrot.slane %v299, 7
      %v302 = vsel %vm288, %v297, %v301
      %v304 = vshrl.u32 %v264, 16
      %v306 = vrot.slane %v304, 6
      %v307 = vshll.u32 %v264, 16
      %v309 = vrot.slane %v307, 7
      %v310 = vor.u32 %v306, %v309
      %v311 = vrot.slane %v310, 2
      %v313 = vshll.u32 %v265, 16
      %v315 = vrot.slane %v313, 7
      %v316 = vsel %vm288, %v311, %v315
      %v318 = vshrl.u32 %v272, 16
      %v320 = vrot.slane %v318, 6
      %v321 = vshll.u32 %v272, 16
      %v323 = vrot.slane %v321, 7
      %v324 = vor.u32 %v320, %v323
      %v325 = vrot.slane %v324, 2
      %v327 = vshll.u32 %v273, 16
      %v329 = vrot.slane %v327, 7
      %v330 = vsel %vm288, %v325, %v329
      %v332 = vshrl.u32 %v280, 16
      %v334 = vrot.slane %v332, 6
      %v335 = vshll.u32 %v280, 16
      %v337 = vrot.slane %v335, 7
      %v338 = vor.u32 %v334, %v337
      %v339 = vrot.slane %v338, 2
      %v341 = vshll.u32 %v281, 16
      %v343 = vrot.slane %v341, 7
      %v344 = vsel %vm288, %v339, %v343
      %s345 = scalar_lea.vmem %s203, 64
      %v346 = vld [vmem:[%s345] sm:$0xf]
      %v347 = vld [vmem:[%s345 + $0x4] sm:$0xf]
      %v348 = vld [vmem:[%s345 + $0x8] sm:$0xf]
      %v349 = vld [vmem:[%s345 + $0xc] sm:$0xf]
      %v350 = vld [vmem:[%s345 + $0x10] sm:$0xf]
      %v351 = vld [vmem:[%s345 + $0x14] sm:$0xf]
      %v352 = vld [vmem:[%s345 + $0x18] sm:$0xf]
      %v353 = vld [vmem:[%s345 + $0x1c] sm:$0xf]
      %v354 = vld [vmem:[%s345 + $0x20] sm:$0xf]
      %v355 = vld [vmem:[%s345 + $0x24] sm:$0xf]
      %v356 = vld [vmem:[%s345 + $0x28] sm:$0xf]
      %v357 = vld [vmem:[%s345 + $0x2c] sm:$0xf]
      %v358 = vld [vmem:[%s345 + $0x30] sm:$0xf]
      %v359 = vld [vmem:[%s345 + $0x34] sm:$0xf]
      %v360 = vld [vmem:[%s345 + $0x38] sm:$0xf]
      %v361 = vld [vmem:[%s345 + $0x3c] sm:$0xf]
      %v362 = vcombine.low %v302, %v316
      %v363 = vcombine.low %v330, %v344
      %v365 = vunpack.c.l.s4 1983009808
      %v366 = vunpack.c.0.s8 %v365
      %v367 = vlaneseq
      %v368 = vshrl.u32 %v367, 7
      %v369 = vsub.s32 %v366, %v368
      %v370 = vrot.slane %v362, %v369
      %v372 = vunpack.c.l.s4 1983009808
      %v373 = vunpack.c.0.s8 %v372
      %v374 = vlaneseq
      %v375 = vshrl.u32 %v374, 7
      %v376 = vsub.s32 %v373, %v375
      %v377 = vrot.slane %v363, %v376
      %v378 = vcombine.low %v370, %v377
      %v396 = vunpack.c.l.b16 %v346
      %v397 = vunpack.c.l.b16 %v347
      %v398 = vunpack.c.l.b16 %v348
      %v399 = vunpack.c.l.b16 %v349
      %v400 = vunpack.c.l.b16 %v350
      %v401 = vunpack.c.l.b16 %v351
      %v402 = vunpack.c.l.b16 %v352
      %v403 = vunpack.c.l.b16 %v353
      %v404 = vunpack.c.l.b16 %v354
      %v405 = vunpack.c.l.b16 %v355
      %v406 = vunpack.c.l.b16 %v356
      %v407 = vunpack.c.l.b16 %v357
      %v408 = vunpack.c.l.b16 %v358
      %v409 = vunpack.c.l.b16 %v359
      %v410 = vunpack.c.l.b16 %v360
      %v411 = vunpack.c.l.b16 %v361
      %v412 = vpack.c.b16 %v397, %v396
      %v413 = vpack.c.b16 %v399, %v398
      %v414 = vpack.c.b16 %v401, %v400
      %v415 = vpack.c.b16 %v403, %v402
      %v416 = vpack.c.b16 %v405, %v404
      %v417 = vpack.c.b16 %v407, %v406
      %v418 = vpack.c.b16 %v409, %v408
      %v419 = vpack.c.b16 %v411, %v410
      %428 = vmatprep.subr.bf16.mxu0 0
      %429 = vmatpush1.bf16.msra.mxu0 %v412
      %430 = vmatprep.subr.bf16.mxu0 0
      %431 = vmatpush1.bf16.msra.mxu0 %v413
      %432 = vmatprep.subr.bf16.mxu0 0
      %433 = vmatpush1.bf16.msra.mxu0 %v414
      %434 = vmatprep.subr.bf16.mxu0 0
      %435 = vmatpush1.bf16.msra.mxu0 %v415
      %436 = vmatprep.subr.bf16.mxu0 0
      %437 = vmatpush1.bf16.msra.mxu0 %v416
      %438 = vmatprep.subr.bf16.mxu0 0
      %439 = vmatpush1.bf16.msra.mxu0 %v417
      %440 = vmatprep.subr.bf16.mxu0 0
      %441 = vmatpush1.bf16.msra.mxu0 %v418
      %442 = vmatprep.subr.bf16.mxu0 0
      %443 = vmatpush1.bf16.msra.mxu0 %v419
      %444 = vmatprep.subr.bf16.mxu0 0
      %445 = vmatpush1.bf16.msra.mxu0 0
      %446 = vmatprep.subr.bf16.mxu0 0
      %447 = vmatpush1.bf16.msra.mxu0 0
      %448 = vmatprep.subr.bf16.mxu0 0
      %449 = vmatpush1.bf16.msra.mxu0 0
      %450 = vmatprep.subr.bf16.mxu0 0
      %451 = vmatpush1.bf16.msra.mxu0 0
      %452 = vmatprep.subr.bf16.mxu0 0
      %453 = vmatpush1.bf16.msra.mxu0 0
      %454 = vmatprep.subr.bf16.mxu0 0
      %455 = vmatpush1.bf16.msra.mxu0 0
      %456 = vmatprep.subr.bf16.mxu0 0
      %457 = vmatpush1.bf16.msra.mxu0 0
      %458 = vmatprep.subr.bf16.mxu0 0
      %459 = vmatpush1.bf16.msra.mxu0 0
      %460 = vmatprep.mubr.bf16.mxu0 0
      %461 = vmatmul.mubr.bf16.gmra.mrb[0].mxu0 %v378
      %v462 = vpop.f32.mrb[0].mxu0
      %v463 = vadd.f32 0.0, %v462
      %v464 = vpop.f32.mrb[0].mxu0
      %v465 = vpop.f32.mrb[0].mxu0
      %v466 = vadd.f32 0.0, %v465
      %v467 = vpop.f32.mrb[0].mxu0
      %468 = vdwg.mxu0
      %v469 = vcombine.low %v226, %v227
      %v470 = vcombine.low %v228, %v229
      %v472 = vunpack.c.l.s4 1983009808
      %v473 = vunpack.c.0.s8 %v472
      %v474 = vlaneseq
      %v475 = vshrl.u32 %v474, 7
      %v476 = vsub.s32 %v473, %v475
      %v477 = vrot.slane %v469, %v476
      %v479 = vunpack.c.l.s4 1983009808
      %v480 = vunpack.c.0.s8 %v479
      %v481 = vlaneseq
      %v482 = vshrl.u32 %v481, 7
      %v483 = vsub.s32 %v480, %v482
      %v484 = vrot.slane %v470, %v483
      %v485 = vcombine.low %v477, %v484
      %v503 = vunpack.c.l.b16 %v230
      %v504 = vunpack.c.l.b16 %v231
      %v505 = vunpack.c.l.b16 %v232
      %v506 = vunpack.c.l.b16 %v233
      %v507 = vunpack.c.l.b16 %v234
      %v508 = vunpack.c.l.b16 %v235
      %v509 = vunpack.c.l.b16 %v236
      %v510 = vunpack.c.l.b16 %v237
      %v511 = vunpack.c.l.b16 %v238
      %v512 = vunpack.c.l.b16 %v239
      %v513 = vunpack.c.l.b16 %v240
      %v514 = vunpack.c.l.b16 %v241
      %v515 = vunpack.c.l.b16 %v242
      %v516 = vunpack.c.l.b16 %v243
      %v517 = vunpack.c.l.b16 %v244
      %v518 = vunpack.c.l.b16 %v245
      %v519 = vpack.c.b16 %v504, %v503
      %v520 = vpack.c.b16 %v506, %v505
      %v521 = vpack.c.b16 %v508, %v507
      %v522 = vpack.c.b16 %v510, %v509
      %v523 = vpack.c.b16 %v512, %v511
      %v524 = vpack.c.b16 %v514, %v513
      %v525 = vpack.c.b16 %v516, %v515
      %v526 = vpack.c.b16 %v518, %v517
      %535 = vmatprep.subr.bf16.mxu0 0
      %536 = vmatpush1.bf16.msra.mxu0 %v519
      %537 = vmatprep.subr.bf16.mxu0 0
      %538 = vmatpush1.bf16.msra.mxu0 %v520
      %539 = vmatprep.subr.bf16.mxu0 0
      %540 = vmatpush1.bf16.msra.mxu0 %v521
      %541 = vmatprep.subr.bf16.mxu0 0
      %542 = vmatpush1.bf16.msra.mxu0 %v522
      %543 = vmatprep.subr.bf16.mxu0 0
      %544 = vmatpush1.bf16.msra.mxu0 %v523
      %545 = vmatprep.subr.bf16.mxu0 0
      %546 = vmatpush1.bf16.msra.mxu0 %v524
      %547 = vmatprep.subr.bf16.mxu0 0
      %548 = vmatpush1.bf16.msra.mxu0 %v525
      %549 = vmatprep.subr.bf16.mxu0 0
      %550 = vmatpush1.bf16.msra.mxu0 %v526
      %551 = vmatprep.subr.bf16.mxu0 0
      %552 = vmatpush1.bf16.msra.mxu0 0
      %553 = vmatprep.subr.bf16.mxu0 0
      %554 = vmatpush1.bf16.msra.mxu0 0
      %555 = vmatprep.subr.bf16.mxu0 0
      %556 = vmatpush1.bf16.msra.mxu0 0
      %557 = vmatprep.subr.bf16.mxu0 0
      %558 = vmatpush1.bf16.msra.mxu0 0
      %559 = vmatprep.subr.bf16.mxu0 0
      %560 = vmatpush1.bf16.msra.mxu0 0
      %561 = vmatprep.subr.bf16.mxu0 0
      %562 = vmatpush1.bf16.msra.mxu0 0
      %563 = vmatprep.subr.bf16.mxu0 0
      %564 = vmatpush1.bf16.msra.mxu0 0
      %565 = vmatprep.subr.bf16.mxu0 0
      %566 = vmatpush1.bf16.msra.mxu0 0
      %567 = vmatprep.mubr.bf16.mxu0 0
      %568 = vmatmul.mubr.bf16.gmra.mrb[0].mxu0 %v485
      %v569 = vpop.f32.mrb[0].mxu0
      %v570 = vadd.f32 %v463, %v569
      %v571 = vpop.f32.mrb[0].mxu0
      %v572 = vpop.f32.mrb[0].mxu0
      %v573 = vadd.f32 %v466, %v572
      %v574 = vpop.f32.mrb[0].mxu0
      %575 = vdwg.mxu0
      %vm576 = vcmask 1040384
      %vm577 = vcmask 1042434
      %vm578 = vmor %vm576, %vm577
      %vm579 = vcmask 1044484
      %vm580 = vmor %vm578, %vm579
      %vm581 = vcmask 1046534
      %vm582 = vmor %vm580, %vm581
      %v583 = vrot.slane %v256, 7
      %v584 = vrot.slane %v583, 2
      %v585 = vrot.slane %v257, 7
      %v586 = vsel %vm582, %v584, %v585
      %v587 = vrot.slane %v264, 7
      %v588 = vrot.slane %v587, 2
      %v589 = vrot.slane %v265, 7
      %v590 = vsel %vm582, %v588, %v589
      %v591 = vrot.slane %v272, 7
      %v592 = vrot.slane %v591, 2
      %v593 = vrot.slane %v273, 7
      %v594 = vsel %vm582, %v592, %v593
      %v595 = vrot.slane %v280, 7
      %v596 = vrot.slane %v595, 2
      %v597 = vrot.slane %v281, 7
      %v598 = vsel %vm582, %v596, %v597
      %s599 = scalar_lea.vmem %s203, 128
      %v600 = vld [vmem:[%s599] sm:$0xf]
      %v601 = vld [vmem:[%s599 + $0x4] sm:$0xf]
      %v602 = vld [vmem:[%s599 + $0x8] sm:$0xf]
      %v603 = vld [vmem:[%s599 + $0xc] sm:$0xf]
      %v604 = vld [vmem:[%s599 + $0x10] sm:$0xf]
      %v605 = vld [vmem:[%s599 + $0x14] sm:$0xf]
      %v606 = vld [vmem:[%s599 + $0x18] sm:$0xf]
      %v607 = vld [vmem:[%s599 + $0x1c] sm:$0xf]
      %v608 = vld [vmem:[%s599 + $0x20] sm:$0xf]
      %v609 = vld [vmem:[%s599 + $0x24] sm:$0xf]
      %v610 = vld [vmem:[%s599 + $0x28] sm:$0xf]
      %v611 = vld [vmem:[%s599 + $0x2c] sm:$0xf]
      %v612 = vld [vmem:[%s599 + $0x30] sm:$0xf]
      %v613 = vld [vmem:[%s599 + $0x34] sm:$0xf]
      %v614 = vld [vmem:[%s599 + $0x38] sm:$0xf]
      %v615 = vld [vmem:[%s599 + $0x3c] sm:$0xf]
      %v616 = vcombine.low %v586, %v590
      %v617 = vcombine.low %v594, %v598
      %v619 = vunpack.c.l.s4 1983009808
      %v620 = vunpack.c.0.s8 %v619
      %v621 = vlaneseq
      %v622 = vshrl.u32 %v621, 7
      %v623 = vsub.s32 %v620, %v622
      %v624 = vrot.slane %v616, %v623
      %v626 = vunpack.c.l.s4 1983009808
      %v627 = vunpack.c.0.s8 %v626
      %v628 = vlaneseq
      %v629 = vshrl.u32 %v628, 7
      %v630 = vsub.s32 %v627, %v629
      %v631 = vrot.slane %v617, %v630
      %v632 = vcombine.low %v624, %v631
      %v650 = vunpack.c.l.b16 %v600
      %v651 = vunpack.c.l.b16 %v601
      %v652 = vunpack.c.l.b16 %v602
      %v653 = vunpack.c.l.b16 %v603
      %v654 = vunpack.c.l.b16 %v604
      %v655 = vunpack.c.l.b16 %v605
      %v656 = vunpack.c.l.b16 %v606
      %v657 = vunpack.c.l.b16 %v607
      %v658 = vunpack.c.l.b16 %v608
      %v659 = vunpack.c.l.b16 %v609
      %v660 = vunpack.c.l.b16 %v610
      %v661 = vunpack.c.l.b16 %v611
      %v662 = vunpack.c.l.b16 %v612
      %v663 = vunpack.c.l.b16 %v613
      %v664 = vunpack.c.l.b16 %v614
      %v665 = vunpack.c.l.b16 %v615
      %v666 = vpack.c.b16 %v651, %v650
      %v667 = vpack.c.b16 %v653, %v652
      %v668 = vpack.c.b16 %v655, %v654
      %v669 = vpack.c.b16 %v657, %v656
      %v670 = vpack.c.b16 %v659, %v658
      %v671 = vpack.c.b16 %v661, %v660
      %v672 = vpack.c.b16 %v663, %v662
      %v673 = vpack.c.b16 %v665, %v664
      %682 = vmatprep.subr.bf16.mxu0 0
      %683 = vmatpush1.bf16.msra.mxu0 %v666
      %684 = vmatprep.subr.bf16.mxu0 0
      %685 = vmatpush1.bf16.msra.mxu0 %v667
      %686 = vmatprep.subr.bf16.mxu0 0
      %687 = vmatpush1.bf16.msra.mxu0 %v668
      %688 = vmatprep.subr.bf16.mxu0 0
      %689 = vmatpush1.bf16.msra.mxu0 %v669
      %690 = vmatprep.subr.bf16.mxu0 0
      %691 = vmatpush1.bf16.msra.mxu0 %v670
      %692 = vmatprep.subr.bf16.mxu0 0
      %693 = vmatpush1.bf16.msra.mxu0 %v671
      %694 = vmatprep.subr.bf16.mxu0 0
      %695 = vmatpush1.bf16.msra.mxu0 %v672
      %696 = vmatprep.subr.bf16.mxu0 0
      %697 = vmatpush1.bf16.msra.mxu0 %v673
      %698 = vmatprep.subr.bf16.mxu0 0
      %699 = vmatpush1.bf16.msra.mxu0 0
      %700 = vmatprep.subr.bf16.mxu0 0
      %701 = vmatpush1.bf16.msra.mxu0 0
      %702 = vmatprep.subr.bf16.mxu0 0
      %703 = vmatpush1.bf16.msra.mxu0 0
      %704 = vmatprep.subr.bf16.mxu0 0
      %705 = vmatpush1.bf16.msra.mxu0 0
      %706 = vmatprep.subr.bf16.mxu0 0
      %707 = vmatpush1.bf16.msra.mxu0 0
      %708 = vmatprep.subr.bf16.mxu0 0
      %709 = vmatpush1.bf16.msra.mxu0 0
      %710 = vmatprep.subr.bf16.mxu0 0
      %711 = vmatpush1.bf16.msra.mxu0 0
      %712 = vmatprep.subr.bf16.mxu0 0
      %713 = vmatpush1.bf16.msra.mxu0 0
      %714 = vmatprep.mubr.bf16.mxu0 0
      %715 = vmatmul.mubr.bf16.gmra.mrb[0].mxu0 %v632
      %v716 = vpop.f32.mrb[0].mxu0
      %v717 = vadd.f32 0.0, %v716
      %v718 = vpop.f32.mrb[0].mxu0
      %v719 = vpop.f32.mrb[0].mxu0
      %v720 = vadd.f32 0.0, %v719
      %v721 = vpop.f32.mrb[0].mxu0
      %722 = vdwg.mxu0
      %v723 = vadd.f32 %v570, %v717
      %v724 = vadd.f32 %v573, %v720
      %s725 = sadd.s32 %s223, 1
      %s726 = smul.addr %s725, 4
      %s727 = scalar_lea.vmem %s0, %s726
      %v728 = vld [vmem:[%s727] sm:$0x7]
      %v729 = vld [vmem:[%s727 + $0x4] sm:$0x7]
      %v730 = vld [vmem:[%s727 + $0x8] sm:$0x7]
      %v731 = vld [vmem:[%s727 + $0xc] sm:$0x7]
      %s732 = scalar_lea.vmem %s203, 192
      %v733 = vld [vmem:[%s732] sm:$0xf]
      %v734 = vld [vmem:[%s732 + $0x4] sm:$0xf]
      %v735 = vld [vmem:[%s732 + $0x8] sm:$0xf]
      %v736 = vld [vmem:[%s732 + $0xc] sm:$0xf]
      %v737 = vld [vmem:[%s732 + $0x10] sm:$0xf]
      %v738 = vld [vmem:[%s732 + $0x14] sm:$0xf]
      %v739 = vld [vmem:[%s732 + $0x18] sm:$0xf]
      %v740 = vld [vmem:[%s732 + $0x1c] sm:$0xf]
      %v741 = vld [vmem:[%s732 + $0x20] sm:$0xf]
      %v742 = vld [vmem:[%s732 + $0x24] sm:$0xf]
      %v743 = vld [vmem:[%s732 + $0x28] sm:$0xf]
      %v744 = vld [vmem:[%s732 + $0x2c] sm:$0xf]
      %v745 = vld [vmem:[%s732 + $0x30] sm:$0xf]
      %v746 = vld [vmem:[%s732 + $0x34] sm:$0xf]
      %v747 = vld [vmem:[%s732 + $0x38] sm:$0xf]
      %v748 = vld [vmem:[%s732 + $0x3c] sm:$0xf]
      %v753 = vcombine.low %v728, %v729
      %v754 = vcombine.low %v730, %v731
      %v756 = vunpack.c.l.s4 1983009808
      %v757 = vunpack.c.0.s8 %v756
      %v758 = vlaneseq
      %v759 = vshrl.u32 %v758, 7
      %v760 = vsub.s32 %v757, %v759
      %v761 = vrot.slane %v753, %v760
      %v763 = vunpack.c.l.s4 1983009808
      %v764 = vunpack.c.0.s8 %v763
      %v765 = vlaneseq
      %v766 = vshrl.u32 %v765, 7
      %v767 = vsub.s32 %v764, %v766
      %v768 = vrot.slane %v754, %v767
      %v769 = vcombine.low %v761, %v768
      %v787 = vunpack.c.l.b16 %v733
      %v788 = vunpack.c.l.b16 %v734
      %v789 = vunpack.c.l.b16 %v735
      %v790 = vunpack.c.l.b16 %v736
      %v791 = vunpack.c.l.b16 %v737
      %v792 = vunpack.c.l.b16 %v738
      %v793 = vunpack.c.l.b16 %v739
      %v794 = vunpack.c.l.b16 %v740
      %v795 = vunpack.c.l.b16 %v741
      %v796 = vunpack.c.l.b16 %v742
      %v797 = vunpack.c.l.b16 %v743
      %v798 = vunpack.c.l.b16 %v744
      %v799 = vunpack.c.l.b16 %v745
      %v800 = vunpack.c.l.b16 %v746
      %v801 = vunpack.c.l.b16 %v747
      %v802 = vunpack.c.l.b16 %v748
      %v803 = vpack.c.b16 %v788, %v787
      %v804 = vpack.c.b16 %v790, %v789
      %v805 = vpack.c.b16 %v792, %v791
      %v806 = vpack.c.b16 %v794, %v793
      %v807 = vpack.c.b16 %v796, %v795
      %v808 = vpack.c.b16 %v798, %v797
      %v809 = vpack.c.b16 %v800, %v799
      %v810 = vpack.c.b16 %v802, %v801
      %819 = vmatprep.subr.bf16.mxu0 0
      %820 = vmatpush1.bf16.msra.mxu0 %v803
      %821 = vmatprep.subr.bf16.mxu0 0
      %822 = vmatpush1.bf16.msra.mxu0 %v804
      %823 = vmatprep.subr.bf16.mxu0 0
      %824 = vmatpush1.bf16.msra.mxu0 %v805
      %825 = vmatprep.subr.bf16.mxu0 0
      %826 = vmatpush1.bf16.msra.mxu0 %v806
      %827 = vmatprep.subr.bf16.mxu0 0
      %828 = vmatpush1.bf16.msra.mxu0 %v807
      %829 = vmatprep.subr.bf16.mxu0 0
      %830 = vmatpush1.bf16.msra.mxu0 %v808
      %831 = vmatprep.subr.bf16.mxu0 0
      %832 = vmatpush1.bf16.msra.mxu0 %v809
      %833 = vmatprep.subr.bf16.mxu0 0
      %834 = vmatpush1.bf16.msra.mxu0 %v810
      %835 = vmatprep.subr.bf16.mxu0 0
      %836 = vmatpush1.bf16.msra.mxu0 0
      %837 = vmatprep.subr.bf16.mxu0 0
      %838 = vmatpush1.bf16.msra.mxu0 0
      %839 = vmatprep.subr.bf16.mxu0 0
      %840 = vmatpush1.bf16.msra.mxu0 0
      %841 = vmatprep.subr.bf16.mxu0 0
      %842 = vmatpush1.bf16.msra.mxu0 0
      %843 = vmatprep.subr.bf16.mxu0 0
      %844 = vmatpush1.bf16.msra.mxu0 0
      %845 = vmatprep.subr.bf16.mxu0 0
      %846 = vmatpush1.bf16.msra.mxu0 0
      %847 = vmatprep.subr.bf16.mxu0 0
      %848 = vmatpush1.bf16.msra.mxu0 0
      %849 = vmatprep.subr.bf16.mxu0 0
      %850 = vmatpush1.bf16.msra.mxu0 0
      %851 = vmatprep.mubr.bf16.mxu0 0
      %852 = vmatmul.mubr.bf16.gmra.mrb[0].mxu0 %v769
      %v853 = vpop.f32.mrb[0].mxu0
      %v854 = vadd.f32 0.0, %v853
      %v855 = vpop.f32.mrb[0].mxu0
      %v856 = vpop.f32.mrb[0].mxu0
      %v857 = vadd.f32 0.0, %v856
      %v858 = vpop.f32.mrb[0].mxu0
      %859 = vdwg.mxu0
      %v860 = vadd.f32 %v723, %v854
      %v861 = vadd.f32 %v724, %v857
      %v863 = vunpack.c.l.s4 1983009808
      %v864 = vunpack.c.0.s8 %v863
      %v865 = vlaneseq
      %v866 = vshrl.u32 %v865, 7
      %v867 = vsub.s32 %v864, %v866
      %v868 = vrot.slane %v728, %v867
      %v869 = vcombine.high %v868, %v868
      %v871 = vunpack.c.l.s4 1983009808
      %v872 = vunpack.c.0.s8 %v871
      %v873 = vlaneseq
      %v874 = vshrl.u32 %v873, 7
      %v875 = vsub.s32 %v872, %v874
      %v876 = vrot.slane %v729, %v875
      %v877 = vcombine.high %v876, %v876
      %v879 = vunpack.c.l.s4 1983009808
      %v880 = vunpack.c.0.s8 %v879
      %v881 = vlaneseq
      %v882 = vshrl.u32 %v881, 7
      %v883 = vsub.s32 %v880, %v882
      %v884 = vrot.slane %v730, %v883
      %v885 = vcombine.high %v884, %v884
      %v887 = vunpack.c.l.s4 1983009808
      %v888 = vunpack.c.0.s8 %v887
      %v889 = vlaneseq
      %v890 = vshrl.u32 %v889, 7
      %v891 = vsub.s32 %v888, %v890
      %v892 = vrot.slane %v731, %v891
      %v893 = vcombine.high %v892, %v892
      %v895 = vshrl.u32 %v868, 16
      %v897 = vrot.slane %v895, 6
      %v898 = vshll.u32 %v868, 16
      %v900 = vrot.slane %v898, 7
      %v901 = vor.u32 %v897, %v900
      %v902 = vrot.slane %v901, 2
      %v904 = vshll.u32 %v869, 16
      %v906 = vrot.slane %v904, 7
      %v907 = vsel %vm288, %v902, %v906
      %v909 = vshrl.u32 %v876, 16
      %v911 = vrot.slane %v909, 6
      %v912 = vshll.u32 %v876, 16
      %v914 = vrot.slane %v912, 7
      %v915 = vor.u32 %v911, %v914
      %v916 = vrot.slane %v915, 2
      %v918 = vshll.u32 %v877, 16
      %v920 = vrot.slane %v918, 7
      %v921 = vsel %vm288, %v916, %v920
      %v923 = vshrl.u32 %v884, 16
      %v925 = vrot.slane %v923, 6
      %v926 = vshll.u32 %v884, 16
      %v928 = vrot.slane %v926, 7
      %v929 = vor.u32 %v925, %v928
      %v930 = vrot.slane %v929, 2
      %v932 = vshll.u32 %v885, 16
      %v934 = vrot.slane %v932, 7
      %v935 = vsel %vm288, %v930, %v934
      %v937 = vshrl.u32 %v892, 16
      %v939 = vrot.slane %v937, 6
      %v940 = vshll.u32 %v892, 16
      %v942 = vrot.slane %v940, 7
      %v943 = vor.u32 %v939, %v942
      %v944 = vrot.slane %v943, 2
      %v946 = vshll.u32 %v893, 16
      %v948 = vrot.slane %v946, 7
      %v949 = vsel %vm288, %v944, %v948
      %s950 = scalar_lea.vmem %s203, 256
      %v951 = vld [vmem:[%s950] sm:$0xf]
      %v952 = vld [vmem:[%s950 + $0x4] sm:$0xf]
      %v953 = vld [vmem:[%s950 + $0x8] sm:$0xf]
      %v954 = vld [vmem:[%s950 + $0xc] sm:$0xf]
      %v955 = vld [vmem:[%s950 + $0x10] sm:$0xf]
      %v956 = vld [vmem:[%s950 + $0x14] sm:$0xf]
      %v957 = vld [vmem:[%s950 + $0x18] sm:$0xf]
      %v958 = vld [vmem:[%s950 + $0x1c] sm:$0xf]
      %v959 = vld [vmem:[%s950 + $0x20] sm:$0xf]
      %v960 = vld [vmem:[%s950 + $0x24] sm:$0xf]
      %v961 = vld [vmem:[%s950 + $0x28] sm:$0xf]
      %v962 = vld [vmem:[%s950 + $0x2c] sm:$0xf]
      %v963 = vld [vmem:[%s950 + $0x30] sm:$0xf]
      %v964 = vld [vmem:[%s950 + $0x34] sm:$0xf]
      %v965 = vld [vmem:[%s950 + $0x38] sm:$0xf]
      %v966 = vld [vmem:[%s950 + $0x3c] sm:$0xf]
      %v967 = vcombine.low %v907, %v921
      %v968 = vcombine.low %v935, %v949
      %v970 = vunpack.c.l.s4 1983009808
      %v971 = vunpack.c.0.s8 %v970
      %v972 = vlaneseq
      %v973 = vshrl.u32 %v972, 7
      %v974 = vsub.s32 %v971, %v973
      %v975 = vrot.slane %v967, %v974
      %v977 = vunpack.c.l.s4 1983009808
      %v978 = vunpack.c.0.s8 %v977
      %v979 = vlaneseq
      %v980 = vshrl.u32 %v979, 7
      %v981 = vsub.s32 %v978, %v980
      %v982 = vrot.slane %v968, %v981
      %v983 = vcombine.low %v975, %v982
      %v1001 = vunpack.c.l.b16 %v951
      %v1002 = vunpack.c.l.b16 %v952
      %v1003 = vunpack.c.l.b16 %v953
      %v1004 = vunpack.c.l.b16 %v954
      %v1005 = vunpack.c.l.b16 %v955
      %v1006 = vunpack.c.l.b16 %v956
      %v1007 = vunpack.c.l.b16 %v957
      %v1008 = vunpack.c.l.b16 %v958
      %v1009 = vunpack.c.l.b16 %v959
      %v1010 = vunpack.c.l.b16 %v960
      %v1011 = vunpack.c.l.b16 %v961
      %v1012 = vunpack.c.l.b16 %v962
      %v1013 = vunpack.c.l.b16 %v963
      %v1014 = vunpack.c.l.b16 %v964
      %v1015 = vunpack.c.l.b16 %v965
      %v1016 = vunpack.c.l.b16 %v966
      %v1017 = vpack.c.b16 %v1002, %v1001
      %v1018 = vpack.c.b16 %v1004, %v1003
      %v1019 = vpack.c.b16 %v1006, %v1005
      %v1020 = vpack.c.b16 %v1008, %v1007
      %v1021 = vpack.c.b16 %v1010, %v1009
      %v1022 = vpack.c.b16 %v1012, %v1011
      %v1023 = vpack.c.b16 %v1014, %v1013
      %v1024 = vpack.c.b16 %v1016, %v1015
      %1033 = vmatprep.subr.bf16.mxu0 0
      %1034 = vmatpush1.bf16.msra.mxu0 %v1017
      %1035 = vmatprep.subr.bf16.mxu0 0
      %1036 = vmatpush1.bf16.msra.mxu0 %v1018
      %1037 = vmatprep.subr.bf16.mxu0 0
      %1038 = vmatpush1.bf16.msra.mxu0 %v1019
      %1039 = vmatprep.subr.bf16.mxu0 0
      %1040 = vmatpush1.bf16.msra.mxu0 %v1020
      %1041 = vmatprep.subr.bf16.mxu0 0
      %1042 = vmatpush1.bf16.msra.mxu0 %v1021
      %1043 = vmatprep.subr.bf16.mxu0 0
      %1044 = vmatpush1.bf16.msra.mxu0 %v1022
      %1045 = vmatprep.subr.bf16.mxu0 0
      %1046 = vmatpush1.bf16.msra.mxu0 %v1023
      %1047 = vmatprep.subr.bf16.mxu0 0
      %1048 = vmatpush1.bf16.msra.mxu0 %v1024
      %1049 = vmatprep.subr.bf16.mxu0 0
      %1050 = vmatpush1.bf16.msra.mxu0 0
      %1051 = vmatprep.subr.bf16.mxu0 0
      %1052 = vmatpush1.bf16.msra.mxu0 0
      %1053 = vmatprep.subr.bf16.mxu0 0
      %1054 = vmatpush1.bf16.msra.mxu0 0
      %1055 = vmatprep.subr.bf16.mxu0 0
      %1056 = vmatpush1.bf16.msra.mxu0 0
      %1057 = vmatprep.subr.bf16.mxu0 0
      %1058 = vmatpush1.bf16.msra.mxu0 0
      %1059 = vmatprep.subr.bf16.mxu0 0
      %1060 = vmatpush1.bf16.msra.mxu0 0
      %1061 = vmatprep.subr.bf16.mxu0 0
      %1062 = vmatpush1.bf16.msra.mxu0 0
      %1063 = vmatprep.subr.bf16.mxu0 0
      %1064 = vmatpush1.bf16.msra.mxu0 0
      %1065 = vmatprep.mubr.bf16.mxu0 0
      %1066 = vmatmul.mubr.bf16.gmra.mrb[0].mxu0 %v983
      %v1067 = vpop.f32.mrb[0].mxu0
      %v1068 = vadd.f32 0.0, %v1067
      %v1069 = vpop.f32.mrb[0].mxu0
      %v1070 = vpop.f32.mrb[0].mxu0
      %v1071 = vadd.f32 0.0, %v1070
      %v1072 = vpop.f32.mrb[0].mxu0
      %1073 = vdwg.mxu0
      %v1074 = vadd.f32 %v860, %v1068
      %v1075 = vadd.f32 %v861, %v1071
      %v1076 = vrot.slane %v868, 7
      %v1077 = vrot.slane %v1076, 2
      %v1078 = vrot.slane %v869, 7
      %v1079 = vsel %vm582, %v1077, %v1078
      %v1080 = vrot.slane %v876, 7
      %v1081 = vrot.slane %v1080, 2
      %v1082 = vrot.slane %v877, 7
      %v1083 = vsel %vm582, %v1081, %v1082
      %v1084 = vrot.slane %v884, 7
      %v1085 = vrot.slane %v1084, 2
      %v1086 = vrot.slane %v885, 7
      %v1087 = vsel %vm582, %v1085, %v1086
      %v1088 = vrot.slane %v892, 7
      %v1089 = vrot.slane %v1088, 2
      %v1090 = vrot.slane %v893, 7
      %v1091 = vsel %vm582, %v1089, %v1090
      %s1092 = scalar_lea.vmem %s203, 320
      %v1093 = vld [vmem:[%s1092] sm:$0xf]
      %v1094 = vld [vmem:[%s1092 + $0x4] sm:$0xf]
      %v1095 = vld [vmem:[%s1092 + $0x8] sm:$0xf]
      %v1096 = vld [vmem:[%s1092 + $0xc] sm:$0xf]
      %v1097 = vld [vmem:[%s1092 + $0x10] sm:$0xf]
      %v1098 = vld [vmem:[%s1092 + $0x14] sm:$0xf]
      %v1099 = vld [vmem:[%s1092 + $0x18] sm:$0xf]
      %v1100 = vld [vmem:[%s1092 + $0x1c] sm:$0xf]
      %v1101 = vld [vmem:[%s1092 + $0x20] sm:$0xf]
      %v1102 = vld [vmem:[%s1092 + $0x24] sm:$0xf]
      %v1103 = vld [vmem:[%s1092 + $0x28] sm:$0xf]
      %v1104 = vld [vmem:[%s1092 + $0x2c] sm:$0xf]
      %v1105 = vld [vmem:[%s1092 + $0x30] sm:$0xf]
      %v1106 = vld [vmem:[%s1092 + $0x34] sm:$0xf]
      %v1107 = vld [vmem:[%s1092 + $0x38] sm:$0xf]
      %v1108 = vld [vmem:[%s1092 + $0x3c] sm:$0xf]
      %v1109 = vcombine.low %v1079, %v1083
      %v1110 = vcombine.low %v1087, %v1091
      %v1112 = vunpack.c.l.s4 1983009808
      %v1113 = vunpack.c.0.s8 %v1112
      %v1114 = vlaneseq
      %v1115 = vshrl.u32 %v1114, 7
      %v1116 = vsub.s32 %v1113, %v1115
      %v1117 = vrot.slane %v1109, %v1116
      %v1119 = vunpack.c.l.s4 1983009808
      %v1120 = vunpack.c.0.s8 %v1119
      %v1121 = vlaneseq
      %v1122 = vshrl.u32 %v1121, 7
      %v1123 = vsub.s32 %v1120, %v1122
      %v1124 = vrot.slane %v1110, %v1123
      %v1125 = vcombine.low %v1117, %v1124
      %v1143 = vunpack.c.l.b16 %v1093
      %v1144 = vunpack.c.l.b16 %v1094
      %v1145 = vunpack.c.l.b16 %v1095
      %v1146 = vunpack.c.l.b16 %v1096
      %v1147 = vunpack.c.l.b16 %v1097
      %v1148 = vunpack.c.l.b16 %v1098
      %v1149 = vunpack.c.l.b16 %v1099
      %v1150 = vunpack.c.l.b16 %v1100
      %v1151 = vunpack.c.l.b16 %v1101
      %v1152 = vunpack.c.l.b16 %v1102
      %v1153 = vunpack.c.l.b16 %v1103
      %v1154 = vunpack.c.l.b16 %v1104
      %v1155 = vunpack.c.l.b16 %v1105
      %v1156 = vunpack.c.l.b16 %v1106
      %v1157 = vunpack.c.l.b16 %v1107
      %v1158 = vunpack.c.l.b16 %v1108
      %v1159 = vpack.c.b16 %v1144, %v1143
      %v1160 = vpack.c.b16 %v1146, %v1145
      %v1161 = vpack.c.b16 %v1148, %v1147
      %v1162 = vpack.c.b16 %v1150, %v1149
      %v1163 = vpack.c.b16 %v1152, %v1151
      %v1164 = vpack.c.b16 %v1154, %v1153
      %v1165 = vpack.c.b16 %v1156, %v1155
      %v1166 = vpack.c.b16 %v1158, %v1157
      %1175 = vmatprep.subr.bf16.mxu0 0
      %1176 = vmatpush1.bf16.msra.mxu0 %v1159
      %1177 = vmatprep.subr.bf16.mxu0 0
      %1178 = vmatpush1.bf16.msra.mxu0 %v1160
      %1179 = vmatprep.subr.bf16.mxu0 0
      %1180 = vmatpush1.bf16.msra.mxu0 %v1161
      %1181 = vmatprep.subr.bf16.mxu0 0
      %1182 = vmatpush1.bf16.msra.mxu0 %v1162
      %1183 = vmatprep.subr.bf16.mxu0 0
      %1184 = vmatpush1.bf16.msra.mxu0 %v1163
      %1185 = vmatprep.subr.bf16.mxu0 0
      %1186 = vmatpush1.bf16.msra.mxu0 %v1164
      %1187 = vmatprep.subr.bf16.mxu0 0
      %1188 = vmatpush1.bf16.msra.mxu0 %v1165
      %1189 = vmatprep.subr.bf16.mxu0 0
      %1190 = vmatpush1.bf16.msra.mxu0 %v1166
      %1191 = vmatprep.subr.bf16.mxu0 0
      %1192 = vmatpush1.bf16.msra.mxu0 0
      %1193 = vmatprep.subr.bf16.mxu0 0
      %1194 = vmatpush1.bf16.msra.mxu0 0
      %1195 = vmatprep.subr.bf16.mxu0 0
      %1196 = vmatpush1.bf16.msra.mxu0 0
      %1197 = vmatprep.subr.bf16.mxu0 0
      %1198 = vmatpush1.bf16.msra.mxu0 0
      %1199 = vmatprep.subr.bf16.mxu0 0
      %1200 = vmatpush1.bf16.msra.mxu0 0
      %1201 = vmatprep.subr.bf16.mxu0 0
      %1202 = vmatpush1.bf16.msra.mxu0 0
      %1203 = vmatprep.subr.bf16.mxu0 0
      %1204 = vmatpush1.bf16.msra.mxu0 0
      %1205 = vmatprep.subr.bf16.mxu0 0
      %1206 = vmatpush1.bf16.msra.mxu0 0
      %1207 = vmatprep.mubr.bf16.mxu0 0
      %1208 = vmatmul.mubr.bf16.gmra.mrb[0].mxu0 %v1125
      %v1209 = vpop.f32.mrb[0].mxu0
      %v1210 = vadd.f32 0.0, %v1209
      %v1211 = vpop.f32.mrb[0].mxu0
      %v1212 = vpop.f32.mrb[0].mxu0
      %v1213 = vadd.f32 0.0, %v1212
      %v1214 = vpop.f32.mrb[0].mxu0
      %1215 = vdwg.mxu0
      %v1216 = vadd.f32 %v1074, %v1210
      %v1217 = vadd.f32 %v1075, %v1213
      %s1218 = sadd.s32 %s223, 2
      %s1219 = smul.addr %s1218, 4
      %s1220 = scalar_lea.vmem %s0, %s1219
      %v1221 = vld [vmem:[%s1220] sm:$0x7]
      %v1222 = vld [vmem:[%s1220 + $0x4] sm:$0x7]
      %v1223 = vld [vmem:[%s1220 + $0x8] sm:$0x7]
      %v1224 = vld [vmem:[%s1220 + $0xc] sm:$0x7]
      %s1225 = scalar_lea.vmem %s203, 384
      %v1226 = vld [vmem:[%s1225] sm:$0xf]
      %v1227 = vld [vmem:[%s1225 + $0x4] sm:$0xf]
      %v1228 = vld [vmem:[%s1225 + $0x8] sm:$0xf]
      %v1229 = vld [vmem:[%s1225 + $0xc] sm:$0xf]
      %v1230 = vld [vmem:[%s1225 + $0x10] sm:$0xf]
      %v1231 = vld [vmem:[%s1225 + $0x14] sm:$0xf]
      %v1232 = vld [vmem:[%s1225 + $0x18] sm:$0xf]
      %v1233 = vld [vmem:[%s1225 + $0x1c] sm:$0xf]
      %v1234 = vld [vmem:[%s1225 + $0x20] sm:$0xf]
      %v1235 = vld [vmem:[%s1225 + $0x24] sm:$0xf]
      %v1236 = vld [vmem:[%s1225 + $0x28] sm:$0xf]
      %v1237 = vld [vmem:[%s1225 + $0x2c] sm:$0xf]
      %v1238 = vld [vmem:[%s1225 + $0x30] sm:$0xf]
      %v1239 = vld [vmem:[%s1225 + $0x34] sm:$0xf]
      %v1240 = vld [vmem:[%s1225 + $0x38] sm:$0xf]
      %v1241 = vld [vmem:[%s1225 + $0x3c] sm:$0xf]
      %v1246 = vcombine.low %v1221, %v1222
      %v1247 = vcombine.low %v1223, %v1224
      %v1249 = vunpack.c.l.s4 1983009808
      %v1250 = vunpack.c.0.s8 %v1249
      %v1251 = vlaneseq
      %v1252 = vshrl.u32 %v1251, 7
      %v1253 = vsub.s32 %v1250, %v1252
      %v1254 = vrot.slane %v1246, %v1253
      %v1256 = vunpack.c.l.s4 1983009808
      %v1257 = vunpack.c.0.s8 %v1256
      %v1258 = vlaneseq
      %v1259 = vshrl.u32 %v1258, 7
      %v1260 = vsub.s32 %v1257, %v1259
      %v1261 = vrot.slane %v1247, %v1260
      %v1262 = vcombine.low %v1254, %v1261
      %v1280 = vunpack.c.l.b16 %v1226
      %v1281 = vunpack.c.l.b16 %v1227
      %v1282 = vunpack.c.l.b16 %v1228
      %v1283 = vunpack.c.l.b16 %v1229
      %v1284 = vunpack.c.l.b16 %v1230
      %v1285 = vunpack.c.l.b16 %v1231
      %v1286 = vunpack.c.l.b16 %v1232
      %v1287 = vunpack.c.l.b16 %v1233
      %v1288 = vunpack.c.l.b16 %v1234
      %v1289 = vunpack.c.l.b16 %v1235
      %v1290 = vunpack.c.l.b16 %v1236
      %v1291 = vunpack.c.l.b16 %v1237
      %v1292 = vunpack.c.l.b16 %v1238
      %v1293 = vunpack.c.l.b16 %v1239
      %v1294 = vunpack.c.l.b16 %v1240
      %v1295 = vunpack.c.l.b16 %v1241
      %v1296 = vpack.c.b16 %v1281, %v1280
      %v1297 = vpack.c.b16 %v1283, %v1282
      %v1298 = vpack.c.b16 %v1285, %v1284
      %v1299 = vpack.c.b16 %v1287, %v1286
      %v1300 = vpack.c.b16 %v1289, %v1288
      %v1301 = vpack.c.b16 %v1291, %v1290
      %v1302 = vpack.c.b16 %v1293, %v1292
      %v1303 = vpack.c.b16 %v1295, %v1294
      %1312 = vmatprep.subr.bf16.mxu0 0
      %1313 = vmatpush1.bf16.msra.mxu0 %v1296
      %1314 = vmatprep.subr.bf16.mxu0 0
      %1315 = vmatpush1.bf16.msra.mxu0 %v1297
      %1316 = vmatprep.subr.bf16.mxu0 0
      %1317 = vmatpush1.bf16.msra.mxu0 %v1298
      %1318 = vmatprep.subr.bf16.mxu0 0
      %1319 = vmatpush1.bf16.msra.mxu0 %v1299
      %1320 = vmatprep.subr.bf16.mxu0 0
      %1321 = vmatpush1.bf16.msra.mxu0 %v1300
      %1322 = vmatprep.subr.bf16.mxu0 0
      %1323 = vmatpush1.bf16.msra.mxu0 %v1301
      %1324 = vmatprep.subr.bf16.mxu0 0
      %1325 = vmatpush1.bf16.msra.mxu0 %v1302
      %1326 = vmatprep.subr.bf16.mxu0 0
      %1327 = vmatpush1.bf16.msra.mxu0 %v1303
      %1328 = vmatprep.subr.bf16.mxu0 0
      %1329 = vmatpush1.bf16.msra.mxu0 0
      %1330 = vmatprep.subr.bf16.mxu0 0
      %1331 = vmatpush1.bf16.msra.mxu0 0
      %1332 = vmatprep.subr.bf16.mxu0 0
      %1333 = vmatpush1.bf16.msra.mxu0 0
      %1334 = vmatprep.subr.bf16.mxu0 0
      %1335 = vmatpush1.bf16.msra.mxu0 0
      %1336 = vmatprep.subr.bf16.mxu0 0
      %1337 = vmatpush1.bf16.msra.mxu0 0
      %1338 = vmatprep.subr.bf16.mxu0 0
      %1339 = vmatpush1.bf16.msra.mxu0 0
      %1340 = vmatprep.subr.bf16.mxu0 0
      %1341 = vmatpush1.bf16.msra.mxu0 0
      %1342 = vmatprep.subr.bf16.mxu0 0
      %1343 = vmatpush1.bf16.msra.mxu0 0
      %1344 = vmatprep.mubr.bf16.mxu0 0
      %1345 = vmatmul.mubr.bf16.gmra.mrb[0].mxu0 %v1262
      %v1346 = vpop.f32.mrb[0].mxu0
      %v1347 = vadd.f32 0.0, %v1346
      %v1348 = vpop.f32.mrb[0].mxu0
      %v1349 = vpop.f32.mrb[0].mxu0
      %v1350 = vadd.f32 0.0, %v1349
      %v1351 = vpop.f32.mrb[0].mxu0
      %1352 = vdwg.mxu0
      %v1353 = vadd.f32 %v1216, %v1347
      %v1354 = vadd.f32 %v1217, %v1350
      %v1356 = vunpack.c.l.s4 1983009808
      %v1357 = vunpack.c.0.s8 %v1356
      %v1358 = vlaneseq
      %v1359 = vshrl.u32 %v1358, 7
      %v1360 = vsub.s32 %v1357, %v1359
      %v1361 = vrot.slane %v1221, %v1360
      %v1362 = vcombine.high %v1361, %v1361
      %v1364 = vunpack.c.l.s4 1983009808
      %v1365 = vunpack.c.0.s8 %v1364
      %v1366 = vlaneseq
      %v1367 = vshrl.u32 %v1366, 7
      %v1368 = vsub.s32 %v1365, %v1367
      %v1369 = vrot.slane %v1222, %v1368
      %v1370 = vcombine.high %v1369, %v1369
      %v1372 = vunpack.c.l.s4 1983009808
      %v1373 = vunpack.c.0.s8 %v1372
      %v1374 = vlaneseq
      %v1375 = vshrl.u32 %v1374, 7
      %v1376 = vsub.s32 %v1373, %v1375
      %v1377 = vrot.slane %v1223, %v1376
      %v1378 = vcombine.high %v1377, %v1377
      %v1380 = vunpack.c.l.s4 1983009808
      %v1381 = vunpack.c.0.s8 %v1380
      %v1382 = vlaneseq
      %v1383 = vshrl.u32 %v1382, 7
      %v1384 = vsub.s32 %v1381, %v1383
      %v1385 = vrot.slane %v1224, %v1384
      %v1386 = vcombine.high %v1385, %v1385
      %v1388 = vshrl.u32 %v1361, 16
      %v1390 = vrot.slane %v1388, 6
      %v1391 = vshll.u32 %v1361, 16
      %v1393 = vrot.slane %v1391, 7
      %v1394 = vor.u32 %v1390, %v1393
      %v1395 = vrot.slane %v1394, 2
      %v1397 = vshll.u32 %v1362, 16
      %v1399 = vrot.slane %v1397, 7
      %v1400 = vsel %vm288, %v1395, %v1399
      %v1402 = vshrl.u32 %v1369, 16
      %v1404 = vrot.slane %v1402, 6
      %v1405 = vshll.u32 %v1369, 16
      %v1407 = vrot.slane %v1405, 7
      %v1408 = vor.u32 %v1404, %v1407
      %v1409 = vrot.slane %v1408, 2
      %v1411 = vshll.u32 %v1370, 16
      %v1413 = vrot.slane %v1411, 7
      %v1414 = vsel %vm288, %v1409, %v1413
      %v1416 = vshrl.u32 %v1377, 16
      %v1418 = vrot.slane %v1416, 6
      %v1419 = vshll.u32 %v1377, 16
      %v1421 = vrot.slane %v1419, 7
      %v1422 = vor.u32 %v1418, %v1421
      %v1423 = vrot.slane %v1422, 2
      %v1425 = vshll.u32 %v1378, 16
      %v1427 = vrot.slane %v1425, 7
      %v1428 = vsel %vm288, %v1423, %v1427
      %v1430 = vshrl.u32 %v1385, 16
      %v1432 = vrot.slane %v1430, 6
      %v1433 = vshll.u32 %v1385, 16
      %v1435 = vrot.slane %v1433, 7
      %v1436 = vor.u32 %v1432, %v1435
      %v1437 = vrot.slane %v1436, 2
      %v1439 = vshll.u32 %v1386, 16
      %v1441 = vrot.slane %v1439, 7
      %v1442 = vsel %vm288, %v1437, %v1441
      %s1443 = scalar_lea.vmem %s203, 448
      %v1444 = vld [vmem:[%s1443] sm:$0xf]
      %v1445 = vld [vmem:[%s1443 + $0x4] sm:$0xf]
      %v1446 = vld [vmem:[%s1443 + $0x8] sm:$0xf]
      %v1447 = vld [vmem:[%s1443 + $0xc] sm:$0xf]
      %v1448 = vld [vmem:[%s1443 + $0x10] sm:$0xf]
      %v1449 = vld [vmem:[%s1443 + $0x14] sm:$0xf]
      %v1450 = vld [vmem:[%s1443 + $0x18] sm:$0xf]
      %v1451 = vld [vmem:[%s1443 + $0x1c] sm:$0xf]
      %v1452 = vld [vmem:[%s1443 + $0x20] sm:$0xf]
      %v1453 = vld [vmem:[%s1443 + $0x24] sm:$0xf]
      %v1454 = vld [vmem:[%s1443 + $0x28] sm:$0xf]
      %v1455 = vld [vmem:[%s1443 + $0x2c] sm:$0xf]
      %v1456 = vld [vmem:[%s1443 + $0x30] sm:$0xf]
      %v1457 = vld [vmem:[%s1443 + $0x34] sm:$0xf]
      %v1458 = vld [vmem:[%s1443 + $0x38] sm:$0xf]
      %v1459 = vld [vmem:[%s1443 + $0x3c] sm:$0xf]
      %v1460 = vcombine.low %v1400, %v1414
      %v1461 = vcombine.low %v1428, %v1442
      %v1463 = vunpack.c.l.s4 1983009808
      %v1464 = vunpack.c.0.s8 %v1463
      %v1465 = vlaneseq
      %v1466 = vshrl.u32 %v1465, 7
      %v1467 = vsub.s32 %v1464, %v1466
      %v1468 = vrot.slane %v1460, %v1467
      %v1470 = vunpack.c.l.s4 1983009808
      %v1471 = vunpack.c.0.s8 %v1470
      %v1472 = vlaneseq
      %v1473 = vshrl.u32 %v1472, 7
      %v1474 = vsub.s32 %v1471, %v1473
      %v1475 = vrot.slane %v1461, %v1474
      %v1476 = vcombine.low %v1468, %v1475
      %v1494 = vunpack.c.l.b16 %v1444
      %v1495 = vunpack.c.l.b16 %v1445
      %v1496 = vunpack.c.l.b16 %v1446
      %v1497 = vunpack.c.l.b16 %v1447
      %v1498 = vunpack.c.l.b16 %v1448
      %v1499 = vunpack.c.l.b16 %v1449
      %v1500 = vunpack.c.l.b16 %v1450
      %v1501 = vunpack.c.l.b16 %v1451
      %v1502 = vunpack.c.l.b16 %v1452
      %v1503 = vunpack.c.l.b16 %v1453
      %v1504 = vunpack.c.l.b16 %v1454
      %v1505 = vunpack.c.l.b16 %v1455
      %v1506 = vunpack.c.l.b16 %v1456
      %v1507 = vunpack.c.l.b16 %v1457
      %v1508 = vunpack.c.l.b16 %v1458
      %v1509 = vunpack.c.l.b16 %v1459
      %v1510 = vpack.c.b16 %v1495, %v1494
      %v1511 = vpack.c.b16 %v1497, %v1496
      %v1512 = vpack.c.b16 %v1499, %v1498
      %v1513 = vpack.c.b16 %v1501, %v1500
      %v1514 = vpack.c.b16 %v1503, %v1502
      %v1515 = vpack.c.b16 %v1505, %v1504
      %v1516 = vpack.c.b16 %v1507, %v1506
      %v1517 = vpack.c.b16 %v1509, %v1508
      %1526 = vmatprep.subr.bf16.mxu0 0
      %1527 = vmatpush1.bf16.msra.mxu0 %v1510
      %1528 = vmatprep.subr.bf16.mxu0 0
      %1529 = vmatpush1.bf16.msra.mxu0 %v1511
      %1530 = vmatprep.subr.bf16.mxu0 0
      %1531 = vmatpush1.bf16.msra.mxu0 %v1512
      %1532 = vmatprep.subr.bf16.mxu0 0
      %1533 = vmatpush1.bf16.msra.mxu0 %v1513
      %1534 = vmatprep.subr.bf16.mxu0 0
      %1535 = vmatpush1.bf16.msra.mxu0 %v1514
      %1536 = vmatprep.subr.bf16.mxu0 0
      %1537 = vmatpush1.bf16.msra.mxu0 %v1515
      %1538 = vmatprep.subr.bf16.mxu0 0
      %1539 = vmatpush1.bf16.msra.mxu0 %v1516
      %1540 = vmatprep.subr.bf16.mxu0 0
      %1541 = vmatpush1.bf16.msra.mxu0 %v1517
      %1542 = vmatprep.subr.bf16.mxu0 0
      %1543 = vmatpush1.bf16.msra.mxu0 0
      %1544 = vmatprep.subr.bf16.mxu0 0
      %1545 = vmatpush1.bf16.msra.mxu0 0
      %1546 = vmatprep.subr.bf16.mxu0 0
      %1547 = vmatpush1.bf16.msra.mxu0 0
      %1548 = vmatprep.subr.bf16.mxu0 0
      %1549 = vmatpush1.bf16.msra.mxu0 0
      %1550 = vmatprep.subr.bf16.mxu0 0
      %1551 = vmatpush1.bf16.msra.mxu0 0
      %1552 = vmatprep.subr.bf16.mxu0 0
      %1553 = vmatpush1.bf16.msra.mxu0 0
      %1554 = vmatprep.subr.bf16.mxu0 0
      %1555 = vmatpush1.bf16.msra.mxu0 0
      %1556 = vmatprep.subr.bf16.mxu0 0
      %1557 = vmatpush1.bf16.msra.mxu0 0
      %1558 = vmatprep.mubr.bf16.mxu0 0
      %1559 = vmatmul.mubr.bf16.gmra.mrb[0].mxu0 %v1476
      %v1560 = vpop.f32.mrb[0].mxu0
      %v1561 = vadd.f32 0.0, %v1560
      %v1562 = vpop.f32.mrb[0].mxu0
      %v1563 = vpop.f32.mrb[0].mxu0
      %v1564 = vadd.f32 0.0, %v1563
      %v1565 = vpop.f32.mrb[0].mxu0
      %1566 = vdwg.mxu0
      %v1567 = vadd.f32 %v1353, %v1561
      %v1568 = vadd.f32 %v1354, %v1564
      %v1569 = vrot.slane %v1361, 7
      %v1570 = vrot.slane %v1569, 2
      %v1571 = vrot.slane %v1362, 7
      %v1572 = vsel %vm582, %v1570, %v1571
      %v1573 = vrot.slane %v1369, 7
      %v1574 = vrot.slane %v1573, 2
      %v1575 = vrot.slane %v1370, 7
      %v1576 = vsel %vm582, %v1574, %v1575
      %v1577 = vrot.slane %v1377, 7
      %v1578 = vrot.slane %v1577, 2
      %v1579 = vrot.slane %v1378, 7
      %v1580 = vsel %vm582, %v1578, %v1579
      %v1581 = vrot.slane %v1385, 7
      %v1582 = vrot.slane %v1581, 2
      %v1583 = vrot.slane %v1386, 7
      %v1584 = vsel %vm582, %v1582, %v1583
      %s1585 = scalar_lea.vmem %s203, 512
      %v1586 = vld [vmem:[%s1585] sm:$0xf]
      %v1587 = vld [vmem:[%s1585 + $0x4] sm:$0xf]
      %v1588 = vld [vmem:[%s1585 + $0x8] sm:$0xf]
      %v1589 = vld [vmem:[%s1585 + $0xc] sm:$0xf]
      %v1590 = vld [vmem:[%s1585 + $0x10] sm:$0xf]
      %v1591 = vld [vmem:[%s1585 + $0x14] sm:$0xf]
      %v1592 = vld [vmem:[%s1585 + $0x18] sm:$0xf]
      %v1593 = vld [vmem:[%s1585 + $0x1c] sm:$0xf]
      %v1594 = vld [vmem:[%s1585 + $0x20] sm:$0xf]
      %v1595 = vld [vmem:[%s1585 + $0x24] sm:$0xf]
      %v1596 = vld [vmem:[%s1585 + $0x28] sm:$0xf]
      %v1597 = vld [vmem:[%s1585 + $0x2c] sm:$0xf]
      %v1598 = vld [vmem:[%s1585 + $0x30] sm:$0xf]
      %v1599 = vld [vmem:[%s1585 + $0x34] sm:$0xf]
      %v1600 = vld [vmem:[%s1585 + $0x38] sm:$0xf]
      %v1601 = vld [vmem:[%s1585 + $0x3c] sm:$0xf]
      %v1602 = vcombine.low %v1572, %v1576
      %v1603 = vcombine.low %v1580, %v1584
      %v1605 = vunpack.c.l.s4 1983009808
      %v1606 = vunpack.c.0.s8 %v1605
      %v1607 = vlaneseq
      %v1608 = vshrl.u32 %v1607, 7
      %v1609 = vsub.s32 %v1606, %v1608
      %v1610 = vrot.slane %v1602, %v1609
      %v1612 = vunpack.c.l.s4 1983009808
      %v1613 = vunpack.c.0.s8 %v1612
      %v1614 = vlaneseq
      %v1615 = vshrl.u32 %v1614, 7
      %v1616 = vsub.s32 %v1613, %v1615
      %v1617 = vrot.slane %v1603, %v1616
      %v1618 = vcombine.low %v1610, %v1617
      %v1636 = vunpack.c.l.b16 %v1586
      %v1637 = vunpack.c.l.b16 %v1587
      %v1638 = vunpack.c.l.b16 %v1588
      %v1639 = vunpack.c.l.b16 %v1589
      %v1640 = vunpack.c.l.b16 %v1590
      %v1641 = vunpack.c.l.b16 %v1591
      %v1642 = vunpack.c.l.b16 %v1592
      %v1643 = vunpack.c.l.b16 %v1593
      %v1644 = vunpack.c.l.b16 %v1594
      %v1645 = vunpack.c.l.b16 %v1595
      %v1646 = vunpack.c.l.b16 %v1596
      %v1647 = vunpack.c.l.b16 %v1597
      %v1648 = vunpack.c.l.b16 %v1598
      %v1649 = vunpack.c.l.b16 %v1599
      %v1650 = vunpack.c.l.b16 %v1600
      %v1651 = vunpack.c.l.b16 %v1601
      %v1652 = vpack.c.b16 %v1637, %v1636
      %v1653 = vpack.c.b16 %v1639, %v1638
      %v1654 = vpack.c.b16 %v1641, %v1640
      %v1655 = vpack.c.b16 %v1643, %v1642
      %v1656 = vpack.c.b16 %v1645, %v1644
      %v1657 = vpack.c.b16 %v1647, %v1646
      %v1658 = vpack.c.b16 %v1649, %v1648
      %v1659 = vpack.c.b16 %v1651, %v1650
      %1668 = vmatprep.subr.bf16.mxu0 0
      %1669 = vmatpush1.bf16.msra.mxu0 %v1652
      %1670 = vmatprep.subr.bf16.mxu0 0
      %1671 = vmatpush1.bf16.msra.mxu0 %v1653
      %1672 = vmatprep.subr.bf16.mxu0 0
      %1673 = vmatpush1.bf16.msra.mxu0 %v1654
      %1674 = vmatprep.subr.bf16.mxu0 0
      %1675 = vmatpush1.bf16.msra.mxu0 %v1655
      %1676 = vmatprep.subr.bf16.mxu0 0
      %1677 = vmatpush1.bf16.msra.mxu0 %v1656
      %1678 = vmatprep.subr.bf16.mxu0 0
      %1679 = vmatpush1.bf16.msra.mxu0 %v1657
      %1680 = vmatprep.subr.bf16.mxu0 0
      %1681 = vmatpush1.bf16.msra.mxu0 %v1658
      %1682 = vmatprep.subr.bf16.mxu0 0
      %1683 = vmatpush1.bf16.msra.mxu0 %v1659
      %1684 = vmatprep.subr.bf16.mxu0 0
      %1685 = vmatpush1.bf16.msra.mxu0 0
      %1686 = vmatprep.subr.bf16.mxu0 0
      %1687 = vmatpush1.bf16.msra.mxu0 0
      %1688 = vmatprep.subr.bf16.mxu0 0
      %1689 = vmatpush1.bf16.msra.mxu0 0
      %1690 = vmatprep.subr.bf16.mxu0 0
      %1691 = vmatpush1.bf16.msra.mxu0 0
      %1692 = vmatprep.subr.bf16.mxu0 0
      %1693 = vmatpush1.bf16.msra.mxu0 0
      %1694 = vmatprep.subr.bf16.mxu0 0
      %1695 = vmatpush1.bf16.msra.mxu0 0
      %1696 = vmatprep.subr.bf16.mxu0 0
      %1697 = vmatpush1.bf16.msra.mxu0 0
      %1698 = vmatprep.subr.bf16.mxu0 0
      %1699 = vmatpush1.bf16.msra.mxu0 0
      %1700 = vmatprep.mubr.bf16.mxu0 0
      %1701 = vmatmul.mubr.bf16.gmra.mrb[0].mxu0 %v1618
      %v1702 = vpop.f32.mrb[0].mxu0
      %v1703 = vadd.f32 0.0, %v1702
      %v1704 = vpop.f32.mrb[0].mxu0
      %v1705 = vpop.f32.mrb[0].mxu0
      %v1706 = vadd.f32 0.0, %v1705
      %v1707 = vpop.f32.mrb[0].mxu0
      %1708 = vdwg.mxu0
      %v1709 = vadd.f32 %v1567, %v1703
      %v1710 = vadd.f32 %v1568, %v1706
      %v1711 = vld [vmem:[%s206] sm:$0x1]
      %v1713 = vlaneseq
      %v1714 = vshrl.u32 %v1713, 7
      %v1715 = vsub.s32 0, %v1714
      %v1716 = vrot.slane %v1711, %v1715
      %v1718 = vadd.f32 %v1709, %v1716
      %v1719 = vadd.f32 %v1710, %v1716
      %v1722 = vcombine.high %v1718, %v1718
      %v1723 = vcombine.high %v1719, %v1719
      %v1726 = vmax.f32 %v1718, 0.0
      %v1727 = vmax.f32 %v1722, 0.0
      %v1728 = vmax.f32 %v1719, 0.0
      %v1729 = vmax.f32 %v1723, 0.0
      %v1730 = vpack.c.bf16 %v1726, %v1726
      %v1731 = vpack.c.bf16 %v1727, %v1727
      %v1732 = vpack.c.bf16 %v1728, %v1728
      %v1733 = vpack.c.bf16 %v1729, %v1729
      %1734 = vst [vmem:[%s218] sm:$0x3] %v1730
      %1735 = vst [vmem:[%s218 + $0x2] sm:$0x3] %v1731
      %1736 = vst [vmem:[%s218 + $0x4] sm:$0x3] %v1732
      %1737 = vst [vmem:[%s218 + $0x6] sm:$0x3] %v1733
      %s1738 = smul.u32 4, %s21
      %p1739 = scmp.lt.s32.totalorder %s20, 1
      %s1740 = scalar_select %p1739, %s20, 1
      %p1741 = scmp.lt.s32.totalorder %s1738, 3
      %s1742 = scalar_select %p1741, %s1738, 3
      %p1743 = scmp.lt.s32.totalorder %s19, 0
      %s1744 = scalar_select %p1743, %s19, 0
      %s1745 = sadd.s32 %s1744, %s1742
      %s1746 = smul.addr %s1740, 4
      %s1747 = sadd.s32 %s1745, %s1746
      %s1748 = smul.addr %s1747, 2
      %s1749 = scalar_lea.vmem %s3, %s1748
      // Predicated region
      $region33: #{cnn_forward.16} parent=31 // pred_check
        %p1750 = pneg %p128
      $region34: #{cnn_forward.16} parent=31 // pred_check_branch
        %1752 = sbr.rel (%p1750) target = $region36
      $region35: #{cnn_forward.16} parent=31 // pred_region
        %s1753 = smul.u32 4, %s21
      $region36: #{cnn_forward.16} parent=31 // pred_fallthru
        _
    $region32: #{cnn_forward.16} parent=5 // pred_fallthru
      _
    %p1754 = scmp.le.s32.totalorder 2, %s9
    // Predicated region
    $region37: #{cnn_forward.16} parent=5 // pred_check
      %p1755 = pneg %p1754
    $region38: #{cnn_forward.16} parent=5 // pred_check_branch
      %1757 = sbr.rel (%p1755) target = $region40
    $region39: #{cnn_forward.16} parent=5 // pred_region
      %s1758 = ssub.s32 %s9, 2
      // Predicated region
      $region41: #{cnn_forward.16} parent=39 // pred_check
        %p1759 = pneg %p134
      $region42: #{cnn_forward.16} parent=39 // pred_check_branch
        %1761 = sbr.rel (%p1759) target = $region44
      $region43: #{cnn_forward.16} parent=39 // pred_region
        %s1762 = smul.u32 4, %s24
        %p1763 = scmp.lt.s32.totalorder %s23, 1
        %s1764 = scalar_select %p1763, %s23, 1
        %p1765 = scmp.lt.s32.totalorder %s1762, 3
        %s1766 = scalar_select %p1765, %s1762, 3
        %p1767 = scmp.lt.s32.totalorder %s22, 0
        %s1768 = scalar_select %p1767, %s22, 0
        %s1769 = sadd.s32 %s1768, %s1766
        %s1770 = smul.addr %s1764, 4
        %s1771 = sadd.s32 %s1769, %s1770
        %s1772 = smul.addr %s1771, 2
        %s1773 = scalar_lea.vmem %s3, %s1772
      $region44: #{cnn_forward.16} parent=39 // pred_fallthru
        _
    $region40: #{cnn_forward.16} parent=5 // pred_fallthru
      _
  $region6: #{cnn_forward.16} parent=0 // loop_footer
    %s13 = sadd.s32 1, %s9
  $region7: #{cnn_forward.16} parent=0 // loop_footer_branch
    %8 = sbr.rel target = $region3
  $region8: #{cnn_forward.16} parent=0 // loop_exit
    _

</llo_original>
